<compile_context>
chip_gen: v5e
topology: v5e:2x2
jax: 0.10.0
libtpu: 0.0.40
codegen_flags: <defaults>
</compile_context>

<pallas_src>
import functools

import jax
import jax.numpy as jnp
from jax.experimental import pallas as pl
from jax.experimental.pallas import tpu as pltpu

F32 = jnp.float32


def _const_spec(shape):
    """BlockSpec covering the whole array; same (only) block for every grid step."""
    nd = len(shape)
    return pl.BlockSpec(shape, lambda i, _nd=nd: (0,) * _nd)


# ----------------------------- in-kernel helpers -----------------------------
def _ln(x, g, b):
    mu = jnp.mean(x, axis=-1, keepdims=True)
    var = jnp.mean((x - mu) ** 2, axis=-1, keepdims=True)
    return (x - mu) * jax.lax.rsqrt(var + 1e-5) * g + b


def _gelu_exact(x):
    # erf(x/sqrt(2)) via Abramowitz & Stegun 7.1.26 (max abs err ~1.5e-7), built only
    # from ops guaranteed to lower in Mosaic (abs / exp / mul / add / where / div).
    z = x * 0.7071067811865476
    az = jnp.abs(z)
    t = 1.0 / (1.0 + 0.3275911 * az)
    poly = ((((1.061405429 * t - 1.453152027) * t + 1.421413741) * t
             - 0.284496736) * t + 0.254829592) * t
    erf_abs = 1.0 - poly * jnp.exp(-az * az)
    erf_z = jnp.where(z < 0.0, -erf_abs, erf_abs)
    return 0.5 * x * (1.0 + erf_z)


# ----------------------------- fused Seq_Transformer -----------------------------
def _transformer_kernel(
    seq_ref,                                  # (1, B*n, patch)
    emb_w_ref, emb_b_ref, ctok_ref,           # (patch, hid), (1, hid), (1, hid)
    ln1_g_ref, ln1_b_ref,                     # (depth, 1, hid)
    qkv_w_ref,                                # (depth, hid, 3*hid)
    out_w_ref, out_b_ref,                     # (depth, hid, hid), (depth, 1, hid)
    ln2_g_ref, ln2_b_ref,                     # (depth, 1, hid)
    ff1_w_ref, ff1_b_ref,                     # (depth, hid, mlp), (depth, 1, mlp)
    ff2_w_ref, ff2_b_ref,                     # (depth, mlp, hid), (depth, 1, hid)
    o_ref,                                    # (1, B, hid)
    xbuf_ref, abuf_ref,                       # VMEM scratch: (B*(n+1), hid) each
    *, batch, n_patches, heads, depth, scale,
):
    B, n = batch, n_patches
    Np = n + 1
    hid = emb_w_ref.shape[1]
    dh = hid // heads

    # patch embedding (single MXU matmul for the whole sequence batch)
    emb = (jnp.dot(seq_ref[0], emb_w_ref[...], preferred_element_type=jnp.float32)
           + emb_b_ref[...])

    # prepend class token per batch element; residual stream lives in VMEM scratch
    ctok = ctok_ref[...]
    for b in range(B):
        xbuf_ref[b * Np:b * Np + 1, :] = ctok
        xbuf_ref[b * Np + 1:(b + 1) * Np, :] = emb[b * n:(b + 1) * n, :]
    x = xbuf_ref[...]                          # (B*Np, hid)

    for l in range(depth):
        # ---------------- attention (PreNorm + residual) ----------------
        h = _ln(x, ln1_g_ref[l], ln1_b_ref[l])
        qkv = jnp.dot(h, qkv_w_ref[l], preferred_element_type=jnp.float32)  # no bias
        q = qkv[:, 0:hid]
        k = qkv[:, hid:2 * hid]
        v = qkv[:, 2 * hid:3 * hid]
        for b in range(B):
            r0 = b * Np
            for hh in range(heads):
                c0 = hh * dh
                qh = q[r0:r0 + Np, c0:c0 + dh]
                kh = k[r0:r0 + Np, c0:c0 + dh]
                vh = v[r0:r0 + Np, c0:c0 + dh]
                s = jax.lax.dot_general(
                    qh, kh, (((1,), (1,)), ((), ())),
                    preferred_element_type=jnp.float32) * scale
                m = jnp.max(s, axis=-1, keepdims=True)
                e = jnp.exp(s - m)
                p = e * pl.reciprocal(jnp.sum(e, axis=-1, keepdims=True), approx=True)
                abuf_ref[r0:r0 + Np, c0:c0 + dh] = jnp.dot(
                    p, vh, preferred_element_type=jnp.float32)
        attn = (jnp.dot(abuf_ref[...], out_w_ref[l], preferred_element_type=jnp.float32)
                + out_b_ref[l])
        # TODO(synk): nn.Dropout(p=0.1) treated as identity (eval mode).
        x = x + attn

        # ---------------- feed-forward (PreNorm + residual) ----------------
        h2 = _ln(x, ln2_g_ref[l], ln2_b_ref[l])
        f = jnp.dot(h2, ff1_w_ref[l], preferred_element_type=jnp.float32) + ff1_b_ref[l]
        f = _gelu_exact(f)
        f = jnp.dot(f, ff2_w_ref[l], preferred_element_type=jnp.float32) + ff2_b_ref[l]
        x = x + f

    # class tokens -> output
    for b in range(B):
        o_ref[0, b:b + 1, :] = x[b * Np:b * Np + 1, :]


def seq_transformer_pair(st, seq_pair, *, batch, n_patches):
    """seq_pair: (2, B*n_patches, patch)  ->  class-token embeddings (2, B, hid)."""
    depth = st["qkv_w"].shape[0]
    patch, hid = st["emb_w"].shape
    M = batch * n_patches
    Np = n_patches + 1
    weights = [st["emb_w"], st["emb_b"], st["c_token"],
               st["ln1_g"], st["ln1_b"], st["qkv_w"], st["out_w"], st["out_b"],
               st["ln2_g"], st["ln2_b"], st["ff1_w"], st["ff1_b"], st["ff2_w"], st["ff2_b"]]
    kernel = functools.partial(
        _transformer_kernel, batch=batch, n_patches=n_patches,
        heads=st["heads"], depth=depth, scale=st["scale"])
    return pl.pallas_call(
        kernel,
        grid=(2,),
        in_specs=[pl.BlockSpec((1, M, patch), lambda i: (i, 0, 0))]
        + [_const_spec(w.shape) for w in weights],
        out_specs=pl.BlockSpec((1, batch, hid), lambda i: (i, 0, 0)),
        out_shape=jax.ShapeDtypeStruct((2, batch, hid), F32),
        scratch_shapes=[pltpu.VMEM((batch * Np, hid), F32),
                        pltpu.VMEM((batch * Np, hid), F32)],
        compiler_params=pltpu.CompilerParams(dimension_semantics=("parallel",)),
    )(seq_pair, *weights)


# ----------------------------- fused Wk-prediction + NCE -----------------------------
def _nce_kernel(c_ref, wkw_ref, wkb_ref, enc_ref, o_ref, *, timestep, batch):
    c = c_ref[...]                                           # (B, H)
    ii = jax.lax.broadcasted_iota(jnp.int32, (batch, batch), 0)
    jj = jax.lax.broadcasted_iota(jnp.int32, (batch, batch), 1)
    diag = ii == jj
    acc = jnp.zeros((), F32)
    for t in range(timestep):                                # static unroll
        pred_t = (jnp.dot(c, wkw_ref[t], preferred_element_type=jnp.float32)
                  + wkb_ref[t])                              # (B, C)
        total = jax.lax.dot_general(                         # enc @ pred^T -> (B, B)
            enc_ref[t], pred_t, (((1,), (1,)), ((), ())),
            preferred_element_type=jnp.float32)
        m = jnp.max(total, axis=1, keepdims=True)
        lsm = total - (m + jnp.log(jnp.sum(jnp.exp(total - m), axis=1, keepdims=True)))
        acc = acc + jnp.sum(jnp.where(diag, lsm, 0.0))
    o_ref[...] = jnp.reshape(acc, (1, 1))


def nce_loss(c_aug, wk_w, wk_b, enc):
    T, H, C = wk_w.shape
    B = c_aug.shape[0]
    out = pl.pallas_call(
        functools.partial(_nce_kernel, timestep=T, batch=B),
        grid=(1,),
        in_specs=[_const_spec((B, H)), _const_spec((T, H, C)),
                  _const_spec((T, 1, C)), _const_spec((T, B, C))],
        out_specs=_const_spec((1, 1)),
        out_shape=jax.ShapeDtypeStruct((1, 1), F32),
    )(c_aug, wk_w, wk_b, enc)
    return out[0, 0] / (-1.0 * B * T)


# ----------------------------- fused projection head (grid over the 2 inputs) --------
def _proj_head_kernel(x_ref, w1_ref, b1_ref, g_ref, beta_ref, w2_ref, b2_ref, o_ref):
    x = x_ref[0]                                             # (B, H)
    h = jnp.dot(x, w1_ref[...], preferred_element_type=jnp.float32) + b1_ref[...]
    # BatchNorm1d training-mode: per-call batch statistics, biased variance, eps=1e-5
    mu = jnp.mean(h, axis=0, keepdims=True)
    var = jnp.mean((h - mu) ** 2, axis=0, keepdims=True)
    hn = (h - mu) * jax.lax.rsqrt(var + 1e-5) * g_ref[...] + beta_ref[...]
    hn = jnp.maximum(hn, 0.0)                                # ReLU
    o_ref[0] = jnp.dot(hn, w2_ref[...], preferred_element_type=jnp.float32) + b2_ref[...]


def projection_head_pair(c_pair, p):
    two, B, H = c_pair.shape
    C2 = p["w1"].shape[1]
    C4 = p["w2"].shape[1]
    return pl.pallas_call(
        _proj_head_kernel,
        grid=(two,),
        in_specs=[pl.BlockSpec((1, B, H), lambda i: (i, 0, 0)),
                  _const_spec((H, C2)), _const_spec((1, C2)), _const_spec((1, C2)),
                  _const_spec((1, C2)), _const_spec((C2, C4)), _const_spec((1, C4))],
        out_specs=pl.BlockSpec((1, B, C4), lambda i: (i, 0, 0)),
        out_shape=jax.ShapeDtypeStruct((two, B, C4), F32),
        compiler_params=pltpu.CompilerParams(dimension_semantics=("parallel",)),
    )(c_pair, p["w1"], p["b1"], p["gamma"], p["beta"], p["w2"], p["b2"])


# ----------------------------- TC forward -----------------------------
def tc_forward(params, features_source, features_aug, t_samples):
    z_aug = jnp.transpose(features_aug, (0, 2, 1))           # (B, L, C)
    z_source = jnp.transpose(features_source, (0, 2, 1))
    B, _, C = z_aug.shape
    T = params["timestep"]
    n = int(t_samples) + 1

    fwd_aug = z_aug[:, :n, :].reshape(B * n, C)
    fwd_src = z_source[:, :n, :].reshape(B * n, C)
    seq_pair = jnp.stack([fwd_aug, fwd_src], axis=0)         # (2, B*n, C): 0=aug, 1=source

    enc = jnp.stack([z_source[:, t_samples + i, :] for i in range(1, T + 1)], axis=0)  # (T,B,C)

    c_pair = seq_transformer_pair(params["st"], seq_pair, batch=B, n_patches=n)  # (2, B, hid)
    c_aug = c_pair[0]

    nce = nce_loss(c_aug, params["wk_w"], params["wk_b"], enc)
    proj = projection_head_pair(c_pair, params["proj"])      # [0]=proj(c_aug), [1]=proj(c_source)
    return nce, proj[1], proj[0]


# ----------------------------- deterministic parameter init -----------------------------
def init_params(key, *, num_channels, hidden_dim, timestep, depth, heads, mlp_dim):
    keys = jax.random.split(key, 32)
    it = iter(keys)

    def w(shape, scale=0.1):
        return jax.random.normal(next(it), shape, F32) * scale

    st = {
        "emb_w": w((num_channels, hidden_dim)),
        "emb_b": jnp.zeros((1, hidden_dim), F32),
        "c_token": w((1, hidden_dim), scale=1.0),
        "heads": heads,
        "scale": float(hidden_dim) ** -0.5,
        "ln1_g": jnp.ones((depth, 1, hidden_dim), F32),
        "ln1_b": jnp.zeros((depth, 1, hidden_dim), F32),
        "qkv_w": w((depth, hidden_dim, 3 * hidden_dim)),
        "out_w": w((depth, hidden_dim, hidden_dim)),
        "out_b": jnp.zeros((depth, 1, hidden_dim), F32),
        "ln2_g": jnp.ones((depth, 1, hidden_dim), F32),
        "ln2_b": jnp.zeros((depth, 1, hidden_dim), F32),
        "ff1_w": w((depth, hidden_dim, mlp_dim)),
        "ff1_b": jnp.zeros((depth, 1, mlp_dim), F32),
        "ff2_w": w((depth, mlp_dim, hidden_dim)),
        "ff2_b": jnp.zeros((depth, 1, hidden_dim), F32),
    }
    params = {
        "timestep": timestep,
        "st": st,
        "wk_w": w((timestep, hidden_dim, num_channels)),
        "wk_b": w((timestep, 1, num_channels), scale=0.01),
        "proj": {
            "w1": w((hidden_dim, num_channels // 2)),
            "b1": jnp.zeros((1, num_channels // 2), F32),
            "gamma": jnp.ones((1, num_channels // 2), F32),
            "beta": jnp.zeros((1, num_channels // 2), F32),
            "w2": w((num_channels // 2, num_channels // 4)),
            "b2": jnp.zeros((1, num_channels // 4), F32),
        },
    }
    return params


if __name__ == "__main__":
    # Small config consistent with the module:
    #   batch=2, final_out_channels=16, feature length=16,
    #   TC.hidden_dim=32, TC.timesteps=4, transformer depth=4, heads=4, mlp_dim=64.
    B, C, L = 2, 16, 16
    HID, T = 32, 4

    key = jax.random.PRNGKey(0)
    k_src, k_aug, k_par, k_t = jax.random.split(key, 4)

    features_source = jax.random.normal(k_src, (B, C, L), F32)
    features_aug = jax.random.normal(k_aug, (B, C, L), F32)
    params = init_params(
        k_par, num_channels=C, hidden_dim=HID, timestep=T, depth=4, heads=4, mlp_dim=64
    )

    # seq_len exactly as the torch code computes it: shape[2] AFTER transpose(1, 2).
    seq_len = jnp.transpose(features_aug, (0, 2, 1)).shape[2]
    t_samples = int(jax.random.randint(k_t, (), 0, seq_len - (T + 2)))

    nce, proj_source, proj_aug = tc_forward(params, features_source, features_aug, t_samples)
    jax.block_until_ready((nce, proj_source, proj_aug))
    print("KERNEL_OK")
</pallas_src>

<mosaic_0001>
module attributes {stable_mosaic.version = 11 : i64} {
  func.func @_transformer_kernel(%arg0: i32, %arg1: memref<1x16x16xf32, #tpu.memory_space<vmem>>, %arg2: memref<16x32xf32, #tpu.memory_space<vmem>>, %arg3: memref<1x32xf32, #tpu.memory_space<vmem>>, %arg4: memref<1x32xf32, #tpu.memory_space<vmem>>, %arg5: memref<4x1x32xf32, #tpu.memory_space<vmem>>, %arg6: memref<4x1x32xf32, #tpu.memory_space<vmem>>, %arg7: memref<4x32x96xf32, #tpu.memory_space<vmem>>, %arg8: memref<4x32x32xf32, #tpu.memory_space<vmem>>, %arg9: memref<4x1x32xf32, #tpu.memory_space<vmem>>, %arg10: memref<4x1x32xf32, #tpu.memory_space<vmem>>, %arg11: memref<4x1x32xf32, #tpu.memory_space<vmem>>, %arg12: memref<4x32x64xf32, #tpu.memory_space<vmem>>, %arg13: memref<4x1x64xf32, #tpu.memory_space<vmem>>, %arg14: memref<4x64x32xf32, #tpu.memory_space<vmem>>, %arg15: memref<4x1x32xf32, #tpu.memory_space<vmem>>, %arg16: memref<1x2x32xf32, #tpu.memory_space<vmem>>, %arg17: memref<18x32xf32, #tpu.memory_space<vmem>>, %arg18: memref<18x32xf32, #tpu.memory_space<vmem>>) attributes {dimension_semantics = [#tpu.dimension_semantics<parallel>], iteration_bounds = array<i64: 2>, scalar_prefetch = 0 : i64, scratch_operands = 2 : i64, tpu.core_type = #tpu.core_type<tc>, window_params = [{transform_indices = @transform_0, window_bounds = array<i64: 1, 16, 16>}, {pipeline_mode = #tpu.pipeline_mode<synchronous>, transform_indices = @transform_1, window_bounds = array<i64: 16, 32>}, {pipeline_mode = #tpu.pipeline_mode<synchronous>, transform_indices = @transform_2, window_bounds = array<i64: 1, 32>}, {pipeline_mode = #tpu.pipeline_mode<synchronous>, transform_indices = @transform_3, window_bounds = array<i64: 1, 32>}, {pipeline_mode = #tpu.pipeline_mode<synchronous>, transform_indices = @transform_4, window_bounds = array<i64: 4, 1, 32>}, {pipeline_mode = #tpu.pipeline_mode<synchronous>, transform_indices = @transform_5, window_bounds = array<i64: 4, 1, 32>}, {pipeline_mode = #tpu.pipeline_mode<synchronous>, transform_indices = @transform_6, window_bounds = array<i64: 4, 32, 96>}, {pipeline_mode = #tpu.pipeline_mode<synchronous>, transform_indices = @transform_7, window_bounds = array<i64: 4, 32, 32>}, {pipeline_mode = #tpu.pipeline_mode<synchronous>, transform_indices = @transform_8, window_bounds = array<i64: 4, 1, 32>}, {pipeline_mode = #tpu.pipeline_mode<synchronous>, transform_indices = @transform_9, window_bounds = array<i64: 4, 1, 32>}, {pipeline_mode = #tpu.pipeline_mode<synchronous>, transform_indices = @transform_10, window_bounds = array<i64: 4, 1, 32>}, {pipeline_mode = #tpu.pipeline_mode<synchronous>, transform_indices = @transform_11, window_bounds = array<i64: 4, 32, 64>}, {pipeline_mode = #tpu.pipeline_mode<synchronous>, transform_indices = @transform_12, window_bounds = array<i64: 4, 1, 64>}, {pipeline_mode = #tpu.pipeline_mode<synchronous>, transform_indices = @transform_13, window_bounds = array<i64: 4, 64, 32>}, {pipeline_mode = #tpu.pipeline_mode<synchronous>, transform_indices = @transform_14, window_bounds = array<i64: 4, 1, 32>}, {transform_indices = @transform_15, window_bounds = array<i64: 1, 2, 32>}]} {
    %c0 = arith.constant 0 : index
    %c0_0 = arith.constant 0 : index
    %c0_1 = arith.constant 0 : index
    %0 = vector.load %arg1[%c0, %c0_0, %c0_1] : memref<1x16x16xf32, #tpu.memory_space<vmem>>, vector<1x16x16xf32>
    %1 = vector.shape_cast %0 : vector<1x16x16xf32> to vector<16x16xf32>
    %c0_2 = arith.constant 0 : index
    %c0_3 = arith.constant 0 : index
    %2 = vector.load %arg2[%c0_2, %c0_3] : memref<16x32xf32, #tpu.memory_space<vmem>>, vector<16x32xf32>
    %cst = arith.constant dense<0.000000e+00> : vector<16x32xf32>
    %3 = tpu.matmul %1, %2, %cst {dimension_numbers = #tpu.dot_dimension_numbers<[1], [0], [0], [1], [0, 0, 1, 1], [], []>} : vector<16x16xf32>, vector<16x32xf32>, vector<16x32xf32> -> vector<16x32xf32>
    %c0_4 = arith.constant 0 : index
    %c0_5 = arith.constant 0 : index
    %4 = vector.load %arg3[%c0_4, %c0_5] : memref<1x32xf32, #tpu.memory_space<vmem>>, vector<1x32xf32>
    %5 = vector.broadcast %4 : vector<1x32xf32> to vector<16x32xf32>
    %6 = arith.addf %3, %5 : vector<16x32xf32>
    %c0_6 = arith.constant 0 : index
    %c0_7 = arith.constant 0 : index
    %7 = vector.load %arg4[%c0_6, %c0_7] : memref<1x32xf32, #tpu.memory_space<vmem>>, vector<1x32xf32>
    %c0_8 = arith.constant 0 : index
    %c0_9 = arith.constant 0 : index
    %8 = vector.load %arg17[%c0_8, %c0_9] : memref<18x32xf32, #tpu.memory_space<vmem>>, vector<1x32xf32>
    tpu.vector_store %arg17[%c0_8, %c0_9], %7 {strides = array<i32>} : memref<18x32xf32, #tpu.memory_space<vmem>>, vector<1x32xf32>,
    %9 = vector.extract_strided_slice %6 {offsets = [0, 0], sizes = [8, 32], strides = [1, 1]} : vector<16x32xf32> to vector<8x32xf32>
    %c1 = arith.constant 1 : index
    %c0_10 = arith.constant 0 : index
    %10 = vector.load %arg17[%c1, %c0_10] : memref<18x32xf32, #tpu.memory_space<vmem>>, vector<8x32xf32>
    tpu.vector_store %arg17[%c1, %c0_10], %9 {strides = array<i32>} : memref<18x32xf32, #tpu.memory_space<vmem>>, vector<8x32xf32>,
    %c9 = arith.constant 9 : index
    %c0_11 = arith.constant 0 : index
    %11 = vector.load %arg17[%c9, %c0_11] : memref<18x32xf32, #tpu.memory_space<vmem>>, vector<1x32xf32>
    tpu.vector_store %arg17[%c9, %c0_11], %7 {strides = array<i32>} : memref<18x32xf32, #tpu.memory_space<vmem>>, vector<1x32xf32>,
    %12 = vector.extract_strided_slice %6 {offsets = [8, 0], sizes = [8, 32], strides = [1, 1]} : vector<16x32xf32> to vector<8x32xf32>
    %c10 = arith.constant 10 : index
    %c0_12 = arith.constant 0 : index
    %13 = vector.load %arg17[%c10, %c0_12] : memref<18x32xf32, #tpu.memory_space<vmem>>, vector<8x32xf32>
    tpu.vector_store %arg17[%c10, %c0_12], %12 {strides = array<i32>} : memref<18x32xf32, #tpu.memory_space<vmem>>, vector<8x32xf32>,
    %c0_13 = arith.constant 0 : index
    %c0_14 = arith.constant 0 : index
    %14 = vector.load %arg17[%c0_13, %c0_14] : memref<18x32xf32, #tpu.memory_space<vmem>>, vector<18x32xf32>
    %c0_15 = arith.constant 0 : index
    %c0_16 = arith.constant 0 : index
    %c0_17 = arith.constant 0 : index
    %15 = vector.load %arg5[%c0_15, %c0_16, %c0_17] : memref<4x1x32xf32, #tpu.memory_space<vmem>>, vector<1x1x32xf32>
    %16 = vector.shape_cast %15 : vector<1x1x32xf32> to vector<1x32xf32>
    %c0_18 = arith.constant 0 : index
    %c0_19 = arith.constant 0 : index
    %c0_20 = arith.constant 0 : index
    %17 = vector.load %arg6[%c0_18, %c0_19, %c0_20] : memref<4x1x32xf32, #tpu.memory_space<vmem>>, vector<1x1x32xf32>
    %18 = vector.shape_cast %17 : vector<1x1x32xf32> to vector<1x32xf32>
    %cst_21 = arith.constant dense<0.000000e+00> : vector<18xf32>
    %19 = vector.multi_reduction <add>, %14, %cst_21 [1] : vector<18x32xf32> to vector<18xf32>
    %20 = vector.shape_cast %19 : vector<18xf32> to vector<18x1xf32>
    %cst_22 = arith.constant 3.200000e+01 : f32
    %21 = vector.broadcast %cst_22 : f32 to vector<18x1xf32>
    %22 = arith.divf %20, %21 : vector<18x1xf32>
    %23 = vector.broadcast %22 : vector<18x1xf32> to vector<18x32xf32>
    %24 = arith.subf %14, %23 : vector<18x32xf32>
    %25 = arith.mulf %24, %24 : vector<18x32xf32>
    %cst_23 = arith.constant dense<0.000000e+00> : vector<18xf32>
    %26 = vector.multi_reduction <add>, %25, %cst_23 [1] : vector<18x32xf32> to vector<18xf32>
    %27 = vector.shape_cast %26 : vector<18xf32> to vector<18x1xf32>
    %cst_24 = arith.constant 3.200000e+01 : f32
    %28 = vector.broadcast %cst_24 : f32 to vector<18x1xf32>
    %29 = arith.divf %27, %28 : vector<18x1xf32>
    %30 = vector.broadcast %22 : vector<18x1xf32> to vector<18x32xf32>
    %31 = arith.subf %14, %30 : vector<18x32xf32>
    %cst_25 = arith.constant 9.99999974E-6 : f32
    %32 = vector.broadcast %cst_25 : f32 to vector<18x1xf32>
    %33 = arith.addf %29, %32 : vector<18x1xf32>
    %34 = math.rsqrt %33 : vector<18x1xf32>
    %35 = vector.broadcast %34 : vector<18x1xf32> to vector<18x32xf32>
    %36 = arith.mulf %31, %35 : vector<18x32xf32>
    %37 = vector.broadcast %16 : vector<1x32xf32> to vector<18x32xf32>
    %38 = arith.mulf %36, %37 : vector<18x32xf32>
    %39 = vector.broadcast %18 : vector<1x32xf32> to vector<18x32xf32>
    %40 = arith.addf %38, %39 : vector<18x32xf32>
    %c0_26 = arith.constant 0 : index
    %c0_27 = arith.constant 0 : index
    %c0_28 = arith.constant 0 : index
    %41 = vector.load %arg7[%c0_26, %c0_27, %c0_28] : memref<4x32x96xf32, #tpu.memory_space<vmem>>, vector<1x32x96xf32>
    %42 = vector.shape_cast %41 : vector<1x32x96xf32> to vector<32x96xf32>
    %cst_29 = arith.constant dense<0.000000e+00> : vector<18x96xf32>
    %43 = tpu.matmul %40, %42, %cst_29 {dimension_numbers = #tpu.dot_dimension_numbers<[1], [0], [0], [1], [0, 0, 1, 1], [], []>} : vector<18x32xf32>, vector<32x96xf32>, vector<18x96xf32> -> vector<18x96xf32>
    %44 = vector.extract_strided_slice %43 {offsets = [0, 0], sizes = [18, 32], strides = [1, 1]} : vector<18x96xf32> to vector<18x32xf32>
    %45 = vector.extract_strided_slice %43 {offsets = [0, 32], sizes = [18, 32], strides = [1, 1]} : vector<18x96xf32> to vector<18x32xf32>
    %46 = vector.extract_strided_slice %43 {offsets = [0, 64], sizes = [18, 32], strides = [1, 1]} : vector<18x96xf32> to vector<18x32xf32>
    %47 = vector.extract_strided_slice %44 {offsets = [0, 0], sizes = [9, 8], strides = [1, 1]} : vector<18x32xf32> to vector<9x8xf32>
    %48 = vector.extract_strided_slice %45 {offsets = [0, 0], sizes = [9, 8], strides = [1, 1]} : vector<18x32xf32> to vector<9x8xf32>
    %49 = vector.extract_strided_slice %46 {offsets = [0, 0], sizes = [9, 8], strides = [1, 1]} : vector<18x32xf32> to vector<9x8xf32>
    %cst_30 = arith.constant dense<0.000000e+00> : vector<9x9xf32>
    %50 = tpu.matmul %47, %48, %cst_30 {dimension_numbers = #tpu.dot_dimension_numbers<[1], [1], [0], [0], [0, 0, 1, 0], [], []>} : vector<9x8xf32>, vector<9x8xf32>, vector<9x9xf32> -> vector<9x9xf32>
    %cst_31 = arith.constant 0.176776692 : f32
    %51 = vector.broadcast %cst_31 : f32 to vector<9x9xf32>
    %52 = arith.mulf %50, %51 : vector<9x9xf32>
    %cst_32 = arith.constant dense<0xFF800000> : vector<9xf32>
    %53 = vector.multi_reduction <maximumf>, %52, %cst_32 [1] : vector<9x9xf32> to vector<9xf32>
    %54 = vector.shape_cast %53 : vector<9xf32> to vector<9x1xf32>
    %55 = vector.broadcast %54 : vector<9x1xf32> to vector<9x9xf32>
    %56 = arith.subf %52, %55 : vector<9x9xf32>
    %57 = math.exp %56 : vector<9x9xf32>
    %cst_33 = arith.constant dense<0.000000e+00> : vector<9xf32>
    %58 = vector.multi_reduction <add>, %57, %cst_33 [1] : vector<9x9xf32> to vector<9xf32>
    %59 = vector.shape_cast %58 : vector<9xf32> to vector<9x1xf32>
    %60 = tpu.reciprocal %59 {approx = true} : vector<9x1xf32> -> vector<9x1xf32>
    %61 = vector.broadcast %60 : vector<9x1xf32> to vector<9x9xf32>
    %62 = arith.mulf %57, %61 : vector<9x9xf32>
    %cst_34 = arith.constant dense<0.000000e+00> : vector<9x8xf32>
    %63 = tpu.matmul %62, %49, %cst_34 {dimension_numbers = #tpu.dot_dimension_numbers<[1], [0], [0], [1], [0, 0, 1, 1], [], []>} : vector<9x9xf32>, vector<9x8xf32>, vector<9x8xf32> -> vector<9x8xf32>
    %c0_35 = arith.constant 0 : index
    %c0_36 = arith.constant 0 : index
    %64 = vector.load %arg18[%c0_35, %c0_36] : memref<18x32xf32, #tpu.memory_space<vmem>>, vector<9x8xf32>
    tpu.vector_store %arg18[%c0_35, %c0_36], %63 {strides = array<i32>} : memref<18x32xf32, #tpu.memory_space<vmem>>, vector<9x8xf32>,
    %65 = vector.extract_strided_slice %44 {offsets = [0, 8], sizes = [9, 8], strides = [1, 1]} : vector<18x32xf32> to vector<9x8xf32>
    %66 = vector.extract_strided_slice %45 {offsets = [0, 8], sizes = [9, 8], strides = [1, 1]} : vector<18x32xf32> to vector<9x8xf32>
    %67 = vector.extract_strided_slice %46 {offsets = [0, 8], sizes = [9, 8], strides = [1, 1]} : vector<18x32xf32> to vector<9x8xf32>
    %cst_37 = arith.constant dense<0.000000e+00> : vector<9x9xf32>
    %68 = tpu.matmul %65, %66, %cst_37 {dimension_numbers = #tpu.dot_dimension_numbers<[1], [1], [0], [0], [0, 0, 1, 0], [], []>} : vector<9x8xf32>, vector<9x8xf32>, vector<9x9xf32> -> vector<9x9xf32>
    %cst_38 = arith.constant 0.176776692 : f32
    %69 = vector.broadcast %cst_38 : f32 to vector<9x9xf32>
    %70 = arith.mulf %68, %69 : vector<9x9xf32>
    %cst_39 = arith.constant dense<0xFF800000> : vector<9xf32>
    %71 = vector.multi_reduction <maximumf>, %70, %cst_39 [1] : vector<9x9xf32> to vector<9xf32>
    %72 = vector.shape_cast %71 : vector<9xf32> to vector<9x1xf32>
    %73 = vector.broadcast %72 : vector<9x1xf32> to vector<9x9xf32>
    %74 = arith.subf %70, %73 : vector<9x9xf32>
    %75 = math.exp %74 : vector<9x9xf32>
    %cst_40 = arith.constant dense<0.000000e+00> : vector<9xf32>
    %76 = vector.multi_reduction <add>, %75, %cst_40 [1] : vector<9x9xf32> to vector<9xf32>
    %77 = vector.shape_cast %76 : vector<9xf32> to vector<9x1xf32>
    %78 = tpu.reciprocal %77 {approx = true} : vector<9x1xf32> -> vector<9x1xf32>
    %79 = vector.broadcast %78 : vector<9x1xf32> to vector<9x9xf32>
    %80 = arith.mulf %75, %79 : vector<9x9xf32>
    %cst_41 = arith.constant dense<0.000000e+00> : vector<9x8xf32>
    %81 = tpu.matmul %80, %67, %cst_41 {dimension_numbers = #tpu.dot_dimension_numbers<[1], [0], [0], [1], [0, 0, 1, 1], [], []>} : vector<9x9xf32>, vector<9x8xf32>, vector<9x8xf32> -> vector<9x8xf32>
    %c0_42 = arith.constant 0 : index
    %c8 = arith.constant 8 : index
    %82 = vector.load %arg18[%c0_42, %c8] : memref<18x32xf32, #tpu.memory_space<vmem>>, vector<9x8xf32>
    tpu.vector_store %arg18[%c0_42, %c8], %81 {strides = array<i32>} : memref<18x32xf32, #tpu.memory_space<vmem>>, vector<9x8xf32>,
    %83 = vector.extract_strided_slice %44 {offsets = [0, 16], sizes = [9, 8], strides = [1, 1]} : vector<18x32xf32> to vector<9x8xf32>
    %84 = vector.extract_strided_slice %45 {offsets = [0, 16], sizes = [9, 8], strides = [1, 1]} : vector<18x32xf32> to vector<9x8xf32>
    %85 = vector.extract_strided_slice %46 {offsets = [0, 16], sizes = [9, 8], strides = [1, 1]} : vector<18x32xf32> to vector<9x8xf32>
    %cst_43 = arith.constant dense<0.000000e+00> : vector<9x9xf32>
    %86 = tpu.matmul %83, %84, %cst_43 {dimension_numbers = #tpu.dot_dimension_numbers<[1], [1], [0], [0], [0, 0, 1, 0], [], []>} : vector<9x8xf32>, vector<9x8xf32>, vector<9x9xf32> -> vector<9x9xf32>
    %cst_44 = arith.constant 0.176776692 : f32
    %87 = vector.broadcast %cst_44 : f32 to vector<9x9xf32>
    %88 = arith.mulf %86, %87 : vector<9x9xf32>
    %cst_45 = arith.constant dense<0xFF800000> : vector<9xf32>
    %89 = vector.multi_reduction <maximumf>, %88, %cst_45 [1] : vector<9x9xf32> to vector<9xf32>
    %90 = vector.shape_cast %89 : vector<9xf32> to vector<9x1xf32>
    %91 = vector.broadcast %90 : vector<9x1xf32> to vector<9x9xf32>
    %92 = arith.subf %88, %91 : vector<9x9xf32>
    %93 = math.exp %92 : vector<9x9xf32>
    %cst_46 = arith.constant dense<0.000000e+00> : vector<9xf32>
    %94 = vector.multi_reduction <add>, %93, %cst_46 [1] : vector<9x9xf32> to vector<9xf32>
    %95 = vector.shape_cast %94 : vector<9xf32> to vector<9x1xf32>
    %96 = tpu.reciprocal %95 {approx = true} : vector<9x1xf32> -> vector<9x1xf32>
    %97 = vector.broadcast %96 : vector<9x1xf32> to vector<9x9xf32>
    %98 = arith.mulf %93, %97 : vector<9x9xf32>
    %cst_47 = arith.constant dense<0.000000e+00> : vector<9x8xf32>
    %99 = tpu.matmul %98, %85, %cst_47 {dimension_numbers = #tpu.dot_dimension_numbers<[1], [0], [0], [1], [0, 0, 1, 1], [], []>} : vector<9x9xf32>, vector<9x8xf32>, vector<9x8xf32> -> vector<9x8xf32>
    %c0_48 = arith.constant 0 : index
    %c16 = arith.constant 16 : index
    %100 = vector.load %arg18[%c0_48, %c16] : memref<18x32xf32, #tpu.memory_space<vmem>>, vector<9x8xf32>
    tpu.vector_store %arg18[%c0_48, %c16], %99 {strides = array<i32>} : memref<18x32xf32, #tpu.memory_space<vmem>>, vector<9x8xf32>,
    %101 = vector.extract_strided_slice %44 {offsets = [0, 24], sizes = [9, 8], strides = [1, 1]} : vector<18x32xf32> to vector<9x8xf32>
    %102 = vector.extract_strided_slice %45 {offsets = [0, 24], sizes = [9, 8], strides = [1, 1]} : vector<18x32xf32> to vector<9x8xf32>
    %103 = vector.extract_strided_slice %46 {offsets = [0, 24], sizes = [9, 8], strides = [1, 1]} : vector<18x32xf32> to vector<9x8xf32>
    %cst_49 = arith.constant dense<0.000000e+00> : vector<9x9xf32>
    %104 = tpu.matmul %101, %102, %cst_49 {dimension_numbers = #tpu.dot_dimension_numbers<[1], [1], [0], [0], [0, 0, 1, 0], [], []>} : vector<9x8xf32>, vector<9x8xf32>, vector<9x9xf32> -> vector<9x9xf32>
    %cst_50 = arith.constant 0.176776692 : f32
    %105 = vector.broadcast %cst_50 : f32 to vector<9x9xf32>
    %106 = arith.mulf %104, %105 : vector<9x9xf32>
    %cst_51 = arith.constant dense<0xFF800000> : vector<9xf32>
    %107 = vector.multi_reduction <maximumf>, %106, %cst_51 [1] : vector<9x9xf32> to vector<9xf32>
    %108 = vector.shape_cast %107 : vector<9xf32> to vector<9x1xf32>
    %109 = vector.broadcast %108 : vector<9x1xf32> to vector<9x9xf32>
    %110 = arith.subf %106, %109 : vector<9x9xf32>
    %111 = math.exp %110 : vector<9x9xf32>
    %cst_52 = arith.constant dense<0.000000e+00> : vector<9xf32>
    %112 = vector.multi_reduction <add>, %111, %cst_52 [1] : vector<9x9xf32> to vector<9xf32>
    %113 = vector.shape_cast %112 : vector<9xf32> to vector<9x1xf32>
    %114 = tpu.reciprocal %113 {approx = true} : vector<9x1xf32> -> vector<9x1xf32>
    %115 = vector.broadcast %114 : vector<9x1xf32> to vector<9x9xf32>
    %116 = arith.mulf %111, %115 : vector<9x9xf32>
    %cst_53 = arith.constant dense<0.000000e+00> : vector<9x8xf32>
    %117 = tpu.matmul %116, %103, %cst_53 {dimension_numbers = #tpu.dot_dimension_numbers<[1], [0], [0], [1], [0, 0, 1, 1], [], []>} : vector<9x9xf32>, vector<9x8xf32>, vector<9x8xf32> -> vector<9x8xf32>
    %c0_54 = arith.constant 0 : index
    %c24 = arith.constant 24 : index
    %118 = vector.load %arg18[%c0_54, %c24] : memref<18x32xf32, #tpu.memory_space<vmem>>, vector<9x8xf32>
    tpu.vector_store %arg18[%c0_54, %c24], %117 {strides = array<i32>} : memref<18x32xf32, #tpu.memory_space<vmem>>, vector<9x8xf32>,
    %119 = vector.extract_strided_slice %44 {offsets = [9, 0], sizes = [9, 8], strides = [1, 1]} : vector<18x32xf32> to vector<9x8xf32>
    %120 = vector.extract_strided_slice %45 {offsets = [9, 0], sizes = [9, 8], strides = [1, 1]} : vector<18x32xf32> to vector<9x8xf32>
    %121 = vector.extract_strided_slice %46 {offsets = [9, 0], sizes = [9, 8], strides = [1, 1]} : vector<18x32xf32> to vector<9x8xf32>
    %cst_55 = arith.constant dense<0.000000e+00> : vector<9x9xf32>
    %122 = tpu.matmul %119, %120, %cst_55 {dimension_numbers = #tpu.dot_dimension_numbers<[1], [1], [0], [0], [0, 0, 1, 0], [], []>} : vector<9x8xf32>, vector<9x8xf32>, vector<9x9xf32> -> vector<9x9xf32>
    %cst_56 = arith.constant 0.176776692 : f32
    %123 = vector.broadcast %cst_56 : f32 to vector<9x9xf32>
    %124 = arith.mulf %122, %123 : vector<9x9xf32>
    %cst_57 = arith.constant dense<0xFF800000> : vector<9xf32>
    %125 = vector.multi_reduction <maximumf>, %124, %cst_57 [1] : vector<9x9xf32> to vector<9xf32>
    %126 = vector.shape_cast %125 : vector<9xf32> to vector<9x1xf32>
    %127 = vector.broadcast %126 : vector<9x1xf32> to vector<9x9xf32>
    %128 = arith.subf %124, %127 : vector<9x9xf32>
    %129 = math.exp %128 : vector<9x9xf32>
    %cst_58 = arith.constant dense<0.000000e+00> : vector<9xf32>
    %130 = vector.multi_reduction <add>, %129, %cst_58 [1] : vector<9x9xf32> to vector<9xf32>
    %131 = vector.shape_cast %130 : vector<9xf32> to vector<9x1xf32>
    %132 = tpu.reciprocal %131 {approx = true} : vector<9x1xf32> -> vector<9x1xf32>
    %133 = vector.broadcast %132 : vector<9x1xf32> to vector<9x9xf32>
    %134 = arith.mulf %129, %133 : vector<9x9xf32>
    %cst_59 = arith.constant dense<0.000000e+00> : vector<9x8xf32>
    %135 = tpu.matmul %134, %121, %cst_59 {dimension_numbers = #tpu.dot_dimension_numbers<[1], [0], [0], [1], [0, 0, 1, 1], [], []>} : vector<9x9xf32>, vector<9x8xf32>, vector<9x8xf32> -> vector<9x8xf32>
    %c9_60 = arith.constant 9 : index
    %c0_61 = arith.constant 0 : index
    %136 = vector.load %arg18[%c9_60, %c0_61] : memref<18x32xf32, #tpu.memory_space<vmem>>, vector<9x8xf32>
    tpu.vector_store %arg18[%c9_60, %c0_61], %135 {strides = array<i32>} : memref<18x32xf32, #tpu.memory_space<vmem>>, vector<9x8xf32>,
    %137 = vector.extract_strided_slice %44 {offsets = [9, 8], sizes = [9, 8], strides = [1, 1]} : vector<18x32xf32> to vector<9x8xf32>
    %138 = vector.extract_strided_slice %45 {offsets = [9, 8], sizes = [9, 8], strides = [1, 1]} : vector<18x32xf32> to vector<9x8xf32>
    %139 = vector.extract_strided_slice %46 {offsets = [9, 8], sizes = [9, 8], strides = [1, 1]} : vector<18x32xf32> to vector<9x8xf32>
    %cst_62 = arith.constant dense<0.000000e+00> : vector<9x9xf32>
    %140 = tpu.matmul %137, %138, %cst_62 {dimension_numbers = #tpu.dot_dimension_numbers<[1], [1], [0], [0], [0, 0, 1, 0], [], []>} : vector<9x8xf32>, vector<9x8xf32>, vector<9x9xf32> -> vector<9x9xf32>
    %cst_63 = arith.constant 0.176776692 : f32
    %141 = vector.broadcast %cst_63 : f32 to vector<9x9xf32>
    %142 = arith.mulf %140, %141 : vector<9x9xf32>
    %cst_64 = arith.constant dense<0xFF800000> : vector<9xf32>
    %143 = vector.multi_reduction <maximumf>, %142, %cst_64 [1] : vector<9x9xf32> to vector<9xf32>
    %144 = vector.shape_cast %143 : vector<9xf32> to vector<9x1xf32>
    %145 = vector.broadcast %144 : vector<9x1xf32> to vector<9x9xf32>
    %146 = arith.subf %142, %145 : vector<9x9xf32>
    %147 = math.exp %146 : vector<9x9xf32>
    %cst_65 = arith.constant dense<0.000000e+00> : vector<9xf32>
    %148 = vector.multi_reduction <add>, %147, %cst_65 [1] : vector<9x9xf32> to vector<9xf32>
    %149 = vector.shape_cast %148 : vector<9xf32> to vector<9x1xf32>
    %150 = tpu.reciprocal %149 {approx = true} : vector<9x1xf32> -> vector<9x1xf32>
    %151 = vector.broadcast %150 : vector<9x1xf32> to vector<9x9xf32>
    %152 = arith.mulf %147, %151 : vector<9x9xf32>
    %cst_66 = arith.constant dense<0.000000e+00> : vector<9x8xf32>
    %153 = tpu.matmul %152, %139, %cst_66 {dimension_numbers = #tpu.dot_dimension_numbers<[1], [0], [0], [1], [0, 0, 1, 1], [], []>} : vector<9x9xf32>, vector<9x8xf32>, vector<9x8xf32> -> vector<9x8xf32>
    %c9_67 = arith.constant 9 : index
    %c8_68 = arith.constant 8 : index
    %154 = vector.load %arg18[%c9_67, %c8_68] : memref<18x32xf32, #tpu.memory_space<vmem>>, vector<9x8xf32>
    tpu.vector_store %arg18[%c9_67, %c8_68], %153 {strides = array<i32>} : memref<18x32xf32, #tpu.memory_space<vmem>>, vector<9x8xf32>,
    %155 = vector.extract_strided_slice %44 {offsets = [9, 16], sizes = [9, 8], strides = [1, 1]} : vector<18x32xf32> to vector<9x8xf32>
    %156 = vector.extract_strided_slice %45 {offsets = [9, 16], sizes = [9, 8], strides = [1, 1]} : vector<18x32xf32> to vector<9x8xf32>
    %157 = vector.extract_strided_slice %46 {offsets = [9, 16], sizes = [9, 8], strides = [1, 1]} : vector<18x32xf32> to vector<9x8xf32>
    %cst_69 = arith.constant dense<0.000000e+00> : vector<9x9xf32>
    %158 = tpu.matmul %155, %156, %cst_69 {dimension_numbers = #tpu.dot_dimension_numbers<[1], [1], [0], [0], [0, 0, 1, 0], [], []>} : vector<9x8xf32>, vector<9x8xf32>, vector<9x9xf32> -> vector<9x9xf32>
    %cst_70 = arith.constant 0.176776692 : f32
    %159 = vector.broadcast %cst_70 : f32 to vector<9x9xf32>
    %160 = arith.mulf %158, %159 : vector<9x9xf32>
    %cst_71 = arith.constant dense<0xFF800000> : vector<9xf32>
    %161 = vector.multi_reduction <maximumf>, %160, %cst_71 [1] : vector<9x9xf32> to vector<9xf32>
    %162 = vector.shape_cast %161 : vector<9xf32> to vector<9x1xf32>
    %163 = vector.broadcast %162 : vector<9x1xf32> to vector<9x9xf32>
    %164 = arith.subf %160, %163 : vector<9x9xf32>
    %165 = math.exp %164 : vector<9x9xf32>
    %cst_72 = arith.constant dense<0.000000e+00> : vector<9xf32>
    %166 = vector.multi_reduction <add>, %165, %cst_72 [1] : vector<9x9xf32> to vector<9xf32>
    %167 = vector.shape_cast %166 : vector<9xf32> to vector<9x1xf32>
    %168 = tpu.reciprocal %167 {approx = true} : vector<9x1xf32> -> vector<9x1xf32>
    %169 = vector.broadcast %168 : vector<9x1xf32> to vector<9x9xf32>
    %170 = arith.mulf %165, %169 : vector<9x9xf32>
    %cst_73 = arith.constant dense<0.000000e+00> : vector<9x8xf32>
    %171 = tpu.matmul %170, %157, %cst_73 {dimension_numbers = #tpu.dot_dimension_numbers<[1], [0], [0], [1], [0, 0, 1, 1], [], []>} : vector<9x9xf32>, vector<9x8xf32>, vector<9x8xf32> -> vector<9x8xf32>
    %c9_74 = arith.constant 9 : index
    %c16_75 = arith.constant 16 : index
    %172 = vector.load %arg18[%c9_74, %c16_75] : memref<18x32xf32, #tpu.memory_space<vmem>>, vector<9x8xf32>
    tpu.vector_store %arg18[%c9_74, %c16_75], %171 {strides = array<i32>} : memref<18x32xf32, #tpu.memory_space<vmem>>, vector<9x8xf32>,
    %173 = vector.extract_strided_slice %44 {offsets = [9, 24], sizes = [9, 8], strides = [1, 1]} : vector<18x32xf32> to vector<9x8xf32>
    %174 = vector.extract_strided_slice %45 {offsets = [9, 24], sizes = [9, 8], strides = [1, 1]} : vector<18x32xf32> to vector<9x8xf32>
    %175 = vector.extract_strided_slice %46 {offsets = [9, 24], sizes = [9, 8], strides = [1, 1]} : vector<18x32xf32> to vector<9x8xf32>
    %cst_76 = arith.constant dense<0.000000e+00> : vector<9x9xf32>
    %176 = tpu.matmul %173, %174, %cst_76 {dimension_numbers = #tpu.dot_dimension_numbers<[1], [1], [0], [0], [0, 0, 1, 0], [], []>} : vector<9x8xf32>, vector<9x8xf32>, vector<9x9xf32> -> vector<9x9xf32>
    %cst_77 = arith.constant 0.176776692 : f32
    %177 = vector.broadcast %cst_77 : f32 to vector<9x9xf32>
    %178 = arith.mulf %176, %177 : vector<9x9xf32>
    %cst_78 = arith.constant dense<0xFF800000> : vector<9xf32>
    %179 = vector.multi_reduction <maximumf>, %178, %cst_78 [1] : vector<9x9xf32> to vector<9xf32>
    %180 = vector.shape_cast %179 : vector<9xf32> to vector<9x1xf32>
    %181 = vector.broadcast %180 : vector<9x1xf32> to vector<9x9xf32>
    %182 = arith.subf %178, %181 : vector<9x9xf32>
    %183 = math.exp %182 : vector<9x9xf32>
    %cst_79 = arith.constant dense<0.000000e+00> : vector<9xf32>
    %184 = vector.multi_reduction <add>, %183, %cst_79 [1] : vector<9x9xf32> to vector<9xf32>
    %185 = vector.shape_cast %184 : vector<9xf32> to vector<9x1xf32>
    %186 = tpu.reciprocal %185 {approx = true} : vector<9x1xf32> -> vector<9x1xf32>
    %187 = vector.broadcast %186 : vector<9x1xf32> to vector<9x9xf32>
    %188 = arith.mulf %183, %187 : vector<9x9xf32>
    %cst_80 = arith.constant dense<0.000000e+00> : vector<9x8xf32>
    %189 = tpu.matmul %188, %175, %cst_80 {dimension_numbers = #tpu.dot_dimension_numbers<[1], [0], [0], [1], [0, 0, 1, 1], [], []>} : vector<9x9xf32>, vector<9x8xf32>, vector<9x8xf32> -> vector<9x8xf32>
    %c9_81 = arith.constant 9 : index
    %c24_82 = arith.constant 24 : index
    %190 = vector.load %arg18[%c9_81, %c24_82] : memref<18x32xf32, #tpu.memory_space<vmem>>, vector<9x8xf32>
    tpu.vector_store %arg18[%c9_81, %c24_82], %189 {strides = array<i32>} : memref<18x32xf32, #tpu.memory_space<vmem>>, vector<9x8xf32>,
    %c0_83 = arith.constant 0 : index
    %c0_84 = arith.constant 0 : index
    %191 = vector.load %arg18[%c0_83, %c0_84] : memref<18x32xf32, #tpu.memory_space<vmem>>, vector<18x32xf32>
    %c0_85 = arith.constant 0 : index
    %c0_86 = arith.constant 0 : index
    %c0_87 = arith.constant 0 : index
    %192 = vector.load %arg8[%c0_85, %c0_86, %c0_87] : memref<4x32x32xf32, #tpu.memory_space<vmem>>, vector<1x32x32xf32>
    %193 = vector.shape_cast %192 : vector<1x32x32xf32> to vector<32x32xf32>
    %cst_88 = arith.constant dense<0.000000e+00> : vector<18x32xf32>
    %194 = tpu.matmul %191, %193, %cst_88 {dimension_numbers = #tpu.dot_dimension_numbers<[1], [0], [0], [1], [0, 0, 1, 1], [], []>} : vector<18x32xf32>, vector<32x32xf32>, vector<18x32xf32> -> vector<18x32xf32>
    %c0_89 = arith.constant 0 : index
    %c0_90 = arith.constant 0 : index
    %c0_91 = arith.constant 0 : index
    %195 = vector.load %arg9[%c0_89, %c0_90, %c0_91] : memref<4x1x32xf32, #tpu.memory_space<vmem>>, vector<1x1x32xf32>
    %196 = vector.shape_cast %195 : vector<1x1x32xf32> to vector<1x32xf32>
    %197 = vector.broadcast %196 : vector<1x32xf32> to vector<18x32xf32>
    %198 = arith.addf %194, %197 : vector<18x32xf32>
    %199 = arith.addf %14, %198 : vector<18x32xf32>
    %c0_92 = arith.constant 0 : index
    %c0_93 = arith.constant 0 : index
    %c0_94 = arith.constant 0 : index
    %200 = vector.load %arg10[%c0_92, %c0_93, %c0_94] : memref<4x1x32xf32, #tpu.memory_space<vmem>>, vector<1x1x32xf32>
    %201 = vector.shape_cast %200 : vector<1x1x32xf32> to vector<1x32xf32>
    %c0_95 = arith.constant 0 : index
    %c0_96 = arith.constant 0 : index
    %c0_97 = arith.constant 0 : index
    %202 = vector.load %arg11[%c0_95, %c0_96, %c0_97] : memref<4x1x32xf32, #tpu.memory_space<vmem>>, vector<1x1x32xf32>
    %203 = vector.shape_cast %202 : vector<1x1x32xf32> to vector<1x32xf32>
    %cst_98 = arith.constant dense<0.000000e+00> : vector<18xf32>
    %204 = vector.multi_reduction <add>, %199, %cst_98 [1] : vector<18x32xf32> to vector<18xf32>
    %205 = vector.shape_cast %204 : vector<18xf32> to vector<18x1xf32>
    %cst_99 = arith.constant 3.200000e+01 : f32
    %206 = vector.broadcast %cst_99 : f32 to vector<18x1xf32>
    %207 = arith.divf %205, %206 : vector<18x1xf32>
    %208 = vector.broadcast %207 : vector<18x1xf32> to vector<18x32xf32>
    %209 = arith.subf %199, %208 : vector<18x32xf32>
    %210 = arith.mulf %209, %209 : vector<18x32xf32>
    %cst_100 = arith.constant dense<0.000000e+00> : vector<18xf32>
    %211 = vector.multi_reduction <add>, %210, %cst_100 [1] : vector<18x32xf32> to vector<18xf32>
    %212 = vector.shape_cast %211 : vector<18xf32> to vector<18x1xf32>
    %cst_101 = arith.constant 3.200000e+01 : f32
    %213 = vector.broadcast %cst_101 : f32 to vector<18x1xf32>
    %214 = arith.divf %212, %213 : vector<18x1xf32>
    %215 = vector.broadcast %207 : vector<18x1xf32> to vector<18x32xf32>
    %216 = arith.subf %199, %215 : vector<18x32xf32>
    %cst_102 = arith.constant 9.99999974E-6 : f32
    %217 = vector.broadcast %cst_102 : f32 to vector<18x1xf32>
    %218 = arith.addf %214, %217 : vector<18x1xf32>
    %219 = math.rsqrt %218 : vector<18x1xf32>
    %220 = vector.broadcast %219 : vector<18x1xf32> to vector<18x32xf32>
    %221 = arith.mulf %216, %220 : vector<18x32xf32>
    %222 = vector.broadcast %201 : vector<1x32xf32> to vector<18x32xf32>
    %223 = arith.mulf %221, %222 : vector<18x32xf32>
    %224 = vector.broadcast %203 : vector<1x32xf32> to vector<18x32xf32>
    %225 = arith.addf %223, %224 : vector<18x32xf32>
    %c0_103 = arith.constant 0 : index
    %c0_104 = arith.constant 0 : index
    %c0_105 = arith.constant 0 : index
    %226 = vector.load %arg12[%c0_103, %c0_104, %c0_105] : memref<4x32x64xf32, #tpu.memory_space<vmem>>, vector<1x32x64xf32>
    %227 = vector.shape_cast %226 : vector<1x32x64xf32> to vector<32x64xf32>
    %cst_106 = arith.constant dense<0.000000e+00> : vector<18x64xf32>
    %228 = tpu.matmul %225, %227, %cst_106 {dimension_numbers = #tpu.dot_dimension_numbers<[1], [0], [0], [1], [0, 0, 1, 1], [], []>} : vector<18x32xf32>, vector<32x64xf32>, vector<18x64xf32> -> vector<18x64xf32>
    %c0_107 = arith.constant 0 : index
    %c0_108 = arith.constant 0 : index
    %c0_109 = arith.constant 0 : index
    %229 = vector.load %arg13[%c0_107, %c0_108, %c0_109] : memref<4x1x64xf32, #tpu.memory_space<vmem>>, vector<1x1x64xf32>
    %230 = vector.shape_cast %229 : vector<1x1x64xf32> to vector<1x64xf32>
    %231 = vector.broadcast %230 : vector<1x64xf32> to vector<18x64xf32>
    %232 = arith.addf %228, %231 : vector<18x64xf32>
    %cst_110 = arith.constant 0.707106769 : f32
    %233 = vector.broadcast %cst_110 : f32 to vector<18x64xf32>
    %234 = arith.mulf %232, %233 : vector<18x64xf32>
    %235 = math.absf %234 : vector<18x64xf32>
    %cst_111 = arith.constant 0.327591091 : f32
    %236 = vector.broadcast %cst_111 : f32 to vector<18x64xf32>
    %237 = arith.mulf %236, %235 : vector<18x64xf32>
    %cst_112 = arith.constant 1.000000e+00 : f32
    %238 = vector.broadcast %cst_112 : f32 to vector<18x64xf32>
    %239 = arith.addf %238, %237 : vector<18x64xf32>
    %cst_113 = arith.constant 1.000000e+00 : f32
    %240 = vector.broadcast %cst_113 : f32 to vector<18x64xf32>
    %241 = arith.divf %240, %239 : vector<18x64xf32>
    %cst_114 = arith.constant 1.06140542 : f32
    %242 = vector.broadcast %cst_114 : f32 to vector<18x64xf32>
    %243 = arith.mulf %242, %241 : vector<18x64xf32>
    %cst_115 = arith.constant 1.45315206 : f32
    %244 = vector.broadcast %cst_115 : f32 to vector<18x64xf32>
    %245 = arith.subf %243, %244 : vector<18x64xf32>
    %246 = arith.mulf %245, %241 : vector<18x64xf32>
    %cst_116 = arith.constant 1.42141378 : f32
    %247 = vector.broadcast %cst_116 : f32 to vector<18x64xf32>
    %248 = arith.addf %246, %247 : vector<18x64xf32>
    %249 = arith.mulf %248, %241 : vector<18x64xf32>
    %cst_117 = arith.constant 0.284496725 : f32
    %250 = vector.broadcast %cst_117 : f32 to vector<18x64xf32>
    %251 = arith.subf %249, %250 : vector<18x64xf32>
    %252 = arith.mulf %251, %241 : vector<18x64xf32>
    %cst_118 = arith.constant 0.254829586 : f32
    %253 = vector.broadcast %cst_118 : f32 to vector<18x64xf32>
    %254 = arith.addf %252, %253 : vector<18x64xf32>
    %255 = arith.mulf %254, %241 : vector<18x64xf32>
    %cst_119 = arith.constant 0.000000e+00 : f32
    %256 = vector.broadcast %cst_119 : f32 to vector<18x64xf32>
    %257 = arith.subf %256, %235 : vector<18x64xf32>
    %258 = arith.mulf %257, %235 : vector<18x64xf32>
    %259 = math.exp %258 : vector<18x64xf32>
    %260 = arith.mulf %255, %259 : vector<18x64xf32>
    %cst_120 = arith.constant 1.000000e+00 : f32
    %261 = vector.broadcast %cst_120 : f32 to vector<18x64xf32>
    %262 = arith.subf %261, %260 : vector<18x64xf32>
    %cst_121 = arith.constant 0.000000e+00 : f32
    %263 = vector.broadcast %cst_121 : f32 to vector<18x64xf32>
    %264 = arith.cmpf olt, %234, %263 : vector<18x64xf32>
    %cst_122 = arith.constant 0.000000e+00 : f32
    %265 = vector.broadcast %cst_122 : f32 to vector<18x64xf32>
    %266 = arith.subf %265, %262 : vector<18x64xf32>
    %267 = arith.select %264, %266, %262 : vector<18x64xi1>, vector<18x64xf32>
    %cst_123 = arith.constant 5.000000e-01 : f32
    %268 = vector.broadcast %cst_123 : f32 to vector<18x64xf32>
    %269 = arith.mulf %268, %232 : vector<18x64xf32>
    %cst_124 = arith.constant 1.000000e+00 : f32
    %270 = vector.broadcast %cst_124 : f32 to vector<18x64xf32>
    %271 = arith.addf %270, %267 : vector<18x64xf32>
    %272 = arith.mulf %269, %271 : vector<18x64xf32>
    %c0_125 = arith.constant 0 : index
    %c0_126 = arith.constant 0 : index
    %c0_127 = arith.constant 0 : index
    %273 = vector.load %arg14[%c0_125, %c0_126, %c0_127] : memref<4x64x32xf32, #tpu.memory_space<vmem>>, vector<1x64x32xf32>
    %274 = vector.shape_cast %273 : vector<1x64x32xf32> to vector<64x32xf32>
    %cst_128 = arith.constant dense<0.000000e+00> : vector<18x32xf32>
    %275 = tpu.matmul %272, %274, %cst_128 {dimension_numbers = #tpu.dot_dimension_numbers<[1], [0], [0], [1], [0, 0, 1, 1], [], []>} : vector<18x64xf32>, vector<64x32xf32>, vector<18x32xf32> -> vector<18x32xf32>
    %c0_129 = arith.constant 0 : index
    %c0_130 = arith.constant 0 : index
    %c0_131 = arith.constant 0 : index
    %276 = vector.load %arg15[%c0_129, %c0_130, %c0_131] : memref<4x1x32xf32, #tpu.memory_space<vmem>>, vector<1x1x32xf32>
    %277 = vector.shape_cast %276 : vector<1x1x32xf32> to vector<1x32xf32>
    %278 = vector.broadcast %277 : vector<1x32xf32> to vector<18x32xf32>
    %279 = arith.addf %275, %278 : vector<18x32xf32>
    %280 = arith.addf %199, %279 : vector<18x32xf32>
    %c1_132 = arith.constant 1 : index
    %c0_133 = arith.constant 0 : index
    %c0_134 = arith.constant 0 : index
    %281 = vector.load %arg5[%c1_132, %c0_133, %c0_134] : memref<4x1x32xf32, #tpu.memory_space<vmem>>, vector<1x1x32xf32>
    %282 = vector.shape_cast %281 : vector<1x1x32xf32> to vector<1x32xf32>
    %c1_135 = arith.constant 1 : index
    %c0_136 = arith.constant 0 : index
    %c0_137 = arith.constant 0 : index
    %283 = vector.load %arg6[%c1_135, %c0_136, %c0_137] : memref<4x1x32xf32, #tpu.memory_space<vmem>>, vector<1x1x32xf32>
    %284 = vector.shape_cast %283 : vector<1x1x32xf32> to vector<1x32xf32>
    %cst_138 = arith.constant dense<0.000000e+00> : vector<18xf32>
    %285 = vector.multi_reduction <add>, %280, %cst_138 [1] : vector<18x32xf32> to vector<18xf32>
    %286 = vector.shape_cast %285 : vector<18xf32> to vector<18x1xf32>
    %cst_139 = arith.constant 3.200000e+01 : f32
    %287 = vector.broadcast %cst_139 : f32 to vector<18x1xf32>
    %288 = arith.divf %286, %287 : vector<18x1xf32>
    %289 = vector.broadcast %288 : vector<18x1xf32> to vector<18x32xf32>
    %290 = arith.subf %280, %289 : vector<18x32xf32>
    %291 = arith.mulf %290, %290 : vector<18x32xf32>
    %cst_140 = arith.constant dense<0.000000e+00> : vector<18xf32>
    %292 = vector.multi_reduction <add>, %291, %cst_140 [1] : vector<18x32xf32> to vector<18xf32>
    %293 = vector.shape_cast %292 : vector<18xf32> to vector<18x1xf32>
    %cst_141 = arith.constant 3.200000e+01 : f32
    %294 = vector.broadcast %cst_141 : f32 to vector<18x1xf32>
    %295 = arith.divf %293, %294 : vector<18x1xf32>
    %296 = vector.broadcast %288 : vector<18x1xf32> to vector<18x32xf32>
    %297 = arith.subf %280, %296 : vector<18x32xf32>
    %cst_142 = arith.constant 9.99999974E-6 : f32
    %298 = vector.broadcast %cst_142 : f32 to vector<18x1xf32>
    %299 = arith.addf %295, %298 : vector<18x1xf32>
    %300 = math.rsqrt %299 : vector<18x1xf32>
    %301 = vector.broadcast %300 : vector<18x1xf32> to vector<18x32xf32>
    %302 = arith.mulf %297, %301 : vector<18x32xf32>
    %303 = vector.broadcast %282 : vector<1x32xf32> to vector<18x32xf32>
    %304 = arith.mulf %302, %303 : vector<18x32xf32>
    %305 = vector.broadcast %284 : vector<1x32xf32> to vector<18x32xf32>
    %306 = arith.addf %304, %305 : vector<18x32xf32>
    %c1_143 = arith.constant 1 : index
    %c0_144 = arith.constant 0 : index
    %c0_145 = arith.constant 0 : index
    %307 = vector.load %arg7[%c1_143, %c0_144, %c0_145] : memref<4x32x96xf32, #tpu.memory_space<vmem>>, vector<1x32x96xf32>
    %308 = vector.shape_cast %307 : vector<1x32x96xf32> to vector<32x96xf32>
    %cst_146 = arith.constant dense<0.000000e+00> : vector<18x96xf32>
    %309 = tpu.matmul %306, %308, %cst_146 {dimension_numbers = #tpu.dot_dimension_numbers<[1], [0], [0], [1], [0, 0, 1, 1], [], []>} : vector<18x32xf32>, vector<32x96xf32>, vector<18x96xf32> -> vector<18x96xf32>
    %310 = vector.extract_strided_slice %309 {offsets = [0, 0], sizes = [18, 32], strides = [1, 1]} : vector<18x96xf32> to vector<18x32xf32>
    %311 = vector.extract_strided_slice %309 {offsets = [0, 32], sizes = [18, 32], strides = [1, 1]} : vector<18x96xf32> to vector<18x32xf32>
    %312 = vector.extract_strided_slice %309 {offsets = [0, 64], sizes = [18, 32], strides = [1, 1]} : vector<18x96xf32> to vector<18x32xf32>
    %313 = vector.extract_strided_slice %310 {offsets = [0, 0], sizes = [9, 8], strides = [1, 1]} : vector<18x32xf32> to vector<9x8xf32>
    %314 = vector.extract_strided_slice %311 {offsets = [0, 0], sizes = [9, 8], strides = [1, 1]} : vector<18x32xf32> to vector<9x8xf32>
    %315 = vector.extract_strided_slice %312 {offsets = [0, 0], sizes = [9, 8], strides = [1, 1]} : vector<18x32xf32> to vector<9x8xf32>
    %cst_147 = arith.constant dense<0.000000e+00> : vector<9x9xf32>
    %316 = tpu.matmul %313, %314, %cst_147 {dimension_numbers = #tpu.dot_dimension_numbers<[1], [1], [0], [0], [0, 0, 1, 0], [], []>} : vector<9x8xf32>, vector<9x8xf32>, vector<9x9xf32> -> vector<9x9xf32>
    %cst_148 = arith.constant 0.176776692 : f32
    %317 = vector.broadcast %cst_148 : f32 to vector<9x9xf32>
    %318 = arith.mulf %316, %317 : vector<9x9xf32>
    %cst_149 = arith.constant dense<0xFF800000> : vector<9xf32>
    %319 = vector.multi_reduction <maximumf>, %318, %cst_149 [1] : vector<9x9xf32> to vector<9xf32>
    %320 = vector.shape_cast %319 : vector<9xf32> to vector<9x1xf32>
    %321 = vector.broadcast %320 : vector<9x1xf32> to vector<9x9xf32>
    %322 = arith.subf %318, %321 : vector<9x9xf32>
    %323 = math.exp %322 : vector<9x9xf32>
    %cst_150 = arith.constant dense<0.000000e+00> : vector<9xf32>
    %324 = vector.multi_reduction <add>, %323, %cst_150 [1] : vector<9x9xf32> to vector<9xf32>
    %325 = vector.shape_cast %324 : vector<9xf32> to vector<9x1xf32>
    %326 = tpu.reciprocal %325 {approx = true} : vector<9x1xf32> -> vector<9x1xf32>
    %327 = vector.broadcast %326 : vector<9x1xf32> to vector<9x9xf32>
    %328 = arith.mulf %323, %327 : vector<9x9xf32>
    %cst_151 = arith.constant dense<0.000000e+00> : vector<9x8xf32>
    %329 = tpu.matmul %328, %315, %cst_151 {dimension_numbers = #tpu.dot_dimension_numbers<[1], [0], [0], [1], [0, 0, 1, 1], [], []>} : vector<9x9xf32>, vector<9x8xf32>, vector<9x8xf32> -> vector<9x8xf32>
    %c0_152 = arith.constant 0 : index
    %c0_153 = arith.constant 0 : index
    %330 = vector.load %arg18[%c0_152, %c0_153] : memref<18x32xf32, #tpu.memory_space<vmem>>, vector<9x8xf32>
    tpu.vector_store %arg18[%c0_152, %c0_153], %329 {strides = array<i32>} : memref<18x32xf32, #tpu.memory_space<vmem>>, vector<9x8xf32>,
    %331 = vector.extract_strided_slice %310 {offsets = [0, 8], sizes = [9, 8], strides = [1, 1]} : vector<18x32xf32> to vector<9x8xf32>
    %332 = vector.extract_strided_slice %311 {offsets = [0, 8], sizes = [9, 8], strides = [1, 1]} : vector<18x32xf32> to vector<9x8xf32>
    %333 = vector.extract_strided_slice %312 {offsets = [0, 8], sizes = [9, 8], strides = [1, 1]} : vector<18x32xf32> to vector<9x8xf32>
    %cst_154 = arith.constant dense<0.000000e+00> : vector<9x9xf32>
    %334 = tpu.matmul %331, %332, %cst_154 {dimension_numbers = #tpu.dot_dimension_numbers<[1], [1], [0], [0], [0, 0, 1, 0], [], []>} : vector<9x8xf32>, vector<9x8xf32>, vector<9x9xf32> -> vector<9x9xf32>
    %cst_155 = arith.constant 0.176776692 : f32
    %335 = vector.broadcast %cst_155 : f32 to vector<9x9xf32>
    %336 = arith.mulf %334, %335 : vector<9x9xf32>
    %cst_156 = arith.constant dense<0xFF800000> : vector<9xf32>
    %337 = vector.multi_reduction <maximumf>, %336, %cst_156 [1] : vector<9x9xf32> to vector<9xf32>
    %338 = vector.shape_cast %337 : vector<9xf32> to vector<9x1xf32>
    %339 = vector.broadcast %338 : vector<9x1xf32> to vector<9x9xf32>
    %340 = arith.subf %336, %339 : vector<9x9xf32>
    %341 = math.exp %340 : vector<9x9xf32>
    %cst_157 = arith.constant dense<0.000000e+00> : vector<9xf32>
    %342 = vector.multi_reduction <add>, %341, %cst_157 [1] : vector<9x9xf32> to vector<9xf32>
    %343 = vector.shape_cast %342 : vector<9xf32> to vector<9x1xf32>
    %344 = tpu.reciprocal %343 {approx = true} : vector<9x1xf32> -> vector<9x1xf32>
    %345 = vector.broadcast %344 : vector<9x1xf32> to vector<9x9xf32>
    %346 = arith.mulf %341, %345 : vector<9x9xf32>
    %cst_158 = arith.constant dense<0.000000e+00> : vector<9x8xf32>
    %347 = tpu.matmul %346, %333, %cst_158 {dimension_numbers = #tpu.dot_dimension_numbers<[1], [0], [0], [1], [0, 0, 1, 1], [], []>} : vector<9x9xf32>, vector<9x8xf32>, vector<9x8xf32> -> vector<9x8xf32>
    %c0_159 = arith.constant 0 : index
    %c8_160 = arith.constant 8 : index
    %348 = vector.load %arg18[%c0_159, %c8_160] : memref<18x32xf32, #tpu.memory_space<vmem>>, vector<9x8xf32>
    tpu.vector_store %arg18[%c0_159, %c8_160], %347 {strides = array<i32>} : memref<18x32xf32, #tpu.memory_space<vmem>>, vector<9x8xf32>,
    %349 = vector.extract_strided_slice %310 {offsets = [0, 16], sizes = [9, 8], strides = [1, 1]} : vector<18x32xf32> to vector<9x8xf32>
    %350 = vector.extract_strided_slice %311 {offsets = [0, 16], sizes = [9, 8], strides = [1, 1]} : vector<18x32xf32> to vector<9x8xf32>
    %351 = vector.extract_strided_slice %312 {offsets = [0, 16], sizes = [9, 8], strides = [1, 1]} : vector<18x32xf32> to vector<9x8xf32>
    %cst_161 = arith.constant dense<0.000000e+00> : vector<9x9xf32>
    %352 = tpu.matmul %349, %350, %cst_161 {dimension_numbers = #tpu.dot_dimension_numbers<[1], [1], [0], [0], [0, 0, 1, 0], [], []>} : vector<9x8xf32>, vector<9x8xf32>, vector<9x9xf32> -> vector<9x9xf32>
    %cst_162 = arith.constant 0.176776692 : f32
    %353 = vector.broadcast %cst_162 : f32 to vector<9x9xf32>
    %354 = arith.mulf %352, %353 : vector<9x9xf32>
    %cst_163 = arith.constant dense<0xFF800000> : vector<9xf32>
    %355 = vector.multi_reduction <maximumf>, %354, %cst_163 [1] : vector<9x9xf32> to vector<9xf32>
    %356 = vector.shape_cast %355 : vector<9xf32> to vector<9x1xf32>
    %357 = vector.broadcast %356 : vector<9x1xf32> to vector<9x9xf32>
    %358 = arith.subf %354, %357 : vector<9x9xf32>
    %359 = math.exp %358 : vector<9x9xf32>
    %cst_164 = arith.constant dense<0.000000e+00> : vector<9xf32>
    %360 = vector.multi_reduction <add>, %359, %cst_164 [1] : vector<9x9xf32> to vector<9xf32>
    %361 = vector.shape_cast %360 : vector<9xf32> to vector<9x1xf32>
    %362 = tpu.reciprocal %361 {approx = true} : vector<9x1xf32> -> vector<9x1xf32>
    %363 = vector.broadcast %362 : vector<9x1xf32> to vector<9x9xf32>
    %364 = arith.mulf %359, %363 : vector<9x9xf32>
    %cst_165 = arith.constant dense<0.000000e+00> : vector<9x8xf32>
    %365 = tpu.matmul %364, %351, %cst_165 {dimension_numbers = #tpu.dot_dimension_numbers<[1], [0], [0], [1], [0, 0, 1, 1], [], []>} : vector<9x9xf32>, vector<9x8xf32>, vector<9x8xf32> -> vector<9x8xf32>
    %c0_166 = arith.constant 0 : index
    %c16_167 = arith.constant 16 : index
    %366 = vector.load %arg18[%c0_166, %c16_167] : memref<18x32xf32, #tpu.memory_space<vmem>>, vector<9x8xf32>
    tpu.vector_store %arg18[%c0_166, %c16_167], %365 {strides = array<i32>} : memref<18x32xf32, #tpu.memory_space<vmem>>, vector<9x8xf32>,
    %367 = vector.extract_strided_slice %310 {offsets = [0, 24], sizes = [9, 8], strides = [1, 1]} : vector<18x32xf32> to vector<9x8xf32>
    %368 = vector.extract_strided_slice %311 {offsets = [0, 24], sizes = [9, 8], strides = [1, 1]} : vector<18x32xf32> to vector<9x8xf32>
    %369 = vector.extract_strided_slice %312 {offsets = [0, 24], sizes = [9, 8], strides = [1, 1]} : vector<18x32xf32> to vector<9x8xf32>
    %cst_168 = arith.constant dense<0.000000e+00> : vector<9x9xf32>
    %370 = tpu.matmul %367, %368, %cst_168 {dimension_numbers = #tpu.dot_dimension_numbers<[1], [1], [0], [0], [0, 0, 1, 0], [], []>} : vector<9x8xf32>, vector<9x8xf32>, vector<9x9xf32> -> vector<9x9xf32>
    %cst_169 = arith.constant 0.176776692 : f32
    %371 = vector.broadcast %cst_169 : f32 to vector<9x9xf32>
    %372 = arith.mulf %370, %371 : vector<9x9xf32>
    %cst_170 = arith.constant dense<0xFF800000> : vector<9xf32>
    %373 = vector.multi_reduction <maximumf>, %372, %cst_170 [1] : vector<9x9xf32> to vector<9xf32>
    %374 = vector.shape_cast %373 : vector<9xf32> to vector<9x1xf32>
    %375 = vector.broadcast %374 : vector<9x1xf32> to vector<9x9xf32>
    %376 = arith.subf %372, %375 : vector<9x9xf32>
    %377 = math.exp %376 : vector<9x9xf32>
    %cst_171 = arith.constant dense<0.000000e+00> : vector<9xf32>
    %378 = vector.multi_reduction <add>, %377, %cst_171 [1] : vector<9x9xf32> to vector<9xf32>
    %379 = vector.shape_cast %378 : vector<9xf32> to vector<9x1xf32>
    %380 = tpu.reciprocal %379 {approx = true} : vector<9x1xf32> -> vector<9x1xf32>
    %381 = vector.broadcast %380 : vector<9x1xf32> to vector<9x9xf32>
    %382 = arith.mulf %377, %381 : vector<9x9xf32>
    %cst_172 = arith.constant dense<0.000000e+00> : vector<9x8xf32>
    %383 = tpu.matmul %382, %369, %cst_172 {dimension_numbers = #tpu.dot_dimension_numbers<[1], [0], [0], [1], [0, 0, 1, 1], [], []>} : vector<9x9xf32>, vector<9x8xf32>, vector<9x8xf32> -> vector<9x8xf32>
    %c0_173 = arith.constant 0 : index
    %c24_174 = arith.constant 24 : index
    %384 = vector.load %arg18[%c0_173, %c24_174] : memref<18x32xf32, #tpu.memory_space<vmem>>, vector<9x8xf32>
    tpu.vector_store %arg18[%c0_173, %c24_174], %383 {strides = array<i32>} : memref<18x32xf32, #tpu.memory_space<vmem>>, vector<9x8xf32>,
    %385 = vector.extract_strided_slice %310 {offsets = [9, 0], sizes = [9, 8], strides = [1, 1]} : vector<18x32xf32> to vector<9x8xf32>
    %386 = vector.extract_strided_slice %311 {offsets = [9, 0], sizes = [9, 8], strides = [1, 1]} : vector<18x32xf32> to vector<9x8xf32>
    %387 = vector.extract_strided_slice %312 {offsets = [9, 0], sizes = [9, 8], strides = [1, 1]} : vector<18x32xf32> to vector<9x8xf32>
    %cst_175 = arith.constant dense<0.000000e+00> : vector<9x9xf32>
    %388 = tpu.matmul %385, %386, %cst_175 {dimension_numbers = #tpu.dot_dimension_numbers<[1], [1], [0], [0], [0, 0, 1, 0], [], []>} : vector<9x8xf32>, vector<9x8xf32>, vector<9x9xf32> -> vector<9x9xf32>
    %cst_176 = arith.constant 0.176776692 : f32
    %389 = vector.broadcast %cst_176 : f32 to vector<9x9xf32>
    %390 = arith.mulf %388, %389 : vector<9x9xf32>
    %cst_177 = arith.constant dense<0xFF800000> : vector<9xf32>
    %391 = vector.multi_reduction <maximumf>, %390, %cst_177 [1] : vector<9x9xf32> to vector<9xf32>
    %392 = vector.shape_cast %391 : vector<9xf32> to vector<9x1xf32>
    %393 = vector.broadcast %392 : vector<9x1xf32> to vector<9x9xf32>
    %394 = arith.subf %390, %393 : vector<9x9xf32>
    %395 = math.exp %394 : vector<9x9xf32>
    %cst_178 = arith.constant dense<0.000000e+00> : vector<9xf32>
    %396 = vector.multi_reduction <add>, %395, %cst_178 [1] : vector<9x9xf32> to vector<9xf32>
    %397 = vector.shape_cast %396 : vector<9xf32> to vector<9x1xf32>
    %398 = tpu.reciprocal %397 {approx = true} : vector<9x1xf32> -> vector<9x1xf32>
    %399 = vector.broadcast %398 : vector<9x1xf32> to vector<9x9xf32>
    %400 = arith.mulf %395, %399 : vector<9x9xf32>
    %cst_179 = arith.constant dense<0.000000e+00> : vector<9x8xf32>
    %401 = tpu.matmul %400, %387, %cst_179 {dimension_numbers = #tpu.dot_dimension_numbers<[1], [0], [0], [1], [0, 0, 1, 1], [], []>} : vector<9x9xf32>, vector<9x8xf32>, vector<9x8xf32> -> vector<9x8xf32>
    %c9_180 = arith.constant 9 : index
    %c0_181 = arith.constant 0 : index
    %402 = vector.load %arg18[%c9_180, %c0_181] : memref<18x32xf32, #tpu.memory_space<vmem>>, vector<9x8xf32>
    tpu.vector_store %arg18[%c9_180, %c0_181], %401 {strides = array<i32>} : memref<18x32xf32, #tpu.memory_space<vmem>>, vector<9x8xf32>,
    %403 = vector.extract_strided_slice %310 {offsets = [9, 8], sizes = [9, 8], strides = [1, 1]} : vector<18x32xf32> to vector<9x8xf32>
    %404 = vector.extract_strided_slice %311 {offsets = [9, 8], sizes = [9, 8], strides = [1, 1]} : vector<18x32xf32> to vector<9x8xf32>
    %405 = vector.extract_strided_slice %312 {offsets = [9, 8], sizes = [9, 8], strides = [1, 1]} : vector<18x32xf32> to vector<9x8xf32>
    %cst_182 = arith.constant dense<0.000000e+00> : vector<9x9xf32>
    %406 = tpu.matmul %403, %404, %cst_182 {dimension_numbers = #tpu.dot_dimension_numbers<[1], [1], [0], [0], [0, 0, 1, 0], [], []>} : vector<9x8xf32>, vector<9x8xf32>, vector<9x9xf32> -> vector<9x9xf32>
    %cst_183 = arith.constant 0.176776692 : f32
    %407 = vector.broadcast %cst_183 : f32 to vector<9x9xf32>
    %408 = arith.mulf %406, %407 : vector<9x9xf32>
    %cst_184 = arith.constant dense<0xFF800000> : vector<9xf32>
    %409 = vector.multi_reduction <maximumf>, %408, %cst_184 [1] : vector<9x9xf32> to vector<9xf32>
    %410 = vector.shape_cast %409 : vector<9xf32> to vector<9x1xf32>
    %411 = vector.broadcast %410 : vector<9x1xf32> to vector<9x9xf32>
    %412 = arith.subf %408, %411 : vector<9x9xf32>
    %413 = math.exp %412 : vector<9x9xf32>
    %cst_185 = arith.constant dense<0.000000e+00> : vector<9xf32>
    %414 = vector.multi_reduction <add>, %413, %cst_185 [1] : vector<9x9xf32> to vector<9xf32>
    %415 = vector.shape_cast %414 : vector<9xf32> to vector<9x1xf32>
    %416 = tpu.reciprocal %415 {approx = true} : vector<9x1xf32> -> vector<9x1xf32>
    %417 = vector.broadcast %416 : vector<9x1xf32> to vector<9x9xf32>
    %418 = arith.mulf %413, %417 : vector<9x9xf32>
    %cst_186 = arith.constant dense<0.000000e+00> : vector<9x8xf32>
    %419 = tpu.matmul %418, %405, %cst_186 {dimension_numbers = #tpu.dot_dimension_numbers<[1], [0], [0], [1], [0, 0, 1, 1], [], []>} : vector<9x9xf32>, vector<9x8xf32>, vector<9x8xf32> -> vector<9x8xf32>
    %c9_187 = arith.constant 9 : index
    %c8_188 = arith.constant 8 : index
    %420 = vector.load %arg18[%c9_187, %c8_188] : memref<18x32xf32, #tpu.memory_space<vmem>>, vector<9x8xf32>
    tpu.vector_store %arg18[%c9_187, %c8_188], %419 {strides = array<i32>} : memref<18x32xf32, #tpu.memory_space<vmem>>, vector<9x8xf32>,
    %421 = vector.extract_strided_slice %310 {offsets = [9, 16], sizes = [9, 8], strides = [1, 1]} : vector<18x32xf32> to vector<9x8xf32>
    %422 = vector.extract_strided_slice %311 {offsets = [9, 16], sizes = [9, 8], strides = [1, 1]} : vector<18x32xf32> to vector<9x8xf32>
    %423 = vector.extract_strided_slice %312 {offsets = [9, 16], sizes = [9, 8], strides = [1, 1]} : vector<18x32xf32> to vector<9x8xf32>
    %cst_189 = arith.constant dense<0.000000e+00> : vector<9x9xf32>
    %424 = tpu.matmul %421, %422, %cst_189 {dimension_numbers = #tpu.dot_dimension_numbers<[1], [1], [0], [0], [0, 0, 1, 0], [], []>} : vector<9x8xf32>, vector<9x8xf32>, vector<9x9xf32> -> vector<9x9xf32>
    %cst_190 = arith.constant 0.176776692 : f32
    %425 = vector.broadcast %cst_190 : f32 to vector<9x9xf32>
    %426 = arith.mulf %424, %425 : vector<9x9xf32>
    %cst_191 = arith.constant dense<0xFF800000> : vector<9xf32>
    %427 = vector.multi_reduction <maximumf>, %426, %cst_191 [1] : vector<9x9xf32> to vector<9xf32>
    %428 = vector.shape_cast %427 : vector<9xf32> to vector<9x1xf32>
    %429 = vector.broadcast %428 : vector<9x1xf32> to vector<9x9xf32>
    %430 = arith.subf %426, %429 : vector<9x9xf32>
    %431 = math.exp %430 : vector<9x9xf32>
    %cst_192 = arith.constant dense<0.000000e+00> : vector<9xf32>
    %432 = vector.multi_reduction <add>, %431, %cst_192 [1] : vector<9x9xf32> to vector<9xf32>
    %433 = vector.shape_cast %432 : vector<9xf32> to vector<9x1xf32>
    %434 = tpu.reciprocal %433 {approx = true} : vector<9x1xf32> -> vector<9x1xf32>
    %435 = vector.broadcast %434 : vector<9x1xf32> to vector<9x9xf32>
    %436 = arith.mulf %431, %435 : vector<9x9xf32>
    %cst_193 = arith.constant dense<0.000000e+00> : vector<9x8xf32>
    %437 = tpu.matmul %436, %423, %cst_193 {dimension_numbers = #tpu.dot_dimension_numbers<[1], [0], [0], [1], [0, 0, 1, 1], [], []>} : vector<9x9xf32>, vector<9x8xf32>, vector<9x8xf32> -> vector<9x8xf32>
    %c9_194 = arith.constant 9 : index
    %c16_195 = arith.constant 16 : index
    %438 = vector.load %arg18[%c9_194, %c16_195] : memref<18x32xf32, #tpu.memory_space<vmem>>, vector<9x8xf32>
    tpu.vector_store %arg18[%c9_194, %c16_195], %437 {strides = array<i32>} : memref<18x32xf32, #tpu.memory_space<vmem>>, vector<9x8xf32>,
    %439 = vector.extract_strided_slice %310 {offsets = [9, 24], sizes = [9, 8], strides = [1, 1]} : vector<18x32xf32> to vector<9x8xf32>
    %440 = vector.extract_strided_slice %311 {offsets = [9, 24], sizes = [9, 8], strides = [1, 1]} : vector<18x32xf32> to vector<9x8xf32>
    %441 = vector.extract_strided_slice %312 {offsets = [9, 24], sizes = [9, 8], strides = [1, 1]} : vector<18x32xf32> to vector<9x8xf32>
    %cst_196 = arith.constant dense<0.000000e+00> : vector<9x9xf32>
    %442 = tpu.matmul %439, %440, %cst_196 {dimension_numbers = #tpu.dot_dimension_numbers<[1], [1], [0], [0], [0, 0, 1, 0], [], []>} : vector<9x8xf32>, vector<9x8xf32>, vector<9x9xf32> -> vector<9x9xf32>
    %cst_197 = arith.constant 0.176776692 : f32
    %443 = vector.broadcast %cst_197 : f32 to vector<9x9xf32>
    %444 = arith.mulf %442, %443 : vector<9x9xf32>
    %cst_198 = arith.constant dense<0xFF800000> : vector<9xf32>
    %445 = vector.multi_reduction <maximumf>, %444, %cst_198 [1] : vector<9x9xf32> to vector<9xf32>
    %446 = vector.shape_cast %445 : vector<9xf32> to vector<9x1xf32>
    %447 = vector.broadcast %446 : vector<9x1xf32> to vector<9x9xf32>
    %448 = arith.subf %444, %447 : vector<9x9xf32>
    %449 = math.exp %448 : vector<9x9xf32>
    %cst_199 = arith.constant dense<0.000000e+00> : vector<9xf32>
    %450 = vector.multi_reduction <add>, %449, %cst_199 [1] : vector<9x9xf32> to vector<9xf32>
    %451 = vector.shape_cast %450 : vector<9xf32> to vector<9x1xf32>
    %452 = tpu.reciprocal %451 {approx = true} : vector<9x1xf32> -> vector<9x1xf32>
    %453 = vector.broadcast %452 : vector<9x1xf32> to vector<9x9xf32>
    %454 = arith.mulf %449, %453 : vector<9x9xf32>
    %cst_200 = arith.constant dense<0.000000e+00> : vector<9x8xf32>
    %455 = tpu.matmul %454, %441, %cst_200 {dimension_numbers = #tpu.dot_dimension_numbers<[1], [0], [0], [1], [0, 0, 1, 1], [], []>} : vector<9x9xf32>, vector<9x8xf32>, vector<9x8xf32> -> vector<9x8xf32>
    %c9_201 = arith.constant 9 : index
    %c24_202 = arith.constant 24 : index
    %456 = vector.load %arg18[%c9_201, %c24_202] : memref<18x32xf32, #tpu.memory_space<vmem>>, vector<9x8xf32>
    tpu.vector_store %arg18[%c9_201, %c24_202], %455 {strides = array<i32>} : memref<18x32xf32, #tpu.memory_space<vmem>>, vector<9x8xf32>,
    %c0_203 = arith.constant 0 : index
    %c0_204 = arith.constant 0 : index
    %457 = vector.load %arg18[%c0_203, %c0_204] : memref<18x32xf32, #tpu.memory_space<vmem>>, vector<18x32xf32>
    %c1_205 = arith.constant 1 : index
    %c0_206 = arith.constant 0 : index
    %c0_207 = arith.constant 0 : index
    %458 = vector.load %arg8[%c1_205, %c0_206, %c0_207] : memref<4x32x32xf32, #tpu.memory_space<vmem>>, vector<1x32x32xf32>
    %459 = vector.shape_cast %458 : vector<1x32x32xf32> to vector<32x32xf32>
    %cst_208 = arith.constant dense<0.000000e+00> : vector<18x32xf32>
    %460 = tpu.matmul %457, %459, %cst_208 {dimension_numbers = #tpu.dot_dimension_numbers<[1], [0], [0], [1], [0, 0, 1, 1], [], []>} : vector<18x32xf32>, vector<32x32xf32>, vector<18x32xf32> -> vector<18x32xf32>
    %c1_209 = arith.constant 1 : index
    %c0_210 = arith.constant 0 : index
    %c0_211 = arith.constant 0 : index
    %461 = vector.load %arg9[%c1_209, %c0_210, %c0_211] : memref<4x1x32xf32, #tpu.memory_space<vmem>>, vector<1x1x32xf32>
    %462 = vector.shape_cast %461 : vector<1x1x32xf32> to vector<1x32xf32>
    %463 = vector.broadcast %462 : vector<1x32xf32> to vector<18x32xf32>
    %464 = arith.addf %460, %463 : vector<18x32xf32>
    %465 = arith.addf %280, %464 : vector<18x32xf32>
    %c1_212 = arith.constant 1 : index
    %c0_213 = arith.constant 0 : index
    %c0_214 = arith.constant 0 : index
    %466 = vector.load %arg10[%c1_212, %c0_213, %c0_214] : memref<4x1x32xf32, #tpu.memory_space<vmem>>, vector<1x1x32xf32>
    %467 = vector.shape_cast %466 : vector<1x1x32xf32> to vector<1x32xf32>
    %c1_215 = arith.constant 1 : index
    %c0_216 = arith.constant 0 : index
    %c0_217 = arith.constant 0 : index
    %468 = vector.load %arg11[%c1_215, %c0_216, %c0_217] : memref<4x1x32xf32, #tpu.memory_space<vmem>>, vector<1x1x32xf32>
    %469 = vector.shape_cast %468 : vector<1x1x32xf32> to vector<1x32xf32>
    %cst_218 = arith.constant dense<0.000000e+00> : vector<18xf32>
    %470 = vector.multi_reduction <add>, %465, %cst_218 [1] : vector<18x32xf32> to vector<18xf32>
    %471 = vector.shape_cast %470 : vector<18xf32> to vector<18x1xf32>
    %cst_219 = arith.constant 3.200000e+01 : f32
    %472 = vector.broadcast %cst_219 : f32 to vector<18x1xf32>
    %473 = arith.divf %471, %472 : vector<18x1xf32>
    %474 = vector.broadcast %473 : vector<18x1xf32> to vector<18x32xf32>
    %475 = arith.subf %465, %474 : vector<18x32xf32>
    %476 = arith.mulf %475, %475 : vector<18x32xf32>
    %cst_220 = arith.constant dense<0.000000e+00> : vector<18xf32>
    %477 = vector.multi_reduction <add>, %476, %cst_220 [1] : vector<18x32xf32> to vector<18xf32>
    %478 = vector.shape_cast %477 : vector<18xf32> to vector<18x1xf32>
    %cst_221 = arith.constant 3.200000e+01 : f32
    %479 = vector.broadcast %cst_221 : f32 to vector<18x1xf32>
    %480 = arith.divf %478, %479 : vector<18x1xf32>
    %481 = vector.broadcast %473 : vector<18x1xf32> to vector<18x32xf32>
    %482 = arith.subf %465, %481 : vector<18x32xf32>
    %cst_222 = arith.constant 9.99999974E-6 : f32
    %483 = vector.broadcast %cst_222 : f32 to vector<18x1xf32>
    %484 = arith.addf %480, %483 : vector<18x1xf32>
    %485 = math.rsqrt %484 : vector<18x1xf32>
    %486 = vector.broadcast %485 : vector<18x1xf32> to vector<18x32xf32>
    %487 = arith.mulf %482, %486 : vector<18x32xf32>
    %488 = vector.broadcast %467 : vector<1x32xf32> to vector<18x32xf32>
    %489 = arith.mulf %487, %488 : vector<18x32xf32>
    %490 = vector.broadcast %469 : vector<1x32xf32> to vector<18x32xf32>
    %491 = arith.addf %489, %490 : vector<18x32xf32>
    %c1_223 = arith.constant 1 : index
    %c0_224 = arith.constant 0 : index
    %c0_225 = arith.constant 0 : index
    %492 = vector.load %arg12[%c1_223, %c0_224, %c0_225] : memref<4x32x64xf32, #tpu.memory_space<vmem>>, vector<1x32x64xf32>
    %493 = vector.shape_cast %492 : vector<1x32x64xf32> to vector<32x64xf32>
    %cst_226 = arith.constant dense<0.000000e+00> : vector<18x64xf32>
    %494 = tpu.matmul %491, %493, %cst_226 {dimension_numbers = #tpu.dot_dimension_numbers<[1], [0], [0], [1], [0, 0, 1, 1], [], []>} : vector<18x32xf32>, vector<32x64xf32>, vector<18x64xf32> -> vector<18x64xf32>
    %c1_227 = arith.constant 1 : index
    %c0_228 = arith.constant 0 : index
    %c0_229 = arith.constant 0 : index
    %495 = vector.load %arg13[%c1_227, %c0_228, %c0_229] : memref<4x1x64xf32, #tpu.memory_space<vmem>>, vector<1x1x64xf32>
    %496 = vector.shape_cast %495 : vector<1x1x64xf32> to vector<1x64xf32>
    %497 = vector.broadcast %496 : vector<1x64xf32> to vector<18x64xf32>
    %498 = arith.addf %494, %497 : vector<18x64xf32>
    %cst_230 = arith.constant 0.707106769 : f32
    %499 = vector.broadcast %cst_230 : f32 to vector<18x64xf32>
    %500 = arith.mulf %498, %499 : vector<18x64xf32>
    %501 = math.absf %500 : vector<18x64xf32>
    %cst_231 = arith.constant 0.327591091 : f32
    %502 = vector.broadcast %cst_231 : f32 to vector<18x64xf32>
    %503 = arith.mulf %502, %501 : vector<18x64xf32>
    %cst_232 = arith.constant 1.000000e+00 : f32
    %504 = vector.broadcast %cst_232 : f32 to vector<18x64xf32>
    %505 = arith.addf %504, %503 : vector<18x64xf32>
    %cst_233 = arith.constant 1.000000e+00 : f32
    %506 = vector.broadcast %cst_233 : f32 to vector<18x64xf32>
    %507 = arith.divf %506, %505 : vector<18x64xf32>
    %cst_234 = arith.constant 1.06140542 : f32
    %508 = vector.broadcast %cst_234 : f32 to vector<18x64xf32>
    %509 = arith.mulf %508, %507 : vector<18x64xf32>
    %cst_235 = arith.constant 1.45315206 : f32
    %510 = vector.broadcast %cst_235 : f32 to vector<18x64xf32>
    %511 = arith.subf %509, %510 : vector<18x64xf32>
    %512 = arith.mulf %511, %507 : vector<18x64xf32>
    %cst_236 = arith.constant 1.42141378 : f32
    %513 = vector.broadcast %cst_236 : f32 to vector<18x64xf32>
    %514 = arith.addf %512, %513 : vector<18x64xf32>
    %515 = arith.mulf %514, %507 : vector<18x64xf32>
    %cst_237 = arith.constant 0.284496725 : f32
    %516 = vector.broadcast %cst_237 : f32 to vector<18x64xf32>
    %517 = arith.subf %515, %516 : vector<18x64xf32>
    %518 = arith.mulf %517, %507 : vector<18x64xf32>
    %cst_238 = arith.constant 0.254829586 : f32
    %519 = vector.broadcast %cst_238 : f32 to vector<18x64xf32>
    %520 = arith.addf %518, %519 : vector<18x64xf32>
    %521 = arith.mulf %520, %507 : vector<18x64xf32>
    %cst_239 = arith.constant 0.000000e+00 : f32
    %522 = vector.broadcast %cst_239 : f32 to vector<18x64xf32>
    %523 = arith.subf %522, %501 : vector<18x64xf32>
    %524 = arith.mulf %523, %501 : vector<18x64xf32>
    %525 = math.exp %524 : vector<18x64xf32>
    %526 = arith.mulf %521, %525 : vector<18x64xf32>
    %cst_240 = arith.constant 1.000000e+00 : f32
    %527 = vector.broadcast %cst_240 : f32 to vector<18x64xf32>
    %528 = arith.subf %527, %526 : vector<18x64xf32>
    %cst_241 = arith.constant 0.000000e+00 : f32
    %529 = vector.broadcast %cst_241 : f32 to vector<18x64xf32>
    %530 = arith.cmpf olt, %500, %529 : vector<18x64xf32>
    %cst_242 = arith.constant 0.000000e+00 : f32
    %531 = vector.broadcast %cst_242 : f32 to vector<18x64xf32>
    %532 = arith.subf %531, %528 : vector<18x64xf32>
    %533 = arith.select %530, %532, %528 : vector<18x64xi1>, vector<18x64xf32>
    %cst_243 = arith.constant 5.000000e-01 : f32
    %534 = vector.broadcast %cst_243 : f32 to vector<18x64xf32>
    %535 = arith.mulf %534, %498 : vector<18x64xf32>
    %cst_244 = arith.constant 1.000000e+00 : f32
    %536 = vector.broadcast %cst_244 : f32 to vector<18x64xf32>
    %537 = arith.addf %536, %533 : vector<18x64xf32>
    %538 = arith.mulf %535, %537 : vector<18x64xf32>
    %c1_245 = arith.constant 1 : index
    %c0_246 = arith.constant 0 : index
    %c0_247 = arith.constant 0 : index
    %539 = vector.load %arg14[%c1_245, %c0_246, %c0_247] : memref<4x64x32xf32, #tpu.memory_space<vmem>>, vector<1x64x32xf32>
    %540 = vector.shape_cast %539 : vector<1x64x32xf32> to vector<64x32xf32>
    %cst_248 = arith.constant dense<0.000000e+00> : vector<18x32xf32>
    %541 = tpu.matmul %538, %540, %cst_248 {dimension_numbers = #tpu.dot_dimension_numbers<[1], [0], [0], [1], [0, 0, 1, 1], [], []>} : vector<18x64xf32>, vector<64x32xf32>, vector<18x32xf32> -> vector<18x32xf32>
    %c1_249 = arith.constant 1 : index
    %c0_250 = arith.constant 0 : index
    %c0_251 = arith.constant 0 : index
    %542 = vector.load %arg15[%c1_249, %c0_250, %c0_251] : memref<4x1x32xf32, #tpu.memory_space<vmem>>, vector<1x1x32xf32>
    %543 = vector.shape_cast %542 : vector<1x1x32xf32> to vector<1x32xf32>
    %544 = vector.broadcast %543 : vector<1x32xf32> to vector<18x32xf32>
    %545 = arith.addf %541, %544 : vector<18x32xf32>
    %546 = arith.addf %465, %545 : vector<18x32xf32>
    %c2 = arith.constant 2 : index
    %c0_252 = arith.constant 0 : index
    %c0_253 = arith.constant 0 : index
    %547 = vector.load %arg5[%c2, %c0_252, %c0_253] : memref<4x1x32xf32, #tpu.memory_space<vmem>>, vector<1x1x32xf32>
    %548 = vector.shape_cast %547 : vector<1x1x32xf32> to vector<1x32xf32>
    %c2_254 = arith.constant 2 : index
    %c0_255 = arith.constant 0 : index
    %c0_256 = arith.constant 0 : index
    %549 = vector.load %arg6[%c2_254, %c0_255, %c0_256] : memref<4x1x32xf32, #tpu.memory_space<vmem>>, vector<1x1x32xf32>
    %550 = vector.shape_cast %549 : vector<1x1x32xf32> to vector<1x32xf32>
    %cst_257 = arith.constant dense<0.000000e+00> : vector<18xf32>
    %551 = vector.multi_reduction <add>, %546, %cst_257 [1] : vector<18x32xf32> to vector<18xf32>
    %552 = vector.shape_cast %551 : vector<18xf32> to vector<18x1xf32>
    %cst_258 = arith.constant 3.200000e+01 : f32
    %553 = vector.broadcast %cst_258 : f32 to vector<18x1xf32>
    %554 = arith.divf %552, %553 : vector<18x1xf32>
    %555 = vector.broadcast %554 : vector<18x1xf32> to vector<18x32xf32>
    %556 = arith.subf %546, %555 : vector<18x32xf32>
    %557 = arith.mulf %556, %556 : vector<18x32xf32>
    %cst_259 = arith.constant dense<0.000000e+00> : vector<18xf32>
    %558 = vector.multi_reduction <add>, %557, %cst_259 [1] : vector<18x32xf32> to vector<18xf32>
    %559 = vector.shape_cast %558 : vector<18xf32> to vector<18x1xf32>
    %cst_260 = arith.constant 3.200000e+01 : f32
    %560 = vector.broadcast %cst_260 : f32 to vector<18x1xf32>
    %561 = arith.divf %559, %560 : vector<18x1xf32>
    %562 = vector.broadcast %554 : vector<18x1xf32> to vector<18x32xf32>
    %563 = arith.subf %546, %562 : vector<18x32xf32>
    %cst_261 = arith.constant 9.99999974E-6 : f32
    %564 = vector.broadcast %cst_261 : f32 to vector<18x1xf32>
    %565 = arith.addf %561, %564 : vector<18x1xf32>
    %566 = math.rsqrt %565 : vector<18x1xf32>
    %567 = vector.broadcast %566 : vector<18x1xf32> to vector<18x32xf32>
    %568 = arith.mulf %563, %567 : vector<18x32xf32>
    %569 = vector.broadcast %548 : vector<1x32xf32> to vector<18x32xf32>
    %570 = arith.mulf %568, %569 : vector<18x32xf32>
    %571 = vector.broadcast %550 : vector<1x32xf32> to vector<18x32xf32>
    %572 = arith.addf %570, %571 : vector<18x32xf32>
    %c2_262 = arith.constant 2 : index
    %c0_263 = arith.constant 0 : index
    %c0_264 = arith.constant 0 : index
    %573 = vector.load %arg7[%c2_262, %c0_263, %c0_264] : memref<4x32x96xf32, #tpu.memory_space<vmem>>, vector<1x32x96xf32>
    %574 = vector.shape_cast %573 : vector<1x32x96xf32> to vector<32x96xf32>
    %cst_265 = arith.constant dense<0.000000e+00> : vector<18x96xf32>
    %575 = tpu.matmul %572, %574, %cst_265 {dimension_numbers = #tpu.dot_dimension_numbers<[1], [0], [0], [1], [0, 0, 1, 1], [], []>} : vector<18x32xf32>, vector<32x96xf32>, vector<18x96xf32> -> vector<18x96xf32>
    %576 = vector.extract_strided_slice %575 {offsets = [0, 0], sizes = [18, 32], strides = [1, 1]} : vector<18x96xf32> to vector<18x32xf32>
    %577 = vector.extract_strided_slice %575 {offsets = [0, 32], sizes = [18, 32], strides = [1, 1]} : vector<18x96xf32> to vector<18x32xf32>
    %578 = vector.extract_strided_slice %575 {offsets = [0, 64], sizes = [18, 32], strides = [1, 1]} : vector<18x96xf32> to vector<18x32xf32>
    %579 = vector.extract_strided_slice %576 {offsets = [0, 0], sizes = [9, 8], strides = [1, 1]} : vector<18x32xf32> to vector<9x8xf32>
    %580 = vector.extract_strided_slice %577 {offsets = [0, 0], sizes = [9, 8], strides = [1, 1]} : vector<18x32xf32> to vector<9x8xf32>
    %581 = vector.extract_strided_slice %578 {offsets = [0, 0], sizes = [9, 8], strides = [1, 1]} : vector<18x32xf32> to vector<9x8xf32>
    %cst_266 = arith.constant dense<0.000000e+00> : vector<9x9xf32>
    %582 = tpu.matmul %579, %580, %cst_266 {dimension_numbers = #tpu.dot_dimension_numbers<[1], [1], [0], [0], [0, 0, 1, 0], [], []>} : vector<9x8xf32>, vector<9x8xf32>, vector<9x9xf32> -> vector<9x9xf32>
    %cst_267 = arith.constant 0.176776692 : f32
    %583 = vector.broadcast %cst_267 : f32 to vector<9x9xf32>
    %584 = arith.mulf %582, %583 : vector<9x9xf32>
    %cst_268 = arith.constant dense<0xFF800000> : vector<9xf32>
    %585 = vector.multi_reduction <maximumf>, %584, %cst_268 [1] : vector<9x9xf32> to vector<9xf32>
    %586 = vector.shape_cast %585 : vector<9xf32> to vector<9x1xf32>
    %587 = vector.broadcast %586 : vector<9x1xf32> to vector<9x9xf32>
    %588 = arith.subf %584, %587 : vector<9x9xf32>
    %589 = math.exp %588 : vector<9x9xf32>
    %cst_269 = arith.constant dense<0.000000e+00> : vector<9xf32>
    %590 = vector.multi_reduction <add>, %589, %cst_269 [1] : vector<9x9xf32> to vector<9xf32>
    %591 = vector.shape_cast %590 : vector<9xf32> to vector<9x1xf32>
    %592 = tpu.reciprocal %591 {approx = true} : vector<9x1xf32> -> vector<9x1xf32>
    %593 = vector.broadcast %592 : vector<9x1xf32> to vector<9x9xf32>
    %594 = arith.mulf %589, %593 : vector<9x9xf32>
    %cst_270 = arith.constant dense<0.000000e+00> : vector<9x8xf32>
    %595 = tpu.matmul %594, %581, %cst_270 {dimension_numbers = #tpu.dot_dimension_numbers<[1], [0], [0], [1], [0, 0, 1, 1], [], []>} : vector<9x9xf32>, vector<9x8xf32>, vector<9x8xf32> -> vector<9x8xf32>
    %c0_271 = arith.constant 0 : index
    %c0_272 = arith.constant 0 : index
    %596 = vector.load %arg18[%c0_271, %c0_272] : memref<18x32xf32, #tpu.memory_space<vmem>>, vector<9x8xf32>
    tpu.vector_store %arg18[%c0_271, %c0_272], %595 {strides = array<i32>} : memref<18x32xf32, #tpu.memory_space<vmem>>, vector<9x8xf32>,
    %597 = vector.extract_strided_slice %576 {offsets = [0, 8], sizes = [9, 8], strides = [1, 1]} : vector<18x32xf32> to vector<9x8xf32>
    %598 = vector.extract_strided_slice %577 {offsets = [0, 8], sizes = [9, 8], strides = [1, 1]} : vector<18x32xf32> to vector<9x8xf32>
    %599 = vector.extract_strided_slice %578 {offsets = [0, 8], sizes = [9, 8], strides = [1, 1]} : vector<18x32xf32> to vector<9x8xf32>
    %cst_273 = arith.constant dense<0.000000e+00> : vector<9x9xf32>
    %600 = tpu.matmul %597, %598, %cst_273 {dimension_numbers = #tpu.dot_dimension_numbers<[1], [1], [0], [0], [0, 0, 1, 0], [], []>} : vector<9x8xf32>, vector<9x8xf32>, vector<9x9xf32> -> vector<9x9xf32>
    %cst_274 = arith.constant 0.176776692 : f32
    %601 = vector.broadcast %cst_274 : f32 to vector<9x9xf32>
    %602 = arith.mulf %600, %601 : vector<9x9xf32>
    %cst_275 = arith.constant dense<0xFF800000> : vector<9xf32>
    %603 = vector.multi_reduction <maximumf>, %602, %cst_275 [1] : vector<9x9xf32> to vector<9xf32>
    %604 = vector.shape_cast %603 : vector<9xf32> to vector<9x1xf32>
    %605 = vector.broadcast %604 : vector<9x1xf32> to vector<9x9xf32>
    %606 = arith.subf %602, %605 : vector<9x9xf32>
    %607 = math.exp %606 : vector<9x9xf32>
    %cst_276 = arith.constant dense<0.000000e+00> : vector<9xf32>
    %608 = vector.multi_reduction <add>, %607, %cst_276 [1] : vector<9x9xf32> to vector<9xf32>
    %609 = vector.shape_cast %608 : vector<9xf32> to vector<9x1xf32>
    %610 = tpu.reciprocal %609 {approx = true} : vector<9x1xf32> -> vector<9x1xf32>
    %611 = vector.broadcast %610 : vector<9x1xf32> to vector<9x9xf32>
    %612 = arith.mulf %607, %611 : vector<9x9xf32>
    %cst_277 = arith.constant dense<0.000000e+00> : vector<9x8xf32>
    %613 = tpu.matmul %612, %599, %cst_277 {dimension_numbers = #tpu.dot_dimension_numbers<[1], [0], [0], [1], [0, 0, 1, 1], [], []>} : vector<9x9xf32>, vector<9x8xf32>, vector<9x8xf32> -> vector<9x8xf32>
    %c0_278 = arith.constant 0 : index
    %c8_279 = arith.constant 8 : index
    %614 = vector.load %arg18[%c0_278, %c8_279] : memref<18x32xf32, #tpu.memory_space<vmem>>, vector<9x8xf32>
    tpu.vector_store %arg18[%c0_278, %c8_279], %613 {strides = array<i32>} : memref<18x32xf32, #tpu.memory_space<vmem>>, vector<9x8xf32>,
    %615 = vector.extract_strided_slice %576 {offsets = [0, 16], sizes = [9, 8], strides = [1, 1]} : vector<18x32xf32> to vector<9x8xf32>
    %616 = vector.extract_strided_slice %577 {offsets = [0, 16], sizes = [9, 8], strides = [1, 1]} : vector<18x32xf32> to vector<9x8xf32>
    %617 = vector.extract_strided_slice %578 {offsets = [0, 16], sizes = [9, 8], strides = [1, 1]} : vector<18x32xf32> to vector<9x8xf32>
    %cst_280 = arith.constant dense<0.000000e+00> : vector<9x9xf32>
    %618 = tpu.matmul %615, %616, %cst_280 {dimension_numbers = #tpu.dot_dimension_numbers<[1], [1], [0], [0], [0, 0, 1, 0], [], []>} : vector<9x8xf32>, vector<9x8xf32>, vector<9x9xf32> -> vector<9x9xf32>
    %cst_281 = arith.constant 0.176776692 : f32
    %619 = vector.broadcast %cst_281 : f32 to vector<9x9xf32>
    %620 = arith.mulf %618, %619 : vector<9x9xf32>
    %cst_282 = arith.constant dense<0xFF800000> : vector<9xf32>
    %621 = vector.multi_reduction <maximumf>, %620, %cst_282 [1] : vector<9x9xf32> to vector<9xf32>
    %622 = vector.shape_cast %621 : vector<9xf32> to vector<9x1xf32>
    %623 = vector.broadcast %622 : vector<9x1xf32> to vector<9x9xf32>
    %624 = arith.subf %620, %623 : vector<9x9xf32>
    %625 = math.exp %624 : vector<9x9xf32>
    %cst_283 = arith.constant dense<0.000000e+00> : vector<9xf32>
    %626 = vector.multi_reduction <add>, %625, %cst_283 [1] : vector<9x9xf32> to vector<9xf32>
    %627 = vector.shape_cast %626 : vector<9xf32> to vector<9x1xf32>
    %628 = tpu.reciprocal %627 {approx = true} : vector<9x1xf32> -> vector<9x1xf32>
    %629 = vector.broadcast %628 : vector<9x1xf32> to vector<9x9xf32>
    %630 = arith.mulf %625, %629 : vector<9x9xf32>
    %cst_284 = arith.constant dense<0.000000e+00> : vector<9x8xf32>
    %631 = tpu.matmul %630, %617, %cst_284 {dimension_numbers = #tpu.dot_dimension_numbers<[1], [0], [0], [1], [0, 0, 1, 1], [], []>} : vector<9x9xf32>, vector<9x8xf32>, vector<9x8xf32> -> vector<9x8xf32>
    %c0_285 = arith.constant 0 : index
    %c16_286 = arith.constant 16 : index
    %632 = vector.load %arg18[%c0_285, %c16_286] : memref<18x32xf32, #tpu.memory_space<vmem>>, vector<9x8xf32>
    tpu.vector_store %arg18[%c0_285, %c16_286], %631 {strides = array<i32>} : memref<18x32xf32, #tpu.memory_space<vmem>>, vector<9x8xf32>,
    %633 = vector.extract_strided_slice %576 {offsets = [0, 24], sizes = [9, 8], strides = [1, 1]} : vector<18x32xf32> to vector<9x8xf32>
    %634 = vector.extract_strided_slice %577 {offsets = [0, 24], sizes = [9, 8], strides = [1, 1]} : vector<18x32xf32> to vector<9x8xf32>
    %635 = vector.extract_strided_slice %578 {offsets = [0, 24], sizes = [9, 8], strides = [1, 1]} : vector<18x32xf32> to vector<9x8xf32>
    %cst_287 = arith.constant dense<0.000000e+00> : vector<9x9xf32>
    %636 = tpu.matmul %633, %634, %cst_287 {dimension_numbers = #tpu.dot_dimension_numbers<[1], [1], [0], [0], [0, 0, 1, 0], [], []>} : vector<9x8xf32>, vector<9x8xf32>, vector<9x9xf32> -> vector<9x9xf32>
    %cst_288 = arith.constant 0.176776692 : f32
    %637 = vector.broadcast %cst_288 : f32 to vector<9x9xf32>
    %638 = arith.mulf %636, %637 : vector<9x9xf32>
    %cst_289 = arith.constant dense<0xFF800000> : vector<9xf32>
    %639 = vector.multi_reduction <maximumf>, %638, %cst_289 [1] : vector<9x9xf32> to vector<9xf32>
    %640 = vector.shape_cast %639 : vector<9xf32> to vector<9x1xf32>
    %641 = vector.broadcast %640 : vector<9x1xf32> to vector<9x9xf32>
    %642 = arith.subf %638, %641 : vector<9x9xf32>
    %643 = math.exp %642 : vector<9x9xf32>
    %cst_290 = arith.constant dense<0.000000e+00> : vector<9xf32>
    %644 = vector.multi_reduction <add>, %643, %cst_290 [1] : vector<9x9xf32> to vector<9xf32>
    %645 = vector.shape_cast %644 : vector<9xf32> to vector<9x1xf32>
    %646 = tpu.reciprocal %645 {approx = true} : vector<9x1xf32> -> vector<9x1xf32>
    %647 = vector.broadcast %646 : vector<9x1xf32> to vector<9x9xf32>
    %648 = arith.mulf %643, %647 : vector<9x9xf32>
    %cst_291 = arith.constant dense<0.000000e+00> : vector<9x8xf32>
    %649 = tpu.matmul %648, %635, %cst_291 {dimension_numbers = #tpu.dot_dimension_numbers<[1], [0], [0], [1], [0, 0, 1, 1], [], []>} : vector<9x9xf32>, vector<9x8xf32>, vector<9x8xf32> -> vector<9x8xf32>
    %c0_292 = arith.constant 0 : index
    %c24_293 = arith.constant 24 : index
    %650 = vector.load %arg18[%c0_292, %c24_293] : memref<18x32xf32, #tpu.memory_space<vmem>>, vector<9x8xf32>
    tpu.vector_store %arg18[%c0_292, %c24_293], %649 {strides = array<i32>} : memref<18x32xf32, #tpu.memory_space<vmem>>, vector<9x8xf32>,
    %651 = vector.extract_strided_slice %576 {offsets = [9, 0], sizes = [9, 8], strides = [1, 1]} : vector<18x32xf32> to vector<9x8xf32>
    %652 = vector.extract_strided_slice %577 {offsets = [9, 0], sizes = [9, 8], strides = [1, 1]} : vector<18x32xf32> to vector<9x8xf32>
    %653 = vector.extract_strided_slice %578 {offsets = [9, 0], sizes = [9, 8], strides = [1, 1]} : vector<18x32xf32> to vector<9x8xf32>
    %cst_294 = arith.constant dense<0.000000e+00> : vector<9x9xf32>
    %654 = tpu.matmul %651, %652, %cst_294 {dimension_numbers = #tpu.dot_dimension_numbers<[1], [1], [0], [0], [0, 0, 1, 0], [], []>} : vector<9x8xf32>, vector<9x8xf32>, vector<9x9xf32> -> vector<9x9xf32>
    %cst_295 = arith.constant 0.176776692 : f32
    %655 = vector.broadcast %cst_295 : f32 to vector<9x9xf32>
    %656 = arith.mulf %654, %655 : vector<9x9xf32>
    %cst_296 = arith.constant dense<0xFF800000> : vector<9xf32>
    %657 = vector.multi_reduction <maximumf>, %656, %cst_296 [1] : vector<9x9xf32> to vector<9xf32>
    %658 = vector.shape_cast %657 : vector<9xf32> to vector<9x1xf32>
    %659 = vector.broadcast %658 : vector<9x1xf32> to vector<9x9xf32>
    %660 = arith.subf %656, %659 : vector<9x9xf32>
    %661 = math.exp %660 : vector<9x9xf32>
    %cst_297 = arith.constant dense<0.000000e+00> : vector<9xf32>
    %662 = vector.multi_reduction <add>, %661, %cst_297 [1] : vector<9x9xf32> to vector<9xf32>
    %663 = vector.shape_cast %662 : vector<9xf32> to vector<9x1xf32>
    %664 = tpu.reciprocal %663 {approx = true} : vector<9x1xf32> -> vector<9x1xf32>
    %665 = vector.broadcast %664 : vector<9x1xf32> to vector<9x9xf32>
    %666 = arith.mulf %661, %665 : vector<9x9xf32>
    %cst_298 = arith.constant dense<0.000000e+00> : vector<9x8xf32>
    %667 = tpu.matmul %666, %653, %cst_298 {dimension_numbers = #tpu.dot_dimension_numbers<[1], [0], [0], [1], [0, 0, 1, 1], [], []>} : vector<9x9xf32>, vector<9x8xf32>, vector<9x8xf32> -> vector<9x8xf32>
    %c9_299 = arith.constant 9 : index
    %c0_300 = arith.constant 0 : index
    %668 = vector.load %arg18[%c9_299, %c0_300] : memref<18x32xf32, #tpu.memory_space<vmem>>, vector<9x8xf32>
    tpu.vector_store %arg18[%c9_299, %c0_300], %667 {strides = array<i32>} : memref<18x32xf32, #tpu.memory_space<vmem>>, vector<9x8xf32>,
    %669 = vector.extract_strided_slice %576 {offsets = [9, 8], sizes = [9, 8], strides = [1, 1]} : vector<18x32xf32> to vector<9x8xf32>
    %670 = vector.extract_strided_slice %577 {offsets = [9, 8], sizes = [9, 8], strides = [1, 1]} : vector<18x32xf32> to vector<9x8xf32>
    %671 = vector.extract_strided_slice %578 {offsets = [9, 8], sizes = [9, 8], strides = [1, 1]} : vector<18x32xf32> to vector<9x8xf32>
    %cst_301 = arith.constant dense<0.000000e+00> : vector<9x9xf32>
    %672 = tpu.matmul %669, %670, %cst_301 {dimension_numbers = #tpu.dot_dimension_numbers<[1], [1], [0], [0], [0, 0, 1, 0], [], []>} : vector<9x8xf32>, vector<9x8xf32>, vector<9x9xf32> -> vector<9x9xf32>
    %cst_302 = arith.constant 0.176776692 : f32
    %673 = vector.broadcast %cst_302 : f32 to vector<9x9xf32>
    %674 = arith.mulf %672, %673 : vector<9x9xf32>
    %cst_303 = arith.constant dense<0xFF800000> : vector<9xf32>
    %675 = vector.multi_reduction <maximumf>, %674, %cst_303 [1] : vector<9x9xf32> to vector<9xf32>
    %676 = vector.shape_cast %675 : vector<9xf32> to vector<9x1xf32>
    %677 = vector.broadcast %676 : vector<9x1xf32> to vector<9x9xf32>
    %678 = arith.subf %674, %677 : vector<9x9xf32>
    %679 = math.exp %678 : vector<9x9xf32>
    %cst_304 = arith.constant dense<0.000000e+00> : vector<9xf32>
    %680 = vector.multi_reduction <add>, %679, %cst_304 [1] : vector<9x9xf32> to vector<9xf32>
    %681 = vector.shape_cast %680 : vector<9xf32> to vector<9x1xf32>
    %682 = tpu.reciprocal %681 {approx = true} : vector<9x1xf32> -> vector<9x1xf32>
    %683 = vector.broadcast %682 : vector<9x1xf32> to vector<9x9xf32>
    %684 = arith.mulf %679, %683 : vector<9x9xf32>
    %cst_305 = arith.constant dense<0.000000e+00> : vector<9x8xf32>
    %685 = tpu.matmul %684, %671, %cst_305 {dimension_numbers = #tpu.dot_dimension_numbers<[1], [0], [0], [1], [0, 0, 1, 1], [], []>} : vector<9x9xf32>, vector<9x8xf32>, vector<9x8xf32> -> vector<9x8xf32>
    %c9_306 = arith.constant 9 : index
    %c8_307 = arith.constant 8 : index
    %686 = vector.load %arg18[%c9_306, %c8_307] : memref<18x32xf32, #tpu.memory_space<vmem>>, vector<9x8xf32>
    tpu.vector_store %arg18[%c9_306, %c8_307], %685 {strides = array<i32>} : memref<18x32xf32, #tpu.memory_space<vmem>>, vector<9x8xf32>,
    %687 = vector.extract_strided_slice %576 {offsets = [9, 16], sizes = [9, 8], strides = [1, 1]} : vector<18x32xf32> to vector<9x8xf32>
    %688 = vector.extract_strided_slice %577 {offsets = [9, 16], sizes = [9, 8], strides = [1, 1]} : vector<18x32xf32> to vector<9x8xf32>
    %689 = vector.extract_strided_slice %578 {offsets = [9, 16], sizes = [9, 8], strides = [1, 1]} : vector<18x32xf32> to vector<9x8xf32>
    %cst_308 = arith.constant dense<0.000000e+00> : vector<9x9xf32>
    %690 = tpu.matmul %687, %688, %cst_308 {dimension_numbers = #tpu.dot_dimension_numbers<[1], [1], [0], [0], [0, 0, 1, 0], [], []>} : vector<9x8xf32>, vector<9x8xf32>, vector<9x9xf32> -> vector<9x9xf32>
    %cst_309 = arith.constant 0.176776692 : f32
    %691 = vector.broadcast %cst_309 : f32 to vector<9x9xf32>
    %692 = arith.mulf %690, %691 : vector<9x9xf32>
    %cst_310 = arith.constant dense<0xFF800000> : vector<9xf32>
    %693 = vector.multi_reduction <maximumf>, %692, %cst_310 [1] : vector<9x9xf32> to vector<9xf32>
    %694 = vector.shape_cast %693 : vector<9xf32> to vector<9x1xf32>
    %695 = vector.broadcast %694 : vector<9x1xf32> to vector<9x9xf32>
    %696 = arith.subf %692, %695 : vector<9x9xf32>
    %697 = math.exp %696 : vector<9x9xf32>
    %cst_311 = arith.constant dense<0.000000e+00> : vector<9xf32>
    %698 = vector.multi_reduction <add>, %697, %cst_311 [1] : vector<9x9xf32> to vector<9xf32>
    %699 = vector.shape_cast %698 : vector<9xf32> to vector<9x1xf32>
    %700 = tpu.reciprocal %699 {approx = true} : vector<9x1xf32> -> vector<9x1xf32>
    %701 = vector.broadcast %700 : vector<9x1xf32> to vector<9x9xf32>
    %702 = arith.mulf %697, %701 : vector<9x9xf32>
    %cst_312 = arith.constant dense<0.000000e+00> : vector<9x8xf32>
    %703 = tpu.matmul %702, %689, %cst_312 {dimension_numbers = #tpu.dot_dimension_numbers<[1], [0], [0], [1], [0, 0, 1, 1], [], []>} : vector<9x9xf32>, vector<9x8xf32>, vector<9x8xf32> -> vector<9x8xf32>
    %c9_313 = arith.constant 9 : index
    %c16_314 = arith.constant 16 : index
    %704 = vector.load %arg18[%c9_313, %c16_314] : memref<18x32xf32, #tpu.memory_space<vmem>>, vector<9x8xf32>
    tpu.vector_store %arg18[%c9_313, %c16_314], %703 {strides = array<i32>} : memref<18x32xf32, #tpu.memory_space<vmem>>, vector<9x8xf32>,
    %705 = vector.extract_strided_slice %576 {offsets = [9, 24], sizes = [9, 8], strides = [1, 1]} : vector<18x32xf32> to vector<9x8xf32>
    %706 = vector.extract_strided_slice %577 {offsets = [9, 24], sizes = [9, 8], strides = [1, 1]} : vector<18x32xf32> to vector<9x8xf32>
    %707 = vector.extract_strided_slice %578 {offsets = [9, 24], sizes = [9, 8], strides = [1, 1]} : vector<18x32xf32> to vector<9x8xf32>
    %cst_315 = arith.constant dense<0.000000e+00> : vector<9x9xf32>
    %708 = tpu.matmul %705, %706, %cst_315 {dimension_numbers = #tpu.dot_dimension_numbers<[1], [1], [0], [0], [0, 0, 1, 0], [], []>} : vector<9x8xf32>, vector<9x8xf32>, vector<9x9xf32> -> vector<9x9xf32>
    %cst_316 = arith.constant 0.176776692 : f32
    %709 = vector.broadcast %cst_316 : f32 to vector<9x9xf32>
    %710 = arith.mulf %708, %709 : vector<9x9xf32>
    %cst_317 = arith.constant dense<0xFF800000> : vector<9xf32>
    %711 = vector.multi_reduction <maximumf>, %710, %cst_317 [1] : vector<9x9xf32> to vector<9xf32>
    %712 = vector.shape_cast %711 : vector<9xf32> to vector<9x1xf32>
    %713 = vector.broadcast %712 : vector<9x1xf32> to vector<9x9xf32>
    %714 = arith.subf %710, %713 : vector<9x9xf32>
    %715 = math.exp %714 : vector<9x9xf32>
    %cst_318 = arith.constant dense<0.000000e+00> : vector<9xf32>
    %716 = vector.multi_reduction <add>, %715, %cst_318 [1] : vector<9x9xf32> to vector<9xf32>
    %717 = vector.shape_cast %716 : vector<9xf32> to vector<9x1xf32>
    %718 = tpu.reciprocal %717 {approx = true} : vector<9x1xf32> -> vector<9x1xf32>
    %719 = vector.broadcast %718 : vector<9x1xf32> to vector<9x9xf32>
    %720 = arith.mulf %715, %719 : vector<9x9xf32>
    %cst_319 = arith.constant dense<0.000000e+00> : vector<9x8xf32>
    %721 = tpu.matmul %720, %707, %cst_319 {dimension_numbers = #tpu.dot_dimension_numbers<[1], [0], [0], [1], [0, 0, 1, 1], [], []>} : vector<9x9xf32>, vector<9x8xf32>, vector<9x8xf32> -> vector<9x8xf32>
    %c9_320 = arith.constant 9 : index
    %c24_321 = arith.constant 24 : index
    %722 = vector.load %arg18[%c9_320, %c24_321] : memref<18x32xf32, #tpu.memory_space<vmem>>, vector<9x8xf32>
    tpu.vector_store %arg18[%c9_320, %c24_321], %721 {strides = array<i32>} : memref<18x32xf32, #tpu.memory_space<vmem>>, vector<9x8xf32>,
    %c0_322 = arith.constant 0 : index
    %c0_323 = arith.constant 0 : index
    %723 = vector.load %arg18[%c0_322, %c0_323] : memref<18x32xf32, #tpu.memory_space<vmem>>, vector<18x32xf32>
    %c2_324 = arith.constant 2 : index
    %c0_325 = arith.constant 0 : index
    %c0_326 = arith.constant 0 : index
    %724 = vector.load %arg8[%c2_324, %c0_325, %c0_326] : memref<4x32x32xf32, #tpu.memory_space<vmem>>, vector<1x32x32xf32>
    %725 = vector.shape_cast %724 : vector<1x32x32xf32> to vector<32x32xf32>
    %cst_327 = arith.constant dense<0.000000e+00> : vector<18x32xf32>
    %726 = tpu.matmul %723, %725, %cst_327 {dimension_numbers = #tpu.dot_dimension_numbers<[1], [0], [0], [1], [0, 0, 1, 1], [], []>} : vector<18x32xf32>, vector<32x32xf32>, vector<18x32xf32> -> vector<18x32xf32>
    %c2_328 = arith.constant 2 : index
    %c0_329 = arith.constant 0 : index
    %c0_330 = arith.constant 0 : index
    %727 = vector.load %arg9[%c2_328, %c0_329, %c0_330] : memref<4x1x32xf32, #tpu.memory_space<vmem>>, vector<1x1x32xf32>
    %728 = vector.shape_cast %727 : vector<1x1x32xf32> to vector<1x32xf32>
    %729 = vector.broadcast %728 : vector<1x32xf32> to vector<18x32xf32>
    %730 = arith.addf %726, %729 : vector<18x32xf32>
    %731 = arith.addf %546, %730 : vector<18x32xf32>
    %c2_331 = arith.constant 2 : index
    %c0_332 = arith.constant 0 : index
    %c0_333 = arith.constant 0 : index
    %732 = vector.load %arg10[%c2_331, %c0_332, %c0_333] : memref<4x1x32xf32, #tpu.memory_space<vmem>>, vector<1x1x32xf32>
    %733 = vector.shape_cast %732 : vector<1x1x32xf32> to vector<1x32xf32>
    %c2_334 = arith.constant 2 : index
    %c0_335 = arith.constant 0 : index
    %c0_336 = arith.constant 0 : index
    %734 = vector.load %arg11[%c2_334, %c0_335, %c0_336] : memref<4x1x32xf32, #tpu.memory_space<vmem>>, vector<1x1x32xf32>
    %735 = vector.shape_cast %734 : vector<1x1x32xf32> to vector<1x32xf32>
    %cst_337 = arith.constant dense<0.000000e+00> : vector<18xf32>
    %736 = vector.multi_reduction <add>, %731, %cst_337 [1] : vector<18x32xf32> to vector<18xf32>
    %737 = vector.shape_cast %736 : vector<18xf32> to vector<18x1xf32>
    %cst_338 = arith.constant 3.200000e+01 : f32
    %738 = vector.broadcast %cst_338 : f32 to vector<18x1xf32>
    %739 = arith.divf %737, %738 : vector<18x1xf32>
    %740 = vector.broadcast %739 : vector<18x1xf32> to vector<18x32xf32>
    %741 = arith.subf %731, %740 : vector<18x32xf32>
    %742 = arith.mulf %741, %741 : vector<18x32xf32>
    %cst_339 = arith.constant dense<0.000000e+00> : vector<18xf32>
    %743 = vector.multi_reduction <add>, %742, %cst_339 [1] : vector<18x32xf32> to vector<18xf32>
    %744 = vector.shape_cast %743 : vector<18xf32> to vector<18x1xf32>
    %cst_340 = arith.constant 3.200000e+01 : f32
    %745 = vector.broadcast %cst_340 : f32 to vector<18x1xf32>
    %746 = arith.divf %744, %745 : vector<18x1xf32>
    %747 = vector.broadcast %739 : vector<18x1xf32> to vector<18x32xf32>
    %748 = arith.subf %731, %747 : vector<18x32xf32>
    %cst_341 = arith.constant 9.99999974E-6 : f32
    %749 = vector.broadcast %cst_341 : f32 to vector<18x1xf32>
    %750 = arith.addf %746, %749 : vector<18x1xf32>
    %751 = math.rsqrt %750 : vector<18x1xf32>
    %752 = vector.broadcast %751 : vector<18x1xf32> to vector<18x32xf32>
    %753 = arith.mulf %748, %752 : vector<18x32xf32>
    %754 = vector.broadcast %733 : vector<1x32xf32> to vector<18x32xf32>
    %755 = arith.mulf %753, %754 : vector<18x32xf32>
    %756 = vector.broadcast %735 : vector<1x32xf32> to vector<18x32xf32>
    %757 = arith.addf %755, %756 : vector<18x32xf32>
    %c2_342 = arith.constant 2 : index
    %c0_343 = arith.constant 0 : index
    %c0_344 = arith.constant 0 : index
    %758 = vector.load %arg12[%c2_342, %c0_343, %c0_344] : memref<4x32x64xf32, #tpu.memory_space<vmem>>, vector<1x32x64xf32>
    %759 = vector.shape_cast %758 : vector<1x32x64xf32> to vector<32x64xf32>
    %cst_345 = arith.constant dense<0.000000e+00> : vector<18x64xf32>
    %760 = tpu.matmul %757, %759, %cst_345 {dimension_numbers = #tpu.dot_dimension_numbers<[1], [0], [0], [1], [0, 0, 1, 1], [], []>} : vector<18x32xf32>, vector<32x64xf32>, vector<18x64xf32> -> vector<18x64xf32>
    %c2_346 = arith.constant 2 : index
    %c0_347 = arith.constant 0 : index
    %c0_348 = arith.constant 0 : index
    %761 = vector.load %arg13[%c2_346, %c0_347, %c0_348] : memref<4x1x64xf32, #tpu.memory_space<vmem>>, vector<1x1x64xf32>
    %762 = vector.shape_cast %761 : vector<1x1x64xf32> to vector<1x64xf32>
    %763 = vector.broadcast %762 : vector<1x64xf32> to vector<18x64xf32>
    %764 = arith.addf %760, %763 : vector<18x64xf32>
    %cst_349 = arith.constant 0.707106769 : f32
    %765 = vector.broadcast %cst_349 : f32 to vector<18x64xf32>
    %766 = arith.mulf %764, %765 : vector<18x64xf32>
    %767 = math.absf %766 : vector<18x64xf32>
    %cst_350 = arith.constant 0.327591091 : f32
    %768 = vector.broadcast %cst_350 : f32 to vector<18x64xf32>
    %769 = arith.mulf %768, %767 : vector<18x64xf32>
    %cst_351 = arith.constant 1.000000e+00 : f32
    %770 = vector.broadcast %cst_351 : f32 to vector<18x64xf32>
    %771 = arith.addf %770, %769 : vector<18x64xf32>
    %cst_352 = arith.constant 1.000000e+00 : f32
    %772 = vector.broadcast %cst_352 : f32 to vector<18x64xf32>
    %773 = arith.divf %772, %771 : vector<18x64xf32>
    %cst_353 = arith.constant 1.06140542 : f32
    %774 = vector.broadcast %cst_353 : f32 to vector<18x64xf32>
    %775 = arith.mulf %774, %773 : vector<18x64xf32>
    %cst_354 = arith.constant 1.45315206 : f32
    %776 = vector.broadcast %cst_354 : f32 to vector<18x64xf32>
    %777 = arith.subf %775, %776 : vector<18x64xf32>
    %778 = arith.mulf %777, %773 : vector<18x64xf32>
    %cst_355 = arith.constant 1.42141378 : f32
    %779 = vector.broadcast %cst_355 : f32 to vector<18x64xf32>
    %780 = arith.addf %778, %779 : vector<18x64xf32>
    %781 = arith.mulf %780, %773 : vector<18x64xf32>
    %cst_356 = arith.constant 0.284496725 : f32
    %782 = vector.broadcast %cst_356 : f32 to vector<18x64xf32>
    %783 = arith.subf %781, %782 : vector<18x64xf32>
    %784 = arith.mulf %783, %773 : vector<18x64xf32>
    %cst_357 = arith.constant 0.254829586 : f32
    %785 = vector.broadcast %cst_357 : f32 to vector<18x64xf32>
    %786 = arith.addf %784, %785 : vector<18x64xf32>
    %787 = arith.mulf %786, %773 : vector<18x64xf32>
    %cst_358 = arith.constant 0.000000e+00 : f32
    %788 = vector.broadcast %cst_358 : f32 to vector<18x64xf32>
    %789 = arith.subf %788, %767 : vector<18x64xf32>
    %790 = arith.mulf %789, %767 : vector<18x64xf32>
    %791 = math.exp %790 : vector<18x64xf32>
    %792 = arith.mulf %787, %791 : vector<18x64xf32>
    %cst_359 = arith.constant 1.000000e+00 : f32
    %793 = vector.broadcast %cst_359 : f32 to vector<18x64xf32>
    %794 = arith.subf %793, %792 : vector<18x64xf32>
    %cst_360 = arith.constant 0.000000e+00 : f32
    %795 = vector.broadcast %cst_360 : f32 to vector<18x64xf32>
    %796 = arith.cmpf olt, %766, %795 : vector<18x64xf32>
    %cst_361 = arith.constant 0.000000e+00 : f32
    %797 = vector.broadcast %cst_361 : f32 to vector<18x64xf32>
    %798 = arith.subf %797, %794 : vector<18x64xf32>
    %799 = arith.select %796, %798, %794 : vector<18x64xi1>, vector<18x64xf32>
    %cst_362 = arith.constant 5.000000e-01 : f32
    %800 = vector.broadcast %cst_362 : f32 to vector<18x64xf32>
    %801 = arith.mulf %800, %764 : vector<18x64xf32>
    %cst_363 = arith.constant 1.000000e+00 : f32
    %802 = vector.broadcast %cst_363 : f32 to vector<18x64xf32>
    %803 = arith.addf %802, %799 : vector<18x64xf32>
    %804 = arith.mulf %801, %803 : vector<18x64xf32>
    %c2_364 = arith.constant 2 : index
    %c0_365 = arith.constant 0 : index
    %c0_366 = arith.constant 0 : index
    %805 = vector.load %arg14[%c2_364, %c0_365, %c0_366] : memref<4x64x32xf32, #tpu.memory_space<vmem>>, vector<1x64x32xf32>
    %806 = vector.shape_cast %805 : vector<1x64x32xf32> to vector<64x32xf32>
    %cst_367 = arith.constant dense<0.000000e+00> : vector<18x32xf32>
    %807 = tpu.matmul %804, %806, %cst_367 {dimension_numbers = #tpu.dot_dimension_numbers<[1], [0], [0], [1], [0, 0, 1, 1], [], []>} : vector<18x64xf32>, vector<64x32xf32>, vector<18x32xf32> -> vector<18x32xf32>
    %c2_368 = arith.constant 2 : index
    %c0_369 = arith.constant 0 : index
    %c0_370 = arith.constant 0 : index
    %808 = vector.load %arg15[%c2_368, %c0_369, %c0_370] : memref<4x1x32xf32, #tpu.memory_space<vmem>>, vector<1x1x32xf32>
    %809 = vector.shape_cast %808 : vector<1x1x32xf32> to vector<1x32xf32>
    %810 = vector.broadcast %809 : vector<1x32xf32> to vector<18x32xf32>
    %811 = arith.addf %807, %810 : vector<18x32xf32>
    %812 = arith.addf %731, %811 : vector<18x32xf32>
    %c3 = arith.constant 3 : index
    %c0_371 = arith.constant 0 : index
    %c0_372 = arith.constant 0 : index
    %813 = vector.load %arg5[%c3, %c0_371, %c0_372] : memref<4x1x32xf32, #tpu.memory_space<vmem>>, vector<1x1x32xf32>
    %814 = vector.shape_cast %813 : vector<1x1x32xf32> to vector<1x32xf32>
    %c3_373 = arith.constant 3 : index
    %c0_374 = arith.constant 0 : index
    %c0_375 = arith.constant 0 : index
    %815 = vector.load %arg6[%c3_373, %c0_374, %c0_375] : memref<4x1x32xf32, #tpu.memory_space<vmem>>, vector<1x1x32xf32>
    %816 = vector.shape_cast %815 : vector<1x1x32xf32> to vector<1x32xf32>
    %cst_376 = arith.constant dense<0.000000e+00> : vector<18xf32>
    %817 = vector.multi_reduction <add>, %812, %cst_376 [1] : vector<18x32xf32> to vector<18xf32>
    %818 = vector.shape_cast %817 : vector<18xf32> to vector<18x1xf32>
    %cst_377 = arith.constant 3.200000e+01 : f32
    %819 = vector.broadcast %cst_377 : f32 to vector<18x1xf32>
    %820 = arith.divf %818, %819 : vector<18x1xf32>
    %821 = vector.broadcast %820 : vector<18x1xf32> to vector<18x32xf32>
    %822 = arith.subf %812, %821 : vector<18x32xf32>
    %823 = arith.mulf %822, %822 : vector<18x32xf32>
    %cst_378 = arith.constant dense<0.000000e+00> : vector<18xf32>
    %824 = vector.multi_reduction <add>, %823, %cst_378 [1] : vector<18x32xf32> to vector<18xf32>
    %825 = vector.shape_cast %824 : vector<18xf32> to vector<18x1xf32>
    %cst_379 = arith.constant 3.200000e+01 : f32
    %826 = vector.broadcast %cst_379 : f32 to vector<18x1xf32>
    %827 = arith.divf %825, %826 : vector<18x1xf32>
    %828 = vector.broadcast %820 : vector<18x1xf32> to vector<18x32xf32>
    %829 = arith.subf %812, %828 : vector<18x32xf32>
    %cst_380 = arith.constant 9.99999974E-6 : f32
    %830 = vector.broadcast %cst_380 : f32 to vector<18x1xf32>
    %831 = arith.addf %827, %830 : vector<18x1xf32>
    %832 = math.rsqrt %831 : vector<18x1xf32>
    %833 = vector.broadcast %832 : vector<18x1xf32> to vector<18x32xf32>
    %834 = arith.mulf %829, %833 : vector<18x32xf32>
    %835 = vector.broadcast %814 : vector<1x32xf32> to vector<18x32xf32>
    %836 = arith.mulf %834, %835 : vector<18x32xf32>
    %837 = vector.broadcast %816 : vector<1x32xf32> to vector<18x32xf32>
    %838 = arith.addf %836, %837 : vector<18x32xf32>
    %c3_381 = arith.constant 3 : index
    %c0_382 = arith.constant 0 : index
    %c0_383 = arith.constant 0 : index
    %839 = vector.load %arg7[%c3_381, %c0_382, %c0_383] : memref<4x32x96xf32, #tpu.memory_space<vmem>>, vector<1x32x96xf32>
    %840 = vector.shape_cast %839 : vector<1x32x96xf32> to vector<32x96xf32>
    %cst_384 = arith.constant dense<0.000000e+00> : vector<18x96xf32>
    %841 = tpu.matmul %838, %840, %cst_384 {dimension_numbers = #tpu.dot_dimension_numbers<[1], [0], [0], [1], [0, 0, 1, 1], [], []>} : vector<18x32xf32>, vector<32x96xf32>, vector<18x96xf32> -> vector<18x96xf32>
    %842 = vector.extract_strided_slice %841 {offsets = [0, 0], sizes = [18, 32], strides = [1, 1]} : vector<18x96xf32> to vector<18x32xf32>
    %843 = vector.extract_strided_slice %841 {offsets = [0, 32], sizes = [18, 32], strides = [1, 1]} : vector<18x96xf32> to vector<18x32xf32>
    %844 = vector.extract_strided_slice %841 {offsets = [0, 64], sizes = [18, 32], strides = [1, 1]} : vector<18x96xf32> to vector<18x32xf32>
    %845 = vector.extract_strided_slice %842 {offsets = [0, 0], sizes = [9, 8], strides = [1, 1]} : vector<18x32xf32> to vector<9x8xf32>
    %846 = vector.extract_strided_slice %843 {offsets = [0, 0], sizes = [9, 8], strides = [1, 1]} : vector<18x32xf32> to vector<9x8xf32>
    %847 = vector.extract_strided_slice %844 {offsets = [0, 0], sizes = [9, 8], strides = [1, 1]} : vector<18x32xf32> to vector<9x8xf32>
    %cst_385 = arith.constant dense<0.000000e+00> : vector<9x9xf32>
    %848 = tpu.matmul %845, %846, %cst_385 {dimension_numbers = #tpu.dot_dimension_numbers<[1], [1], [0], [0], [0, 0, 1, 0], [], []>} : vector<9x8xf32>, vector<9x8xf32>, vector<9x9xf32> -> vector<9x9xf32>
    %cst_386 = arith.constant 0.176776692 : f32
    %849 = vector.broadcast %cst_386 : f32 to vector<9x9xf32>
    %850 = arith.mulf %848, %849 : vector<9x9xf32>
    %cst_387 = arith.constant dense<0xFF800000> : vector<9xf32>
    %851 = vector.multi_reduction <maximumf>, %850, %cst_387 [1] : vector<9x9xf32> to vector<9xf32>
    %852 = vector.shape_cast %851 : vector<9xf32> to vector<9x1xf32>
    %853 = vector.broadcast %852 : vector<9x1xf32> to vector<9x9xf32>
    %854 = arith.subf %850, %853 : vector<9x9xf32>
    %855 = math.exp %854 : vector<9x9xf32>
    %cst_388 = arith.constant dense<0.000000e+00> : vector<9xf32>
    %856 = vector.multi_reduction <add>, %855, %cst_388 [1] : vector<9x9xf32> to vector<9xf32>
    %857 = vector.shape_cast %856 : vector<9xf32> to vector<9x1xf32>
    %858 = tpu.reciprocal %857 {approx = true} : vector<9x1xf32> -> vector<9x1xf32>
    %859 = vector.broadcast %858 : vector<9x1xf32> to vector<9x9xf32>
    %860 = arith.mulf %855, %859 : vector<9x9xf32>
    %cst_389 = arith.constant dense<0.000000e+00> : vector<9x8xf32>
    %861 = tpu.matmul %860, %847, %cst_389 {dimension_numbers = #tpu.dot_dimension_numbers<[1], [0], [0], [1], [0, 0, 1, 1], [], []>} : vector<9x9xf32>, vector<9x8xf32>, vector<9x8xf32> -> vector<9x8xf32>
    %c0_390 = arith.constant 0 : index
    %c0_391 = arith.constant 0 : index
    %862 = vector.load %arg18[%c0_390, %c0_391] : memref<18x32xf32, #tpu.memory_space<vmem>>, vector<9x8xf32>
    tpu.vector_store %arg18[%c0_390, %c0_391], %861 {strides = array<i32>} : memref<18x32xf32, #tpu.memory_space<vmem>>, vector<9x8xf32>,
    %863 = vector.extract_strided_slice %842 {offsets = [0, 8], sizes = [9, 8], strides = [1, 1]} : vector<18x32xf32> to vector<9x8xf32>
    %864 = vector.extract_strided_slice %843 {offsets = [0, 8], sizes = [9, 8], strides = [1, 1]} : vector<18x32xf32> to vector<9x8xf32>
    %865 = vector.extract_strided_slice %844 {offsets = [0, 8], sizes = [9, 8], strides = [1, 1]} : vector<18x32xf32> to vector<9x8xf32>
    %cst_392 = arith.constant dense<0.000000e+00> : vector<9x9xf32>
    %866 = tpu.matmul %863, %864, %cst_392 {dimension_numbers = #tpu.dot_dimension_numbers<[1], [1], [0], [0], [0, 0, 1, 0], [], []>} : vector<9x8xf32>, vector<9x8xf32>, vector<9x9xf32> -> vector<9x9xf32>
    %cst_393 = arith.constant 0.176776692 : f32
    %867 = vector.broadcast %cst_393 : f32 to vector<9x9xf32>
    %868 = arith.mulf %866, %867 : vector<9x9xf32>
    %cst_394 = arith.constant dense<0xFF800000> : vector<9xf32>
    %869 = vector.multi_reduction <maximumf>, %868, %cst_394 [1] : vector<9x9xf32> to vector<9xf32>
    %870 = vector.shape_cast %869 : vector<9xf32> to vector<9x1xf32>
    %871 = vector.broadcast %870 : vector<9x1xf32> to vector<9x9xf32>
    %872 = arith.subf %868, %871 : vector<9x9xf32>
    %873 = math.exp %872 : vector<9x9xf32>
    %cst_395 = arith.constant dense<0.000000e+00> : vector<9xf32>
    %874 = vector.multi_reduction <add>, %873, %cst_395 [1] : vector<9x9xf32> to vector<9xf32>
    %875 = vector.shape_cast %874 : vector<9xf32> to vector<9x1xf32>
    %876 = tpu.reciprocal %875 {approx = true} : vector<9x1xf32> -> vector<9x1xf32>
    %877 = vector.broadcast %876 : vector<9x1xf32> to vector<9x9xf32>
    %878 = arith.mulf %873, %877 : vector<9x9xf32>
    %cst_396 = arith.constant dense<0.000000e+00> : vector<9x8xf32>
    %879 = tpu.matmul %878, %865, %cst_396 {dimension_numbers = #tpu.dot_dimension_numbers<[1], [0], [0], [1], [0, 0, 1, 1], [], []>} : vector<9x9xf32>, vector<9x8xf32>, vector<9x8xf32> -> vector<9x8xf32>
    %c0_397 = arith.constant 0 : index
    %c8_398 = arith.constant 8 : index
    %880 = vector.load %arg18[%c0_397, %c8_398] : memref<18x32xf32, #tpu.memory_space<vmem>>, vector<9x8xf32>
    tpu.vector_store %arg18[%c0_397, %c8_398], %879 {strides = array<i32>} : memref<18x32xf32, #tpu.memory_space<vmem>>, vector<9x8xf32>,
    %881 = vector.extract_strided_slice %842 {offsets = [0, 16], sizes = [9, 8], strides = [1, 1]} : vector<18x32xf32> to vector<9x8xf32>
    %882 = vector.extract_strided_slice %843 {offsets = [0, 16], sizes = [9, 8], strides = [1, 1]} : vector<18x32xf32> to vector<9x8xf32>
    %883 = vector.extract_strided_slice %844 {offsets = [0, 16], sizes = [9, 8], strides = [1, 1]} : vector<18x32xf32> to vector<9x8xf32>
    %cst_399 = arith.constant dense<0.000000e+00> : vector<9x9xf32>
    %884 = tpu.matmul %881, %882, %cst_399 {dimension_numbers = #tpu.dot_dimension_numbers<[1], [1], [0], [0], [0, 0, 1, 0], [], []>} : vector<9x8xf32>, vector<9x8xf32>, vector<9x9xf32> -> vector<9x9xf32>
    %cst_400 = arith.constant 0.176776692 : f32
    %885 = vector.broadcast %cst_400 : f32 to vector<9x9xf32>
    %886 = arith.mulf %884, %885 : vector<9x9xf32>
    %cst_401 = arith.constant dense<0xFF800000> : vector<9xf32>
    %887 = vector.multi_reduction <maximumf>, %886, %cst_401 [1] : vector<9x9xf32> to vector<9xf32>
    %888 = vector.shape_cast %887 : vector<9xf32> to vector<9x1xf32>
    %889 = vector.broadcast %888 : vector<9x1xf32> to vector<9x9xf32>
    %890 = arith.subf %886, %889 : vector<9x9xf32>
    %891 = math.exp %890 : vector<9x9xf32>
    %cst_402 = arith.constant dense<0.000000e+00> : vector<9xf32>
    %892 = vector.multi_reduction <add>, %891, %cst_402 [1] : vector<9x9xf32> to vector<9xf32>
    %893 = vector.shape_cast %892 : vector<9xf32> to vector<9x1xf32>
    %894 = tpu.reciprocal %893 {approx = true} : vector<9x1xf32> -> vector<9x1xf32>
    %895 = vector.broadcast %894 : vector<9x1xf32> to vector<9x9xf32>
    %896 = arith.mulf %891, %895 : vector<9x9xf32>
    %cst_403 = arith.constant dense<0.000000e+00> : vector<9x8xf32>
    %897 = tpu.matmul %896, %883, %cst_403 {dimension_numbers = #tpu.dot_dimension_numbers<[1], [0], [0], [1], [0, 0, 1, 1], [], []>} : vector<9x9xf32>, vector<9x8xf32>, vector<9x8xf32> -> vector<9x8xf32>
    %c0_404 = arith.constant 0 : index
    %c16_405 = arith.constant 16 : index
    %898 = vector.load %arg18[%c0_404, %c16_405] : memref<18x32xf32, #tpu.memory_space<vmem>>, vector<9x8xf32>
    tpu.vector_store %arg18[%c0_404, %c16_405], %897 {strides = array<i32>} : memref<18x32xf32, #tpu.memory_space<vmem>>, vector<9x8xf32>,
    %899 = vector.extract_strided_slice %842 {offsets = [0, 24], sizes = [9, 8], strides = [1, 1]} : vector<18x32xf32> to vector<9x8xf32>
    %900 = vector.extract_strided_slice %843 {offsets = [0, 24], sizes = [9, 8], strides = [1, 1]} : vector<18x32xf32> to vector<9x8xf32>
    %901 = vector.extract_strided_slice %844 {offsets = [0, 24], sizes = [9, 8], strides = [1, 1]} : vector<18x32xf32> to vector<9x8xf32>
    %cst_406 = arith.constant dense<0.000000e+00> : vector<9x9xf32>
    %902 = tpu.matmul %899, %900, %cst_406 {dimension_numbers = #tpu.dot_dimension_numbers<[1], [1], [0], [0], [0, 0, 1, 0], [], []>} : vector<9x8xf32>, vector<9x8xf32>, vector<9x9xf32> -> vector<9x9xf32>
    %cst_407 = arith.constant 0.176776692 : f32
    %903 = vector.broadcast %cst_407 : f32 to vector<9x9xf32>
    %904 = arith.mulf %902, %903 : vector<9x9xf32>
    %cst_408 = arith.constant dense<0xFF800000> : vector<9xf32>
    %905 = vector.multi_reduction <maximumf>, %904, %cst_408 [1] : vector<9x9xf32> to vector<9xf32>
    %906 = vector.shape_cast %905 : vector<9xf32> to vector<9x1xf32>
    %907 = vector.broadcast %906 : vector<9x1xf32> to vector<9x9xf32>
    %908 = arith.subf %904, %907 : vector<9x9xf32>
    %909 = math.exp %908 : vector<9x9xf32>
    %cst_409 = arith.constant dense<0.000000e+00> : vector<9xf32>
    %910 = vector.multi_reduction <add>, %909, %cst_409 [1] : vector<9x9xf32> to vector<9xf32>
    %911 = vector.shape_cast %910 : vector<9xf32> to vector<9x1xf32>
    %912 = tpu.reciprocal %911 {approx = true} : vector<9x1xf32> -> vector<9x1xf32>
    %913 = vector.broadcast %912 : vector<9x1xf32> to vector<9x9xf32>
    %914 = arith.mulf %909, %913 : vector<9x9xf32>
    %cst_410 = arith.constant dense<0.000000e+00> : vector<9x8xf32>
    %915 = tpu.matmul %914, %901, %cst_410 {dimension_numbers = #tpu.dot_dimension_numbers<[1], [0], [0], [1], [0, 0, 1, 1], [], []>} : vector<9x9xf32>, vector<9x8xf32>, vector<9x8xf32> -> vector<9x8xf32>
    %c0_411 = arith.constant 0 : index
    %c24_412 = arith.constant 24 : index
    %916 = vector.load %arg18[%c0_411, %c24_412] : memref<18x32xf32, #tpu.memory_space<vmem>>, vector<9x8xf32>
    tpu.vector_store %arg18[%c0_411, %c24_412], %915 {strides = array<i32>} : memref<18x32xf32, #tpu.memory_space<vmem>>, vector<9x8xf32>,
    %917 = vector.extract_strided_slice %842 {offsets = [9, 0], sizes = [9, 8], strides = [1, 1]} : vector<18x32xf32> to vector<9x8xf32>
    %918 = vector.extract_strided_slice %843 {offsets = [9, 0], sizes = [9, 8], strides = [1, 1]} : vector<18x32xf32> to vector<9x8xf32>
    %919 = vector.extract_strided_slice %844 {offsets = [9, 0], sizes = [9, 8], strides = [1, 1]} : vector<18x32xf32> to vector<9x8xf32>
    %cst_413 = arith.constant dense<0.000000e+00> : vector<9x9xf32>
    %920 = tpu.matmul %917, %918, %cst_413 {dimension_numbers = #tpu.dot_dimension_numbers<[1], [1], [0], [0], [0, 0, 1, 0], [], []>} : vector<9x8xf32>, vector<9x8xf32>, vector<9x9xf32> -> vector<9x9xf32>
    %cst_414 = arith.constant 0.176776692 : f32
    %921 = vector.broadcast %cst_414 : f32 to vector<9x9xf32>
    %922 = arith.mulf %920, %921 : vector<9x9xf32>
    %cst_415 = arith.constant dense<0xFF800000> : vector<9xf32>
    %923 = vector.multi_reduction <maximumf>, %922, %cst_415 [1] : vector<9x9xf32> to vector<9xf32>
    %924 = vector.shape_cast %923 : vector<9xf32> to vector<9x1xf32>
    %925 = vector.broadcast %924 : vector<9x1xf32> to vector<9x9xf32>
    %926 = arith.subf %922, %925 : vector<9x9xf32>
    %927 = math.exp %926 : vector<9x9xf32>
    %cst_416 = arith.constant dense<0.000000e+00> : vector<9xf32>
    %928 = vector.multi_reduction <add>, %927, %cst_416 [1] : vector<9x9xf32> to vector<9xf32>
    %929 = vector.shape_cast %928 : vector<9xf32> to vector<9x1xf32>
    %930 = tpu.reciprocal %929 {approx = true} : vector<9x1xf32> -> vector<9x1xf32>
    %931 = vector.broadcast %930 : vector<9x1xf32> to vector<9x9xf32>
    %932 = arith.mulf %927, %931 : vector<9x9xf32>
    %cst_417 = arith.constant dense<0.000000e+00> : vector<9x8xf32>
    %933 = tpu.matmul %932, %919, %cst_417 {dimension_numbers = #tpu.dot_dimension_numbers<[1], [0], [0], [1], [0, 0, 1, 1], [], []>} : vector<9x9xf32>, vector<9x8xf32>, vector<9x8xf32> -> vector<9x8xf32>
    %c9_418 = arith.constant 9 : index
    %c0_419 = arith.constant 0 : index
    %934 = vector.load %arg18[%c9_418, %c0_419] : memref<18x32xf32, #tpu.memory_space<vmem>>, vector<9x8xf32>
    tpu.vector_store %arg18[%c9_418, %c0_419], %933 {strides = array<i32>} : memref<18x32xf32, #tpu.memory_space<vmem>>, vector<9x8xf32>,
    %935 = vector.extract_strided_slice %842 {offsets = [9, 8], sizes = [9, 8], strides = [1, 1]} : vector<18x32xf32> to vector<9x8xf32>
    %936 = vector.extract_strided_slice %843 {offsets = [9, 8], sizes = [9, 8], strides = [1, 1]} : vector<18x32xf32> to vector<9x8xf32>
    %937 = vector.extract_strided_slice %844 {offsets = [9, 8], sizes = [9, 8], strides = [1, 1]} : vector<18x32xf32> to vector<9x8xf32>
    %cst_420 = arith.constant dense<0.000000e+00> : vector<9x9xf32>
    %938 = tpu.matmul %935, %936, %cst_420 {dimension_numbers = #tpu.dot_dimension_numbers<[1], [1], [0], [0], [0, 0, 1, 0], [], []>} : vector<9x8xf32>, vector<9x8xf32>, vector<9x9xf32> -> vector<9x9xf32>
    %cst_421 = arith.constant 0.176776692 : f32
    %939 = vector.broadcast %cst_421 : f32 to vector<9x9xf32>
    %940 = arith.mulf %938, %939 : vector<9x9xf32>
    %cst_422 = arith.constant dense<0xFF800000> : vector<9xf32>
    %941 = vector.multi_reduction <maximumf>, %940, %cst_422 [1] : vector<9x9xf32> to vector<9xf32>
    %942 = vector.shape_cast %941 : vector<9xf32> to vector<9x1xf32>
    %943 = vector.broadcast %942 : vector<9x1xf32> to vector<9x9xf32>
    %944 = arith.subf %940, %943 : vector<9x9xf32>
    %945 = math.exp %944 : vector<9x9xf32>
    %cst_423 = arith.constant dense<0.000000e+00> : vector<9xf32>
    %946 = vector.multi_reduction <add>, %945, %cst_423 [1] : vector<9x9xf32> to vector<9xf32>
    %947 = vector.shape_cast %946 : vector<9xf32> to vector<9x1xf32>
    %948 = tpu.reciprocal %947 {approx = true} : vector<9x1xf32> -> vector<9x1xf32>
    %949 = vector.broadcast %948 : vector<9x1xf32> to vector<9x9xf32>
    %950 = arith.mulf %945, %949 : vector<9x9xf32>
    %cst_424 = arith.constant dense<0.000000e+00> : vector<9x8xf32>
    %951 = tpu.matmul %950, %937, %cst_424 {dimension_numbers = #tpu.dot_dimension_numbers<[1], [0], [0], [1], [0, 0, 1, 1], [], []>} : vector<9x9xf32>, vector<9x8xf32>, vector<9x8xf32> -> vector<9x8xf32>
    %c9_425 = arith.constant 9 : index
    %c8_426 = arith.constant 8 : index
    %952 = vector.load %arg18[%c9_425, %c8_426] : memref<18x32xf32, #tpu.memory_space<vmem>>, vector<9x8xf32>
    tpu.vector_store %arg18[%c9_425, %c8_426], %951 {strides = array<i32>} : memref<18x32xf32, #tpu.memory_space<vmem>>, vector<9x8xf32>,
    %953 = vector.extract_strided_slice %842 {offsets = [9, 16], sizes = [9, 8], strides = [1, 1]} : vector<18x32xf32> to vector<9x8xf32>
    %954 = vector.extract_strided_slice %843 {offsets = [9, 16], sizes = [9, 8], strides = [1, 1]} : vector<18x32xf32> to vector<9x8xf32>
    %955 = vector.extract_strided_slice %844 {offsets = [9, 16], sizes = [9, 8], strides = [1, 1]} : vector<18x32xf32> to vector<9x8xf32>
    %cst_427 = arith.constant dense<0.000000e+00> : vector<9x9xf32>
    %956 = tpu.matmul %953, %954, %cst_427 {dimension_numbers = #tpu.dot_dimension_numbers<[1], [1], [0], [0], [0, 0, 1, 0], [], []>} : vector<9x8xf32>, vector<9x8xf32>, vector<9x9xf32> -> vector<9x9xf32>
    %cst_428 = arith.constant 0.176776692 : f32
    %957 = vector.broadcast %cst_428 : f32 to vector<9x9xf32>
    %958 = arith.mulf %956, %957 : vector<9x9xf32>
    %cst_429 = arith.constant dense<0xFF800000> : vector<9xf32>
    %959 = vector.multi_reduction <maximumf>, %958, %cst_429 [1] : vector<9x9xf32> to vector<9xf32>
    %960 = vector.shape_cast %959 : vector<9xf32> to vector<9x1xf32>
    %961 = vector.broadcast %960 : vector<9x1xf32> to vector<9x9xf32>
    %962 = arith.subf %958, %961 : vector<9x9xf32>
    %963 = math.exp %962 : vector<9x9xf32>
    %cst_430 = arith.constant dense<0.000000e+00> : vector<9xf32>
    %964 = vector.multi_reduction <add>, %963, %cst_430 [1] : vector<9x9xf32> to vector<9xf32>
    %965 = vector.shape_cast %964 : vector<9xf32> to vector<9x1xf32>
    %966 = tpu.reciprocal %965 {approx = true} : vector<9x1xf32> -> vector<9x1xf32>
    %967 = vector.broadcast %966 : vector<9x1xf32> to vector<9x9xf32>
    %968 = arith.mulf %963, %967 : vector<9x9xf32>
    %cst_431 = arith.constant dense<0.000000e+00> : vector<9x8xf32>
    %969 = tpu.matmul %968, %955, %cst_431 {dimension_numbers = #tpu.dot_dimension_numbers<[1], [0], [0], [1], [0, 0, 1, 1], [], []>} : vector<9x9xf32>, vector<9x8xf32>, vector<9x8xf32> -> vector<9x8xf32>
    %c9_432 = arith.constant 9 : index
    %c16_433 = arith.constant 16 : index
    %970 = vector.load %arg18[%c9_432, %c16_433] : memref<18x32xf32, #tpu.memory_space<vmem>>, vector<9x8xf32>
    tpu.vector_store %arg18[%c9_432, %c16_433], %969 {strides = array<i32>} : memref<18x32xf32, #tpu.memory_space<vmem>>, vector<9x8xf32>,
    %971 = vector.extract_strided_slice %842 {offsets = [9, 24], sizes = [9, 8], strides = [1, 1]} : vector<18x32xf32> to vector<9x8xf32>
    %972 = vector.extract_strided_slice %843 {offsets = [9, 24], sizes = [9, 8], strides = [1, 1]} : vector<18x32xf32> to vector<9x8xf32>
    %973 = vector.extract_strided_slice %844 {offsets = [9, 24], sizes = [9, 8], strides = [1, 1]} : vector<18x32xf32> to vector<9x8xf32>
    %cst_434 = arith.constant dense<0.000000e+00> : vector<9x9xf32>
    %974 = tpu.matmul %971, %972, %cst_434 {dimension_numbers = #tpu.dot_dimension_numbers<[1], [1], [0], [0], [0, 0, 1, 0], [], []>} : vector<9x8xf32>, vector<9x8xf32>, vector<9x9xf32> -> vector<9x9xf32>
    %cst_435 = arith.constant 0.176776692 : f32
    %975 = vector.broadcast %cst_435 : f32 to vector<9x9xf32>
    %976 = arith.mulf %974, %975 : vector<9x9xf32>
    %cst_436 = arith.constant dense<0xFF800000> : vector<9xf32>
    %977 = vector.multi_reduction <maximumf>, %976, %cst_436 [1] : vector<9x9xf32> to vector<9xf32>
    %978 = vector.shape_cast %977 : vector<9xf32> to vector<9x1xf32>
    %979 = vector.broadcast %978 : vector<9x1xf32> to vector<9x9xf32>
    %980 = arith.subf %976, %979 : vector<9x9xf32>
    %981 = math.exp %980 : vector<9x9xf32>
    %cst_437 = arith.constant dense<0.000000e+00> : vector<9xf32>
    %982 = vector.multi_reduction <add>, %981, %cst_437 [1] : vector<9x9xf32> to vector<9xf32>
    %983 = vector.shape_cast %982 : vector<9xf32> to vector<9x1xf32>
    %984 = tpu.reciprocal %983 {approx = true} : vector<9x1xf32> -> vector<9x1xf32>
    %985 = vector.broadcast %984 : vector<9x1xf32> to vector<9x9xf32>
    %986 = arith.mulf %981, %985 : vector<9x9xf32>
    %cst_438 = arith.constant dense<0.000000e+00> : vector<9x8xf32>
    %987 = tpu.matmul %986, %973, %cst_438 {dimension_numbers = #tpu.dot_dimension_numbers<[1], [0], [0], [1], [0, 0, 1, 1], [], []>} : vector<9x9xf32>, vector<9x8xf32>, vector<9x8xf32> -> vector<9x8xf32>
    %c9_439 = arith.constant 9 : index
    %c24_440 = arith.constant 24 : index
    %988 = vector.load %arg18[%c9_439, %c24_440] : memref<18x32xf32, #tpu.memory_space<vmem>>, vector<9x8xf32>
    tpu.vector_store %arg18[%c9_439, %c24_440], %987 {strides = array<i32>} : memref<18x32xf32, #tpu.memory_space<vmem>>, vector<9x8xf32>,
    %c0_441 = arith.constant 0 : index
    %c0_442 = arith.constant 0 : index
    %989 = vector.load %arg18[%c0_441, %c0_442] : memref<18x32xf32, #tpu.memory_space<vmem>>, vector<18x32xf32>
    %c3_443 = arith.constant 3 : index
    %c0_444 = arith.constant 0 : index
    %c0_445 = arith.constant 0 : index
    %990 = vector.load %arg8[%c3_443, %c0_444, %c0_445] : memref<4x32x32xf32, #tpu.memory_space<vmem>>, vector<1x32x32xf32>
    %991 = vector.shape_cast %990 : vector<1x32x32xf32> to vector<32x32xf32>
    %cst_446 = arith.constant dense<0.000000e+00> : vector<18x32xf32>
    %992 = tpu.matmul %989, %991, %cst_446 {dimension_numbers = #tpu.dot_dimension_numbers<[1], [0], [0], [1], [0, 0, 1, 1], [], []>} : vector<18x32xf32>, vector<32x32xf32>, vector<18x32xf32> -> vector<18x32xf32>
    %c3_447 = arith.constant 3 : index
    %c0_448 = arith.constant 0 : index
    %c0_449 = arith.constant 0 : index
    %993 = vector.load %arg9[%c3_447, %c0_448, %c0_449] : memref<4x1x32xf32, #tpu.memory_space<vmem>>, vector<1x1x32xf32>
    %994 = vector.shape_cast %993 : vector<1x1x32xf32> to vector<1x32xf32>
    %995 = vector.broadcast %994 : vector<1x32xf32> to vector<18x32xf32>
    %996 = arith.addf %992, %995 : vector<18x32xf32>
    %997 = arith.addf %812, %996 : vector<18x32xf32>
    %c3_450 = arith.constant 3 : index
    %c0_451 = arith.constant 0 : index
    %c0_452 = arith.constant 0 : index
    %998 = vector.load %arg10[%c3_450, %c0_451, %c0_452] : memref<4x1x32xf32, #tpu.memory_space<vmem>>, vector<1x1x32xf32>
    %999 = vector.shape_cast %998 : vector<1x1x32xf32> to vector<1x32xf32>
    %c3_453 = arith.constant 3 : index
    %c0_454 = arith.constant 0 : index
    %c0_455 = arith.constant 0 : index
    %1000 = vector.load %arg11[%c3_453, %c0_454, %c0_455] : memref<4x1x32xf32, #tpu.memory_space<vmem>>, vector<1x1x32xf32>
    %1001 = vector.shape_cast %1000 : vector<1x1x32xf32> to vector<1x32xf32>
    %cst_456 = arith.constant dense<0.000000e+00> : vector<18xf32>
    %1002 = vector.multi_reduction <add>, %997, %cst_456 [1] : vector<18x32xf32> to vector<18xf32>
    %1003 = vector.shape_cast %1002 : vector<18xf32> to vector<18x1xf32>
    %cst_457 = arith.constant 3.200000e+01 : f32
    %1004 = vector.broadcast %cst_457 : f32 to vector<18x1xf32>
    %1005 = arith.divf %1003, %1004 : vector<18x1xf32>
    %1006 = vector.broadcast %1005 : vector<18x1xf32> to vector<18x32xf32>
    %1007 = arith.subf %997, %1006 : vector<18x32xf32>
    %1008 = arith.mulf %1007, %1007 : vector<18x32xf32>
    %cst_458 = arith.constant dense<0.000000e+00> : vector<18xf32>
    %1009 = vector.multi_reduction <add>, %1008, %cst_458 [1] : vector<18x32xf32> to vector<18xf32>
    %1010 = vector.shape_cast %1009 : vector<18xf32> to vector<18x1xf32>
    %cst_459 = arith.constant 3.200000e+01 : f32
    %1011 = vector.broadcast %cst_459 : f32 to vector<18x1xf32>
    %1012 = arith.divf %1010, %1011 : vector<18x1xf32>
    %1013 = vector.broadcast %1005 : vector<18x1xf32> to vector<18x32xf32>
    %1014 = arith.subf %997, %1013 : vector<18x32xf32>
    %cst_460 = arith.constant 9.99999974E-6 : f32
    %1015 = vector.broadcast %cst_460 : f32 to vector<18x1xf32>
    %1016 = arith.addf %1012, %1015 : vector<18x1xf32>
    %1017 = math.rsqrt %1016 : vector<18x1xf32>
    %1018 = vector.broadcast %1017 : vector<18x1xf32> to vector<18x32xf32>
    %1019 = arith.mulf %1014, %1018 : vector<18x32xf32>
    %1020 = vector.broadcast %999 : vector<1x32xf32> to vector<18x32xf32>
    %1021 = arith.mulf %1019, %1020 : vector<18x32xf32>
    %1022 = vector.broadcast %1001 : vector<1x32xf32> to vector<18x32xf32>
    %1023 = arith.addf %1021, %1022 : vector<18x32xf32>
    %c3_461 = arith.constant 3 : index
    %c0_462 = arith.constant 0 : index
    %c0_463 = arith.constant 0 : index
    %1024 = vector.load %arg12[%c3_461, %c0_462, %c0_463] : memref<4x32x64xf32, #tpu.memory_space<vmem>>, vector<1x32x64xf32>
    %1025 = vector.shape_cast %1024 : vector<1x32x64xf32> to vector<32x64xf32>
    %cst_464 = arith.constant dense<0.000000e+00> : vector<18x64xf32>
    %1026 = tpu.matmul %1023, %1025, %cst_464 {dimension_numbers = #tpu.dot_dimension_numbers<[1], [0], [0], [1], [0, 0, 1, 1], [], []>} : vector<18x32xf32>, vector<32x64xf32>, vector<18x64xf32> -> vector<18x64xf32>
    %c3_465 = arith.constant 3 : index
    %c0_466 = arith.constant 0 : index
    %c0_467 = arith.constant 0 : index
    %1027 = vector.load %arg13[%c3_465, %c0_466, %c0_467] : memref<4x1x64xf32, #tpu.memory_space<vmem>>, vector<1x1x64xf32>
    %1028 = vector.shape_cast %1027 : vector<1x1x64xf32> to vector<1x64xf32>
    %1029 = vector.broadcast %1028 : vector<1x64xf32> to vector<18x64xf32>
    %1030 = arith.addf %1026, %1029 : vector<18x64xf32>
    %cst_468 = arith.constant 0.707106769 : f32
    %1031 = vector.broadcast %cst_468 : f32 to vector<18x64xf32>
    %1032 = arith.mulf %1030, %1031 : vector<18x64xf32>
    %1033 = math.absf %1032 : vector<18x64xf32>
    %cst_469 = arith.constant 0.327591091 : f32
    %1034 = vector.broadcast %cst_469 : f32 to vector<18x64xf32>
    %1035 = arith.mulf %1034, %1033 : vector<18x64xf32>
    %cst_470 = arith.constant 1.000000e+00 : f32
    %1036 = vector.broadcast %cst_470 : f32 to vector<18x64xf32>
    %1037 = arith.addf %1036, %1035 : vector<18x64xf32>
    %cst_471 = arith.constant 1.000000e+00 : f32
    %1038 = vector.broadcast %cst_471 : f32 to vector<18x64xf32>
    %1039 = arith.divf %1038, %1037 : vector<18x64xf32>
    %cst_472 = arith.constant 1.06140542 : f32
    %1040 = vector.broadcast %cst_472 : f32 to vector<18x64xf32>
    %1041 = arith.mulf %1040, %1039 : vector<18x64xf32>
    %cst_473 = arith.constant 1.45315206 : f32
    %1042 = vector.broadcast %cst_473 : f32 to vector<18x64xf32>
    %1043 = arith.subf %1041, %1042 : vector<18x64xf32>
    %1044 = arith.mulf %1043, %1039 : vector<18x64xf32>
    %cst_474 = arith.constant 1.42141378 : f32
    %1045 = vector.broadcast %cst_474 : f32 to vector<18x64xf32>
    %1046 = arith.addf %1044, %1045 : vector<18x64xf32>
    %1047 = arith.mulf %1046, %1039 : vector<18x64xf32>
    %cst_475 = arith.constant 0.284496725 : f32
    %1048 = vector.broadcast %cst_475 : f32 to vector<18x64xf32>
    %1049 = arith.subf %1047, %1048 : vector<18x64xf32>
    %1050 = arith.mulf %1049, %1039 : vector<18x64xf32>
    %cst_476 = arith.constant 0.254829586 : f32
    %1051 = vector.broadcast %cst_476 : f32 to vector<18x64xf32>
    %1052 = arith.addf %1050, %1051 : vector<18x64xf32>
    %1053 = arith.mulf %1052, %1039 : vector<18x64xf32>
    %cst_477 = arith.constant 0.000000e+00 : f32
    %1054 = vector.broadcast %cst_477 : f32 to vector<18x64xf32>
    %1055 = arith.subf %1054, %1033 : vector<18x64xf32>
    %1056 = arith.mulf %1055, %1033 : vector<18x64xf32>
    %1057 = math.exp %1056 : vector<18x64xf32>
    %1058 = arith.mulf %1053, %1057 : vector<18x64xf32>
    %cst_478 = arith.constant 1.000000e+00 : f32
    %1059 = vector.broadcast %cst_478 : f32 to vector<18x64xf32>
    %1060 = arith.subf %1059, %1058 : vector<18x64xf32>
    %cst_479 = arith.constant 0.000000e+00 : f32
    %1061 = vector.broadcast %cst_479 : f32 to vector<18x64xf32>
    %1062 = arith.cmpf olt, %1032, %1061 : vector<18x64xf32>
    %cst_480 = arith.constant 0.000000e+00 : f32
    %1063 = vector.broadcast %cst_480 : f32 to vector<18x64xf32>
    %1064 = arith.subf %1063, %1060 : vector<18x64xf32>
    %1065 = arith.select %1062, %1064, %1060 : vector<18x64xi1>, vector<18x64xf32>
    %cst_481 = arith.constant 5.000000e-01 : f32
    %1066 = vector.broadcast %cst_481 : f32 to vector<18x64xf32>
    %1067 = arith.mulf %1066, %1030 : vector<18x64xf32>
    %cst_482 = arith.constant 1.000000e+00 : f32
    %1068 = vector.broadcast %cst_482 : f32 to vector<18x64xf32>
    %1069 = arith.addf %1068, %1065 : vector<18x64xf32>
    %1070 = arith.mulf %1067, %1069 : vector<18x64xf32>
    %c3_483 = arith.constant 3 : index
    %c0_484 = arith.constant 0 : index
    %c0_485 = arith.constant 0 : index
    %1071 = vector.load %arg14[%c3_483, %c0_484, %c0_485] : memref<4x64x32xf32, #tpu.memory_space<vmem>>, vector<1x64x32xf32>
    %1072 = vector.shape_cast %1071 : vector<1x64x32xf32> to vector<64x32xf32>
    %cst_486 = arith.constant dense<0.000000e+00> : vector<18x32xf32>
    %1073 = tpu.matmul %1070, %1072, %cst_486 {dimension_numbers = #tpu.dot_dimension_numbers<[1], [0], [0], [1], [0, 0, 1, 1], [], []>} : vector<18x64xf32>, vector<64x32xf32>, vector<18x32xf32> -> vector<18x32xf32>
    %c3_487 = arith.constant 3 : index
    %c0_488 = arith.constant 0 : index
    %c0_489 = arith.constant 0 : index
    %1074 = vector.load %arg15[%c3_487, %c0_488, %c0_489] : memref<4x1x32xf32, #tpu.memory_space<vmem>>, vector<1x1x32xf32>
    %1075 = vector.shape_cast %1074 : vector<1x1x32xf32> to vector<1x32xf32>
    %1076 = vector.broadcast %1075 : vector<1x32xf32> to vector<18x32xf32>
    %1077 = arith.addf %1073, %1076 : vector<18x32xf32>
    %1078 = arith.addf %997, %1077 : vector<18x32xf32>
    %1079 = vector.extract_strided_slice %1078 {offsets = [0, 0], sizes = [1, 32], strides = [1, 1]} : vector<18x32xf32> to vector<1x32xf32>
    %c0_490 = arith.constant 0 : index
    %c0_491 = arith.constant 0 : index
    %c0_492 = arith.constant 0 : index
    %1080 = vector.load %arg16[%c0_490, %c0_491, %c0_492] : memref<1x2x32xf32, #tpu.memory_space<vmem>>, vector<1x1x32xf32>
    %1081 = vector.shape_cast %1080 : vector<1x1x32xf32> to vector<1x32xf32>
    %1082 = vector.shape_cast %1079 : vector<1x32xf32> to vector<1x1x32xf32>
    tpu.vector_store %arg16[%c0_490, %c0_491, %c0_492], %1082 {strides = array<i32>} : memref<1x2x32xf32, #tpu.memory_space<vmem>>, vector<1x1x32xf32>,
    %1083 = vector.extract_strided_slice %1078 {offsets = [9, 0], sizes = [1, 32], strides = [1, 1]} : vector<18x32xf32> to vector<1x32xf32>
    %c0_493 = arith.constant 0 : index
    %c1_494 = arith.constant 1 : index
    %c0_495 = arith.constant 0 : index
    %1084 = vector.load %arg16[%c0_493, %c1_494, %c0_495] : memref<1x2x32xf32, #tpu.memory_space<vmem>>, vector<1x1x32xf32>
    %1085 = vector.shape_cast %1084 : vector<1x1x32xf32> to vector<1x32xf32>
    %1086 = vector.shape_cast %1083 : vector<1x32xf32> to vector<1x1x32xf32>
    tpu.vector_store %arg16[%c0_493, %c1_494, %c0_495], %1086 {strides = array<i32>} : memref<1x2x32xf32, #tpu.memory_space<vmem>>, vector<1x1x32xf32>,
    return
  }
  func.func @transform_0(%arg0: i32) -> (i32, i32, i32) {
    %c0_i32 = arith.constant 0 : i32
    %c0_i32_0 = arith.constant 0 : i32
    %c0_i32_1 = arith.constant 0 : i32
    return %arg0, %c0_i32, %c0_i32_0 : i32, i32, i32
  }
  func.func @transform_1(%arg0: i32) -> (i32, i32) {
    %c0_i32 = arith.constant 0 : i32
    %c0_i32_0 = arith.constant 0 : i32
    %c0_i32_1 = arith.constant 0 : i32
    return %c0_i32, %c0_i32_0 : i32, i32
  }
  func.func @transform_2(%arg0: i32) -> (i32, i32) {
    %c0_i32 = arith.constant 0 : i32
    %c0_i32_0 = arith.constant 0 : i32
    %c0_i32_1 = arith.constant 0 : i32
    return %c0_i32, %c0_i32_0 : i32, i32
  }
  func.func @transform_3(%arg0: i32) -> (i32, i32) {
    %c0_i32 = arith.constant 0 : i32
    %c0_i32_0 = arith.constant 0 : i32
    %c0_i32_1 = arith.constant 0 : i32
    return %c0_i32, %c0_i32_0 : i32, i32
  }
  func.func @transform_4(%arg0: i32) -> (i32, i32, i32) {
    %c0_i32 = arith.constant 0 : i32
    %c0_i32_0 = arith.constant 0 : i32
    %c0_i32_1 = arith.constant 0 : i32
    %c0_i32_2 = arith.constant 0 : i32
    return %c0_i32, %c0_i32_0, %c0_i32_1 : i32, i32, i32
  }
  func.func @transform_5(%arg0: i32) -> (i32, i32, i32) {
    %c0_i32 = arith.constant 0 : i32
    %c0_i32_0 = arith.constant 0 : i32
    %c0_i32_1 = arith.constant 0 : i32
    %c0_i32_2 = arith.constant 0 : i32
    return %c0_i32, %c0_i32_0, %c0_i32_1 : i32, i32, i32
  }
  func.func @transform_6(%arg0: i32) -> (i32, i32, i32) {
    %c0_i32 = arith.constant 0 : i32
    %c0_i32_0 = arith.constant 0 : i32
    %c0_i32_1 = arith.constant 0 : i32
    %c0_i32_2 = arith.constant 0 : i32
    return %c0_i32, %c0_i32_0, %c0_i32_1 : i32, i32, i32
  }
  func.func @transform_7(%arg0: i32) -> (i32, i32, i32) {
    %c0_i32 = arith.constant 0 : i32
    %c0_i32_0 = arith.constant 0 : i32
    %c0_i32_1 = arith.constant 0 : i32
    %c0_i32_2 = arith.constant 0 : i32
    return %c0_i32, %c0_i32_0, %c0_i32_1 : i32, i32, i32
  }
  func.func @transform_8(%arg0: i32) -> (i32, i32, i32) {
    %c0_i32 = arith.constant 0 : i32
    %c0_i32_0 = arith.constant 0 : i32
    %c0_i32_1 = arith.constant 0 : i32
    %c0_i32_2 = arith.constant 0 : i32
    return %c0_i32, %c0_i32_0, %c0_i32_1 : i32, i32, i32
  }
  func.func @transform_9(%arg0: i32) -> (i32, i32, i32) {
    %c0_i32 = arith.constant 0 : i32
    %c0_i32_0 = arith.constant 0 : i32
    %c0_i32_1 = arith.constant 0 : i32
    %c0_i32_2 = arith.constant 0 : i32
    return %c0_i32, %c0_i32_0, %c0_i32_1 : i32, i32, i32
  }
  func.func @transform_10(%arg0: i32) -> (i32, i32, i32) {
    %c0_i32 = arith.constant 0 : i32
    %c0_i32_0 = arith.constant 0 : i32
    %c0_i32_1 = arith.constant 0 : i32
    %c0_i32_2 = arith.constant 0 : i32
    return %c0_i32, %c0_i32_0, %c0_i32_1 : i32, i32, i32
  }
  func.func @transform_11(%arg0: i32) -> (i32, i32, i32) {
    %c0_i32 = arith.constant 0 : i32
    %c0_i32_0 = arith.constant 0 : i32
    %c0_i32_1 = arith.constant 0 : i32
    %c0_i32_2 = arith.constant 0 : i32
    return %c0_i32, %c0_i32_0, %c0_i32_1 : i32, i32, i32
  }
  func.func @transform_12(%arg0: i32) -> (i32, i32, i32) {
    %c0_i32 = arith.constant 0 : i32
    %c0_i32_0 = arith.constant 0 : i32
    %c0_i32_1 = arith.constant 0 : i32
    %c0_i32_2 = arith.constant 0 : i32
    return %c0_i32, %c0_i32_0, %c0_i32_1 : i32, i32, i32
  }
  func.func @transform_13(%arg0: i32) -> (i32, i32, i32) {
    %c0_i32 = arith.constant 0 : i32
    %c0_i32_0 = arith.constant 0 : i32
    %c0_i32_1 = arith.constant 0 : i32
    %c0_i32_2 = arith.constant 0 : i32
    return %c0_i32, %c0_i32_0, %c0_i32_1 : i32, i32, i32
  }
  func.func @transform_14(%arg0: i32) -> (i32, i32, i32) {
    %c0_i32 = arith.constant 0 : i32
    %c0_i32_0 = arith.constant 0 : i32
    %c0_i32_1 = arith.constant 0 : i32
    %c0_i32_2 = arith.constant 0 : i32
    return %c0_i32, %c0_i32_0, %c0_i32_1 : i32, i32, i32
  }
  func.func @transform_15(%arg0: i32) -> (i32, i32, i32) {
    %c0_i32 = arith.constant 0 : i32
    %c0_i32_0 = arith.constant 0 : i32
    %c0_i32_1 = arith.constant 0 : i32
    return %arg0, %c0_i32, %c0_i32_0 : i32, i32, i32
  }
}

</mosaic_0001>

<llo_original>
// kernel: tpu_custom_call.1
$region0: #{tpu_custom_call.1}
  #allocation0 [shape = 'u32[]', space=smem, size = 0x4, offset = 0x4, fixed_abs, tag = 'smem constant byte address 0x4 - core index']
  #allocation1 [shape = 'u32[72,128]{1,0:T(1,128)}', space=vmem, size = 0x9000, scoped, tag = 'internal scratch']
  #allocation2 [shape = 'f32[18,32]{1,0:T(8,128)}', space=vmem, size = 0x3000, scoped, tag = 'scratch operand']
  #allocation3 [shape = 'f32[18,32]{1,0:T(8,128)}', space=vmem, size = 0x3000, scoped, tag = 'scratch operand']
  %s0 = inlined_call_operand.hbm [shape: f32[2,16,16], index: 0, kind: input, shape index: {}]
  %s1 = inlined_call_operand.hbm [shape: f32[16,32], index: 1, kind: input, shape index: {}]
  %s2 = inlined_call_operand.hbm [shape: f32[1,32], index: 2, kind: input, shape index: {}]
  %s3 = inlined_call_operand.hbm [shape: f32[1,32], index: 3, kind: input, shape index: {}]
  %s4 = inlined_call_operand.hbm [shape: f32[4,1,32], index: 4, kind: input, shape index: {}]
  %s5 = inlined_call_operand.vmem [shape: f32[4,1,32], index: 5, kind: input, shape index: {}]
  %s6 = inlined_call_operand.vmem [shape: f32[4,32,96], index: 6, kind: input, shape index: {}]
  %s7 = inlined_call_operand.vmem [shape: f32[4,32,32], index: 7, kind: input, shape index: {}]
  %s8 = inlined_call_operand.hbm [shape: f32[4,1,32], index: 8, kind: input, shape index: {}]
  %s9 = inlined_call_operand.hbm [shape: f32[4,1,32], index: 9, kind: input, shape index: {}]
  %s10 = inlined_call_operand.vmem [shape: f32[4,1,32], index: 10, kind: input, shape index: {}]
  %s11 = inlined_call_operand.vmem [shape: f32[4,32,64], index: 11, kind: input, shape index: {}]
  %s12 = inlined_call_operand.hbm [shape: f32[4,1,64], index: 12, kind: input, shape index: {}]
  %s13 = inlined_call_operand.vmem [shape: f32[4,64,32], index: 13, kind: input, shape index: {}]
  %s14 = inlined_call_operand.hbm [shape: f32[4,1,32], index: 14, kind: input, shape index: {}]
  %s15 = inlined_call_operand.hbm [shape: f32[2,2,32], index: 15, kind: output, shape index: {}]
  %s16 = sld [smem:[#allocation0]]
  $region129: #{tpu_custom_call.1} parent=0
    _
  %s18 = ssub.s32 1, %s16
  %s19 = scalar_select 0, %s18, %s16
  $region1: #{tpu_custom_call.1} parent=0
    #allocation4 [shape = 'u8[16384]{0}', space=vmem, size = 0x4000, scoped, tag = 'input window, operand 0']
    #allocation5 [shape = 's32[2]{0}', space=sflag, size = 0x8, scoped, tag = 'scoped memory for tpu_custom_call.1']
    #allocation6 [shape = 's32[2]{0}', space=sflag, size = 0x8, scoped, tag = 'scoped memory for tpu_custom_call.1']
    #allocation7 [shape = 'u8[8192]{0}', space=vmem, size = 0x2000, scoped, tag = 'input window, operand 1, single buffered']
    #allocation8 [shape = 's32[1]{0}', space=sflag, size = 0x4, scoped, tag = 'scoped memory for tpu_custom_call.1']
    #allocation9 [shape = 'u8[512]{0}', space=vmem, size = 0x400, scoped, tag = 'input window, operand 2, single buffered']
    #allocation10 [shape = 'u8[512]{0}', space=vmem, size = 0x400, scoped, tag = 'input window, operand 3, single buffered']
    #allocation11 [shape = 's32[1]{0}', space=sflag, size = 0x4, scoped, tag = 'scoped memory for tpu_custom_call.1']
    #allocation12 [shape = 'u8[2048]{0}', space=vmem, size = 0x800, scoped, tag = 'input window, operand 4, single buffered']
    #allocation13 [shape = 'u8[2048]{0}', space=vmem, size = 0x800, scoped, tag = 'input window, operand 8, single buffered']
    #allocation14 [shape = 's32[1]{0}', space=sflag, size = 0x4, scoped, tag = 'scoped memory for tpu_custom_call.1']
    #allocation15 [shape = 'u8[2048]{0}', space=vmem, size = 0x800, scoped, tag = 'input window, operand 9, single buffered']
    #allocation16 [shape = 'u8[2048]{0}', space=vmem, size = 0x800, scoped, tag = 'input window, operand 12, single buffered']
    #allocation17 [shape = 's32[1]{0}', space=sflag, size = 0x4, scoped, tag = 'scoped memory for tpu_custom_call.1']
    #allocation18 [shape = 'u8[2048]{0}', space=vmem, size = 0x800, scoped, tag = 'input window, operand 14, single buffered']
    #allocation19 [shape = 'u8[2048]{0}', space=vmem, size = 0x800, scoped, tag = 'output window, operand 0']
    %20 = vsyncpa [#allocation5], 0
    %s21 = scalar_lea.sflag [#allocation5], 1
    %22 = vsyncpa %s21, 0
    %23 = vsyncpa [#allocation8], 0
    %24 = vsyncpa [#allocation11], 0
    %25 = vsyncpa [#allocation14], 0
    %26 = vsyncpa [#allocation17], 0
    %27 = vsyncpa [#allocation6], 0
    %s28 = scalar_lea.sflag [#allocation6], 1
    %29 = vsyncpa %s28, 0
    loop: start=0, step=1, limit=4
    $region2: #{tpu_custom_call.1} parent=1 // loop_pre_header
      _
    $region3: #{tpu_custom_call.1} parent=1 // loop_header
      %s31 = sphi 0, %s35
      %p32 = scmp.ge.s32.totalorder %s31, 4
      %s41 = sphi 0, %s43
      %s44 = sphi 0, %s41
      %s45 = sphi 0, %s44
      %s61 = sphi 0, %s45
      %s65 = sphi 0, %s65
      %s67 = sphi 0, %s65
      %s68 = sphi 0, %s67
      %s82 = sphi 0, %s68
      %s86 = sphi 0, %s86
      %s88 = sphi 0, %s86
      %s89 = sphi 0, %s88
      %s103 = sphi 0, %s89
      %s107 = sphi 0, %s107
      %s109 = sphi 0, %s107
      %s110 = sphi 0, %s109
      %s124 = sphi 0, %s110
      %s128 = sphi 0, %s128
      %s130 = sphi 0, %s128
      %s131 = sphi 0, %s130
      %s145 = sphi 0, %s131
      %s149 = sphi 0, %s149
      %s151 = sphi 0, %s149
      %s152 = sphi 0, %s151
      %s166 = sphi 0, %s152
      %s170 = sphi 0, %s170
      %s172 = sphi 0, %s170
      %s173 = sphi 0, %s172
      %s187 = sphi 0, %s173
      %s191 = sphi 0, %s191
      %s193 = sphi 0, %s191
      %s194 = sphi 0, %s193
      %s208 = sphi 0, %s194
      %s212 = sphi 0, %s212
      %s214 = sphi 0, %s212
      %s215 = sphi 0, %s214
      %s229 = sphi 0, %s215
      %s233 = sphi 0, %s233
      %s235 = sphi 0, %s233
      %s236 = sphi 0, %s235
      %s250 = sphi 0, %s236
      %s254 = sphi 0, %s254
      %s256 = sphi 0, %s254
      %s257 = sphi 0, %s256
      %s271 = sphi 0, %s257
      %s275 = sphi 0, %s275
      %s277 = sphi 0, %s275
      %s278 = sphi 0, %s277
      %s292 = sphi 0, %s278
      %s296 = sphi 0, %s296
      %s298 = sphi 0, %s296
      %s299 = sphi 0, %s298
      %s313 = sphi 0, %s299
      %s317 = sphi 0, %s317
      %s319 = sphi 0, %s317
      %s320 = sphi 0, %s319
      %s334 = sphi 0, %s320
      %s338 = sphi 0, %s338
      %s340 = sphi 0, %s338
      %s341 = sphi 0, %s340
      %s355 = sphi 0, %s341
      %s361 = sphi 0, %s363
      %s364 = sphi 0, %s361
      %s365 = sphi 0, %s364
      %s381 = sphi 0, %s365
    $region4: #{tpu_custom_call.1} parent=1 // loop_header_branch
      %34 = sbr.rel (%p32) target = $region8
    $region5: #{tpu_custom_call.1} parent=1 // loop_body
      %s36 = ssub.s32 %s31, 1
      %s37 = ssub.s32 %s31, 2
      %s38 = sadd.s32 %s31, 1
      %s39 = ssub.s32 %s31, %s38
      %p40 = scmp.eq.s32.totalorder %s39, 0
      %s42 = sadd.s32 %s41, 1
      %s43 = scalar_select %p40, %s41, %s42
      %p46 = pneg %p40
      %p47 = scmp.eq.s32.totalorder %s31, 1
      %p48 = por %p46, %p47
      %p49 = scmp.ne.s32.totalorder %s41, %s44
      %p50 = scmp.eq.s32.totalorder %s31, 0
      %p51 = por %p49, %p50
      %p52 = scmp.ne.s32.totalorder %s41, %s44
      %p53 = scmp.eq.s32.totalorder %s36, 1
      %p54 = por %p52, %p53
      %p55 = scmp.ne.s32.totalorder %s44, %s45
      %p56 = scmp.eq.s32.totalorder %s36, 0
      %p57 = por %p55, %p56
      %p58 = scmp.ne.s32.totalorder %s44, %s45
      %p59 = scmp.eq.s32.totalorder %s37, 1
      %p60 = por %p58, %p59
      %p62 = scmp.ne.s32.totalorder %s45, %s61
      %p63 = scmp.eq.s32.totalorder %s37, 0
      %p64 = por %p62, %p63
      %s66 = sadd.s32 %s65, 1
      %p69 = scmp.eq.s32.totalorder %s31, 1
      %p70 = scmp.ne.s32.totalorder %s65, %s67
      %p71 = scmp.eq.s32.totalorder %s31, 0
      %p72 = por %p70, %p71
      %p73 = scmp.ne.s32.totalorder %s65, %s67
      %p74 = scmp.eq.s32.totalorder %s36, 1
      %p75 = por %p73, %p74
      %p76 = scmp.ne.s32.totalorder %s67, %s68
      %p77 = scmp.eq.s32.totalorder %s36, 0
      %p78 = por %p76, %p77
      %p79 = scmp.ne.s32.totalorder %s67, %s68
      %p80 = scmp.eq.s32.totalorder %s37, 1
      %p81 = por %p79, %p80
      %p83 = scmp.ne.s32.totalorder %s68, %s82
      %p84 = scmp.eq.s32.totalorder %s37, 0
      %p85 = por %p83, %p84
      %s87 = sadd.s32 %s86, 1
      %p90 = scmp.eq.s32.totalorder %s31, 1
      %p91 = scmp.ne.s32.totalorder %s86, %s88
      %p92 = scmp.eq.s32.totalorder %s31, 0
      %p93 = por %p91, %p92
      %p94 = scmp.ne.s32.totalorder %s86, %s88
      %p95 = scmp.eq.s32.totalorder %s36, 1
      %p96 = por %p94, %p95
      %p97 = scmp.ne.s32.totalorder %s88, %s89
      %p98 = scmp.eq.s32.totalorder %s36, 0
      %p99 = por %p97, %p98
      %p100 = scmp.ne.s32.totalorder %s88, %s89
      %p101 = scmp.eq.s32.totalorder %s37, 1
      %p102 = por %p100, %p101
      %p104 = scmp.ne.s32.totalorder %s89, %s103
      %p105 = scmp.eq.s32.totalorder %s37, 0
      %p106 = por %p104, %p105
      %s108 = sadd.s32 %s107, 1
      %p111 = scmp.eq.s32.totalorder %s31, 1
      %p112 = scmp.ne.s32.totalorder %s107, %s109
      %p113 = scmp.eq.s32.totalorder %s31, 0
      %p114 = por %p112, %p113
      %p115 = scmp.ne.s32.totalorder %s107, %s109
      %p116 = scmp.eq.s32.totalorder %s36, 1
      %p117 = por %p115, %p116
      %p118 = scmp.ne.s32.totalorder %s109, %s110
      %p119 = scmp.eq.s32.totalorder %s36, 0
      %p120 = por %p118, %p119
      %p121 = scmp.ne.s32.totalorder %s109, %s110
      %p122 = scmp.eq.s32.totalorder %s37, 1
      %p123 = por %p121, %p122
      %p125 = scmp.ne.s32.totalorder %s110, %s124
      %p126 = scmp.eq.s32.totalorder %s37, 0
      %p127 = por %p125, %p126
      %s129 = sadd.s32 %s128, 1
      %p132 = scmp.eq.s32.totalorder %s31, 1
      %p133 = scmp.ne.s32.totalorder %s128, %s130
      %p134 = scmp.eq.s32.totalorder %s31, 0
      %p135 = por %p133, %p134
      %p136 = scmp.ne.s32.totalorder %s128, %s130
      %p137 = scmp.eq.s32.totalorder %s36, 1
      %p138 = por %p136, %p137
      %p139 = scmp.ne.s32.totalorder %s130, %s131
      %p140 = scmp.eq.s32.totalorder %s36, 0
      %p141 = por %p139, %p140
      %p142 = scmp.ne.s32.totalorder %s130, %s131
      %p143 = scmp.eq.s32.totalorder %s37, 1
      %p144 = por %p142, %p143
      %p146 = scmp.ne.s32.totalorder %s131, %s145
      %p147 = scmp.eq.s32.totalorder %s37, 0
      %p148 = por %p146, %p147
      %s150 = sadd.s32 %s149, 1
      %p153 = scmp.eq.s32.totalorder %s31, 1
      %p154 = scmp.ne.s32.totalorder %s149, %s151
      %p155 = scmp.eq.s32.totalorder %s31, 0
      %p156 = por %p154, %p155
      %p157 = scmp.ne.s32.totalorder %s149, %s151
      %p158 = scmp.eq.s32.totalorder %s36, 1
      %p159 = por %p157, %p158
      %p160 = scmp.ne.s32.totalorder %s151, %s152
      %p161 = scmp.eq.s32.totalorder %s36, 0
      %p162 = por %p160, %p161
      %p163 = scmp.ne.s32.totalorder %s151, %s152
      %p164 = scmp.eq.s32.totalorder %s37, 1
      %p165 = por %p163, %p164
      %p167 = scmp.ne.s32.totalorder %s152, %s166
      %p168 = scmp.eq.s32.totalorder %s37, 0
      %p169 = por %p167, %p168
      %s171 = sadd.s32 %s170, 1
      %p174 = scmp.eq.s32.totalorder %s31, 1
      %p175 = scmp.ne.s32.totalorder %s170, %s172
      %p176 = scmp.eq.s32.totalorder %s31, 0
      %p177 = por %p175, %p176
      %p178 = scmp.ne.s32.totalorder %s170, %s172
      %p179 = scmp.eq.s32.totalorder %s36, 1
      %p180 = por %p178, %p179
      %p181 = scmp.ne.s32.totalorder %s172, %s173
      %p182 = scmp.eq.s32.totalorder %s36, 0
      %p183 = por %p181, %p182
      %p184 = scmp.ne.s32.totalorder %s172, %s173
      %p185 = scmp.eq.s32.totalorder %s37, 1
      %p186 = por %p184, %p185
      %p188 = scmp.ne.s32.totalorder %s173, %s187
      %p189 = scmp.eq.s32.totalorder %s37, 0
      %p190 = por %p188, %p189
      %s192 = sadd.s32 %s191, 1
      %p195 = scmp.eq.s32.totalorder %s31, 1
      %p196 = scmp.ne.s32.totalorder %s191, %s193
      %p197 = scmp.eq.s32.totalorder %s31, 0
      %p198 = por %p196, %p197
      %p199 = scmp.ne.s32.totalorder %s191, %s193
      %p200 = scmp.eq.s32.totalorder %s36, 1
      %p201 = por %p199, %p200
      %p202 = scmp.ne.s32.totalorder %s193, %s194
      %p203 = scmp.eq.s32.totalorder %s36, 0
      %p204 = por %p202, %p203
      %p205 = scmp.ne.s32.totalorder %s193, %s194
      %p206 = scmp.eq.s32.totalorder %s37, 1
      %p207 = por %p205, %p206
      %p209 = scmp.ne.s32.totalorder %s194, %s208
      %p210 = scmp.eq.s32.totalorder %s37, 0
      %p211 = por %p209, %p210
      %s213 = sadd.s32 %s212, 1
      %p216 = scmp.eq.s32.totalorder %s31, 1
      %p217 = scmp.ne.s32.totalorder %s212, %s214
      %p218 = scmp.eq.s32.totalorder %s31, 0
      %p219 = por %p217, %p218
      %p220 = scmp.ne.s32.totalorder %s212, %s214
      %p221 = scmp.eq.s32.totalorder %s36, 1
      %p222 = por %p220, %p221
      %p223 = scmp.ne.s32.totalorder %s214, %s215
      %p224 = scmp.eq.s32.totalorder %s36, 0
      %p225 = por %p223, %p224
      %p226 = scmp.ne.s32.totalorder %s214, %s215
      %p227 = scmp.eq.s32.totalorder %s37, 1
      %p228 = por %p226, %p227
      %p230 = scmp.ne.s32.totalorder %s215, %s229
      %p231 = scmp.eq.s32.totalorder %s37, 0
      %p232 = por %p230, %p231
      %s234 = sadd.s32 %s233, 1
      %p237 = scmp.eq.s32.totalorder %s31, 1
      %p238 = scmp.ne.s32.totalorder %s233, %s235
      %p239 = scmp.eq.s32.totalorder %s31, 0
      %p240 = por %p238, %p239
      %p241 = scmp.ne.s32.totalorder %s233, %s235
      %p242 = scmp.eq.s32.totalorder %s36, 1
      %p243 = por %p241, %p242
      %p244 = scmp.ne.s32.totalorder %s235, %s236
      %p245 = scmp.eq.s32.totalorder %s36, 0
      %p246 = por %p244, %p245
      %p247 = scmp.ne.s32.totalorder %s235, %s236
      %p248 = scmp.eq.s32.totalorder %s37, 1
      %p249 = por %p247, %p248
      %p251 = scmp.ne.s32.totalorder %s236, %s250
      %p252 = scmp.eq.s32.totalorder %s37, 0
      %p253 = por %p251, %p252
      %s255 = sadd.s32 %s254, 1
      %p258 = scmp.eq.s32.totalorder %s31, 1
      %p259 = scmp.ne.s32.totalorder %s254, %s256
      %p260 = scmp.eq.s32.totalorder %s31, 0
      %p261 = por %p259, %p260
      %p262 = scmp.ne.s32.totalorder %s254, %s256
      %p263 = scmp.eq.s32.totalorder %s36, 1
      %p264 = por %p262, %p263
      %p265 = scmp.ne.s32.totalorder %s256, %s257
      %p266 = scmp.eq.s32.totalorder %s36, 0
      %p267 = por %p265, %p266
      %p268 = scmp.ne.s32.totalorder %s256, %s257
      %p269 = scmp.eq.s32.totalorder %s37, 1
      %p270 = por %p268, %p269
      %p272 = scmp.ne.s32.totalorder %s257, %s271
      %p273 = scmp.eq.s32.totalorder %s37, 0
      %p274 = por %p272, %p273
      %s276 = sadd.s32 %s275, 1
      %p279 = scmp.eq.s32.totalorder %s31, 1
      %p280 = scmp.ne.s32.totalorder %s275, %s277
      %p281 = scmp.eq.s32.totalorder %s31, 0
      %p282 = por %p280, %p281
      %p283 = scmp.ne.s32.totalorder %s275, %s277
      %p284 = scmp.eq.s32.totalorder %s36, 1
      %p285 = por %p283, %p284
      %p286 = scmp.ne.s32.totalorder %s277, %s278
      %p287 = scmp.eq.s32.totalorder %s36, 0
      %p288 = por %p286, %p287
      %p289 = scmp.ne.s32.totalorder %s277, %s278
      %p290 = scmp.eq.s32.totalorder %s37, 1
      %p291 = por %p289, %p290
      %p293 = scmp.ne.s32.totalorder %s278, %s292
      %p294 = scmp.eq.s32.totalorder %s37, 0
      %p295 = por %p293, %p294
      %s297 = sadd.s32 %s296, 1
      %p300 = scmp.eq.s32.totalorder %s31, 1
      %p301 = scmp.ne.s32.totalorder %s296, %s298
      %p302 = scmp.eq.s32.totalorder %s31, 0
      %p303 = por %p301, %p302
      %p304 = scmp.ne.s32.totalorder %s296, %s298
      %p305 = scmp.eq.s32.totalorder %s36, 1
      %p306 = por %p304, %p305
      %p307 = scmp.ne.s32.totalorder %s298, %s299
      %p308 = scmp.eq.s32.totalorder %s36, 0
      %p309 = por %p307, %p308
      %p310 = scmp.ne.s32.totalorder %s298, %s299
      %p311 = scmp.eq.s32.totalorder %s37, 1
      %p312 = por %p310, %p311
      %p314 = scmp.ne.s32.totalorder %s299, %s313
      %p315 = scmp.eq.s32.totalorder %s37, 0
      %p316 = por %p314, %p315
      %s318 = sadd.s32 %s317, 1
      %p321 = scmp.eq.s32.totalorder %s31, 1
      %p322 = scmp.ne.s32.totalorder %s317, %s319
      %p323 = scmp.eq.s32.totalorder %s31, 0
      %p324 = por %p322, %p323
      %p325 = scmp.ne.s32.totalorder %s317, %s319
      %p326 = scmp.eq.s32.totalorder %s36, 1
      %p327 = por %p325, %p326
      %p328 = scmp.ne.s32.totalorder %s319, %s320
      %p329 = scmp.eq.s32.totalorder %s36, 0
      %p330 = por %p328, %p329
      %p331 = scmp.ne.s32.totalorder %s319, %s320
      %p332 = scmp.eq.s32.totalorder %s37, 1
      %p333 = por %p331, %p332
      %p335 = scmp.ne.s32.totalorder %s320, %s334
      %p336 = scmp.eq.s32.totalorder %s37, 0
      %p337 = por %p335, %p336
      %s339 = sadd.s32 %s338, 1
      %p342 = scmp.eq.s32.totalorder %s31, 1
      %p343 = scmp.ne.s32.totalorder %s338, %s340
      %p344 = scmp.eq.s32.totalorder %s31, 0
      %p345 = por %p343, %p344
      %p346 = scmp.ne.s32.totalorder %s338, %s340
      %p347 = scmp.eq.s32.totalorder %s36, 1
      %p348 = por %p346, %p347
      %p349 = scmp.ne.s32.totalorder %s340, %s341
      %p350 = scmp.eq.s32.totalorder %s36, 0
      %p351 = por %p349, %p350
      %p352 = scmp.ne.s32.totalorder %s340, %s341
      %p353 = scmp.eq.s32.totalorder %s37, 1
      %p354 = por %p352, %p353
      %p356 = scmp.ne.s32.totalorder %s341, %s355
      %p357 = scmp.eq.s32.totalorder %s37, 0
      %p358 = por %p356, %p357
      %s359 = ssub.s32 %s31, %s38
      %p360 = scmp.eq.s32.totalorder %s359, 0
      %s362 = sadd.s32 %s361, 1
      %s363 = scalar_select %p360, %s361, %s362
      %p366 = pneg %p360
      %p367 = scmp.eq.s32.totalorder %s31, 1
      %p368 = por %p366, %p367
      %p369 = scmp.ne.s32.totalorder %s361, %s364
      %p370 = scmp.eq.s32.totalorder %s31, 0
      %p371 = por %p369, %p370
      %p372 = scmp.ne.s32.totalorder %s361, %s364
      %p373 = scmp.eq.s32.totalorder %s36, 1
      %p374 = por %p372, %p373
      %p375 = scmp.ne.s32.totalorder %s364, %s365
      %p376 = scmp.eq.s32.totalorder %s36, 0
      %p377 = por %p375, %p376
      %p378 = scmp.ne.s32.totalorder %s364, %s365
      %p379 = scmp.eq.s32.totalorder %s37, 1
      %p380 = por %p378, %p379
      %p382 = scmp.ne.s32.totalorder %s365, %s381
      %p383 = scmp.eq.s32.totalorder %s37, 0
      %p384 = por %p382, %p383
      %p385 = scmp.le.s32.totalorder 1, %s31
      %p386 = scmp.lt.s32.totalorder %s31, 3
      %p387 = pnand %p385, %p386
      %p388 = pneg %p387
      // Predicated region
      $region9: #{tpu_custom_call.1} parent=5 // pred_check
        _
      $region10: #{tpu_custom_call.1} parent=5 // pred_check_branch
        %390 = sbr.rel (%p387) target = $region12
      $region11: #{tpu_custom_call.1} parent=5 // pred_region
        %s391 = ssub.s32 %s31, 1
        // Predicated region
        $region13: #{tpu_custom_call.1} parent=11 // pred_check
          %p392 = pneg %p78
        $region14: #{tpu_custom_call.1} parent=11 // pred_check_branch
          %394 = sbr.rel (%p392) target = $region16
        $region15: #{tpu_custom_call.1} parent=11 // pred_region
          %396 = vsyncadd [#allocation8], 0
          %s397 = sshll.u32 %s1, 4
          %s398 = int_to_ptr.hbm [resolvable:$true] %s397
          %s399 = sshll.u32 [#allocation7], 4
          %s400 = int_to_ptr.vmem [resolvable:$true] %s399
          %405 = dma.hbm_to_vmem [thread:$0]  %s398, 256, %s400, [#allocation8], 128, 128, 8
        $region16: #{tpu_custom_call.1} parent=11 // pred_fallthru
          _
        // Predicated region
        $region17: #{tpu_custom_call.1} parent=11 // pred_check
          %p406 = pneg %p99
        $region18: #{tpu_custom_call.1} parent=11 // pred_check_branch
          %408 = sbr.rel (%p406) target = $region20
        $region19: #{tpu_custom_call.1} parent=11 // pred_region
          %410 = vsyncadd [#allocation8], 0
          %s412 = sshll.u32 %s2, 4
          %s413 = int_to_ptr.hbm [resolvable:$true] %s412
          %s414 = sshll.u32 [#allocation9], 4
          %s415 = int_to_ptr.vmem [resolvable:$true] %s414
          %417 = dma.hbm_to_vmem [thread:$0]  %s413, 16, %s415, [#allocation8]
        $region20: #{tpu_custom_call.1} parent=11 // pred_fallthru
          _
        // Predicated region
        $region21: #{tpu_custom_call.1} parent=11 // pred_check
          %p418 = pneg %p120
        $region22: #{tpu_custom_call.1} parent=11 // pred_check_branch
          %420 = sbr.rel (%p418) target = $region24
        $region23: #{tpu_custom_call.1} parent=11 // pred_region
          %422 = vsyncadd [#allocation11], 0
          %s424 = sshll.u32 %s3, 4
          %s425 = int_to_ptr.hbm [resolvable:$true] %s424
          %s426 = sshll.u32 [#allocation10], 4
          %s427 = int_to_ptr.vmem [resolvable:$true] %s426
          %429 = dma.hbm_to_vmem [thread:$0]  %s425, 16, %s427, [#allocation11]
        $region24: #{tpu_custom_call.1} parent=11 // pred_fallthru
          _
        // Predicated region
        $region25: #{tpu_custom_call.1} parent=11 // pred_check
          %p430 = pneg %p141
        $region26: #{tpu_custom_call.1} parent=11 // pred_check_branch
          %432 = sbr.rel (%p430) target = $region28
        $region27: #{tpu_custom_call.1} parent=11 // pred_region
          %434 = vsyncadd [#allocation11], 0
          %s435 = sshll.u32 %s4, 4
          %s436 = int_to_ptr.hbm [resolvable:$true] %s435
          %s437 = sshll.u32 [#allocation12], 4
          %s438 = int_to_ptr.vmem [resolvable:$true] %s437
          %443 = dma.hbm_to_vmem [thread:$0]  %s436, 64, %s438, [#allocation11], 16, 16, 1
        $region28: #{tpu_custom_call.1} parent=11 // pred_fallthru
          _
        // Predicated region
        $region29: #{tpu_custom_call.1} parent=11 // pred_check
          %p444 = pneg %p162
        $region30: #{tpu_custom_call.1} parent=11 // pred_check_branch
          %446 = sbr.rel (%p444) target = $region32
        $region31: #{tpu_custom_call.1} parent=11 // pred_region
          _
        $region32: #{tpu_custom_call.1} parent=11 // pred_fallthru
          _
        // Predicated region
        $region33: #{tpu_custom_call.1} parent=11 // pred_check
          %p447 = pneg %p183
        $region34: #{tpu_custom_call.1} parent=11 // pred_check_branch
          %449 = sbr.rel (%p447) target = $region36
        $region35: #{tpu_custom_call.1} parent=11 // pred_region
          _
        $region36: #{tpu_custom_call.1} parent=11 // pred_fallthru
          _
        // Predicated region
        $region37: #{tpu_custom_call.1} parent=11 // pred_check
          %p450 = pneg %p204
        $region38: #{tpu_custom_call.1} parent=11 // pred_check_branch
          %452 = sbr.rel (%p450) target = $region40
        $region39: #{tpu_custom_call.1} parent=11 // pred_region
          _
        $region40: #{tpu_custom_call.1} parent=11 // pred_fallthru
          _
        // Predicated region
        $region41: #{tpu_custom_call.1} parent=11 // pred_check
          %p453 = pneg %p225
        $region42: #{tpu_custom_call.1} parent=11 // pred_check_branch
          %455 = sbr.rel (%p453) target = $region44
        $region43: #{tpu_custom_call.1} parent=11 // pred_region
          %457 = vsyncadd [#allocation14], 0
          %s458 = sshll.u32 %s8, 4
          %s459 = int_to_ptr.hbm [resolvable:$true] %s458
          %s460 = sshll.u32 [#allocation13], 4
          %s461 = int_to_ptr.vmem [resolvable:$true] %s460
          %466 = dma.hbm_to_vmem [thread:$0]  %s459, 64, %s461, [#allocation14], 16, 16, 1
        $region44: #{tpu_custom_call.1} parent=11 // pred_fallthru
          _
        // Predicated region
        $region45: #{tpu_custom_call.1} parent=11 // pred_check
          %p467 = pneg %p246
        $region46: #{tpu_custom_call.1} parent=11 // pred_check_branch
          %469 = sbr.rel (%p467) target = $region48
        $region47: #{tpu_custom_call.1} parent=11 // pred_region
          %471 = vsyncadd [#allocation14], 0
          %s472 = sshll.u32 %s9, 4
          %s473 = int_to_ptr.hbm [resolvable:$true] %s472
          %s474 = sshll.u32 [#allocation15], 4
          %s475 = int_to_ptr.vmem [resolvable:$true] %s474
          %480 = dma.hbm_to_vmem [thread:$0]  %s473, 64, %s475, [#allocation14], 16, 16, 1
        $region48: #{tpu_custom_call.1} parent=11 // pred_fallthru
          _
        // Predicated region
        $region49: #{tpu_custom_call.1} parent=11 // pred_check
          %p481 = pneg %p267
        $region50: #{tpu_custom_call.1} parent=11 // pred_check_branch
          %483 = sbr.rel (%p481) target = $region52
        $region51: #{tpu_custom_call.1} parent=11 // pred_region
          _
        $region52: #{tpu_custom_call.1} parent=11 // pred_fallthru
          _
        // Predicated region
        $region53: #{tpu_custom_call.1} parent=11 // pred_check
          %p484 = pneg %p288
        $region54: #{tpu_custom_call.1} parent=11 // pred_check_branch
          %486 = sbr.rel (%p484) target = $region56
        $region55: #{tpu_custom_call.1} parent=11 // pred_region
          _
        $region56: #{tpu_custom_call.1} parent=11 // pred_fallthru
          _
        // Predicated region
        $region57: #{tpu_custom_call.1} parent=11 // pred_check
          %p487 = pneg %p309
        $region58: #{tpu_custom_call.1} parent=11 // pred_check_branch
          %489 = sbr.rel (%p487) target = $region60
        $region59: #{tpu_custom_call.1} parent=11 // pred_region
          %491 = vsyncadd [#allocation17], 0
          %s492 = sshll.u32 %s12, 4
          %s493 = int_to_ptr.hbm [resolvable:$true] %s492
          %s494 = sshll.u32 [#allocation16], 4
          %s495 = int_to_ptr.vmem [resolvable:$true] %s494
          %500 = dma.hbm_to_vmem [thread:$0]  %s493, 64, %s495, [#allocation17], 16, 16, 1
        $region60: #{tpu_custom_call.1} parent=11 // pred_fallthru
          _
        // Predicated region
        $region61: #{tpu_custom_call.1} parent=11 // pred_check
          %p501 = pneg %p330
        $region62: #{tpu_custom_call.1} parent=11 // pred_check_branch
          %503 = sbr.rel (%p501) target = $region64
        $region63: #{tpu_custom_call.1} parent=11 // pred_region
          _
        $region64: #{tpu_custom_call.1} parent=11 // pred_fallthru
          _
        // Predicated region
        $region65: #{tpu_custom_call.1} parent=11 // pred_check
          %p504 = pneg %p351
        $region66: #{tpu_custom_call.1} parent=11 // pred_check_branch
          %506 = sbr.rel (%p504) target = $region68
        $region67: #{tpu_custom_call.1} parent=11 // pred_region
          %508 = vsyncadd [#allocation17], 0
          %s509 = sshll.u32 %s14, 4
          %s510 = int_to_ptr.hbm [resolvable:$true] %s509
          %s511 = sshll.u32 [#allocation18], 4
          %s512 = int_to_ptr.vmem [resolvable:$true] %s511
          %517 = dma.hbm_to_vmem [thread:$0]  %s510, 64, %s512, [#allocation17], 16, 16, 1
        $region68: #{tpu_custom_call.1} parent=11 // pred_fallthru
          _
      $region12: #{tpu_custom_call.1} parent=5 // pred_fallthru
        _
      %p518 = scmp.lt.s32.totalorder %s31, 2
      // Predicated region
      $region69: #{tpu_custom_call.1} parent=5 // pred_check
        %p519 = pneg %p518
      $region70: #{tpu_custom_call.1} parent=5 // pred_check_branch
        %521 = sbr.rel (%p519) target = $region72
      $region71: #{tpu_custom_call.1} parent=5 // pred_region
        // Predicated region
        $region73: #{tpu_custom_call.1} parent=71 // pred_check
          %p522 = pneg %p51
        $region74: #{tpu_custom_call.1} parent=71 // pred_check_branch
          %524 = sbr.rel (%p522) target = $region76
        $region75: #{tpu_custom_call.1} parent=71 // pred_region
          %s525 = sand.u32 %s41, 1
          %s526 = scalar_lea.sflag [#allocation5], %s525
          %s527 = sand.u32 %s41, 1
          %s528 = smul.addr %s527, 16
          %s529 = scalar_lea.vmem [#allocation4], %s528
          %531 = vsyncadd %s526, 0
          %s532 = smul.addr %s31, 2
          %s533 = smul.addr %s532, 8
          %s534 = scalar_lea.hbm %s0, %s533
          %s535 = sshll.u32 %s534, 4
          %s536 = int_to_ptr.hbm [resolvable:$true] %s535
          %s537 = sshll.u32 %s529, 4
          %s538 = int_to_ptr.vmem [resolvable:$true] %s537
          %543 = dma.hbm_to_vmem [thread:$0]  %s536, 256, %s538, %s526, 128, 128, 8
        $region76: #{tpu_custom_call.1} parent=71 // pred_fallthru
          _
      $region72: #{tpu_custom_call.1} parent=5 // pred_fallthru
        _
      %p544 = scmp.le.s32.totalorder 1, %s31
      %p545 = scmp.lt.s32.totalorder %s31, 3
      %p546 = pnand %p544, %p545
      %p547 = pneg %p546
      // Predicated region
      $region77: #{tpu_custom_call.1} parent=5 // pred_check
        _
      $region78: #{tpu_custom_call.1} parent=5 // pred_check_branch
        %549 = sbr.rel (%p546) target = $region80
      $region79: #{tpu_custom_call.1} parent=5 // pred_region
        %s550 = ssub.s32 %s31, 1
        %s551 = sand.u32 %s44, 1
        %s552 = scalar_lea.sflag [#allocation5], %s551
        %s553 = sand.u32 %s44, 1
        %s554 = smul.addr %s553, 16
        %s555 = scalar_lea.vmem [#allocation4], %s554
        // Predicated region
        $region81: #{tpu_custom_call.1} parent=79 // pred_check
          %p556 = pneg %p57
        $region82: #{tpu_custom_call.1} parent=79 // pred_check_branch
          %558 = sbr.rel (%p556) target = $region84
        $region83: #{tpu_custom_call.1} parent=79 // pred_region
          %560 = dma.done %s552, 256
        $region84: #{tpu_custom_call.1} parent=79 // pred_fallthru
          _
        // Predicated region
        $region85: #{tpu_custom_call.1} parent=79 // pred_check
          %p561 = pneg %p78
        $region86: #{tpu_custom_call.1} parent=79 // pred_check_branch
          %563 = sbr.rel (%p561) target = $region88
        $region87: #{tpu_custom_call.1} parent=79 // pred_region
          %565 = dma.done [#allocation8], 256
        $region88: #{tpu_custom_call.1} parent=79 // pred_fallthru
          _
        // Predicated region
        $region89: #{tpu_custom_call.1} parent=79 // pred_check
          %p566 = pneg %p99
        $region90: #{tpu_custom_call.1} parent=79 // pred_check_branch
          %568 = sbr.rel (%p566) target = $region92
        $region91: #{tpu_custom_call.1} parent=79 // pred_region
          %570 = dma.done [#allocation8], 16
        $region92: #{tpu_custom_call.1} parent=79 // pred_fallthru
          _
        // Predicated region
        $region93: #{tpu_custom_call.1} parent=79 // pred_check
          %p571 = pneg %p120
        $region94: #{tpu_custom_call.1} parent=79 // pred_check_branch
          %573 = sbr.rel (%p571) target = $region96
        $region95: #{tpu_custom_call.1} parent=79 // pred_region
          %575 = dma.done [#allocation11], 16
        $region96: #{tpu_custom_call.1} parent=79 // pred_fallthru
          _
        // Predicated region
        $region97: #{tpu_custom_call.1} parent=79 // pred_check
          %p576 = pneg %p141
        $region98: #{tpu_custom_call.1} parent=79 // pred_check_branch
          %578 = sbr.rel (%p576) target = $region100
        $region99: #{tpu_custom_call.1} parent=79 // pred_region
          %580 = dma.done [#allocation11], 64
        $region100: #{tpu_custom_call.1} parent=79 // pred_fallthru
          _
        // Predicated region
        $region101: #{tpu_custom_call.1} parent=79 // pred_check
          %p581 = pneg %p225
        $region102: #{tpu_custom_call.1} parent=79 // pred_check_branch
          %583 = sbr.rel (%p581) target = $region104
        $region103: #{tpu_custom_call.1} parent=79 // pred_region
          %585 = dma.done [#allocation14], 64
        $region104: #{tpu_custom_call.1} parent=79 // pred_fallthru
          _
        // Predicated region
        $region105: #{tpu_custom_call.1} parent=79 // pred_check
          %p586 = pneg %p246
        $region106: #{tpu_custom_call.1} parent=79 // pred_check_branch
          %588 = sbr.rel (%p586) target = $region108
        $region107: #{tpu_custom_call.1} parent=79 // pred_region
          %590 = dma.done [#allocation14], 64
        $region108: #{tpu_custom_call.1} parent=79 // pred_fallthru
          _
        // Predicated region
        $region109: #{tpu_custom_call.1} parent=79 // pred_check
          %p591 = pneg %p309
        $region110: #{tpu_custom_call.1} parent=79 // pred_check_branch
          %593 = sbr.rel (%p591) target = $region112
        $region111: #{tpu_custom_call.1} parent=79 // pred_region
          %595 = dma.done [#allocation17], 64
        $region112: #{tpu_custom_call.1} parent=79 // pred_fallthru
          _
        // Predicated region
        $region113: #{tpu_custom_call.1} parent=79 // pred_check
          %p596 = pneg %p351
        $region114: #{tpu_custom_call.1} parent=79 // pred_check_branch
          %598 = sbr.rel (%p596) target = $region116
        $region115: #{tpu_custom_call.1} parent=79 // pred_region
          %600 = dma.done [#allocation17], 64
        $region116: #{tpu_custom_call.1} parent=79 // pred_fallthru
          _
        %s601 = sand.u32 %s44, 1
        %s602 = scalar_lea.sflag [#allocation5], %s601
        %s603 = sand.u32 %s44, 1
        %s604 = smul.addr %s603, 16
        %s605 = scalar_lea.vmem [#allocation4], %s604
        %p606 = pneg %p57
        %p607 = pneg %p54
        %p608 = pneg %p78
        %p609 = pneg %p75
        %p610 = pneg %p99
        %p611 = pneg %p96
        %p612 = pneg %p120
        %p613 = pneg %p117
        %p614 = pneg %p141
        %p615 = pneg %p138
        %p616 = pneg %p162
        %p617 = pneg %p159
        %p618 = pneg %p183
        %p619 = pneg %p180
        %p620 = pneg %p204
        %p621 = pneg %p201
        %p622 = pneg %p225
        %p623 = pneg %p222
        %p624 = pneg %p246
        %p625 = pneg %p243
        %p626 = pneg %p267
        %p627 = pneg %p264
        %p628 = pneg %p288
        %p629 = pneg %p285
        %p630 = pneg %p309
        %p631 = pneg %p306
        %p632 = pneg %p330
        %p633 = pneg %p327
        %p634 = pneg %p351
        %p635 = pneg %p348
        %p636 = pneg %p377
        %p637 = pneg %p374
        %s638 = sand.u32 %s364, 1
        %s639 = scalar_lea.sflag [#allocation6], %s638
        %s640 = sand.u32 %s364, 1
        %s641 = smul.addr %s640, 2
        %s642 = scalar_lea.vmem [#allocation19], %s641
        %v643 = vld [vmem:[%s555] sm:$0xff]
        %v644 = vld [vmem:[%s555 + $0x8] sm:$0xff]
        %v645 = vld [vmem:[#allocation7] sm:$0xff]
        %v646 = vld [vmem:[#allocation7 + $0x8] sm:$0xff]
        %v647 = vld [vmem:[#allocation9] sm:$0x1]
        %v649 = vperm.slane %v647, 0
        %vm651 = vcmask 130048
        %v653 = vsel %vm651, %v643, 0
        %v656 = vsel %vm651, %v644, 0
        %658 = vmatpush.msra.mxu0 0.0
        %659 = vmatpush.msra.mxu0 0.0
        %660 = vmatpush.msra.mxu0 0.0
        %661 = vmatpush.msra.mxu0 0.0
        %662 = vmatpush.msra.mxu0 0.0
        %663 = vmatpush.msra.mxu0 0.0
        %664 = vmatpush.msra.mxu0 0.0
        %665 = vmatpush.msra.mxu0 0.0
        %666 = vmatpush.msra.mxu0 0.0
        %667 = vmatpush.msra.mxu0 0.0
        %668 = vmatpush.msra.mxu0 0.0
        %669 = vmatpush.msra.mxu0 0.0
        %670 = vmatpush.msra.mxu0 0.0
        %671 = vmatpush.msra.mxu0 0.0
        %672 = vmatpush.msra.mxu0 %v646
        %673 = vmatpush.msra.mxu0 %v645
        %674 = vmatmul.f32.gmra.mxu0 %v653
        %v675 = vpop.f32.mrf.mxu0
        %v676 = vadd.f32 %v649, %v675
        %677 = vmatmul.f32.gmra.mxu0 %v656
        %v678 = vpop.f32.mrf.mxu0
        %v679 = vadd.f32 %v649, %v678
        %680 = vdwg.mxu0
        %v681 = vld [vmem:[#allocation10] sm:$0x1]
        %vm682 = vcmask 253952
        %683 = vst.msk [vmem:[#allocation2] sm:$0x1] %vm682, %v681
        %vm684 = vcmask 261120
        %685 = vst.msk [vmem:[#allocation2 + $0x1] sm:$0xff] %vm684, %v676
        %686 = vst.msk [vmem:[#allocation2 + $0x9] sm:$0x1] %vm682, %v681
        %687 = vst.msk [vmem:[#allocation2 + $0xa] sm:$0xff] %vm684, %v679
        %v688 = vld [vmem:[#allocation2] sm:$0xff]
        %v689 = vld [vmem:[#allocation2 + $0x8] sm:$0xff]
        %v690 = vld [vmem:[#allocation2 + $0x10] sm:$0x3]
        %v691 = vld [vmem:[#allocation12] sm:$0x1]
        %v692 = vld [vmem:[%s5] sm:$0x1]
        %v693 = vsel %vm684, %v688, 0.0
        %694 = vadd.xlane.f32.xlu0 %v693
        %v695 = vpop.xlane.xlu0 %694
        %v696 = vsel %vm684, %v689, 0.0
        %697 = vadd.xlane.f32.xlu0 %v696
        %v698 = vpop.xlane.xlu0 %697
        %vm699 = vcmask 254976
        %v700 = vsel %vm699, %v690, 0.0
        %701 = vadd.xlane.f32.xlu0 %v700
        %v702 = vpop.xlane.xlu0 %701
        %v703 = vrcp.pop 32.0
        %v704 = vmul.f32 32.0, %v703
        %v705 = vsub.f32 1.0, %v704
        %v706 = vmul.f32 %v703, %v705
        %v707 = vadd.f32 %v703, %v706
        %vm708 = vweird.f32 %v703
        %v709 = vsel %vm708, %v703, %v707
        %v710 = vmul.f32 %v695, %v709
        %v711 = vmul.f32 %v698, %v709
        %v712 = vmul.f32 %v702, %v709
        %v713 = vsub.f32 %v688, %v710
        %v714 = vsub.f32 %v689, %v711
        %v715 = vsub.f32 %v690, %v712
        %v716 = vmul.f32 %v713, %v713
        %v717 = vmul.f32 %v714, %v714
        %v718 = vmul.f32 %v715, %v715
        %v719 = vsel %vm684, %v716, 0.0
        %720 = vadd.xlane.f32.xlu0 %v719
        %v721 = vpop.xlane.xlu0 %720
        %v722 = vsel %vm684, %v717, 0.0
        %723 = vadd.xlane.f32.xlu0 %v722
        %v724 = vpop.xlane.xlu0 %723
        %v725 = vsel %vm699, %v718, 0.0
        %726 = vadd.xlane.f32.xlu0 %v725
        %v727 = vpop.xlane.xlu0 %726
        %v728 = vmul.f32 %v721, %v709
        %v729 = vmul.f32 %v724, %v709
        %v730 = vmul.f32 %v727, %v709
        %v731 = vadd.f32 %v728, 1e-05
        %v732 = vadd.f32 %v729, 1e-05
        %v733 = vadd.f32 %v730, 1e-05
        %v734 = vrsqrt.pop %v731
        %v735 = vmul.f32 %v734, %v731
        %v736 = vmul.f32 %v735, %v734
        %v737 = vmul.f32 0.5, %v736
        %v738 = vsub.f32 1.5, %v737
        %v739 = vmul.f32 %v734, %v738
        %vm740 = vweird.f32 %v731
        %vm741 = vweird.f32 %v734
        %vm742 = vmor %vm740, %vm741
        %v743 = vsel %vm742, %v734, %v739
        %v744 = vrsqrt.pop %v732
        %v745 = vmul.f32 %v744, %v732
        %v746 = vmul.f32 %v745, %v744
        %v747 = vmul.f32 0.5, %v746
        %v748 = vsub.f32 1.5, %v747
        %v749 = vmul.f32 %v744, %v748
        %vm750 = vweird.f32 %v732
        %vm751 = vweird.f32 %v744
        %vm752 = vmor %vm750, %vm751
        %v753 = vsel %vm752, %v744, %v749
        %v754 = vrsqrt.pop %v733
        %v755 = vmul.f32 %v754, %v733
        %v756 = vmul.f32 %v755, %v754
        %v757 = vmul.f32 0.5, %v756
        %v758 = vsub.f32 1.5, %v757
        %v759 = vmul.f32 %v754, %v758
        %vm760 = vweird.f32 %v733
        %vm761 = vweird.f32 %v754
        %vm762 = vmor %vm760, %vm761
        %v763 = vsel %vm762, %v754, %v759
        %v764 = vmul.f32 %v713, %v743
        %v765 = vmul.f32 %v714, %v753
        %v766 = vmul.f32 %v715, %v763
        %v768 = vperm.slane %v691, 0
        %v770 = vmul.f32 %v764, %v768
        %v771 = vmul.f32 %v765, %v768
        %v772 = vmul.f32 %v766, %v768
        %v774 = vperm.slane %v692, 0
        %v776 = vadd.f32 %v770, %v774
        %v777 = vadd.f32 %v771, %v774
        %v778 = vadd.f32 %v772, %v774
        %v779 = vld [vmem:[%s6] sm:$0xff]
        %v780 = vld [vmem:[%s6 + $0x8] sm:$0xff]
        %v781 = vld [vmem:[%s6 + $0x10] sm:$0xff]
        %v782 = vld [vmem:[%s6 + $0x18] sm:$0xff]
        %v784 = vsel %vm684, %v776, 0
        %v787 = vsel %vm684, %v777, 0
        %v790 = vsel %vm684, %v778, 0
        %792 = vmatpush.msra.mxu0 0.0
        %793 = vmatpush.msra.mxu0 0.0
        %794 = vmatpush.msra.mxu0 0.0
        %795 = vmatpush.msra.mxu0 0.0
        %796 = vmatpush.msra.mxu0 0.0
        %797 = vmatpush.msra.mxu0 0.0
        %798 = vmatpush.msra.mxu0 0.0
        %799 = vmatpush.msra.mxu0 0.0
        %800 = vmatpush.msra.mxu0 0.0
        %801 = vmatpush.msra.mxu0 0.0
        %802 = vmatpush.msra.mxu0 0.0
        %803 = vmatpush.msra.mxu0 0.0
        %804 = vmatpush.msra.mxu0 %v782
        %805 = vmatpush.msra.mxu0 %v781
        %806 = vmatpush.msra.mxu0 %v780
        %807 = vmatpush.msra.mxu0 %v779
        %808 = vmatmul.f32.gmra.mxu0 %v784
        %v809 = vpop.f32.mrf.mxu0
        %v810 = vadd.f32 0.0, %v809
        %811 = vmatmul.f32.gmra.mxu0 %v787
        %v812 = vpop.f32.mrf.mxu0
        %v813 = vadd.f32 0.0, %v812
        %814 = vmatmul.f32.gmra.mxu0 %v790
        %v815 = vpop.f32.mrf.mxu0
        %v816 = vadd.f32 0.0, %v815
        %817 = vdwg.mxu0
        %820 = vrot.lane.b32.xlu0 %v810, 96
        %v821 = vpop.permute.xlu0 %820
        %822 = vrot.lane.b32.xlu0 %v813, 96
        %v823 = vpop.permute.xlu0 %822
        %vm824 = vcmask 64512
        %v825 = vsel %vm824, %v810, 0
        %v827 = vsel %vm824, %v813, 0
        %v829 = vsel %vm824, %v821, 0
        %v831 = vsel %vm824, %v823, 0
        %833 = vmatpush.xpose.msra.mxu0 0.0
        %834 = vmatpush.xpose.msra.mxu0 0.0
        %835 = vmatpush.xpose.msra.mxu0 0.0
        %836 = vmatpush.xpose.msra.mxu0 0.0
        %837 = vmatpush.xpose.msra.mxu0 0.0
        %838 = vmatpush.xpose.msra.mxu0 0.0
        %839 = vmatpush.xpose.msra.mxu0 0.0
        %840 = vmatpush.xpose.msra.mxu0 0.0
        %841 = vmatpush.xpose.msra.mxu0 0.0
        %842 = vmatpush.xpose.msra.mxu0 0.0
        %843 = vmatpush.xpose.msra.mxu0 0.0
        %844 = vmatpush.xpose.msra.mxu0 0.0
        %845 = vmatpush.xpose.msra.mxu0 0.0
        %846 = vmatpush.xpose.msra.mxu0 0.0
        %847 = vmatpush.xpose.msra.mxu0 %v831
        %848 = vmatpush.xpose.msra.mxu0 %v829
        %849 = vmatmul.f32.gmra.mxu0 %v825
        %v850 = vpop.f32.mrf.mxu0
        %v851 = vadd.f32 0.0, %v850
        %852 = vmatmul.f32.gmra.mxu0 %v827
        %v853 = vpop.f32.mrf.mxu0
        %v854 = vadd.f32 0.0, %v853
        %855 = vdwg.mxu0
        %v856 = vmul.f32 %v851, 0.17677669
        %v857 = vmul.f32 %v854, 0.17677669
        %vm858 = vcmask 72704
        %v859 = vsel %vm858, %v856, -inf
        %860 = vmax.xlane.f32.xlu0 %v859
        %v861 = vpop.xlane.xlu0 %860
        %vm862 = vcmask 65536
        %v863 = vsel %vm862, %v857, -inf
        %864 = vmax.xlane.f32.xlu0 %v863
        %v865 = vpop.xlane.xlu0 %864
        %v866 = vsub.f32 %v856, %v861
        %v867 = vsub.f32 %v857, %v865
        %v868 = vmul.f32 %v866, 1.442695
        %v869 = vpow.pop %v868
        %v870 = vmul.f32 %v867, 1.442695
        %v871 = vpow.pop %v870
        %v872 = vsel %vm858, %v869, 0.0
        %873 = vadd.xlane.f32.xlu0 %v872
        %v874 = vpop.xlane.xlu0 %873
        %v875 = vsel %vm862, %v871, 0.0
        %876 = vadd.xlane.f32.xlu0 %v875
        %v877 = vpop.xlane.xlu0 %876
        %v878 = vrcp.pop %v874
        %v879 = vrcp.pop %v877
        %v880 = vmul.f32 %v869, %v878
        %v881 = vmul.f32 %v871, %v879
        %882 = vrot.lane.b32.xlu0 %v810, 64
        %v883 = vpop.permute.xlu0 %882
        %884 = vrot.lane.b32.xlu0 %v813, 64
        %v885 = vpop.permute.xlu0 %884
        %v888 = vsel %vm858, %v880, 0
        %v891 = vsel %vm858, %v881, 0
        %vm893 = vcmask 1040384
        %v894 = vsel %vm893, %v885, 0
        %896 = vmatpush.msra.mxu0 0.0
        %897 = vmatpush.msra.mxu0 0.0
        %898 = vmatpush.msra.mxu0 0.0
        %899 = vmatpush.msra.mxu0 0.0
        %900 = vmatpush.msra.mxu0 0.0
        %901 = vmatpush.msra.mxu0 0.0
        %902 = vmatpush.msra.mxu0 0.0
        %903 = vmatpush.msra.mxu0 0.0
        %904 = vmatpush.msra.mxu0 0.0
        %905 = vmatpush.msra.mxu0 0.0
        %906 = vmatpush.msra.mxu0 0.0
        %907 = vmatpush.msra.mxu0 0.0
        %908 = vmatpush.msra.mxu0 0.0
        %909 = vmatpush.msra.mxu0 0.0
        %910 = vmatpush.msra.mxu0 %v894
        %911 = vmatpush.msra.mxu0 %v883
        %912 = vmatmul.f32.gmra.mxu0 %v888
        %v913 = vpop.f32.mrf.mxu0
        %v914 = vadd.f32 0.0, %v913
        %915 = vmatmul.f32.gmra.mxu0 %v891
        %v916 = vpop.f32.mrf.mxu0
        %v917 = vadd.f32 0.0, %v916
        %918 = vdwg.mxu0
        %919 = vst.msk [vmem:[#allocation3] sm:$0xff] %vm824, %v914
        %vm920 = vcmask 57344
        %921 = vst.msk [vmem:[#allocation3 + $0x8] sm:$0x1] %vm920, %v917
        %922 = vrot.lane.b32.xlu0 %v810, 120
        %v923 = vpop.permute.xlu0 %922
        %924 = vrot.lane.b32.xlu0 %v813, 120
        %v925 = vpop.permute.xlu0 %924
        %926 = vrot.lane.b32.xlu0 %v810, 88
        %v927 = vpop.permute.xlu0 %926
        %928 = vrot.lane.b32.xlu0 %v813, 88
        %v929 = vpop.permute.xlu0 %928
        %v930 = vsel %vm824, %v923, 0
        %v932 = vsel %vm824, %v925, 0
        %v934 = vsel %vm824, %v927, 0
        %v936 = vsel %vm824, %v929, 0
        %938 = vmatpush.xpose.msra.mxu0 0.0
        %939 = vmatpush.xpose.msra.mxu0 0.0
        %940 = vmatpush.xpose.msra.mxu0 0.0
        %941 = vmatpush.xpose.msra.mxu0 0.0
        %942 = vmatpush.xpose.msra.mxu0 0.0
        %943 = vmatpush.xpose.msra.mxu0 0.0
        %944 = vmatpush.xpose.msra.mxu0 0.0
        %945 = vmatpush.xpose.msra.mxu0 0.0
        %946 = vmatpush.xpose.msra.mxu0 0.0
        %947 = vmatpush.xpose.msra.mxu0 0.0
        %948 = vmatpush.xpose.msra.mxu0 0.0
        %949 = vmatpush.xpose.msra.mxu0 0.0
        %950 = vmatpush.xpose.msra.mxu0 0.0
        %951 = vmatpush.xpose.msra.mxu0 0.0
        %952 = vmatpush.xpose.msra.mxu0 %v936
        %953 = vmatpush.xpose.msra.mxu0 %v934
        %954 = vmatmul.f32.gmra.mxu0 %v930
        %v955 = vpop.f32.mrf.mxu0
        %v956 = vadd.f32 0.0, %v955
        %957 = vmatmul.f32.gmra.mxu0 %v932
        %v958 = vpop.f32.mrf.mxu0
        %v959 = vadd.f32 0.0, %v958
        %960 = vdwg.mxu0
        %v961 = vmul.f32 %v956, 0.17677669
        %v962 = vmul.f32 %v959, 0.17677669
        %v963 = vsel %vm858, %v961, -inf
        %964 = vmax.xlane.f32.xlu0 %v963
        %v965 = vpop.xlane.xlu0 %964
        %v966 = vsel %vm862, %v962, -inf
        %967 = vmax.xlane.f32.xlu0 %v966
        %v968 = vpop.xlane.xlu0 %967
        %v969 = vsub.f32 %v961, %v965
        %v970 = vsub.f32 %v962, %v968
        %v971 = vmul.f32 %v969, 1.442695
        %v972 = vpow.pop %v971
        %v973 = vmul.f32 %v970, 1.442695
        %v974 = vpow.pop %v973
        %v975 = vsel %vm858, %v972, 0.0
        %976 = vadd.xlane.f32.xlu0 %v975
        %v977 = vpop.xlane.xlu0 %976
        %v978 = vsel %vm862, %v974, 0.0
        %979 = vadd.xlane.f32.xlu0 %v978
        %v980 = vpop.xlane.xlu0 %979
        %v981 = vrcp.pop %v977
        %v982 = vrcp.pop %v980
        %v983 = vmul.f32 %v972, %v981
        %v984 = vmul.f32 %v974, %v982
        %985 = vrot.lane.b32.xlu0 %v810, 56
        %v986 = vpop.permute.xlu0 %985
        %987 = vrot.lane.b32.xlu0 %v813, 56
        %v988 = vpop.permute.xlu0 %987
        %v991 = vsel %vm858, %v983, 0
        %v994 = vsel %vm858, %v984, 0
        %v996 = vsel %vm893, %v988, 0
        %998 = vmatpush.msra.mxu0 0.0
        %999 = vmatpush.msra.mxu0 0.0
        %1000 = vmatpush.msra.mxu0 0.0
        %1001 = vmatpush.msra.mxu0 0.0
        %1002 = vmatpush.msra.mxu0 0.0
        %1003 = vmatpush.msra.mxu0 0.0
        %1004 = vmatpush.msra.mxu0 0.0
        %1005 = vmatpush.msra.mxu0 0.0
        %1006 = vmatpush.msra.mxu0 0.0
        %1007 = vmatpush.msra.mxu0 0.0
        %1008 = vmatpush.msra.mxu0 0.0
        %1009 = vmatpush.msra.mxu0 0.0
        %1010 = vmatpush.msra.mxu0 0.0
        %1011 = vmatpush.msra.mxu0 0.0
        %1012 = vmatpush.msra.mxu0 %v996
        %1013 = vmatpush.msra.mxu0 %v986
        %1014 = vmatmul.f32.gmra.mxu0 %v991
        %v1015 = vpop.f32.mrf.mxu0
        %v1016 = vadd.f32 0.0, %v1015
        %1017 = vmatmul.f32.gmra.mxu0 %v994
        %v1018 = vpop.f32.mrf.mxu0
        %v1019 = vadd.f32 0.0, %v1018
        %1020 = vdwg.mxu0
        %1023 = vrot.lane.b32.xlu0 %v1016, 8
        %v1024 = vpop.permute.xlu0 %1023
        %1025 = vrot.lane.b32.xlu0 %v1019, 8
        %v1026 = vpop.permute.xlu0 %1025
        %vm1029 = vcmask 130112
        %1030 = vst.msk [vmem:[#allocation3] sm:$0xff] %vm1029, %v1024
        %vm1031 = vcmask 122944
        %1032 = vst.msk [vmem:[#allocation3 + $0x8] sm:$0x1] %vm1031, %v1026
        %1033 = vrot.lane.b32.xlu0 %v810, 112
        %v1034 = vpop.permute.xlu0 %1033
        %1035 = vrot.lane.b32.xlu0 %v813, 112
        %v1036 = vpop.permute.xlu0 %1035
        %1037 = vrot.lane.b32.xlu0 %v810, 80
        %v1038 = vpop.permute.xlu0 %1037
        %1039 = vrot.lane.b32.xlu0 %v813, 80
        %v1040 = vpop.permute.xlu0 %1039
        %v1041 = vsel %vm824, %v1034, 0
        %v1043 = vsel %vm824, %v1036, 0
        %v1045 = vsel %vm824, %v1038, 0
        %v1047 = vsel %vm824, %v1040, 0
        %1049 = vmatpush.xpose.msra.mxu0 0.0
        %1050 = vmatpush.xpose.msra.mxu0 0.0
        %1051 = vmatpush.xpose.msra.mxu0 0.0
        %1052 = vmatpush.xpose.msra.mxu0 0.0
        %1053 = vmatpush.xpose.msra.mxu0 0.0
        %1054 = vmatpush.xpose.msra.mxu0 0.0
        %1055 = vmatpush.xpose.msra.mxu0 0.0
        %1056 = vmatpush.xpose.msra.mxu0 0.0
        %1057 = vmatpush.xpose.msra.mxu0 0.0
        %1058 = vmatpush.xpose.msra.mxu0 0.0
        %1059 = vmatpush.xpose.msra.mxu0 0.0
        %1060 = vmatpush.xpose.msra.mxu0 0.0
        %1061 = vmatpush.xpose.msra.mxu0 0.0
        %1062 = vmatpush.xpose.msra.mxu0 0.0
        %1063 = vmatpush.xpose.msra.mxu0 %v1047
        %1064 = vmatpush.xpose.msra.mxu0 %v1045
        %1065 = vmatmul.f32.gmra.mxu0 %v1041
        %v1066 = vpop.f32.mrf.mxu0
        %v1067 = vadd.f32 0.0, %v1066
        %1068 = vmatmul.f32.gmra.mxu0 %v1043
        %v1069 = vpop.f32.mrf.mxu0
        %v1070 = vadd.f32 0.0, %v1069
        %1071 = vdwg.mxu0
        %v1072 = vmul.f32 %v1067, 0.17677669
        %v1073 = vmul.f32 %v1070, 0.17677669
        %v1074 = vsel %vm858, %v1072, -inf
        %1075 = vmax.xlane.f32.xlu0 %v1074
        %v1076 = vpop.xlane.xlu0 %1075
        %v1077 = vsel %vm862, %v1073, -inf
        %1078 = vmax.xlane.f32.xlu0 %v1077
        %v1079 = vpop.xlane.xlu0 %1078
        %v1080 = vsub.f32 %v1072, %v1076
        %v1081 = vsub.f32 %v1073, %v1079
        %v1082 = vmul.f32 %v1080, 1.442695
        %v1083 = vpow.pop %v1082
        %v1084 = vmul.f32 %v1081, 1.442695
        %v1085 = vpow.pop %v1084
        %v1086 = vsel %vm858, %v1083, 0.0
        %1087 = vadd.xlane.f32.xlu0 %v1086
        %v1088 = vpop.xlane.xlu0 %1087
        %v1089 = vsel %vm862, %v1085, 0.0
        %1090 = vadd.xlane.f32.xlu0 %v1089
        %v1091 = vpop.xlane.xlu0 %1090
        %v1092 = vrcp.pop %v1088
        %v1093 = vrcp.pop %v1091
        %v1094 = vmul.f32 %v1083, %v1092
        %v1095 = vmul.f32 %v1085, %v1093
        %1096 = vrot.lane.b32.xlu0 %v810, 48
        %v1097 = vpop.permute.xlu0 %1096
        %1098 = vrot.lane.b32.xlu0 %v813, 48
        %v1099 = vpop.permute.xlu0 %1098
        %v1102 = vsel %vm858, %v1094, 0
        %v1105 = vsel %vm858, %v1095, 0
        %v1107 = vsel %vm893, %v1099, 0
        %1109 = vmatpush.msra.mxu0 0.0
        %1110 = vmatpush.msra.mxu0 0.0
        %1111 = vmatpush.msra.mxu0 0.0
        %1112 = vmatpush.msra.mxu0 0.0
        %1113 = vmatpush.msra.mxu0 0.0
        %1114 = vmatpush.msra.mxu0 0.0
        %1115 = vmatpush.msra.mxu0 0.0
        %1116 = vmatpush.msra.mxu0 0.0
        %1117 = vmatpush.msra.mxu0 0.0
        %1118 = vmatpush.msra.mxu0 0.0
        %1119 = vmatpush.msra.mxu0 0.0
        %1120 = vmatpush.msra.mxu0 0.0
        %1121 = vmatpush.msra.mxu0 0.0
        %1122 = vmatpush.msra.mxu0 0.0
        %1123 = vmatpush.msra.mxu0 %v1107
        %1124 = vmatpush.msra.mxu0 %v1097
        %1125 = vmatmul.f32.gmra.mxu0 %v1102
        %v1126 = vpop.f32.mrf.mxu0
        %v1127 = vadd.f32 0.0, %v1126
        %1128 = vmatmul.f32.gmra.mxu0 %v1105
        %v1129 = vpop.f32.mrf.mxu0
        %v1130 = vadd.f32 0.0, %v1129
        %1131 = vdwg.mxu0
        %1134 = vrot.lane.b32.xlu0 %v1127, 16
        %v1135 = vpop.permute.xlu0 %1134
        %1136 = vrot.lane.b32.xlu0 %v1130, 16
        %v1137 = vpop.permute.xlu0 %1136
        %vm1140 = vcmask 195712
        %1141 = vst.msk [vmem:[#allocation3] sm:$0xff] %vm1140, %v1135
        %vm1142 = vcmask 188544
        %1143 = vst.msk [vmem:[#allocation3 + $0x8] sm:$0x1] %vm1142, %v1137
        %1144 = vrot.lane.b32.xlu0 %v810, 104
        %v1145 = vpop.permute.xlu0 %1144
        %1146 = vrot.lane.b32.xlu0 %v813, 104
        %v1147 = vpop.permute.xlu0 %1146
        %1148 = vrot.lane.b32.xlu0 %v810, 72
        %v1149 = vpop.permute.xlu0 %1148
        %1150 = vrot.lane.b32.xlu0 %v813, 72
        %v1151 = vpop.permute.xlu0 %1150
        %v1152 = vsel %vm824, %v1145, 0
        %v1154 = vsel %vm824, %v1147, 0
        %v1156 = vsel %vm824, %v1149, 0
        %v1158 = vsel %vm824, %v1151, 0
        %1160 = vmatpush.xpose.msra.mxu0 0.0
        %1161 = vmatpush.xpose.msra.mxu0 0.0
        %1162 = vmatpush.xpose.msra.mxu0 0.0
        %1163 = vmatpush.xpose.msra.mxu0 0.0
        %1164 = vmatpush.xpose.msra.mxu0 0.0
        %1165 = vmatpush.xpose.msra.mxu0 0.0
        %1166 = vmatpush.xpose.msra.mxu0 0.0
        %1167 = vmatpush.xpose.msra.mxu0 0.0
        %1168 = vmatpush.xpose.msra.mxu0 0.0
        %1169 = vmatpush.xpose.msra.mxu0 0.0
        %1170 = vmatpush.xpose.msra.mxu0 0.0
        %1171 = vmatpush.xpose.msra.mxu0 0.0
        %1172 = vmatpush.xpose.msra.mxu0 0.0
        %1173 = vmatpush.xpose.msra.mxu0 0.0
        %1174 = vmatpush.xpose.msra.mxu0 %v1158
        %1175 = vmatpush.xpose.msra.mxu0 %v1156
        %1176 = vmatmul.f32.gmra.mxu0 %v1152
        %v1177 = vpop.f32.mrf.mxu0
        %v1178 = vadd.f32 0.0, %v1177
        %1179 = vmatmul.f32.gmra.mxu0 %v1154
        %v1180 = vpop.f32.mrf.mxu0
        %v1181 = vadd.f32 0.0, %v1180
        %1182 = vdwg.mxu0
        %v1183 = vmul.f32 %v1178, 0.17677669
        %v1184 = vmul.f32 %v1181, 0.17677669
        %v1185 = vsel %vm858, %v1183, -inf
        %1186 = vmax.xlane.f32.xlu0 %v1185
        %v1187 = vpop.xlane.xlu0 %1186
        %v1188 = vsel %vm862, %v1184, -inf
        %1189 = vmax.xlane.f32.xlu0 %v1188
        %v1190 = vpop.xlane.xlu0 %1189
        %v1191 = vsub.f32 %v1183, %v1187
        %v1192 = vsub.f32 %v1184, %v1190
        %v1193 = vmul.f32 %v1191, 1.442695
        %v1194 = vpow.pop %v1193
        %v1195 = vmul.f32 %v1192, 1.442695
        %v1196 = vpow.pop %v1195
        %v1197 = vsel %vm858, %v1194, 0.0
        %1198 = vadd.xlane.f32.xlu0 %v1197
        %v1199 = vpop.xlane.xlu0 %1198
        %v1200 = vsel %vm862, %v1196, 0.0
        %1201 = vadd.xlane.f32.xlu0 %v1200
        %v1202 = vpop.xlane.xlu0 %1201
        %v1203 = vrcp.pop %v1199
        %v1204 = vrcp.pop %v1202
        %v1205 = vmul.f32 %v1194, %v1203
        %v1206 = vmul.f32 %v1196, %v1204
        %1207 = vrot.lane.b32.xlu0 %v810, 40
        %v1208 = vpop.permute.xlu0 %1207
        %1209 = vrot.lane.b32.xlu0 %v813, 40
        %v1210 = vpop.permute.xlu0 %1209
        %v1213 = vsel %vm858, %v1205, 0
        %v1216 = vsel %vm858, %v1206, 0
        %v1218 = vsel %vm893, %v1210, 0
        %1220 = vmatpush.msra.mxu0 0.0
        %1221 = vmatpush.msra.mxu0 0.0
        %1222 = vmatpush.msra.mxu0 0.0
        %1223 = vmatpush.msra.mxu0 0.0
        %1224 = vmatpush.msra.mxu0 0.0
        %1225 = vmatpush.msra.mxu0 0.0
        %1226 = vmatpush.msra.mxu0 0.0
        %1227 = vmatpush.msra.mxu0 0.0
        %1228 = vmatpush.msra.mxu0 0.0
        %1229 = vmatpush.msra.mxu0 0.0
        %1230 = vmatpush.msra.mxu0 0.0
        %1231 = vmatpush.msra.mxu0 0.0
        %1232 = vmatpush.msra.mxu0 0.0
        %1233 = vmatpush.msra.mxu0 0.0
        %1234 = vmatpush.msra.mxu0 %v1218
        %1235 = vmatpush.msra.mxu0 %v1208
        %1236 = vmatmul.f32.gmra.mxu0 %v1213
        %v1237 = vpop.f32.mrf.mxu0
        %v1238 = vadd.f32 0.0, %v1237
        %1239 = vmatmul.f32.gmra.mxu0 %v1216
        %v1240 = vpop.f32.mrf.mxu0
        %v1241 = vadd.f32 0.0, %v1240
        %1242 = vdwg.mxu0
        %1245 = vrot.lane.b32.xlu0 %v1238, 24
        %v1246 = vpop.permute.xlu0 %1245
        %1247 = vrot.lane.b32.xlu0 %v1241, 24
        %v1248 = vpop.permute.xlu0 %1247
        %vm1251 = vcmask 261312
        %1252 = vst.msk [vmem:[#allocation3] sm:$0xff] %vm1251, %v1246
        %vm1253 = vcmask 254144
        %1254 = vst.msk [vmem:[#allocation3 + $0x8] sm:$0x1] %vm1253, %v1248
        %vm1256 = vcmask 1046528
        %v1257 = vrot.slane %v813, 1
        %v1258 = vrot.slane %v816, 1
        %v1259 = vsel %vm1256, %v1257, %v1258
        %1260 = vrot.lane.b32.xlu0 %v1259, 96
        %v1261 = vpop.permute.xlu0 %1260
        %1262 = vrot.lane.b32.xlu0 %v1258, 96
        %v1263 = vpop.permute.xlu0 %1262
        %v1264 = vsel %vm824, %v1259, 0
        %v1266 = vsel %vm824, %v1258, 0
        %v1268 = vsel %vm824, %v1261, 0
        %v1270 = vsel %vm824, %v1263, 0
        %1272 = vmatpush.xpose.msra.mxu0 0.0
        %1273 = vmatpush.xpose.msra.mxu0 0.0
        %1274 = vmatpush.xpose.msra.mxu0 0.0
        %1275 = vmatpush.xpose.msra.mxu0 0.0
        %1276 = vmatpush.xpose.msra.mxu0 0.0
        %1277 = vmatpush.xpose.msra.mxu0 0.0
        %1278 = vmatpush.xpose.msra.mxu0 0.0
        %1279 = vmatpush.xpose.msra.mxu0 0.0
        %1280 = vmatpush.xpose.msra.mxu0 0.0
        %1281 = vmatpush.xpose.msra.mxu0 0.0
        %1282 = vmatpush.xpose.msra.mxu0 0.0
        %1283 = vmatpush.xpose.msra.mxu0 0.0
        %1284 = vmatpush.xpose.msra.mxu0 0.0
        %1285 = vmatpush.xpose.msra.mxu0 0.0
        %1286 = vmatpush.xpose.msra.mxu0 %v1270
        %1287 = vmatpush.xpose.msra.mxu0 %v1268
        %1288 = vmatmul.f32.gmra.mxu0 %v1264
        %v1289 = vpop.f32.mrf.mxu0
        %v1290 = vadd.f32 0.0, %v1289
        %1291 = vmatmul.f32.gmra.mxu0 %v1266
        %v1292 = vpop.f32.mrf.mxu0
        %v1293 = vadd.f32 0.0, %v1292
        %1294 = vdwg.mxu0
        %v1295 = vmul.f32 %v1290, 0.17677669
        %v1296 = vmul.f32 %v1293, 0.17677669
        %v1297 = vsel %vm858, %v1295, -inf
        %1298 = vmax.xlane.f32.xlu0 %v1297
        %v1299 = vpop.xlane.xlu0 %1298
        %v1300 = vsel %vm862, %v1296, -inf
        %1301 = vmax.xlane.f32.xlu0 %v1300
        %v1302 = vpop.xlane.xlu0 %1301
        %v1303 = vsub.f32 %v1295, %v1299
        %v1304 = vsub.f32 %v1296, %v1302
        %v1305 = vmul.f32 %v1303, 1.442695
        %v1306 = vpow.pop %v1305
        %v1307 = vmul.f32 %v1304, 1.442695
        %v1308 = vpow.pop %v1307
        %v1309 = vsel %vm858, %v1306, 0.0
        %1310 = vadd.xlane.f32.xlu0 %v1309
        %v1311 = vpop.xlane.xlu0 %1310
        %v1312 = vsel %vm862, %v1308, 0.0
        %1313 = vadd.xlane.f32.xlu0 %v1312
        %v1314 = vpop.xlane.xlu0 %1313
        %v1315 = vrcp.pop %v1311
        %v1316 = vrcp.pop %v1314
        %v1317 = vmul.f32 %v1306, %v1315
        %v1318 = vmul.f32 %v1308, %v1316
        %1319 = vrot.lane.b32.xlu0 %v1259, 64
        %v1320 = vpop.permute.xlu0 %1319
        %1321 = vrot.lane.b32.xlu0 %v1258, 64
        %v1322 = vpop.permute.xlu0 %1321
        %v1325 = vsel %vm858, %v1317, 0
        %v1328 = vsel %vm858, %v1318, 0
        %v1330 = vsel %vm893, %v1322, 0
        %1332 = vmatpush.msra.mxu0 0.0
        %1333 = vmatpush.msra.mxu0 0.0
        %1334 = vmatpush.msra.mxu0 0.0
        %1335 = vmatpush.msra.mxu0 0.0
        %1336 = vmatpush.msra.mxu0 0.0
        %1337 = vmatpush.msra.mxu0 0.0
        %1338 = vmatpush.msra.mxu0 0.0
        %1339 = vmatpush.msra.mxu0 0.0
        %1340 = vmatpush.msra.mxu0 0.0
        %1341 = vmatpush.msra.mxu0 0.0
        %1342 = vmatpush.msra.mxu0 0.0
        %1343 = vmatpush.msra.mxu0 0.0
        %1344 = vmatpush.msra.mxu0 0.0
        %1345 = vmatpush.msra.mxu0 0.0
        %1346 = vmatpush.msra.mxu0 %v1330
        %1347 = vmatpush.msra.mxu0 %v1320
        %1348 = vmatmul.f32.gmra.mxu0 %v1325
        %v1349 = vpop.f32.mrf.mxu0
        %v1350 = vadd.f32 0.0, %v1349
        %1351 = vmatmul.f32.gmra.mxu0 %v1328
        %v1352 = vpop.f32.mrf.mxu0
        %v1353 = vadd.f32 0.0, %v1352
        %1354 = vdwg.mxu0
        %1355 = vst.msk [vmem:[#allocation3 + $0x9] sm:$0xff] %vm824, %v1350
        %1356 = vst.msk [vmem:[#allocation3 + $0x11] sm:$0x1] %vm920, %v1353
        %1357 = vrot.lane.b32.xlu0 %v1259, 120
        %v1358 = vpop.permute.xlu0 %1357
        %1359 = vrot.lane.b32.xlu0 %v1258, 120
        %v1360 = vpop.permute.xlu0 %1359
        %1361 = vrot.lane.b32.xlu0 %v1259, 88
        %v1362 = vpop.permute.xlu0 %1361
        %1363 = vrot.lane.b32.xlu0 %v1258, 88
        %v1364 = vpop.permute.xlu0 %1363
        %v1365 = vsel %vm824, %v1358, 0
        %v1367 = vsel %vm824, %v1360, 0
        %v1369 = vsel %vm824, %v1362, 0
        %v1371 = vsel %vm824, %v1364, 0
        %1373 = vmatpush.xpose.msra.mxu0 0.0
        %1374 = vmatpush.xpose.msra.mxu0 0.0
        %1375 = vmatpush.xpose.msra.mxu0 0.0
        %1376 = vmatpush.xpose.msra.mxu0 0.0
        %1377 = vmatpush.xpose.msra.mxu0 0.0
        %1378 = vmatpush.xpose.msra.mxu0 0.0
        %1379 = vmatpush.xpose.msra.mxu0 0.0
        %1380 = vmatpush.xpose.msra.mxu0 0.0
        %1381 = vmatpush.xpose.msra.mxu0 0.0
        %1382 = vmatpush.xpose.msra.mxu0 0.0
        %1383 = vmatpush.xpose.msra.mxu0 0.0
        %1384 = vmatpush.xpose.msra.mxu0 0.0
        %1385 = vmatpush.xpose.msra.mxu0 0.0
        %1386 = vmatpush.xpose.msra.mxu0 0.0
        %1387 = vmatpush.xpose.msra.mxu0 %v1371
        %1388 = vmatpush.xpose.msra.mxu0 %v1369
        %1389 = vmatmul.f32.gmra.mxu0 %v1365
        %v1390 = vpop.f32.mrf.mxu0
        %v1391 = vadd.f32 0.0, %v1390
        %1392 = vmatmul.f32.gmra.mxu0 %v1367
        %v1393 = vpop.f32.mrf.mxu0
        %v1394 = vadd.f32 0.0, %v1393
        %1395 = vdwg.mxu0
        %v1396 = vmul.f32 %v1391, 0.17677669
        %v1397 = vmul.f32 %v1394, 0.17677669
        %v1398 = vsel %vm858, %v1396, -inf
        %1399 = vmax.xlane.f32.xlu0 %v1398
        %v1400 = vpop.xlane.xlu0 %1399
        %v1401 = vsel %vm862, %v1397, -inf
        %1402 = vmax.xlane.f32.xlu0 %v1401
        %v1403 = vpop.xlane.xlu0 %1402
        %v1404 = vsub.f32 %v1396, %v1400
        %v1405 = vsub.f32 %v1397, %v1403
        %v1406 = vmul.f32 %v1404, 1.442695
        %v1407 = vpow.pop %v1406
        %v1408 = vmul.f32 %v1405, 1.442695
        %v1409 = vpow.pop %v1408
        %v1410 = vsel %vm858, %v1407, 0.0
        %1411 = vadd.xlane.f32.xlu0 %v1410
        %v1412 = vpop.xlane.xlu0 %1411
        %v1413 = vsel %vm862, %v1409, 0.0
        %1414 = vadd.xlane.f32.xlu0 %v1413
        %v1415 = vpop.xlane.xlu0 %1414
        %v1416 = vrcp.pop %v1412
        %v1417 = vrcp.pop %v1415
        %v1418 = vmul.f32 %v1407, %v1416
        %v1419 = vmul.f32 %v1409, %v1417
        %1420 = vrot.lane.b32.xlu0 %v1259, 56
        %v1421 = vpop.permute.xlu0 %1420
        %1422 = vrot.lane.b32.xlu0 %v1258, 56
        %v1423 = vpop.permute.xlu0 %1422
        %v1426 = vsel %vm858, %v1418, 0
        %v1429 = vsel %vm858, %v1419, 0
        %v1431 = vsel %vm893, %v1423, 0
        %1433 = vmatpush.msra.mxu0 0.0
        %1434 = vmatpush.msra.mxu0 0.0
        %1435 = vmatpush.msra.mxu0 0.0
        %1436 = vmatpush.msra.mxu0 0.0
        %1437 = vmatpush.msra.mxu0 0.0
        %1438 = vmatpush.msra.mxu0 0.0
        %1439 = vmatpush.msra.mxu0 0.0
        %1440 = vmatpush.msra.mxu0 0.0
        %1441 = vmatpush.msra.mxu0 0.0
        %1442 = vmatpush.msra.mxu0 0.0
        %1443 = vmatpush.msra.mxu0 0.0
        %1444 = vmatpush.msra.mxu0 0.0
        %1445 = vmatpush.msra.mxu0 0.0
        %1446 = vmatpush.msra.mxu0 0.0
        %1447 = vmatpush.msra.mxu0 %v1431
        %1448 = vmatpush.msra.mxu0 %v1421
        %1449 = vmatmul.f32.gmra.mxu0 %v1426
        %v1450 = vpop.f32.mrf.mxu0
        %v1451 = vadd.f32 0.0, %v1450
        %1452 = vmatmul.f32.gmra.mxu0 %v1429
        %v1453 = vpop.f32.mrf.mxu0
        %v1454 = vadd.f32 0.0, %v1453
        %1455 = vdwg.mxu0
        %1458 = vrot.lane.b32.xlu0 %v1451, 8
        %v1459 = vpop.permute.xlu0 %1458
        %1460 = vrot.lane.b32.xlu0 %v1454, 8
        %v1461 = vpop.permute.xlu0 %1460
        %1464 = vst.msk [vmem:[#allocation3 + $0x9] sm:$0xff] %vm1029, %v1459
        %1465 = vst.msk [vmem:[#allocation3 + $0x11] sm:$0x1] %vm1031, %v1461
        %1466 = vrot.lane.b32.xlu0 %v1259, 112
        %v1467 = vpop.permute.xlu0 %1466
        %1468 = vrot.lane.b32.xlu0 %v1258, 112
        %v1469 = vpop.permute.xlu0 %1468
        %1470 = vrot.lane.b32.xlu0 %v1259, 80
        %v1471 = vpop.permute.xlu0 %1470
        %1472 = vrot.lane.b32.xlu0 %v1258, 80
        %v1473 = vpop.permute.xlu0 %1472
        %v1474 = vsel %vm824, %v1467, 0
        %v1476 = vsel %vm824, %v1469, 0
        %v1478 = vsel %vm824, %v1471, 0
        %v1480 = vsel %vm824, %v1473, 0
        %1482 = vmatpush.xpose.msra.mxu0 0.0
        %1483 = vmatpush.xpose.msra.mxu0 0.0
        %1484 = vmatpush.xpose.msra.mxu0 0.0
        %1485 = vmatpush.xpose.msra.mxu0 0.0
        %1486 = vmatpush.xpose.msra.mxu0 0.0
        %1487 = vmatpush.xpose.msra.mxu0 0.0
        %1488 = vmatpush.xpose.msra.mxu0 0.0
        %1489 = vmatpush.xpose.msra.mxu0 0.0
        %1490 = vmatpush.xpose.msra.mxu0 0.0
        %1491 = vmatpush.xpose.msra.mxu0 0.0
        %1492 = vmatpush.xpose.msra.mxu0 0.0
        %1493 = vmatpush.xpose.msra.mxu0 0.0
        %1494 = vmatpush.xpose.msra.mxu0 0.0
        %1495 = vmatpush.xpose.msra.mxu0 0.0
        %1496 = vmatpush.xpose.msra.mxu0 %v1480
        %1497 = vmatpush.xpose.msra.mxu0 %v1478
        %1498 = vmatmul.f32.gmra.mxu0 %v1474
        %v1499 = vpop.f32.mrf.mxu0
        %v1500 = vadd.f32 0.0, %v1499
        %1501 = vmatmul.f32.gmra.mxu0 %v1476
        %v1502 = vpop.f32.mrf.mxu0
        %v1503 = vadd.f32 0.0, %v1502
        %1504 = vdwg.mxu0
        %v1505 = vmul.f32 %v1500, 0.17677669
        %v1506 = vmul.f32 %v1503, 0.17677669
        %v1507 = vsel %vm858, %v1505, -inf
        %1508 = vmax.xlane.f32.xlu0 %v1507
        %v1509 = vpop.xlane.xlu0 %1508
        %v1510 = vsel %vm862, %v1506, -inf
        %1511 = vmax.xlane.f32.xlu0 %v1510
        %v1512 = vpop.xlane.xlu0 %1511
        %v1513 = vsub.f32 %v1505, %v1509
        %v1514 = vsub.f32 %v1506, %v1512
        %v1515 = vmul.f32 %v1513, 1.442695
        %v1516 = vpow.pop %v1515
        %v1517 = vmul.f32 %v1514, 1.442695
        %v1518 = vpow.pop %v1517
        %v1519 = vsel %vm858, %v1516, 0.0
        %1520 = vadd.xlane.f32.xlu0 %v1519
        %v1521 = vpop.xlane.xlu0 %1520
        %v1522 = vsel %vm862, %v1518, 0.0
        %1523 = vadd.xlane.f32.xlu0 %v1522
        %v1524 = vpop.xlane.xlu0 %1523
        %v1525 = vrcp.pop %v1521
        %v1526 = vrcp.pop %v1524
        %v1527 = vmul.f32 %v1516, %v1525
        %v1528 = vmul.f32 %v1518, %v1526
        %1529 = vrot.lane.b32.xlu0 %v1259, 48
        %v1530 = vpop.permute.xlu0 %1529
        %1531 = vrot.lane.b32.xlu0 %v1258, 48
        %v1532 = vpop.permute.xlu0 %1531
        %v1535 = vsel %vm858, %v1527, 0
        %v1538 = vsel %vm858, %v1528, 0
        %v1540 = vsel %vm893, %v1532, 0
        %1542 = vmatpush.msra.mxu0 0.0
        %1543 = vmatpush.msra.mxu0 0.0
        %1544 = vmatpush.msra.mxu0 0.0
        %1545 = vmatpush.msra.mxu0 0.0
        %1546 = vmatpush.msra.mxu0 0.0
        %1547 = vmatpush.msra.mxu0 0.0
        %1548 = vmatpush.msra.mxu0 0.0
        %1549 = vmatpush.msra.mxu0 0.0
        %1550 = vmatpush.msra.mxu0 0.0
        %1551 = vmatpush.msra.mxu0 0.0
        %1552 = vmatpush.msra.mxu0 0.0
        %1553 = vmatpush.msra.mxu0 0.0
        %1554 = vmatpush.msra.mxu0 0.0
        %1555 = vmatpush.msra.mxu0 0.0
        %1556 = vmatpush.msra.mxu0 %v1540
        %1557 = vmatpush.msra.mxu0 %v1530
        %1558 = vmatmul.f32.gmra.mxu0 %v1535
        %v1559 = vpop.f32.mrf.mxu0
        %v1560 = vadd.f32 0.0, %v1559
        %1561 = vmatmul.f32.gmra.mxu0 %v1538
        %v1562 = vpop.f32.mrf.mxu0
        %v1563 = vadd.f32 0.0, %v1562
        %1564 = vdwg.mxu0
        %1567 = vrot.lane.b32.xlu0 %v1560, 16
        %v1568 = vpop.permute.xlu0 %1567
        %1569 = vrot.lane.b32.xlu0 %v1563, 16
        %v1570 = vpop.permute.xlu0 %1569
        %1573 = vst.msk [vmem:[#allocation3 + $0x9] sm:$0xff] %vm1140, %v1568
        %1574 = vst.msk [vmem:[#allocation3 + $0x11] sm:$0x1] %vm1142, %v1570
        %1575 = vrot.lane.b32.xlu0 %v1259, 104
        %v1576 = vpop.permute.xlu0 %1575
        %1577 = vrot.lane.b32.xlu0 %v1258, 104
        %v1578 = vpop.permute.xlu0 %1577
        %1579 = vrot.lane.b32.xlu0 %v1259, 72
        %v1580 = vpop.permute.xlu0 %1579
        %1581 = vrot.lane.b32.xlu0 %v1258, 72
        %v1582 = vpop.permute.xlu0 %1581
        %v1583 = vsel %vm824, %v1576, 0
        %v1585 = vsel %vm824, %v1578, 0
        %v1587 = vsel %vm824, %v1580, 0
        %v1589 = vsel %vm824, %v1582, 0
        %1591 = vmatpush.xpose.msra.mxu0 0.0
        %1592 = vmatpush.xpose.msra.mxu0 0.0
        %1593 = vmatpush.xpose.msra.mxu0 0.0
        %1594 = vmatpush.xpose.msra.mxu0 0.0
        %1595 = vmatpush.xpose.msra.mxu0 0.0
        %1596 = vmatpush.xpose.msra.mxu0 0.0
        %1597 = vmatpush.xpose.msra.mxu0 0.0
        %1598 = vmatpush.xpose.msra.mxu0 0.0
        %1599 = vmatpush.xpose.msra.mxu0 0.0
        %1600 = vmatpush.xpose.msra.mxu0 0.0
        %1601 = vmatpush.xpose.msra.mxu0 0.0
        %1602 = vmatpush.xpose.msra.mxu0 0.0
        %1603 = vmatpush.xpose.msra.mxu0 0.0
        %1604 = vmatpush.xpose.msra.mxu0 0.0
        %1605 = vmatpush.xpose.msra.mxu0 %v1589
        %1606 = vmatpush.xpose.msra.mxu0 %v1587
        %1607 = vmatmul.f32.gmra.mxu0 %v1583
        %v1608 = vpop.f32.mrf.mxu0
        %v1609 = vadd.f32 0.0, %v1608
        %1610 = vmatmul.f32.gmra.mxu0 %v1585
        %v1611 = vpop.f32.mrf.mxu0
        %v1612 = vadd.f32 0.0, %v1611
        %1613 = vdwg.mxu0
        %v1614 = vmul.f32 %v1609, 0.17677669
        %v1615 = vmul.f32 %v1612, 0.17677669
        %v1616 = vsel %vm858, %v1614, -inf
        %1617 = vmax.xlane.f32.xlu0 %v1616
        %v1618 = vpop.xlane.xlu0 %1617
        %v1619 = vsel %vm862, %v1615, -inf
        %1620 = vmax.xlane.f32.xlu0 %v1619
        %v1621 = vpop.xlane.xlu0 %1620
        %v1622 = vsub.f32 %v1614, %v1618
        %v1623 = vsub.f32 %v1615, %v1621
        %v1624 = vmul.f32 %v1622, 1.442695
        %v1625 = vpow.pop %v1624
        %v1626 = vmul.f32 %v1623, 1.442695
        %v1627 = vpow.pop %v1626
        %v1628 = vsel %vm858, %v1625, 0.0
        %1629 = vadd.xlane.f32.xlu0 %v1628
        %v1630 = vpop.xlane.xlu0 %1629
        %v1631 = vsel %vm862, %v1627, 0.0
        %1632 = vadd.xlane.f32.xlu0 %v1631
        %v1633 = vpop.xlane.xlu0 %1632
        %v1634 = vrcp.pop %v1630
        %v1635 = vrcp.pop %v1633
        %v1636 = vmul.f32 %v1625, %v1634
        %v1637 = vmul.f32 %v1627, %v1635
        %1638 = vrot.lane.b32.xlu0 %v1259, 40
        %v1639 = vpop.permute.xlu0 %1638
        %1640 = vrot.lane.b32.xlu0 %v1258, 40
        %v1641 = vpop.permute.xlu0 %1640
        %v1644 = vsel %vm858, %v1636, 0
        %v1647 = vsel %vm858, %v1637, 0
        %v1649 = vsel %vm893, %v1641, 0
        %1651 = vmatpush.msra.mxu0 0.0
        %1652 = vmatpush.msra.mxu0 0.0
        %1653 = vmatpush.msra.mxu0 0.0
        %1654 = vmatpush.msra.mxu0 0.0
        %1655 = vmatpush.msra.mxu0 0.0
        %1656 = vmatpush.msra.mxu0 0.0
        %1657 = vmatpush.msra.mxu0 0.0
        %1658 = vmatpush.msra.mxu0 0.0
        %1659 = vmatpush.msra.mxu0 0.0
        %1660 = vmatpush.msra.mxu0 0.0
        %1661 = vmatpush.msra.mxu0 0.0
        %1662 = vmatpush.msra.mxu0 0.0
        %1663 = vmatpush.msra.mxu0 0.0
        %1664 = vmatpush.msra.mxu0 0.0
        %1665 = vmatpush.msra.mxu0 %v1649
        %1666 = vmatpush.msra.mxu0 %v1639
        %1667 = vmatmul.f32.gmra.mxu0 %v1644
        %v1668 = vpop.f32.mrf.mxu0
        %v1669 = vadd.f32 0.0, %v1668
        %1670 = vmatmul.f32.gmra.mxu0 %v1647
        %v1671 = vpop.f32.mrf.mxu0
        %v1672 = vadd.f32 0.0, %v1671
        %1673 = vdwg.mxu0
        %1676 = vrot.lane.b32.xlu0 %v1669, 24
        %v1677 = vpop.permute.xlu0 %1676
        %1678 = vrot.lane.b32.xlu0 %v1672, 24
        %v1679 = vpop.permute.xlu0 %1678
        %1682 = vst.msk [vmem:[#allocation3 + $0x9] sm:$0xff] %vm1251, %v1677
        %1683 = vst.msk [vmem:[#allocation3 + $0x11] sm:$0x1] %vm1253, %v1679
        %v1684 = vld [vmem:[#allocation3] sm:$0xff]
        %v1685 = vld [vmem:[#allocation3 + $0x8] sm:$0xff]
        %v1686 = vld [vmem:[#allocation3 + $0x10] sm:$0x3]
        %v1687 = vld [vmem:[%s7] sm:$0xff]
        %v1688 = vld [vmem:[%s7 + $0x8] sm:$0xff]
        %v1689 = vld [vmem:[%s7 + $0x10] sm:$0xff]
        %v1690 = vld [vmem:[%s7 + $0x18] sm:$0xff]
        %v1691 = vld [vmem:[#allocation13] sm:$0x1]
        %v1693 = vperm.slane %v1691, 0
        %v1696 = vsel %vm684, %v1684, 0
        %v1699 = vsel %vm684, %v1685, 0
        %v1702 = vsel %vm684, %v1686, 0
        %1704 = vmatpush.msra.mxu0 0.0
        %1705 = vmatpush.msra.mxu0 0.0
        %1706 = vmatpush.msra.mxu0 0.0
        %1707 = vmatpush.msra.mxu0 0.0
        %1708 = vmatpush.msra.mxu0 0.0
        %1709 = vmatpush.msra.mxu0 0.0
        %1710 = vmatpush.msra.mxu0 0.0
        %1711 = vmatpush.msra.mxu0 0.0
        %1712 = vmatpush.msra.mxu0 0.0
        %1713 = vmatpush.msra.mxu0 0.0
        %1714 = vmatpush.msra.mxu0 0.0
        %1715 = vmatpush.msra.mxu0 0.0
        %1716 = vmatpush.msra.mxu0 %v1690
        %1717 = vmatpush.msra.mxu0 %v1689
        %1718 = vmatpush.msra.mxu0 %v1688
        %1719 = vmatpush.msra.mxu0 %v1687
        %1720 = vmatmul.f32.gmra.mxu0 %v1696
        %v1721 = vpop.f32.mrf.mxu0
        %v1722 = vadd.f32 %v1693, %v1721
        %1723 = vmatmul.f32.gmra.mxu0 %v1699
        %v1724 = vpop.f32.mrf.mxu0
        %v1725 = vadd.f32 %v1693, %v1724
        %1726 = vmatmul.f32.gmra.mxu0 %v1702
        %v1727 = vpop.f32.mrf.mxu0
        %v1728 = vadd.f32 %v1693, %v1727
        %1729 = vdwg.mxu0
        %v1730 = vadd.f32 %v688, %v1722
        %v1731 = vadd.f32 %v689, %v1725
        %v1732 = vadd.f32 %v690, %v1728
        %v1733 = vld [vmem:[#allocation15] sm:$0x1]
        %v1734 = vld [vmem:[%s10] sm:$0x1]
        %v1735 = vsel %vm684, %v1730, 0.0
        %1736 = vadd.xlane.f32.xlu0 %v1735
        %v1737 = vpop.xlane.xlu0 %1736
        %v1738 = vsel %vm684, %v1731, 0.0
        %1739 = vadd.xlane.f32.xlu0 %v1738
        %v1740 = vpop.xlane.xlu0 %1739
        %v1741 = vsel %vm699, %v1732, 0.0
        %1742 = vadd.xlane.f32.xlu0 %v1741
        %v1743 = vpop.xlane.xlu0 %1742
        %v1744 = vmul.f32 %v1737, %v709
        %v1745 = vmul.f32 %v1740, %v709
        %v1746 = vmul.f32 %v1743, %v709
        %v1747 = vsub.f32 %v1730, %v1744
        %v1748 = vsub.f32 %v1731, %v1745
        %v1749 = vsub.f32 %v1732, %v1746
        %v1750 = vmul.f32 %v1747, %v1747
        %v1751 = vmul.f32 %v1748, %v1748
        %v1752 = vmul.f32 %v1749, %v1749
        %v1753 = vsel %vm684, %v1750, 0.0
        %1754 = vadd.xlane.f32.xlu0 %v1753
        %v1755 = vpop.xlane.xlu0 %1754
        %v1756 = vsel %vm684, %v1751, 0.0
        %1757 = vadd.xlane.f32.xlu0 %v1756
        %v1758 = vpop.xlane.xlu0 %1757
        %v1759 = vsel %vm699, %v1752, 0.0
        %1760 = vadd.xlane.f32.xlu0 %v1759
        %v1761 = vpop.xlane.xlu0 %1760
        %v1762 = vmul.f32 %v1755, %v709
        %v1763 = vmul.f32 %v1758, %v709
        %v1764 = vmul.f32 %v1761, %v709
        %v1765 = vadd.f32 %v1762, 1e-05
        %v1766 = vadd.f32 %v1763, 1e-05
        %v1767 = vadd.f32 %v1764, 1e-05
        %v1768 = vrsqrt.pop %v1765
        %v1769 = vmul.f32 %v1768, %v1765
        %v1770 = vmul.f32 %v1769, %v1768
        %v1771 = vmul.f32 0.5, %v1770
        %v1772 = vsub.f32 1.5, %v1771
        %v1773 = vmul.f32 %v1768, %v1772
        %vm1774 = vweird.f32 %v1765
        %vm1775 = vweird.f32 %v1768
        %vm1776 = vmor %vm1774, %vm1775
        %v1777 = vsel %vm1776, %v1768, %v1773
        %v1778 = vrsqrt.pop %v1766
        %v1779 = vmul.f32 %v1778, %v1766
        %v1780 = vmul.f32 %v1779, %v1778
        %v1781 = vmul.f32 0.5, %v1780
        %v1782 = vsub.f32 1.5, %v1781
        %v1783 = vmul.f32 %v1778, %v1782
        %vm1784 = vweird.f32 %v1766
        %vm1785 = vweird.f32 %v1778
        %vm1786 = vmor %vm1784, %vm1785
        %v1787 = vsel %vm1786, %v1778, %v1783
        %v1788 = vrsqrt.pop %v1767
        %v1789 = vmul.f32 %v1788, %v1767
        %v1790 = vmul.f32 %v1789, %v1788
        %v1791 = vmul.f32 0.5, %v1790
        %v1792 = vsub.f32 1.5, %v1791
        %v1793 = vmul.f32 %v1788, %v1792
        %vm1794 = vweird.f32 %v1767
        %vm1795 = vweird.f32 %v1788
        %vm1796 = vmor %vm1794, %vm1795
        %v1797 = vsel %vm1796, %v1788, %v1793
        %v1798 = vmul.f32 %v1747, %v1777
        %v1799 = vmul.f32 %v1748, %v1787
        %v1800 = vmul.f32 %v1749, %v1797
        %v1802 = vperm.slane %v1733, 0
        %v1804 = vmul.f32 %v1798, %v1802
        %v1805 = vmul.f32 %v1799, %v1802
        %v1806 = vmul.f32 %v1800, %v1802
        %v1808 = vperm.slane %v1734, 0
        %v1810 = vadd.f32 %v1804, %v1808
        %v1811 = vadd.f32 %v1805, %v1808
        %v1812 = vadd.f32 %v1806, %v1808
        %v1813 = vld [vmem:[%s11] sm:$0xff]
        %v1814 = vld [vmem:[%s11 + $0x8] sm:$0xff]
        %v1815 = vld [vmem:[%s11 + $0x10] sm:$0xff]
        %v1816 = vld [vmem:[%s11 + $0x18] sm:$0xff]
        %v1817 = vld [vmem:[#allocation16] sm:$0x1]
        %v1819 = vperm.slane %v1817, 0
        %v1822 = vsel %vm684, %v1810, 0
        %v1825 = vsel %vm684, %v1811, 0
        %v1828 = vsel %vm684, %v1812, 0
        %1830 = vmatpush.msra.mxu0 0.0
        %1831 = vmatpush.msra.mxu0 0.0
        %1832 = vmatpush.msra.mxu0 0.0
        %1833 = vmatpush.msra.mxu0 0.0
        %1834 = vmatpush.msra.mxu0 0.0
        %1835 = vmatpush.msra.mxu0 0.0
        %1836 = vmatpush.msra.mxu0 0.0
        %1837 = vmatpush.msra.mxu0 0.0
        %1838 = vmatpush.msra.mxu0 0.0
        %1839 = vmatpush.msra.mxu0 0.0
        %1840 = vmatpush.msra.mxu0 0.0
        %1841 = vmatpush.msra.mxu0 0.0
        %1842 = vmatpush.msra.mxu0 %v1816
        %1843 = vmatpush.msra.mxu0 %v1815
        %1844 = vmatpush.msra.mxu0 %v1814
        %1845 = vmatpush.msra.mxu0 %v1813
        %1846 = vmatmul.f32.gmra.mxu0 %v1822
        %v1847 = vpop.f32.mrf.mxu0
        %v1848 = vadd.f32 %v1819, %v1847
        %1849 = vmatmul.f32.gmra.mxu0 %v1825
        %v1850 = vpop.f32.mrf.mxu0
        %v1851 = vadd.f32 %v1819, %v1850
        %1852 = vmatmul.f32.gmra.mxu0 %v1828
        %v1853 = vpop.f32.mrf.mxu0
        %v1854 = vadd.f32 %v1819, %v1853
        %1855 = vdwg.mxu0
        %v1856 = vmul.f32 %v1848, 0.70710677
        %v1857 = vmul.f32 %v1851, 0.70710677
        %v1858 = vmul.f32 %v1854, 0.70710677
        %v1859 = vand.u32 2147483647, %v1856
        %v1860 = vand.u32 2147483647, %v1857
        %v1861 = vand.u32 2147483647, %v1858
        %v1862 = vmul.f32 %v1859, 0.3275911
        %v1863 = vmul.f32 %v1860, 0.3275911
        %v1864 = vmul.f32 %v1861, 0.3275911
        %v1865 = vadd.f32 %v1862, 1.0
        %v1866 = vadd.f32 %v1863, 1.0
        %v1867 = vadd.f32 %v1864, 1.0
        %v1868 = vrcp.pop %v1865
        %v1869 = vmul.f32 %v1865, %v1868
        %v1870 = vsub.f32 1.0, %v1869
        %v1871 = vmul.f32 %v1868, %v1870
        %v1872 = vadd.f32 %v1868, %v1871
        %vm1873 = vweird.f32 %v1865
        %vm1874 = vweird.f32 %v1868
        %vm1875 = vmor %vm1873, %vm1874
        %v1876 = vsel %vm1875, %v1868, %v1872
        %v1877 = vand.u32 2147483647, %v1865
        %vm1878 = vcmp.eq.f32.partialorder %v1877, 8.507059e+37
        %v1879 = vand.u32 %v1865, 2147483648
        %v1880 = vor.u32 1.1754944e-38, %v1879
        %v1881 = vsel %vm1878, %v1880, %v1876
        %v1882 = vmul.f32 1.0, %v1881
        %v1883 = vrcp.pop %v1866
        %v1884 = vmul.f32 %v1866, %v1883
        %v1885 = vsub.f32 1.0, %v1884
        %v1886 = vmul.f32 %v1883, %v1885
        %v1887 = vadd.f32 %v1883, %v1886
        %vm1888 = vweird.f32 %v1866
        %vm1889 = vweird.f32 %v1883
        %vm1890 = vmor %vm1888, %vm1889
        %v1891 = vsel %vm1890, %v1883, %v1887
        %v1892 = vand.u32 2147483647, %v1866
        %vm1893 = vcmp.eq.f32.partialorder %v1892, 8.507059e+37
        %v1894 = vand.u32 %v1866, 2147483648
        %v1895 = vor.u32 1.1754944e-38, %v1894
        %v1896 = vsel %vm1893, %v1895, %v1891
        %v1897 = vmul.f32 1.0, %v1896
        %v1898 = vrcp.pop %v1867
        %v1899 = vmul.f32 %v1867, %v1898
        %v1900 = vsub.f32 1.0, %v1899
        %v1901 = vmul.f32 %v1898, %v1900
        %v1902 = vadd.f32 %v1898, %v1901
        %vm1903 = vweird.f32 %v1867
        %vm1904 = vweird.f32 %v1898
        %vm1905 = vmor %vm1903, %vm1904
        %v1906 = vsel %vm1905, %v1898, %v1902
        %v1907 = vand.u32 2147483647, %v1867
        %vm1908 = vcmp.eq.f32.partialorder %v1907, 8.507059e+37
        %v1909 = vand.u32 %v1867, 2147483648
        %v1910 = vor.u32 1.1754944e-38, %v1909
        %v1911 = vsel %vm1908, %v1910, %v1906
        %v1912 = vmul.f32 1.0, %v1911
        %v1913 = vmul.f32 %v1882, 1.0614054
        %v1914 = vmul.f32 %v1897, 1.0614054
        %v1915 = vmul.f32 %v1912, 1.0614054
        %v1916 = vsub.f32 %v1913, 1.4531521
        %v1917 = vsub.f32 %v1914, 1.4531521
        %v1918 = vsub.f32 %v1915, 1.4531521
        %v1919 = vmul.f32 %v1916, %v1882
        %v1920 = vmul.f32 %v1917, %v1897
        %v1921 = vmul.f32 %v1918, %v1912
        %v1922 = vadd.f32 %v1919, 1.4214138
        %v1923 = vadd.f32 %v1920, 1.4214138
        %v1924 = vadd.f32 %v1921, 1.4214138
        %v1925 = vmul.f32 %v1922, %v1882
        %v1926 = vmul.f32 %v1923, %v1897
        %v1927 = vmul.f32 %v1924, %v1912
        %v1928 = vsub.f32 %v1925, 0.28449672
        %v1929 = vsub.f32 %v1926, 0.28449672
        %v1930 = vsub.f32 %v1927, 0.28449672
        %v1931 = vmul.f32 %v1928, %v1882
        %v1932 = vmul.f32 %v1929, %v1897
        %v1933 = vmul.f32 %v1930, %v1912
        %v1934 = vadd.f32 %v1931, 0.2548296
        %v1935 = vadd.f32 %v1932, 0.2548296
        %v1936 = vadd.f32 %v1933, 0.2548296
        %v1937 = vmul.f32 %v1934, %v1882
        %v1938 = vmul.f32 %v1935, %v1897
        %v1939 = vmul.f32 %v1936, %v1912
        %v1940 = vsub.f32 0.0, %v1859
        %v1941 = vsub.f32 0.0, %v1860
        %v1942 = vsub.f32 0.0, %v1861
        %v1943 = vmul.f32 %v1940, %v1859
        %v1944 = vmul.f32 %v1941, %v1860
        %v1945 = vmul.f32 %v1942, %v1861
        %v1946 = vmul.f32 %v1943, 1.442695
        %v1947 = vpow.pop %v1946
        %v1948 = vmul.f32 %v1944, 1.442695
        %v1949 = vpow.pop %v1948
        %v1950 = vmul.f32 %v1945, 1.442695
        %v1951 = vpow.pop %v1950
        %v1952 = vmul.f32 %v1937, %v1947
        %v1953 = vmul.f32 %v1938, %v1949
        %v1954 = vmul.f32 %v1939, %v1951
        %v1955 = vsub.f32 1.0, %v1952
        %v1956 = vsub.f32 1.0, %v1953
        %v1957 = vsub.f32 1.0, %v1954
        %vm1958 = vcmp.lt.f32.partialorder %v1856, 0.0
        %vm1959 = vcmp.lt.f32.partialorder %v1857, 0.0
        %vm1960 = vcmp.lt.f32.partialorder %v1858, 0.0
        %v1961 = vsub.f32 0.0, %v1955
        %v1962 = vsub.f32 0.0, %v1956
        %v1963 = vsub.f32 0.0, %v1957
        %v1964 = vsel %vm1958, %v1961, %v1955
        %v1965 = vsel %vm1959, %v1962, %v1956
        %v1966 = vsel %vm1960, %v1963, %v1957
        %v1967 = vmul.f32 %v1848, 0.5
        %v1968 = vmul.f32 %v1851, 0.5
        %v1969 = vmul.f32 %v1854, 0.5
        %v1970 = vadd.f32 %v1964, 1.0
        %v1971 = vadd.f32 %v1965, 1.0
        %v1972 = vadd.f32 %v1966, 1.0
        %v1973 = vmul.f32 %v1967, %v1970
        %v1974 = vmul.f32 %v1968, %v1971
        %v1975 = vmul.f32 %v1969, %v1972
        %v1976 = vld [vmem:[%s13] sm:$0xff]
        %v1977 = vld [vmem:[%s13 + $0x8] sm:$0xff]
        %v1978 = vld [vmem:[%s13 + $0x10] sm:$0xff]
        %v1979 = vld [vmem:[%s13 + $0x18] sm:$0xff]
        %v1980 = vld [vmem:[%s13 + $0x20] sm:$0xff]
        %v1981 = vld [vmem:[%s13 + $0x28] sm:$0xff]
        %v1982 = vld [vmem:[%s13 + $0x30] sm:$0xff]
        %v1983 = vld [vmem:[%s13 + $0x38] sm:$0xff]
        %v1984 = vld [vmem:[#allocation18] sm:$0x1]
        %v1986 = vperm.slane %v1984, 0
        %vm1988 = vcmask 523264
        %v1990 = vsel %vm1988, %v1973, 0
        %v1993 = vsel %vm1988, %v1974, 0
        %v1996 = vsel %vm1988, %v1975, 0
        %1998 = vmatpush.msra.mxu0 0.0
        %1999 = vmatpush.msra.mxu0 0.0
        %2000 = vmatpush.msra.mxu0 0.0
        %2001 = vmatpush.msra.mxu0 0.0
        %2002 = vmatpush.msra.mxu0 0.0
        %2003 = vmatpush.msra.mxu0 0.0
        %2004 = vmatpush.msra.mxu0 0.0
        %2005 = vmatpush.msra.mxu0 0.0
        %2006 = vmatpush.msra.mxu0 %v1983
        %2007 = vmatpush.msra.mxu0 %v1982
        %2008 = vmatpush.msra.mxu0 %v1981
        %2009 = vmatpush.msra.mxu0 %v1980
        %2010 = vmatpush.msra.mxu0 %v1979
        %2011 = vmatpush.msra.mxu0 %v1978
        %2012 = vmatpush.msra.mxu0 %v1977
        %2013 = vmatpush.msra.mxu0 %v1976
        %2014 = vmatmul.f32.gmra.mxu0 %v1990
        %v2015 = vpop.f32.mrf.mxu0
        %v2016 = vadd.f32 %v1986, %v2015
        %2017 = vmatmul.f32.gmra.mxu0 %v1993
        %v2018 = vpop.f32.mrf.mxu0
        %v2019 = vadd.f32 %v1986, %v2018
        %2020 = vmatmul.f32.gmra.mxu0 %v1996
        %v2021 = vpop.f32.mrf.mxu0
        %v2022 = vadd.f32 %v1986, %v2021
        %2023 = vdwg.mxu0
        %v2024 = vadd.f32 %v1730, %v2016
        %v2025 = vadd.f32 %v1731, %v2019
        %v2026 = vadd.f32 %v1732, %v2022
        %s2027 = scalar_lea.vmem [#allocation12], 1
        %v2028 = vld [vmem:[%s2027] sm:$0x1]
        %s2029 = scalar_lea.vmem %s5, 1
        %v2030 = vld [vmem:[%s2029] sm:$0x1]
        %v2031 = vsel %vm684, %v2024, 0.0
        %2032 = vadd.xlane.f32.xlu0 %v2031
        %v2033 = vpop.xlane.xlu0 %2032
        %v2034 = vsel %vm684, %v2025, 0.0
        %2035 = vadd.xlane.f32.xlu0 %v2034
        %v2036 = vpop.xlane.xlu0 %2035
        %v2037 = vsel %vm699, %v2026, 0.0
        %2038 = vadd.xlane.f32.xlu0 %v2037
        %v2039 = vpop.xlane.xlu0 %2038
        %v2040 = vmul.f32 %v2033, %v709
        %v2041 = vmul.f32 %v2036, %v709
        %v2042 = vmul.f32 %v2039, %v709
        %v2043 = vsub.f32 %v2024, %v2040
        %v2044 = vsub.f32 %v2025, %v2041
        %v2045 = vsub.f32 %v2026, %v2042
        %v2046 = vmul.f32 %v2043, %v2043
        %v2047 = vmul.f32 %v2044, %v2044
        %v2048 = vmul.f32 %v2045, %v2045
        %v2049 = vsel %vm684, %v2046, 0.0
        %2050 = vadd.xlane.f32.xlu0 %v2049
        %v2051 = vpop.xlane.xlu0 %2050
        %v2052 = vsel %vm684, %v2047, 0.0
        %2053 = vadd.xlane.f32.xlu0 %v2052
        %v2054 = vpop.xlane.xlu0 %2053
        %v2055 = vsel %vm699, %v2048, 0.0
        %2056 = vadd.xlane.f32.xlu0 %v2055
        %v2057 = vpop.xlane.xlu0 %2056
        %v2058 = vmul.f32 %v2051, %v709
        %v2059 = vmul.f32 %v2054, %v709
        %v2060 = vmul.f32 %v2057, %v709
        %v2061 = vadd.f32 %v2058, 1e-05
        %v2062 = vadd.f32 %v2059, 1e-05
        %v2063 = vadd.f32 %v2060, 1e-05
        %v2064 = vrsqrt.pop %v2061
        %v2065 = vmul.f32 %v2064, %v2061
        %v2066 = vmul.f32 %v2065, %v2064
        %v2067 = vmul.f32 0.5, %v2066
        %v2068 = vsub.f32 1.5, %v2067
        %v2069 = vmul.f32 %v2064, %v2068
        %vm2070 = vweird.f32 %v2061
        %vm2071 = vweird.f32 %v2064
        %vm2072 = vmor %vm2070, %vm2071
        %v2073 = vsel %vm2072, %v2064, %v2069
        %v2074 = vrsqrt.pop %v2062
        %v2075 = vmul.f32 %v2074, %v2062
        %v2076 = vmul.f32 %v2075, %v2074
        %v2077 = vmul.f32 0.5, %v2076
        %v2078 = vsub.f32 1.5, %v2077
        %v2079 = vmul.f32 %v2074, %v2078
        %vm2080 = vweird.f32 %v2062
        %vm2081 = vweird.f32 %v2074
        %vm2082 = vmor %vm2080, %vm2081
        %v2083 = vsel %vm2082, %v2074, %v2079
        %v2084 = vrsqrt.pop %v2063
        %v2085 = vmul.f32 %v2084, %v2063
        %v2086 = vmul.f32 %v2085, %v2084
        %v2087 = vmul.f32 0.5, %v2086
        %v2088 = vsub.f32 1.5, %v2087
        %v2089 = vmul.f32 %v2084, %v2088
        %vm2090 = vweird.f32 %v2063
        %vm2091 = vweird.f32 %v2084
        %vm2092 = vmor %vm2090, %vm2091
        %v2093 = vsel %vm2092, %v2084, %v2089
        %v2094 = vmul.f32 %v2043, %v2073
        %v2095 = vmul.f32 %v2044, %v2083
        %v2096 = vmul.f32 %v2045, %v2093
        %v2098 = vperm.slane %v2028, 0
        %v2100 = vmul.f32 %v2094, %v2098
        %v2101 = vmul.f32 %v2095, %v2098
        %v2102 = vmul.f32 %v2096, %v2098
        %v2104 = vperm.slane %v2030, 0
        %v2106 = vadd.f32 %v2100, %v2104
        %v2107 = vadd.f32 %v2101, %v2104
        %v2108 = vadd.f32 %v2102, %v2104
        %s2109 = scalar_lea.vmem %s6, 32
        %v2110 = vld [vmem:[%s2109] sm:$0xff]
        %v2111 = vld [vmem:[%s2109 + $0x8] sm:$0xff]
        %v2112 = vld [vmem:[%s2109 + $0x10] sm:$0xff]
        %v2113 = vld [vmem:[%s2109 + $0x18] sm:$0xff]
        %v2115 = vsel %vm684, %v2106, 0
        %v2118 = vsel %vm684, %v2107, 0
        %v2121 = vsel %vm684, %v2108, 0
        %2123 = vmatpush.msra.mxu0 0.0
        %2124 = vmatpush.msra.mxu0 0.0
        %2125 = vmatpush.msra.mxu0 0.0
        %2126 = vmatpush.msra.mxu0 0.0
        %2127 = vmatpush.msra.mxu0 0.0
        %2128 = vmatpush.msra.mxu0 0.0
        %2129 = vmatpush.msra.mxu0 0.0
        %2130 = vmatpush.msra.mxu0 0.0
        %2131 = vmatpush.msra.mxu0 0.0
        %2132 = vmatpush.msra.mxu0 0.0
        %2133 = vmatpush.msra.mxu0 0.0
        %2134 = vmatpush.msra.mxu0 0.0
        %2135 = vmatpush.msra.mxu0 %v2113
        %2136 = vmatpush.msra.mxu0 %v2112
        %2137 = vmatpush.msra.mxu0 %v2111
        %2138 = vmatpush.msra.mxu0 %v2110
        %2139 = vmatmul.f32.gmra.mxu0 %v2115
        %v2140 = vpop.f32.mrf.mxu0
        %v2141 = vadd.f32 0.0, %v2140
        %2142 = vmatmul.f32.gmra.mxu0 %v2118
        %v2143 = vpop.f32.mrf.mxu0
        %v2144 = vadd.f32 0.0, %v2143
        %2145 = vmatmul.f32.gmra.mxu0 %v2121
        %v2146 = vpop.f32.mrf.mxu0
        %v2147 = vadd.f32 0.0, %v2146
        %2148 = vdwg.mxu0
        %2151 = vrot.lane.b32.xlu0 %v2141, 96
        %v2152 = vpop.permute.xlu0 %2151
        %2153 = vrot.lane.b32.xlu0 %v2144, 96
        %v2154 = vpop.permute.xlu0 %2153
        %v2155 = vsel %vm824, %v2141, 0
        %v2157 = vsel %vm824, %v2144, 0
        %v2159 = vsel %vm824, %v2152, 0
        %v2161 = vsel %vm824, %v2154, 0
        %2163 = vmatpush.xpose.msra.mxu0 0.0
        %2164 = vmatpush.xpose.msra.mxu0 0.0
        %2165 = vmatpush.xpose.msra.mxu0 0.0
        %2166 = vmatpush.xpose.msra.mxu0 0.0
        %2167 = vmatpush.xpose.msra.mxu0 0.0
        %2168 = vmatpush.xpose.msra.mxu0 0.0
        %2169 = vmatpush.xpose.msra.mxu0 0.0
        %2170 = vmatpush.xpose.msra.mxu0 0.0
        %2171 = vmatpush.xpose.msra.mxu0 0.0
        %2172 = vmatpush.xpose.msra.mxu0 0.0
        %2173 = vmatpush.xpose.msra.mxu0 0.0
        %2174 = vmatpush.xpose.msra.mxu0 0.0
        %2175 = vmatpush.xpose.msra.mxu0 0.0
        %2176 = vmatpush.xpose.msra.mxu0 0.0
        %2177 = vmatpush.xpose.msra.mxu0 %v2161
        %2178 = vmatpush.xpose.msra.mxu0 %v2159
        %2179 = vmatmul.f32.gmra.mxu0 %v2155
        %v2180 = vpop.f32.mrf.mxu0
        %v2181 = vadd.f32 0.0, %v2180
        %2182 = vmatmul.f32.gmra.mxu0 %v2157
        %v2183 = vpop.f32.mrf.mxu0
        %v2184 = vadd.f32 0.0, %v2183
        %2185 = vdwg.mxu0
        %v2186 = vmul.f32 %v2181, 0.17677669
        %v2187 = vmul.f32 %v2184, 0.17677669
        %v2188 = vsel %vm858, %v2186, -inf
        %2189 = vmax.xlane.f32.xlu0 %v2188
        %v2190 = vpop.xlane.xlu0 %2189
        %v2191 = vsel %vm862, %v2187, -inf
        %2192 = vmax.xlane.f32.xlu0 %v2191
        %v2193 = vpop.xlane.xlu0 %2192
        %v2194 = vsub.f32 %v2186, %v2190
        %v2195 = vsub.f32 %v2187, %v2193
        %v2196 = vmul.f32 %v2194, 1.442695
        %v2197 = vpow.pop %v2196
        %v2198 = vmul.f32 %v2195, 1.442695
        %v2199 = vpow.pop %v2198
        %v2200 = vsel %vm858, %v2197, 0.0
        %2201 = vadd.xlane.f32.xlu0 %v2200
        %v2202 = vpop.xlane.xlu0 %2201
        %v2203 = vsel %vm862, %v2199, 0.0
        %2204 = vadd.xlane.f32.xlu0 %v2203
        %v2205 = vpop.xlane.xlu0 %2204
        %v2206 = vrcp.pop %v2202
        %v2207 = vrcp.pop %v2205
        %v2208 = vmul.f32 %v2197, %v2206
        %v2209 = vmul.f32 %v2199, %v2207
        %2210 = vrot.lane.b32.xlu0 %v2141, 64
        %v2211 = vpop.permute.xlu0 %2210
        %2212 = vrot.lane.b32.xlu0 %v2144, 64
        %v2213 = vpop.permute.xlu0 %2212
        %v2216 = vsel %vm858, %v2208, 0
        %v2219 = vsel %vm858, %v2209, 0
        %v2221 = vsel %vm893, %v2213, 0
        %2223 = vmatpush.msra.mxu0 0.0
        %2224 = vmatpush.msra.mxu0 0.0
        %2225 = vmatpush.msra.mxu0 0.0
        %2226 = vmatpush.msra.mxu0 0.0
        %2227 = vmatpush.msra.mxu0 0.0
        %2228 = vmatpush.msra.mxu0 0.0
        %2229 = vmatpush.msra.mxu0 0.0
        %2230 = vmatpush.msra.mxu0 0.0
        %2231 = vmatpush.msra.mxu0 0.0
        %2232 = vmatpush.msra.mxu0 0.0
        %2233 = vmatpush.msra.mxu0 0.0
        %2234 = vmatpush.msra.mxu0 0.0
        %2235 = vmatpush.msra.mxu0 0.0
        %2236 = vmatpush.msra.mxu0 0.0
        %2237 = vmatpush.msra.mxu0 %v2221
        %2238 = vmatpush.msra.mxu0 %v2211
        %2239 = vmatmul.f32.gmra.mxu0 %v2216
        %v2240 = vpop.f32.mrf.mxu0
        %v2241 = vadd.f32 0.0, %v2240
        %2242 = vmatmul.f32.gmra.mxu0 %v2219
        %v2243 = vpop.f32.mrf.mxu0
        %v2244 = vadd.f32 0.0, %v2243
        %2245 = vdwg.mxu0
        %2246 = vst.msk [vmem:[#allocation3] sm:$0xff] %vm824, %v2241
        %2247 = vst.msk [vmem:[#allocation3 + $0x8] sm:$0x1] %vm920, %v2244
        %2248 = vrot.lane.b32.xlu0 %v2141, 120
        %v2249 = vpop.permute.xlu0 %2248
        %2250 = vrot.lane.b32.xlu0 %v2144, 120
        %v2251 = vpop.permute.xlu0 %2250
        %2252 = vrot.lane.b32.xlu0 %v2141, 88
        %v2253 = vpop.permute.xlu0 %2252
        %2254 = vrot.lane.b32.xlu0 %v2144, 88
        %v2255 = vpop.permute.xlu0 %2254
        %v2256 = vsel %vm824, %v2249, 0
        %v2258 = vsel %vm824, %v2251, 0
        %v2260 = vsel %vm824, %v2253, 0
        %v2262 = vsel %vm824, %v2255, 0
        %2264 = vmatpush.xpose.msra.mxu0 0.0
        %2265 = vmatpush.xpose.msra.mxu0 0.0
        %2266 = vmatpush.xpose.msra.mxu0 0.0
        %2267 = vmatpush.xpose.msra.mxu0 0.0
        %2268 = vmatpush.xpose.msra.mxu0 0.0
        %2269 = vmatpush.xpose.msra.mxu0 0.0
        %2270 = vmatpush.xpose.msra.mxu0 0.0
        %2271 = vmatpush.xpose.msra.mxu0 0.0
        %2272 = vmatpush.xpose.msra.mxu0 0.0
        %2273 = vmatpush.xpose.msra.mxu0 0.0
        %2274 = vmatpush.xpose.msra.mxu0 0.0
        %2275 = vmatpush.xpose.msra.mxu0 0.0
        %2276 = vmatpush.xpose.msra.mxu0 0.0
        %2277 = vmatpush.xpose.msra.mxu0 0.0
        %2278 = vmatpush.xpose.msra.mxu0 %v2262
        %2279 = vmatpush.xpose.msra.mxu0 %v2260
        %2280 = vmatmul.f32.gmra.mxu0 %v2256
        %v2281 = vpop.f32.mrf.mxu0
        %v2282 = vadd.f32 0.0, %v2281
        %2283 = vmatmul.f32.gmra.mxu0 %v2258
        %v2284 = vpop.f32.mrf.mxu0
        %v2285 = vadd.f32 0.0, %v2284
        %2286 = vdwg.mxu0
        %v2287 = vmul.f32 %v2282, 0.17677669
        %v2288 = vmul.f32 %v2285, 0.17677669
        %v2289 = vsel %vm858, %v2287, -inf
        %2290 = vmax.xlane.f32.xlu0 %v2289
        %v2291 = vpop.xlane.xlu0 %2290
        %v2292 = vsel %vm862, %v2288, -inf
        %2293 = vmax.xlane.f32.xlu0 %v2292
        %v2294 = vpop.xlane.xlu0 %2293
        %v2295 = vsub.f32 %v2287, %v2291
        %v2296 = vsub.f32 %v2288, %v2294
        %v2297 = vmul.f32 %v2295, 1.442695
        %v2298 = vpow.pop %v2297
        %v2299 = vmul.f32 %v2296, 1.442695
        %v2300 = vpow.pop %v2299
        %v2301 = vsel %vm858, %v2298, 0.0
        %2302 = vadd.xlane.f32.xlu0 %v2301
        %v2303 = vpop.xlane.xlu0 %2302
        %v2304 = vsel %vm862, %v2300, 0.0
        %2305 = vadd.xlane.f32.xlu0 %v2304
        %v2306 = vpop.xlane.xlu0 %2305
        %v2307 = vrcp.pop %v2303
        %v2308 = vrcp.pop %v2306
        %v2309 = vmul.f32 %v2298, %v2307
        %v2310 = vmul.f32 %v2300, %v2308
        %2311 = vrot.lane.b32.xlu0 %v2141, 56
        %v2312 = vpop.permute.xlu0 %2311
        %2313 = vrot.lane.b32.xlu0 %v2144, 56
        %v2314 = vpop.permute.xlu0 %2313
        %v2317 = vsel %vm858, %v2309, 0
        %v2320 = vsel %vm858, %v2310, 0
        %v2322 = vsel %vm893, %v2314, 0
        %2324 = vmatpush.msra.mxu0 0.0
        %2325 = vmatpush.msra.mxu0 0.0
        %2326 = vmatpush.msra.mxu0 0.0
        %2327 = vmatpush.msra.mxu0 0.0
        %2328 = vmatpush.msra.mxu0 0.0
        %2329 = vmatpush.msra.mxu0 0.0
        %2330 = vmatpush.msra.mxu0 0.0
        %2331 = vmatpush.msra.mxu0 0.0
        %2332 = vmatpush.msra.mxu0 0.0
        %2333 = vmatpush.msra.mxu0 0.0
        %2334 = vmatpush.msra.mxu0 0.0
        %2335 = vmatpush.msra.mxu0 0.0
        %2336 = vmatpush.msra.mxu0 0.0
        %2337 = vmatpush.msra.mxu0 0.0
        %2338 = vmatpush.msra.mxu0 %v2322
        %2339 = vmatpush.msra.mxu0 %v2312
        %2340 = vmatmul.f32.gmra.mxu0 %v2317
        %v2341 = vpop.f32.mrf.mxu0
        %v2342 = vadd.f32 0.0, %v2341
        %2343 = vmatmul.f32.gmra.mxu0 %v2320
        %v2344 = vpop.f32.mrf.mxu0
        %v2345 = vadd.f32 0.0, %v2344
        %2346 = vdwg.mxu0
        %2349 = vrot.lane.b32.xlu0 %v2342, 8
        %v2350 = vpop.permute.xlu0 %2349
        %2351 = vrot.lane.b32.xlu0 %v2345, 8
        %v2352 = vpop.permute.xlu0 %2351
        %2355 = vst.msk [vmem:[#allocation3] sm:$0xff] %vm1029, %v2350
        %2356 = vst.msk [vmem:[#allocation3 + $0x8] sm:$0x1] %vm1031, %v2352
        %2357 = vrot.lane.b32.xlu0 %v2141, 112
        %v2358 = vpop.permute.xlu0 %2357
        %2359 = vrot.lane.b32.xlu0 %v2144, 112
        %v2360 = vpop.permute.xlu0 %2359
        %2361 = vrot.lane.b32.xlu0 %v2141, 80
        %v2362 = vpop.permute.xlu0 %2361
        %2363 = vrot.lane.b32.xlu0 %v2144, 80
        %v2364 = vpop.permute.xlu0 %2363
        %v2365 = vsel %vm824, %v2358, 0
        %v2367 = vsel %vm824, %v2360, 0
        %v2369 = vsel %vm824, %v2362, 0
        %v2371 = vsel %vm824, %v2364, 0
        %2373 = vmatpush.xpose.msra.mxu0 0.0
        %2374 = vmatpush.xpose.msra.mxu0 0.0
        %2375 = vmatpush.xpose.msra.mxu0 0.0
        %2376 = vmatpush.xpose.msra.mxu0 0.0
        %2377 = vmatpush.xpose.msra.mxu0 0.0
        %2378 = vmatpush.xpose.msra.mxu0 0.0
        %2379 = vmatpush.xpose.msra.mxu0 0.0
        %2380 = vmatpush.xpose.msra.mxu0 0.0
        %2381 = vmatpush.xpose.msra.mxu0 0.0
        %2382 = vmatpush.xpose.msra.mxu0 0.0
        %2383 = vmatpush.xpose.msra.mxu0 0.0
        %2384 = vmatpush.xpose.msra.mxu0 0.0
        %2385 = vmatpush.xpose.msra.mxu0 0.0
        %2386 = vmatpush.xpose.msra.mxu0 0.0
        %2387 = vmatpush.xpose.msra.mxu0 %v2371
        %2388 = vmatpush.xpose.msra.mxu0 %v2369
        %2389 = vmatmul.f32.gmra.mxu0 %v2365
        %v2390 = vpop.f32.mrf.mxu0
        %v2391 = vadd.f32 0.0, %v2390
        %2392 = vmatmul.f32.gmra.mxu0 %v2367
        %v2393 = vpop.f32.mrf.mxu0
        %v2394 = vadd.f32 0.0, %v2393
        %2395 = vdwg.mxu0
        %v2396 = vmul.f32 %v2391, 0.17677669
        %v2397 = vmul.f32 %v2394, 0.17677669
        %v2398 = vsel %vm858, %v2396, -inf
        %2399 = vmax.xlane.f32.xlu0 %v2398
        %v2400 = vpop.xlane.xlu0 %2399
        %v2401 = vsel %vm862, %v2397, -inf
        %2402 = vmax.xlane.f32.xlu0 %v2401
        %v2403 = vpop.xlane.xlu0 %2402
        %v2404 = vsub.f32 %v2396, %v2400
        %v2405 = vsub.f32 %v2397, %v2403
        %v2406 = vmul.f32 %v2404, 1.442695
        %v2407 = vpow.pop %v2406
        %v2408 = vmul.f32 %v2405, 1.442695
        %v2409 = vpow.pop %v2408
        %v2410 = vsel %vm858, %v2407, 0.0
        %2411 = vadd.xlane.f32.xlu0 %v2410
        %v2412 = vpop.xlane.xlu0 %2411
        %v2413 = vsel %vm862, %v2409, 0.0
        %2414 = vadd.xlane.f32.xlu0 %v2413
        %v2415 = vpop.xlane.xlu0 %2414
        %v2416 = vrcp.pop %v2412
        %v2417 = vrcp.pop %v2415
        %v2418 = vmul.f32 %v2407, %v2416
        %v2419 = vmul.f32 %v2409, %v2417
        %2420 = vrot.lane.b32.xlu0 %v2141, 48
        %v2421 = vpop.permute.xlu0 %2420
        %2422 = vrot.lane.b32.xlu0 %v2144, 48
        %v2423 = vpop.permute.xlu0 %2422
        %v2426 = vsel %vm858, %v2418, 0
        %v2429 = vsel %vm858, %v2419, 0
        %v2431 = vsel %vm893, %v2423, 0
        %2433 = vmatpush.msra.mxu0 0.0
        %2434 = vmatpush.msra.mxu0 0.0
        %2435 = vmatpush.msra.mxu0 0.0
        %2436 = vmatpush.msra.mxu0 0.0
        %2437 = vmatpush.msra.mxu0 0.0
        %2438 = vmatpush.msra.mxu0 0.0
        %2439 = vmatpush.msra.mxu0 0.0
        %2440 = vmatpush.msra.mxu0 0.0
        %2441 = vmatpush.msra.mxu0 0.0
        %2442 = vmatpush.msra.mxu0 0.0
        %2443 = vmatpush.msra.mxu0 0.0
        %2444 = vmatpush.msra.mxu0 0.0
        %2445 = vmatpush.msra.mxu0 0.0
        %2446 = vmatpush.msra.mxu0 0.0
        %2447 = vmatpush.msra.mxu0 %v2431
        %2448 = vmatpush.msra.mxu0 %v2421
        %2449 = vmatmul.f32.gmra.mxu0 %v2426
        %v2450 = vpop.f32.mrf.mxu0
        %v2451 = vadd.f32 0.0, %v2450
        %2452 = vmatmul.f32.gmra.mxu0 %v2429
        %v2453 = vpop.f32.mrf.mxu0
        %v2454 = vadd.f32 0.0, %v2453
        %2455 = vdwg.mxu0
        %2458 = vrot.lane.b32.xlu0 %v2451, 16
        %v2459 = vpop.permute.xlu0 %2458
        %2460 = vrot.lane.b32.xlu0 %v2454, 16
        %v2461 = vpop.permute.xlu0 %2460
        %2464 = vst.msk [vmem:[#allocation3] sm:$0xff] %vm1140, %v2459
        %2465 = vst.msk [vmem:[#allocation3 + $0x8] sm:$0x1] %vm1142, %v2461
        %2466 = vrot.lane.b32.xlu0 %v2141, 104
        %v2467 = vpop.permute.xlu0 %2466
        %2468 = vrot.lane.b32.xlu0 %v2144, 104
        %v2469 = vpop.permute.xlu0 %2468
        %2470 = vrot.lane.b32.xlu0 %v2141, 72
        %v2471 = vpop.permute.xlu0 %2470
        %2472 = vrot.lane.b32.xlu0 %v2144, 72
        %v2473 = vpop.permute.xlu0 %2472
        %v2474 = vsel %vm824, %v2467, 0
        %v2476 = vsel %vm824, %v2469, 0
        %v2478 = vsel %vm824, %v2471, 0
        %v2480 = vsel %vm824, %v2473, 0
        %2482 = vmatpush.xpose.msra.mxu0 0.0
        %2483 = vmatpush.xpose.msra.mxu0 0.0
        %2484 = vmatpush.xpose.msra.mxu0 0.0
        %2485 = vmatpush.xpose.msra.mxu0 0.0
        %2486 = vmatpush.xpose.msra.mxu0 0.0
        %2487 = vmatpush.xpose.msra.mxu0 0.0
        %2488 = vmatpush.xpose.msra.mxu0 0.0
        %2489 = vmatpush.xpose.msra.mxu0 0.0
        %2490 = vmatpush.xpose.msra.mxu0 0.0
        %2491 = vmatpush.xpose.msra.mxu0 0.0
        %2492 = vmatpush.xpose.msra.mxu0 0.0
        %2493 = vmatpush.xpose.msra.mxu0 0.0
        %2494 = vmatpush.xpose.msra.mxu0 0.0
        %2495 = vmatpush.xpose.msra.mxu0 0.0
        %2496 = vmatpush.xpose.msra.mxu0 %v2480
        %2497 = vmatpush.xpose.msra.mxu0 %v2478
        %2498 = vmatmul.f32.gmra.mxu0 %v2474
        %v2499 = vpop.f32.mrf.mxu0
        %v2500 = vadd.f32 0.0, %v2499
        %2501 = vmatmul.f32.gmra.mxu0 %v2476
        %v2502 = vpop.f32.mrf.mxu0
        %v2503 = vadd.f32 0.0, %v2502
        %2504 = vdwg.mxu0
        %v2505 = vmul.f32 %v2500, 0.17677669
        %v2506 = vmul.f32 %v2503, 0.17677669
        %v2507 = vsel %vm858, %v2505, -inf
        %2508 = vmax.xlane.f32.xlu0 %v2507
        %v2509 = vpop.xlane.xlu0 %2508
        %v2510 = vsel %vm862, %v2506, -inf
        %2511 = vmax.xlane.f32.xlu0 %v2510
        %v2512 = vpop.xlane.xlu0 %2511
        %v2513 = vsub.f32 %v2505, %v2509
        %v2514 = vsub.f32 %v2506, %v2512
        %v2515 = vmul.f32 %v2513, 1.442695
        %v2516 = vpow.pop %v2515
        %v2517 = vmul.f32 %v2514, 1.442695
        %v2518 = vpow.pop %v2517
        %v2519 = vsel %vm858, %v2516, 0.0
        %2520 = vadd.xlane.f32.xlu0 %v2519
        %v2521 = vpop.xlane.xlu0 %2520
        %v2522 = vsel %vm862, %v2518, 0.0
        %2523 = vadd.xlane.f32.xlu0 %v2522
        %v2524 = vpop.xlane.xlu0 %2523
        %v2525 = vrcp.pop %v2521
        %v2526 = vrcp.pop %v2524
        %v2527 = vmul.f32 %v2516, %v2525
        %v2528 = vmul.f32 %v2518, %v2526
        %2529 = vrot.lane.b32.xlu0 %v2141, 40
        %v2530 = vpop.permute.xlu0 %2529
        %2531 = vrot.lane.b32.xlu0 %v2144, 40
        %v2532 = vpop.permute.xlu0 %2531
        %v2535 = vsel %vm858, %v2527, 0
        %v2538 = vsel %vm858, %v2528, 0
        %v2540 = vsel %vm893, %v2532, 0
        %2542 = vmatpush.msra.mxu0 0.0
        %2543 = vmatpush.msra.mxu0 0.0
        %2544 = vmatpush.msra.mxu0 0.0
        %2545 = vmatpush.msra.mxu0 0.0
        %2546 = vmatpush.msra.mxu0 0.0
        %2547 = vmatpush.msra.mxu0 0.0
        %2548 = vmatpush.msra.mxu0 0.0
        %2549 = vmatpush.msra.mxu0 0.0
        %2550 = vmatpush.msra.mxu0 0.0
        %2551 = vmatpush.msra.mxu0 0.0
        %2552 = vmatpush.msra.mxu0 0.0
        %2553 = vmatpush.msra.mxu0 0.0
        %2554 = vmatpush.msra.mxu0 0.0
        %2555 = vmatpush.msra.mxu0 0.0
        %2556 = vmatpush.msra.mxu0 %v2540
        %2557 = vmatpush.msra.mxu0 %v2530
        %2558 = vmatmul.f32.gmra.mxu0 %v2535
        %v2559 = vpop.f32.mrf.mxu0
        %v2560 = vadd.f32 0.0, %v2559
        %2561 = vmatmul.f32.gmra.mxu0 %v2538
        %v2562 = vpop.f32.mrf.mxu0
        %v2563 = vadd.f32 0.0, %v2562
        %2564 = vdwg.mxu0
        %2567 = vrot.lane.b32.xlu0 %v2560, 24
        %v2568 = vpop.permute.xlu0 %2567
        %2569 = vrot.lane.b32.xlu0 %v2563, 24
        %v2570 = vpop.permute.xlu0 %2569
        %2573 = vst.msk [vmem:[#allocation3] sm:$0xff] %vm1251, %v2568
        %2574 = vst.msk [vmem:[#allocation3 + $0x8] sm:$0x1] %vm1253, %v2570
        %v2576 = vrot.slane %v2144, 1
        %v2577 = vrot.slane %v2147, 1
        %v2578 = vsel %vm1256, %v2576, %v2577
        %2579 = vrot.lane.b32.xlu0 %v2578, 96
        %v2580 = vpop.permute.xlu0 %2579
        %2581 = vrot.lane.b32.xlu0 %v2577, 96
        %v2582 = vpop.permute.xlu0 %2581
        %v2583 = vsel %vm824, %v2578, 0
        %v2585 = vsel %vm824, %v2577, 0
        %v2587 = vsel %vm824, %v2580, 0
        %v2589 = vsel %vm824, %v2582, 0
        %2591 = vmatpush.xpose.msra.mxu0 0.0
        %2592 = vmatpush.xpose.msra.mxu0 0.0
        %2593 = vmatpush.xpose.msra.mxu0 0.0
        %2594 = vmatpush.xpose.msra.mxu0 0.0
        %2595 = vmatpush.xpose.msra.mxu0 0.0
        %2596 = vmatpush.xpose.msra.mxu0 0.0
        %2597 = vmatpush.xpose.msra.mxu0 0.0
        %2598 = vmatpush.xpose.msra.mxu0 0.0
        %2599 = vmatpush.xpose.msra.mxu0 0.0
        %2600 = vmatpush.xpose.msra.mxu0 0.0
        %2601 = vmatpush.xpose.msra.mxu0 0.0
        %2602 = vmatpush.xpose.msra.mxu0 0.0
        %2603 = vmatpush.xpose.msra.mxu0 0.0
        %2604 = vmatpush.xpose.msra.mxu0 0.0
        %2605 = vmatpush.xpose.msra.mxu0 %v2589
        %2606 = vmatpush.xpose.msra.mxu0 %v2587
        %2607 = vmatmul.f32.gmra.mxu0 %v2583
        %v2608 = vpop.f32.mrf.mxu0
        %v2609 = vadd.f32 0.0, %v2608
        %2610 = vmatmul.f32.gmra.mxu0 %v2585
        %v2611 = vpop.f32.mrf.mxu0
        %v2612 = vadd.f32 0.0, %v2611
        %2613 = vdwg.mxu0
        %v2614 = vmul.f32 %v2609, 0.17677669
        %v2615 = vmul.f32 %v2612, 0.17677669
        %v2616 = vsel %vm858, %v2614, -inf
        %2617 = vmax.xlane.f32.xlu0 %v2616
        %v2618 = vpop.xlane.xlu0 %2617
        %v2619 = vsel %vm862, %v2615, -inf
        %2620 = vmax.xlane.f32.xlu0 %v2619
        %v2621 = vpop.xlane.xlu0 %2620
        %v2622 = vsub.f32 %v2614, %v2618
        %v2623 = vsub.f32 %v2615, %v2621
        %v2624 = vmul.f32 %v2622, 1.442695
        %v2625 = vpow.pop %v2624
        %v2626 = vmul.f32 %v2623, 1.442695
        %v2627 = vpow.pop %v2626
        %v2628 = vsel %vm858, %v2625, 0.0
        %2629 = vadd.xlane.f32.xlu0 %v2628
        %v2630 = vpop.xlane.xlu0 %2629
        %v2631 = vsel %vm862, %v2627, 0.0
        %2632 = vadd.xlane.f32.xlu0 %v2631
        %v2633 = vpop.xlane.xlu0 %2632
        %v2634 = vrcp.pop %v2630
        %v2635 = vrcp.pop %v2633
        %v2636 = vmul.f32 %v2625, %v2634
        %v2637 = vmul.f32 %v2627, %v2635
        %2638 = vrot.lane.b32.xlu0 %v2578, 64
        %v2639 = vpop.permute.xlu0 %2638
        %2640 = vrot.lane.b32.xlu0 %v2577, 64
        %v2641 = vpop.permute.xlu0 %2640
        %v2644 = vsel %vm858, %v2636, 0
        %v2647 = vsel %vm858, %v2637, 0
        %v2649 = vsel %vm893, %v2641, 0
        %2651 = vmatpush.msra.mxu0 0.0
        %2652 = vmatpush.msra.mxu0 0.0
        %2653 = vmatpush.msra.mxu0 0.0
        %2654 = vmatpush.msra.mxu0 0.0
        %2655 = vmatpush.msra.mxu0 0.0
        %2656 = vmatpush.msra.mxu0 0.0
        %2657 = vmatpush.msra.mxu0 0.0
        %2658 = vmatpush.msra.mxu0 0.0
        %2659 = vmatpush.msra.mxu0 0.0
        %2660 = vmatpush.msra.mxu0 0.0
        %2661 = vmatpush.msra.mxu0 0.0
        %2662 = vmatpush.msra.mxu0 0.0
        %2663 = vmatpush.msra.mxu0 0.0
        %2664 = vmatpush.msra.mxu0 0.0
        %2665 = vmatpush.msra.mxu0 %v2649
        %2666 = vmatpush.msra.mxu0 %v2639
        %2667 = vmatmul.f32.gmra.mxu0 %v2644
        %v2668 = vpop.f32.mrf.mxu0
        %v2669 = vadd.f32 0.0, %v2668
        %2670 = vmatmul.f32.gmra.mxu0 %v2647
        %v2671 = vpop.f32.mrf.mxu0
        %v2672 = vadd.f32 0.0, %v2671
        %2673 = vdwg.mxu0
        %2674 = vst.msk [vmem:[#allocation3 + $0x9] sm:$0xff] %vm824, %v2669
        %2675 = vst.msk [vmem:[#allocation3 + $0x11] sm:$0x1] %vm920, %v2672
        %2676 = vrot.lane.b32.xlu0 %v2578, 120
        %v2677 = vpop.permute.xlu0 %2676
        %2678 = vrot.lane.b32.xlu0 %v2577, 120
        %v2679 = vpop.permute.xlu0 %2678
        %2680 = vrot.lane.b32.xlu0 %v2578, 88
        %v2681 = vpop.permute.xlu0 %2680
        %2682 = vrot.lane.b32.xlu0 %v2577, 88
        %v2683 = vpop.permute.xlu0 %2682
        %v2684 = vsel %vm824, %v2677, 0
        %v2686 = vsel %vm824, %v2679, 0
        %v2688 = vsel %vm824, %v2681, 0
        %v2690 = vsel %vm824, %v2683, 0
        %2692 = vmatpush.xpose.msra.mxu0 0.0
        %2693 = vmatpush.xpose.msra.mxu0 0.0
        %2694 = vmatpush.xpose.msra.mxu0 0.0
        %2695 = vmatpush.xpose.msra.mxu0 0.0
        %2696 = vmatpush.xpose.msra.mxu0 0.0
        %2697 = vmatpush.xpose.msra.mxu0 0.0
        %2698 = vmatpush.xpose.msra.mxu0 0.0
        %2699 = vmatpush.xpose.msra.mxu0 0.0
        %2700 = vmatpush.xpose.msra.mxu0 0.0
        %2701 = vmatpush.xpose.msra.mxu0 0.0
        %2702 = vmatpush.xpose.msra.mxu0 0.0
        %2703 = vmatpush.xpose.msra.mxu0 0.0
        %2704 = vmatpush.xpose.msra.mxu0 0.0
        %2705 = vmatpush.xpose.msra.mxu0 0.0
        %2706 = vmatpush.xpose.msra.mxu0 %v2690
        %2707 = vmatpush.xpose.msra.mxu0 %v2688
        %2708 = vmatmul.f32.gmra.mxu0 %v2684
        %v2709 = vpop.f32.mrf.mxu0
        %v2710 = vadd.f32 0.0, %v2709
        %2711 = vmatmul.f32.gmra.mxu0 %v2686
        %v2712 = vpop.f32.mrf.mxu0
        %v2713 = vadd.f32 0.0, %v2712
        %2714 = vdwg.mxu0
        %v2715 = vmul.f32 %v2710, 0.17677669
        %v2716 = vmul.f32 %v2713, 0.17677669
        %v2717 = vsel %vm858, %v2715, -inf
        %2718 = vmax.xlane.f32.xlu0 %v2717
        %v2719 = vpop.xlane.xlu0 %2718
        %v2720 = vsel %vm862, %v2716, -inf
        %2721 = vmax.xlane.f32.xlu0 %v2720
        %v2722 = vpop.xlane.xlu0 %2721
        %v2723 = vsub.f32 %v2715, %v2719
        %v2724 = vsub.f32 %v2716, %v2722
        %v2725 = vmul.f32 %v2723, 1.442695
        %v2726 = vpow.pop %v2725
        %v2727 = vmul.f32 %v2724, 1.442695
        %v2728 = vpow.pop %v2727
        %v2729 = vsel %vm858, %v2726, 0.0
        %2730 = vadd.xlane.f32.xlu0 %v2729
        %v2731 = vpop.xlane.xlu0 %2730
        %v2732 = vsel %vm862, %v2728, 0.0
        %2733 = vadd.xlane.f32.xlu0 %v2732
        %v2734 = vpop.xlane.xlu0 %2733
        %v2735 = vrcp.pop %v2731
        %v2736 = vrcp.pop %v2734
        %v2737 = vmul.f32 %v2726, %v2735
        %v2738 = vmul.f32 %v2728, %v2736
        %2739 = vrot.lane.b32.xlu0 %v2578, 56
        %v2740 = vpop.permute.xlu0 %2739
        %2741 = vrot.lane.b32.xlu0 %v2577, 56
        %v2742 = vpop.permute.xlu0 %2741
        %v2745 = vsel %vm858, %v2737, 0
        %v2748 = vsel %vm858, %v2738, 0
        %v2750 = vsel %vm893, %v2742, 0
        %2752 = vmatpush.msra.mxu0 0.0
        %2753 = vmatpush.msra.mxu0 0.0
        %2754 = vmatpush.msra.mxu0 0.0
        %2755 = vmatpush.msra.mxu0 0.0
        %2756 = vmatpush.msra.mxu0 0.0
        %2757 = vmatpush.msra.mxu0 0.0
        %2758 = vmatpush.msra.mxu0 0.0
        %2759 = vmatpush.msra.mxu0 0.0
        %2760 = vmatpush.msra.mxu0 0.0
        %2761 = vmatpush.msra.mxu0 0.0
        %2762 = vmatpush.msra.mxu0 0.0
        %2763 = vmatpush.msra.mxu0 0.0
        %2764 = vmatpush.msra.mxu0 0.0
        %2765 = vmatpush.msra.mxu0 0.0
        %2766 = vmatpush.msra.mxu0 %v2750
        %2767 = vmatpush.msra.mxu0 %v2740
        %2768 = vmatmul.f32.gmra.mxu0 %v2745
        %v2769 = vpop.f32.mrf.mxu0
        %v2770 = vadd.f32 0.0, %v2769
        %2771 = vmatmul.f32.gmra.mxu0 %v2748
        %v2772 = vpop.f32.mrf.mxu0
        %v2773 = vadd.f32 0.0, %v2772
        %2774 = vdwg.mxu0
        %2777 = vrot.lane.b32.xlu0 %v2770, 8
        %v2778 = vpop.permute.xlu0 %2777
        %2779 = vrot.lane.b32.xlu0 %v2773, 8
        %v2780 = vpop.permute.xlu0 %2779
        %2783 = vst.msk [vmem:[#allocation3 + $0x9] sm:$0xff] %vm1029, %v2778
        %2784 = vst.msk [vmem:[#allocation3 + $0x11] sm:$0x1] %vm1031, %v2780
        %2785 = vrot.lane.b32.xlu0 %v2578, 112
        %v2786 = vpop.permute.xlu0 %2785
        %2787 = vrot.lane.b32.xlu0 %v2577, 112
        %v2788 = vpop.permute.xlu0 %2787
        %2789 = vrot.lane.b32.xlu0 %v2578, 80
        %v2790 = vpop.permute.xlu0 %2789
        %2791 = vrot.lane.b32.xlu0 %v2577, 80
        %v2792 = vpop.permute.xlu0 %2791
        %v2793 = vsel %vm824, %v2786, 0
        %v2795 = vsel %vm824, %v2788, 0
        %v2797 = vsel %vm824, %v2790, 0
        %v2799 = vsel %vm824, %v2792, 0
        %2801 = vmatpush.xpose.msra.mxu0 0.0
        %2802 = vmatpush.xpose.msra.mxu0 0.0
        %2803 = vmatpush.xpose.msra.mxu0 0.0
        %2804 = vmatpush.xpose.msra.mxu0 0.0
        %2805 = vmatpush.xpose.msra.mxu0 0.0
        %2806 = vmatpush.xpose.msra.mxu0 0.0
        %2807 = vmatpush.xpose.msra.mxu0 0.0
        %2808 = vmatpush.xpose.msra.mxu0 0.0
        %2809 = vmatpush.xpose.msra.mxu0 0.0
        %2810 = vmatpush.xpose.msra.mxu0 0.0
        %2811 = vmatpush.xpose.msra.mxu0 0.0
        %2812 = vmatpush.xpose.msra.mxu0 0.0
        %2813 = vmatpush.xpose.msra.mxu0 0.0
        %2814 = vmatpush.xpose.msra.mxu0 0.0
        %2815 = vmatpush.xpose.msra.mxu0 %v2799
        %2816 = vmatpush.xpose.msra.mxu0 %v2797
        %2817 = vmatmul.f32.gmra.mxu0 %v2793
        %v2818 = vpop.f32.mrf.mxu0
        %v2819 = vadd.f32 0.0, %v2818
        %2820 = vmatmul.f32.gmra.mxu0 %v2795
        %v2821 = vpop.f32.mrf.mxu0
        %v2822 = vadd.f32 0.0, %v2821
        %2823 = vdwg.mxu0
        %v2824 = vmul.f32 %v2819, 0.17677669
        %v2825 = vmul.f32 %v2822, 0.17677669
        %v2826 = vsel %vm858, %v2824, -inf
        %2827 = vmax.xlane.f32.xlu0 %v2826
        %v2828 = vpop.xlane.xlu0 %2827
        %v2829 = vsel %vm862, %v2825, -inf
        %2830 = vmax.xlane.f32.xlu0 %v2829
        %v2831 = vpop.xlane.xlu0 %2830
        %v2832 = vsub.f32 %v2824, %v2828
        %v2833 = vsub.f32 %v2825, %v2831
        %v2834 = vmul.f32 %v2832, 1.442695
        %v2835 = vpow.pop %v2834
        %v2836 = vmul.f32 %v2833, 1.442695
        %v2837 = vpow.pop %v2836
        %v2838 = vsel %vm858, %v2835, 0.0
        %2839 = vadd.xlane.f32.xlu0 %v2838
        %v2840 = vpop.xlane.xlu0 %2839
        %v2841 = vsel %vm862, %v2837, 0.0
        %2842 = vadd.xlane.f32.xlu0 %v2841
        %v2843 = vpop.xlane.xlu0 %2842
        %v2844 = vrcp.pop %v2840
        %v2845 = vrcp.pop %v2843
        %v2846 = vmul.f32 %v2835, %v2844
        %v2847 = vmul.f32 %v2837, %v2845
        %2848 = vrot.lane.b32.xlu0 %v2578, 48
        %v2849 = vpop.permute.xlu0 %2848
        %2850 = vrot.lane.b32.xlu0 %v2577, 48
        %v2851 = vpop.permute.xlu0 %2850
        %v2854 = vsel %vm858, %v2846, 0
        %v2857 = vsel %vm858, %v2847, 0
        %v2859 = vsel %vm893, %v2851, 0
        %2861 = vmatpush.msra.mxu0 0.0
        %2862 = vmatpush.msra.mxu0 0.0
        %2863 = vmatpush.msra.mxu0 0.0
        %2864 = vmatpush.msra.mxu0 0.0
        %2865 = vmatpush.msra.mxu0 0.0
        %2866 = vmatpush.msra.mxu0 0.0
        %2867 = vmatpush.msra.mxu0 0.0
        %2868 = vmatpush.msra.mxu0 0.0
        %2869 = vmatpush.msra.mxu0 0.0
        %2870 = vmatpush.msra.mxu0 0.0
        %2871 = vmatpush.msra.mxu0 0.0
        %2872 = vmatpush.msra.mxu0 0.0
        %2873 = vmatpush.msra.mxu0 0.0
        %2874 = vmatpush.msra.mxu0 0.0
        %2875 = vmatpush.msra.mxu0 %v2859
        %2876 = vmatpush.msra.mxu0 %v2849
        %2877 = vmatmul.f32.gmra.mxu0 %v2854
        %v2878 = vpop.f32.mrf.mxu0
        %v2879 = vadd.f32 0.0, %v2878
        %2880 = vmatmul.f32.gmra.mxu0 %v2857
        %v2881 = vpop.f32.mrf.mxu0
        %v2882 = vadd.f32 0.0, %v2881
        %2883 = vdwg.mxu0
        %2886 = vrot.lane.b32.xlu0 %v2879, 16
        %v2887 = vpop.permute.xlu0 %2886
        %2888 = vrot.lane.b32.xlu0 %v2882, 16
        %v2889 = vpop.permute.xlu0 %2888
        %2892 = vst.msk [vmem:[#allocation3 + $0x9] sm:$0xff] %vm1140, %v2887
        %2893 = vst.msk [vmem:[#allocation3 + $0x11] sm:$0x1] %vm1142, %v2889
        %2894 = vrot.lane.b32.xlu0 %v2578, 104
        %v2895 = vpop.permute.xlu0 %2894
        %2896 = vrot.lane.b32.xlu0 %v2577, 104
        %v2897 = vpop.permute.xlu0 %2896
        %2898 = vrot.lane.b32.xlu0 %v2578, 72
        %v2899 = vpop.permute.xlu0 %2898
        %2900 = vrot.lane.b32.xlu0 %v2577, 72
        %v2901 = vpop.permute.xlu0 %2900
        %v2902 = vsel %vm824, %v2895, 0
        %v2904 = vsel %vm824, %v2897, 0
        %v2906 = vsel %vm824, %v2899, 0
        %v2908 = vsel %vm824, %v2901, 0
        %2910 = vmatpush.xpose.msra.mxu0 0.0
        %2911 = vmatpush.xpose.msra.mxu0 0.0
        %2912 = vmatpush.xpose.msra.mxu0 0.0
        %2913 = vmatpush.xpose.msra.mxu0 0.0
        %2914 = vmatpush.xpose.msra.mxu0 0.0
        %2915 = vmatpush.xpose.msra.mxu0 0.0
        %2916 = vmatpush.xpose.msra.mxu0 0.0
        %2917 = vmatpush.xpose.msra.mxu0 0.0
        %2918 = vmatpush.xpose.msra.mxu0 0.0
        %2919 = vmatpush.xpose.msra.mxu0 0.0
        %2920 = vmatpush.xpose.msra.mxu0 0.0
        %2921 = vmatpush.xpose.msra.mxu0 0.0
        %2922 = vmatpush.xpose.msra.mxu0 0.0
        %2923 = vmatpush.xpose.msra.mxu0 0.0
        %2924 = vmatpush.xpose.msra.mxu0 %v2908
        %2925 = vmatpush.xpose.msra.mxu0 %v2906
        %2926 = vmatmul.f32.gmra.mxu0 %v2902
        %v2927 = vpop.f32.mrf.mxu0
        %v2928 = vadd.f32 0.0, %v2927
        %2929 = vmatmul.f32.gmra.mxu0 %v2904
        %v2930 = vpop.f32.mrf.mxu0
        %v2931 = vadd.f32 0.0, %v2930
        %2932 = vdwg.mxu0
        %v2933 = vmul.f32 %v2928, 0.17677669
        %v2934 = vmul.f32 %v2931, 0.17677669
        %v2935 = vsel %vm858, %v2933, -inf
        %2936 = vmax.xlane.f32.xlu0 %v2935
        %v2937 = vpop.xlane.xlu0 %2936
        %v2938 = vsel %vm862, %v2934, -inf
        %2939 = vmax.xlane.f32.xlu0 %v2938
        %v2940 = vpop.xlane.xlu0 %2939
        %v2941 = vsub.f32 %v2933, %v2937
        %v2942 = vsub.f32 %v2934, %v2940
        %v2943 = vmul.f32 %v2941, 1.442695
        %v2944 = vpow.pop %v2943
        %v2945 = vmul.f32 %v2942, 1.442695
        %v2946 = vpow.pop %v2945
        %v2947 = vsel %vm858, %v2944, 0.0
        %2948 = vadd.xlane.f32.xlu0 %v2947
        %v2949 = vpop.xlane.xlu0 %2948
        %v2950 = vsel %vm862, %v2946, 0.0
        %2951 = vadd.xlane.f32.xlu0 %v2950
        %v2952 = vpop.xlane.xlu0 %2951
        %v2953 = vrcp.pop %v2949
        %v2954 = vrcp.pop %v2952
        %v2955 = vmul.f32 %v2944, %v2953
        %v2956 = vmul.f32 %v2946, %v2954
        %2957 = vrot.lane.b32.xlu0 %v2578, 40
        %v2958 = vpop.permute.xlu0 %2957
        %2959 = vrot.lane.b32.xlu0 %v2577, 40
        %v2960 = vpop.permute.xlu0 %2959
        %v2963 = vsel %vm858, %v2955, 0
        %v2966 = vsel %vm858, %v2956, 0
        %v2968 = vsel %vm893, %v2960, 0
        %2970 = vmatpush.msra.mxu0 0.0
        %2971 = vmatpush.msra.mxu0 0.0
        %2972 = vmatpush.msra.mxu0 0.0
        %2973 = vmatpush.msra.mxu0 0.0
        %2974 = vmatpush.msra.mxu0 0.0
        %2975 = vmatpush.msra.mxu0 0.0
        %2976 = vmatpush.msra.mxu0 0.0
        %2977 = vmatpush.msra.mxu0 0.0
        %2978 = vmatpush.msra.mxu0 0.0
        %2979 = vmatpush.msra.mxu0 0.0
        %2980 = vmatpush.msra.mxu0 0.0
        %2981 = vmatpush.msra.mxu0 0.0
        %2982 = vmatpush.msra.mxu0 0.0
        %2983 = vmatpush.msra.mxu0 0.0
        %2984 = vmatpush.msra.mxu0 %v2968
        %2985 = vmatpush.msra.mxu0 %v2958
        %2986 = vmatmul.f32.gmra.mxu0 %v2963
        %v2987 = vpop.f32.mrf.mxu0
        %v2988 = vadd.f32 0.0, %v2987
        %2989 = vmatmul.f32.gmra.mxu0 %v2966
        %v2990 = vpop.f32.mrf.mxu0
        %v2991 = vadd.f32 0.0, %v2990
        %2992 = vdwg.mxu0
        %2995 = vrot.lane.b32.xlu0 %v2988, 24
        %v2996 = vpop.permute.xlu0 %2995
        %2997 = vrot.lane.b32.xlu0 %v2991, 24
        %v2998 = vpop.permute.xlu0 %2997
        %3001 = vst.msk [vmem:[#allocation3 + $0x9] sm:$0xff] %vm1251, %v2996
        %3002 = vst.msk [vmem:[#allocation3 + $0x11] sm:$0x1] %vm1253, %v2998
        %v3003 = vld [vmem:[#allocation3] sm:$0xff]
        %v3004 = vld [vmem:[#allocation3 + $0x8] sm:$0xff]
        %v3005 = vld [vmem:[#allocation3 + $0x10] sm:$0x3]
        %s3006 = scalar_lea.vmem %s7, 32
        %v3007 = vld [vmem:[%s3006] sm:$0xff]
        %v3008 = vld [vmem:[%s3006 + $0x8] sm:$0xff]
        %v3009 = vld [vmem:[%s3006 + $0x10] sm:$0xff]
        %v3010 = vld [vmem:[%s3006 + $0x18] sm:$0xff]
        %s3011 = scalar_lea.vmem [#allocation13], 1
        %v3012 = vld [vmem:[%s3011] sm:$0x1]
        %v3014 = vperm.slane %v3012, 0
        %v3017 = vsel %vm684, %v3003, 0
        %v3020 = vsel %vm684, %v3004, 0
        %v3023 = vsel %vm684, %v3005, 0
        %3025 = vmatpush.msra.mxu0 0.0
        %3026 = vmatpush.msra.mxu0 0.0
        %3027 = vmatpush.msra.mxu0 0.0
        %3028 = vmatpush.msra.mxu0 0.0
        %3029 = vmatpush.msra.mxu0 0.0
        %3030 = vmatpush.msra.mxu0 0.0
        %3031 = vmatpush.msra.mxu0 0.0
        %3032 = vmatpush.msra.mxu0 0.0
        %3033 = vmatpush.msra.mxu0 0.0
        %3034 = vmatpush.msra.mxu0 0.0
        %3035 = vmatpush.msra.mxu0 0.0
        %3036 = vmatpush.msra.mxu0 0.0
        %3037 = vmatpush.msra.mxu0 %v3010
        %3038 = vmatpush.msra.mxu0 %v3009
        %3039 = vmatpush.msra.mxu0 %v3008
        %3040 = vmatpush.msra.mxu0 %v3007
        %3041 = vmatmul.f32.gmra.mxu0 %v3017
        %v3042 = vpop.f32.mrf.mxu0
        %v3043 = vadd.f32 %v3014, %v3042
        %3044 = vmatmul.f32.gmra.mxu0 %v3020
        %v3045 = vpop.f32.mrf.mxu0
        %v3046 = vadd.f32 %v3014, %v3045
        %3047 = vmatmul.f32.gmra.mxu0 %v3023
        %v3048 = vpop.f32.mrf.mxu0
        %v3049 = vadd.f32 %v3014, %v3048
        %3050 = vdwg.mxu0
        %v3051 = vadd.f32 %v2024, %v3043
        %v3052 = vadd.f32 %v2025, %v3046
        %v3053 = vadd.f32 %v2026, %v3049
        %s3054 = scalar_lea.vmem [#allocation15], 1
        %v3055 = vld [vmem:[%s3054] sm:$0x1]
        %s3056 = scalar_lea.vmem %s10, 1
        %v3057 = vld [vmem:[%s3056] sm:$0x1]
        %v3058 = vsel %vm684, %v3051, 0.0
        %3059 = vadd.xlane.f32.xlu0 %v3058
        %v3060 = vpop.xlane.xlu0 %3059
        %v3061 = vsel %vm684, %v3052, 0.0
        %3062 = vadd.xlane.f32.xlu0 %v3061
        %v3063 = vpop.xlane.xlu0 %3062
        %v3064 = vsel %vm699, %v3053, 0.0
        %3065 = vadd.xlane.f32.xlu0 %v3064
        %v3066 = vpop.xlane.xlu0 %3065
        %v3067 = vmul.f32 %v3060, %v709
        %v3068 = vmul.f32 %v3063, %v709
        %v3069 = vmul.f32 %v3066, %v709
        %v3070 = vsub.f32 %v3051, %v3067
        %v3071 = vsub.f32 %v3052, %v3068
        %v3072 = vsub.f32 %v3053, %v3069
        %v3073 = vmul.f32 %v3070, %v3070
        %v3074 = vmul.f32 %v3071, %v3071
        %v3075 = vmul.f32 %v3072, %v3072
        %v3076 = vsel %vm684, %v3073, 0.0
        %3077 = vadd.xlane.f32.xlu0 %v3076
        %v3078 = vpop.xlane.xlu0 %3077
        %v3079 = vsel %vm684, %v3074, 0.0
        %3080 = vadd.xlane.f32.xlu0 %v3079
        %v3081 = vpop.xlane.xlu0 %3080
        %v3082 = vsel %vm699, %v3075, 0.0
        %3083 = vadd.xlane.f32.xlu0 %v3082
        %v3084 = vpop.xlane.xlu0 %3083
        %v3085 = vmul.f32 %v3078, %v709
        %v3086 = vmul.f32 %v3081, %v709
        %v3087 = vmul.f32 %v3084, %v709
        %v3088 = vadd.f32 %v3085, 1e-05
        %v3089 = vadd.f32 %v3086, 1e-05
        %v3090 = vadd.f32 %v3087, 1e-05
        %v3091 = vrsqrt.pop %v3088
        %v3092 = vmul.f32 %v3091, %v3088
        %v3093 = vmul.f32 %v3092, %v3091
        %v3094 = vmul.f32 0.5, %v3093
        %v3095 = vsub.f32 1.5, %v3094
        %v3096 = vmul.f32 %v3091, %v3095
        %vm3097 = vweird.f32 %v3088
        %vm3098 = vweird.f32 %v3091
        %vm3099 = vmor %vm3097, %vm3098
        %v3100 = vsel %vm3099, %v3091, %v3096
        %v3101 = vrsqrt.pop %v3089
        %v3102 = vmul.f32 %v3101, %v3089
        %v3103 = vmul.f32 %v3102, %v3101
        %v3104 = vmul.f32 0.5, %v3103
        %v3105 = vsub.f32 1.5, %v3104
        %v3106 = vmul.f32 %v3101, %v3105
        %vm3107 = vweird.f32 %v3089
        %vm3108 = vweird.f32 %v3101
        %vm3109 = vmor %vm3107, %vm3108
        %v3110 = vsel %vm3109, %v3101, %v3106
        %v3111 = vrsqrt.pop %v3090
        %v3112 = vmul.f32 %v3111, %v3090
        %v3113 = vmul.f32 %v3112, %v3111
        %v3114 = vmul.f32 0.5, %v3113
        %v3115 = vsub.f32 1.5, %v3114
        %v3116 = vmul.f32 %v3111, %v3115
        %vm3117 = vweird.f32 %v3090
        %vm3118 = vweird.f32 %v3111
        %vm3119 = vmor %vm3117, %vm3118
        %v3120 = vsel %vm3119, %v3111, %v3116
        %v3121 = vmul.f32 %v3070, %v3100
        %v3122 = vmul.f32 %v3071, %v3110
        %v3123 = vmul.f32 %v3072, %v3120
        %v3125 = vperm.slane %v3055, 0
        %v3127 = vmul.f32 %v3121, %v3125
        %v3128 = vmul.f32 %v3122, %v3125
        %v3129 = vmul.f32 %v3123, %v3125
        %v3131 = vperm.slane %v3057, 0
        %v3133 = vadd.f32 %v3127, %v3131
        %v3134 = vadd.f32 %v3128, %v3131
        %v3135 = vadd.f32 %v3129, %v3131
        %s3136 = scalar_lea.vmem %s11, 32
        %v3137 = vld [vmem:[%s3136] sm:$0xff]
        %v3138 = vld [vmem:[%s3136 + $0x8] sm:$0xff]
        %v3139 = vld [vmem:[%s3136 + $0x10] sm:$0xff]
        %v3140 = vld [vmem:[%s3136 + $0x18] sm:$0xff]
        %s3141 = scalar_lea.vmem [#allocation16], 1
        %v3142 = vld [vmem:[%s3141] sm:$0x1]
        %v3144 = vperm.slane %v3142, 0
        %v3147 = vsel %vm684, %v3133, 0
        %v3150 = vsel %vm684, %v3134, 0
        %v3153 = vsel %vm684, %v3135, 0
        %3155 = vmatpush.msra.mxu0 0.0
        %3156 = vmatpush.msra.mxu0 0.0
        %3157 = vmatpush.msra.mxu0 0.0
        %3158 = vmatpush.msra.mxu0 0.0
        %3159 = vmatpush.msra.mxu0 0.0
        %3160 = vmatpush.msra.mxu0 0.0
        %3161 = vmatpush.msra.mxu0 0.0
        %3162 = vmatpush.msra.mxu0 0.0
        %3163 = vmatpush.msra.mxu0 0.0
        %3164 = vmatpush.msra.mxu0 0.0
        %3165 = vmatpush.msra.mxu0 0.0
        %3166 = vmatpush.msra.mxu0 0.0
        %3167 = vmatpush.msra.mxu0 %v3140
        %3168 = vmatpush.msra.mxu0 %v3139
        %3169 = vmatpush.msra.mxu0 %v3138
        %3170 = vmatpush.msra.mxu0 %v3137
        %3171 = vmatmul.f32.gmra.mxu0 %v3147
        %v3172 = vpop.f32.mrf.mxu0
        %v3173 = vadd.f32 %v3144, %v3172
        %3174 = vmatmul.f32.gmra.mxu0 %v3150
        %v3175 = vpop.f32.mrf.mxu0
        %v3176 = vadd.f32 %v3144, %v3175
        %3177 = vmatmul.f32.gmra.mxu0 %v3153
        %v3178 = vpop.f32.mrf.mxu0
        %v3179 = vadd.f32 %v3144, %v3178
        %3180 = vdwg.mxu0
        %v3181 = vmul.f32 %v3173, 0.70710677
        %v3182 = vmul.f32 %v3176, 0.70710677
        %v3183 = vmul.f32 %v3179, 0.70710677
        %v3184 = vand.u32 2147483647, %v3181
        %v3185 = vand.u32 2147483647, %v3182
        %v3186 = vand.u32 2147483647, %v3183
        %v3187 = vmul.f32 %v3184, 0.3275911
        %v3188 = vmul.f32 %v3185, 0.3275911
        %v3189 = vmul.f32 %v3186, 0.3275911
        %v3190 = vadd.f32 %v3187, 1.0
        %v3191 = vadd.f32 %v3188, 1.0
        %v3192 = vadd.f32 %v3189, 1.0
        %v3193 = vrcp.pop %v3190
        %v3194 = vmul.f32 %v3190, %v3193
        %v3195 = vsub.f32 1.0, %v3194
        %v3196 = vmul.f32 %v3193, %v3195
        %v3197 = vadd.f32 %v3193, %v3196
        %vm3198 = vweird.f32 %v3190
        %vm3199 = vweird.f32 %v3193
        %vm3200 = vmor %vm3198, %vm3199
        %v3201 = vsel %vm3200, %v3193, %v3197
        %v3202 = vand.u32 2147483647, %v3190
        %vm3203 = vcmp.eq.f32.partialorder %v3202, 8.507059e+37
        %v3204 = vand.u32 %v3190, 2147483648
        %v3205 = vor.u32 1.1754944e-38, %v3204
        %v3206 = vsel %vm3203, %v3205, %v3201
        %v3207 = vmul.f32 1.0, %v3206
        %v3208 = vrcp.pop %v3191
        %v3209 = vmul.f32 %v3191, %v3208
        %v3210 = vsub.f32 1.0, %v3209
        %v3211 = vmul.f32 %v3208, %v3210
        %v3212 = vadd.f32 %v3208, %v3211
        %vm3213 = vweird.f32 %v3191
        %vm3214 = vweird.f32 %v3208
        %vm3215 = vmor %vm3213, %vm3214
        %v3216 = vsel %vm3215, %v3208, %v3212
        %v3217 = vand.u32 2147483647, %v3191
        %vm3218 = vcmp.eq.f32.partialorder %v3217, 8.507059e+37
        %v3219 = vand.u32 %v3191, 2147483648
        %v3220 = vor.u32 1.1754944e-38, %v3219
        %v3221 = vsel %vm3218, %v3220, %v3216
        %v3222 = vmul.f32 1.0, %v3221
        %v3223 = vrcp.pop %v3192
        %v3224 = vmul.f32 %v3192, %v3223
        %v3225 = vsub.f32 1.0, %v3224
        %v3226 = vmul.f32 %v3223, %v3225
        %v3227 = vadd.f32 %v3223, %v3226
        %vm3228 = vweird.f32 %v3192
        %vm3229 = vweird.f32 %v3223
        %vm3230 = vmor %vm3228, %vm3229
        %v3231 = vsel %vm3230, %v3223, %v3227
        %v3232 = vand.u32 2147483647, %v3192
        %vm3233 = vcmp.eq.f32.partialorder %v3232, 8.507059e+37
        %v3234 = vand.u32 %v3192, 2147483648
        %v3235 = vor.u32 1.1754944e-38, %v3234
        %v3236 = vsel %vm3233, %v3235, %v3231
        %v3237 = vmul.f32 1.0, %v3236
        %v3238 = vmul.f32 %v3207, 1.0614054
        %v3239 = vmul.f32 %v3222, 1.0614054
        %v3240 = vmul.f32 %v3237, 1.0614054
        %v3241 = vsub.f32 %v3238, 1.4531521
        %v3242 = vsub.f32 %v3239, 1.4531521
        %v3243 = vsub.f32 %v3240, 1.4531521
        %v3244 = vmul.f32 %v3241, %v3207
        %v3245 = vmul.f32 %v3242, %v3222
        %v3246 = vmul.f32 %v3243, %v3237
        %v3247 = vadd.f32 %v3244, 1.4214138
        %v3248 = vadd.f32 %v3245, 1.4214138
        %v3249 = vadd.f32 %v3246, 1.4214138
        %v3250 = vmul.f32 %v3247, %v3207
        %v3251 = vmul.f32 %v3248, %v3222
        %v3252 = vmul.f32 %v3249, %v3237
        %v3253 = vsub.f32 %v3250, 0.28449672
        %v3254 = vsub.f32 %v3251, 0.28449672
        %v3255 = vsub.f32 %v3252, 0.28449672
        %v3256 = vmul.f32 %v3253, %v3207
        %v3257 = vmul.f32 %v3254, %v3222
        %v3258 = vmul.f32 %v3255, %v3237
        %v3259 = vadd.f32 %v3256, 0.2548296
        %v3260 = vadd.f32 %v3257, 0.2548296
        %v3261 = vadd.f32 %v3258, 0.2548296
        %v3262 = vmul.f32 %v3259, %v3207
        %v3263 = vmul.f32 %v3260, %v3222
        %v3264 = vmul.f32 %v3261, %v3237
        %v3265 = vsub.f32 0.0, %v3184
        %v3266 = vsub.f32 0.0, %v3185
        %v3267 = vsub.f32 0.0, %v3186
        %v3268 = vmul.f32 %v3265, %v3184
        %v3269 = vmul.f32 %v3266, %v3185
        %v3270 = vmul.f32 %v3267, %v3186
        %v3271 = vmul.f32 %v3268, 1.442695
        %v3272 = vpow.pop %v3271
        %v3273 = vmul.f32 %v3269, 1.442695
        %v3274 = vpow.pop %v3273
        %v3275 = vmul.f32 %v3270, 1.442695
        %v3276 = vpow.pop %v3275
        %v3277 = vmul.f32 %v3262, %v3272
        %v3278 = vmul.f32 %v3263, %v3274
        %v3279 = vmul.f32 %v3264, %v3276
        %v3280 = vsub.f32 1.0, %v3277
        %v3281 = vsub.f32 1.0, %v3278
        %v3282 = vsub.f32 1.0, %v3279
        %vm3283 = vcmp.lt.f32.partialorder %v3181, 0.0
        %vm3284 = vcmp.lt.f32.partialorder %v3182, 0.0
        %vm3285 = vcmp.lt.f32.partialorder %v3183, 0.0
        %v3286 = vsub.f32 0.0, %v3280
        %v3287 = vsub.f32 0.0, %v3281
        %v3288 = vsub.f32 0.0, %v3282
        %v3289 = vsel %vm3283, %v3286, %v3280
        %v3290 = vsel %vm3284, %v3287, %v3281
        %v3291 = vsel %vm3285, %v3288, %v3282
        %v3292 = vmul.f32 %v3173, 0.5
        %v3293 = vmul.f32 %v3176, 0.5
        %v3294 = vmul.f32 %v3179, 0.5
        %v3295 = vadd.f32 %v3289, 1.0
        %v3296 = vadd.f32 %v3290, 1.0
        %v3297 = vadd.f32 %v3291, 1.0
        %v3298 = vmul.f32 %v3292, %v3295
        %v3299 = vmul.f32 %v3293, %v3296
        %v3300 = vmul.f32 %v3294, %v3297
        %s3301 = scalar_lea.vmem %s13, 64
        %v3302 = vld [vmem:[%s3301] sm:$0xff]
        %v3303 = vld [vmem:[%s3301 + $0x8] sm:$0xff]
        %v3304 = vld [vmem:[%s3301 + $0x10] sm:$0xff]
        %v3305 = vld [vmem:[%s3301 + $0x18] sm:$0xff]
        %v3306 = vld [vmem:[%s3301 + $0x20] sm:$0xff]
        %v3307 = vld [vmem:[%s3301 + $0x28] sm:$0xff]
        %v3308 = vld [vmem:[%s3301 + $0x30] sm:$0xff]
        %v3309 = vld [vmem:[%s3301 + $0x38] sm:$0xff]
        %s3310 = scalar_lea.vmem [#allocation18], 1
        %v3311 = vld [vmem:[%s3310] sm:$0x1]
        %v3313 = vperm.slane %v3311, 0
        %v3316 = vsel %vm1988, %v3298, 0
        %v3319 = vsel %vm1988, %v3299, 0
        %v3322 = vsel %vm1988, %v3300, 0
        %3324 = vmatpush.msra.mxu0 0.0
        %3325 = vmatpush.msra.mxu0 0.0
        %3326 = vmatpush.msra.mxu0 0.0
        %3327 = vmatpush.msra.mxu0 0.0
        %3328 = vmatpush.msra.mxu0 0.0
        %3329 = vmatpush.msra.mxu0 0.0
        %3330 = vmatpush.msra.mxu0 0.0
        %3331 = vmatpush.msra.mxu0 0.0
        %3332 = vmatpush.msra.mxu0 %v3309
        %3333 = vmatpush.msra.mxu0 %v3308
        %3334 = vmatpush.msra.mxu0 %v3307
        %3335 = vmatpush.msra.mxu0 %v3306
        %3336 = vmatpush.msra.mxu0 %v3305
        %3337 = vmatpush.msra.mxu0 %v3304
        %3338 = vmatpush.msra.mxu0 %v3303
        %3339 = vmatpush.msra.mxu0 %v3302
        %3340 = vmatmul.f32.gmra.mxu0 %v3316
        %v3341 = vpop.f32.mrf.mxu0
        %v3342 = vadd.f32 %v3313, %v3341
        %3343 = vmatmul.f32.gmra.mxu0 %v3319
        %v3344 = vpop.f32.mrf.mxu0
        %v3345 = vadd.f32 %v3313, %v3344
        %3346 = vmatmul.f32.gmra.mxu0 %v3322
        %v3347 = vpop.f32.mrf.mxu0
        %v3348 = vadd.f32 %v3313, %v3347
        %3349 = vdwg.mxu0
        %v3350 = vadd.f32 %v3051, %v3342
        %v3351 = vadd.f32 %v3052, %v3345
        %v3352 = vadd.f32 %v3053, %v3348
        %s3353 = scalar_lea.vmem [#allocation12], 2
        %v3354 = vld [vmem:[%s3353] sm:$0x1]
        %s3355 = scalar_lea.vmem %s5, 2
        %v3356 = vld [vmem:[%s3355] sm:$0x1]
        %v3357 = vsel %vm684, %v3350, 0.0
        %3358 = vadd.xlane.f32.xlu0 %v3357
        %v3359 = vpop.xlane.xlu0 %3358
        %v3360 = vsel %vm684, %v3351, 0.0
        %3361 = vadd.xlane.f32.xlu0 %v3360
        %v3362 = vpop.xlane.xlu0 %3361
        %v3363 = vsel %vm699, %v3352, 0.0
        %3364 = vadd.xlane.f32.xlu0 %v3363
        %v3365 = vpop.xlane.xlu0 %3364
        %v3366 = vmul.f32 %v3359, %v709
        %v3367 = vmul.f32 %v3362, %v709
        %v3368 = vmul.f32 %v3365, %v709
        %v3369 = vsub.f32 %v3350, %v3366
        %v3370 = vsub.f32 %v3351, %v3367
        %v3371 = vsub.f32 %v3352, %v3368
        %v3372 = vmul.f32 %v3369, %v3369
        %v3373 = vmul.f32 %v3370, %v3370
        %v3374 = vmul.f32 %v3371, %v3371
        %v3375 = vsel %vm684, %v3372, 0.0
        %3376 = vadd.xlane.f32.xlu0 %v3375
        %v3377 = vpop.xlane.xlu0 %3376
        %v3378 = vsel %vm684, %v3373, 0.0
        %3379 = vadd.xlane.f32.xlu0 %v3378
        %v3380 = vpop.xlane.xlu0 %3379
        %v3381 = vsel %vm699, %v3374, 0.0
        %3382 = vadd.xlane.f32.xlu0 %v3381
        %v3383 = vpop.xlane.xlu0 %3382
        %v3384 = vmul.f32 %v3377, %v709
        %v3385 = vmul.f32 %v3380, %v709
        %v3386 = vmul.f32 %v3383, %v709
        %v3387 = vadd.f32 %v3384, 1e-05
        %v3388 = vadd.f32 %v3385, 1e-05
        %v3389 = vadd.f32 %v3386, 1e-05
        %v3390 = vrsqrt.pop %v3387
        %v3391 = vmul.f32 %v3390, %v3387
        %v3392 = vmul.f32 %v3391, %v3390
        %v3393 = vmul.f32 0.5, %v3392
        %v3394 = vsub.f32 1.5, %v3393
        %v3395 = vmul.f32 %v3390, %v3394
        %vm3396 = vweird.f32 %v3387
        %vm3397 = vweird.f32 %v3390
        %vm3398 = vmor %vm3396, %vm3397
        %v3399 = vsel %vm3398, %v3390, %v3395
        %v3400 = vrsqrt.pop %v3388
        %v3401 = vmul.f32 %v3400, %v3388
        %v3402 = vmul.f32 %v3401, %v3400
        %v3403 = vmul.f32 0.5, %v3402
        %v3404 = vsub.f32 1.5, %v3403
        %v3405 = vmul.f32 %v3400, %v3404
        %vm3406 = vweird.f32 %v3388
        %vm3407 = vweird.f32 %v3400
        %vm3408 = vmor %vm3406, %vm3407
        %v3409 = vsel %vm3408, %v3400, %v3405
        %v3410 = vrsqrt.pop %v3389
        %v3411 = vmul.f32 %v3410, %v3389
        %v3412 = vmul.f32 %v3411, %v3410
        %v3413 = vmul.f32 0.5, %v3412
        %v3414 = vsub.f32 1.5, %v3413
        %v3415 = vmul.f32 %v3410, %v3414
        %vm3416 = vweird.f32 %v3389
        %vm3417 = vweird.f32 %v3410
        %vm3418 = vmor %vm3416, %vm3417
        %v3419 = vsel %vm3418, %v3410, %v3415
        %v3420 = vmul.f32 %v3369, %v3399
        %v3421 = vmul.f32 %v3370, %v3409
        %v3422 = vmul.f32 %v3371, %v3419
        %v3424 = vperm.slane %v3354, 0
        %v3426 = vmul.f32 %v3420, %v3424
        %v3427 = vmul.f32 %v3421, %v3424
        %v3428 = vmul.f32 %v3422, %v3424
        %v3430 = vperm.slane %v3356, 0
        %v3432 = vadd.f32 %v3426, %v3430
        %v3433 = vadd.f32 %v3427, %v3430
        %v3434 = vadd.f32 %v3428, %v3430
        %s3435 = scalar_lea.vmem %s6, 64
        %v3436 = vld [vmem:[%s3435] sm:$0xff]
        %v3437 = vld [vmem:[%s3435 + $0x8] sm:$0xff]
        %v3438 = vld [vmem:[%s3435 + $0x10] sm:$0xff]
        %v3439 = vld [vmem:[%s3435 + $0x18] sm:$0xff]
        %v3441 = vsel %vm684, %v3432, 0
        %v3444 = vsel %vm684, %v3433, 0
        %v3447 = vsel %vm684, %v3434, 0
        %3449 = vmatpush.msra.mxu0 0.0
        %3450 = vmatpush.msra.mxu0 0.0
        %3451 = vmatpush.msra.mxu0 0.0
        %3452 = vmatpush.msra.mxu0 0.0
        %3453 = vmatpush.msra.mxu0 0.0
        %3454 = vmatpush.msra.mxu0 0.0
        %3455 = vmatpush.msra.mxu0 0.0
        %3456 = vmatpush.msra.mxu0 0.0
        %3457 = vmatpush.msra.mxu0 0.0
        %3458 = vmatpush.msra.mxu0 0.0
        %3459 = vmatpush.msra.mxu0 0.0
        %3460 = vmatpush.msra.mxu0 0.0
        %3461 = vmatpush.msra.mxu0 %v3439
        %3462 = vmatpush.msra.mxu0 %v3438
        %3463 = vmatpush.msra.mxu0 %v3437
        %3464 = vmatpush.msra.mxu0 %v3436
        %3465 = vmatmul.f32.gmra.mxu0 %v3441
        %v3466 = vpop.f32.mrf.mxu0
        %v3467 = vadd.f32 0.0, %v3466
        %3468 = vmatmul.f32.gmra.mxu0 %v3444
        %v3469 = vpop.f32.mrf.mxu0
        %v3470 = vadd.f32 0.0, %v3469
        %3471 = vmatmul.f32.gmra.mxu0 %v3447
        %v3472 = vpop.f32.mrf.mxu0
        %v3473 = vadd.f32 0.0, %v3472
        %3474 = vdwg.mxu0
        %3477 = vrot.lane.b32.xlu0 %v3467, 96
        %v3478 = vpop.permute.xlu0 %3477
        %3479 = vrot.lane.b32.xlu0 %v3470, 96
        %v3480 = vpop.permute.xlu0 %3479
        %v3481 = vsel %vm824, %v3467, 0
        %v3483 = vsel %vm824, %v3470, 0
        %v3485 = vsel %vm824, %v3478, 0
        %v3487 = vsel %vm824, %v3480, 0
        %3489 = vmatpush.xpose.msra.mxu0 0.0
        %3490 = vmatpush.xpose.msra.mxu0 0.0
        %3491 = vmatpush.xpose.msra.mxu0 0.0
        %3492 = vmatpush.xpose.msra.mxu0 0.0
        %3493 = vmatpush.xpose.msra.mxu0 0.0
        %3494 = vmatpush.xpose.msra.mxu0 0.0
        %3495 = vmatpush.xpose.msra.mxu0 0.0
        %3496 = vmatpush.xpose.msra.mxu0 0.0
        %3497 = vmatpush.xpose.msra.mxu0 0.0
        %3498 = vmatpush.xpose.msra.mxu0 0.0
        %3499 = vmatpush.xpose.msra.mxu0 0.0
        %3500 = vmatpush.xpose.msra.mxu0 0.0
        %3501 = vmatpush.xpose.msra.mxu0 0.0
        %3502 = vmatpush.xpose.msra.mxu0 0.0
        %3503 = vmatpush.xpose.msra.mxu0 %v3487
        %3504 = vmatpush.xpose.msra.mxu0 %v3485
        %3505 = vmatmul.f32.gmra.mxu0 %v3481
        %v3506 = vpop.f32.mrf.mxu0
        %v3507 = vadd.f32 0.0, %v3506
        %3508 = vmatmul.f32.gmra.mxu0 %v3483
        %v3509 = vpop.f32.mrf.mxu0
        %v3510 = vadd.f32 0.0, %v3509
        %3511 = vdwg.mxu0
        %v3512 = vmul.f32 %v3507, 0.17677669
        %v3513 = vmul.f32 %v3510, 0.17677669
        %v3514 = vsel %vm858, %v3512, -inf
        %3515 = vmax.xlane.f32.xlu0 %v3514
        %v3516 = vpop.xlane.xlu0 %3515
        %v3517 = vsel %vm862, %v3513, -inf
        %3518 = vmax.xlane.f32.xlu0 %v3517
        %v3519 = vpop.xlane.xlu0 %3518
        %v3520 = vsub.f32 %v3512, %v3516
        %v3521 = vsub.f32 %v3513, %v3519
        %v3522 = vmul.f32 %v3520, 1.442695
        %v3523 = vpow.pop %v3522
        %v3524 = vmul.f32 %v3521, 1.442695
        %v3525 = vpow.pop %v3524
        %v3526 = vsel %vm858, %v3523, 0.0
        %3527 = vadd.xlane.f32.xlu0 %v3526
        %v3528 = vpop.xlane.xlu0 %3527
        %v3529 = vsel %vm862, %v3525, 0.0
        %3530 = vadd.xlane.f32.xlu0 %v3529
        %v3531 = vpop.xlane.xlu0 %3530
        %v3532 = vrcp.pop %v3528
        %v3533 = vrcp.pop %v3531
        %v3534 = vmul.f32 %v3523, %v3532
        %v3535 = vmul.f32 %v3525, %v3533
        %3536 = vrot.lane.b32.xlu0 %v3467, 64
        %v3537 = vpop.permute.xlu0 %3536
        %3538 = vrot.lane.b32.xlu0 %v3470, 64
        %v3539 = vpop.permute.xlu0 %3538
        %v3542 = vsel %vm858, %v3534, 0
        %v3545 = vsel %vm858, %v3535, 0
        %v3547 = vsel %vm893, %v3539, 0
        %3549 = vmatpush.msra.mxu0 0.0
        %3550 = vmatpush.msra.mxu0 0.0
        %3551 = vmatpush.msra.mxu0 0.0
        %3552 = vmatpush.msra.mxu0 0.0
        %3553 = vmatpush.msra.mxu0 0.0
        %3554 = vmatpush.msra.mxu0 0.0
        %3555 = vmatpush.msra.mxu0 0.0
        %3556 = vmatpush.msra.mxu0 0.0
        %3557 = vmatpush.msra.mxu0 0.0
        %3558 = vmatpush.msra.mxu0 0.0
        %3559 = vmatpush.msra.mxu0 0.0
        %3560 = vmatpush.msra.mxu0 0.0
        %3561 = vmatpush.msra.mxu0 0.0
        %3562 = vmatpush.msra.mxu0 0.0
        %3563 = vmatpush.msra.mxu0 %v3547
        %3564 = vmatpush.msra.mxu0 %v3537
        %3565 = vmatmul.f32.gmra.mxu0 %v3542
        %v3566 = vpop.f32.mrf.mxu0
        %v3567 = vadd.f32 0.0, %v3566
        %3568 = vmatmul.f32.gmra.mxu0 %v3545
        %v3569 = vpop.f32.mrf.mxu0
        %v3570 = vadd.f32 0.0, %v3569
        %3571 = vdwg.mxu0
        %3572 = vst.msk [vmem:[#allocation3] sm:$0xff] %vm824, %v3567
        %3573 = vst.msk [vmem:[#allocation3 + $0x8] sm:$0x1] %vm920, %v3570
        %3574 = vrot.lane.b32.xlu0 %v3467, 120
        %v3575 = vpop.permute.xlu0 %3574
        %3576 = vrot.lane.b32.xlu0 %v3470, 120
        %v3577 = vpop.permute.xlu0 %3576
        %3578 = vrot.lane.b32.xlu0 %v3467, 88
        %v3579 = vpop.permute.xlu0 %3578
        %3580 = vrot.lane.b32.xlu0 %v3470, 88
        %v3581 = vpop.permute.xlu0 %3580
        %v3582 = vsel %vm824, %v3575, 0
        %v3584 = vsel %vm824, %v3577, 0
        %v3586 = vsel %vm824, %v3579, 0
        %v3588 = vsel %vm824, %v3581, 0
        %3590 = vmatpush.xpose.msra.mxu0 0.0
        %3591 = vmatpush.xpose.msra.mxu0 0.0
        %3592 = vmatpush.xpose.msra.mxu0 0.0
        %3593 = vmatpush.xpose.msra.mxu0 0.0
        %3594 = vmatpush.xpose.msra.mxu0 0.0
        %3595 = vmatpush.xpose.msra.mxu0 0.0
        %3596 = vmatpush.xpose.msra.mxu0 0.0
        %3597 = vmatpush.xpose.msra.mxu0 0.0
        %3598 = vmatpush.xpose.msra.mxu0 0.0
        %3599 = vmatpush.xpose.msra.mxu0 0.0
        %3600 = vmatpush.xpose.msra.mxu0 0.0
        %3601 = vmatpush.xpose.msra.mxu0 0.0
        %3602 = vmatpush.xpose.msra.mxu0 0.0
        %3603 = vmatpush.xpose.msra.mxu0 0.0
        %3604 = vmatpush.xpose.msra.mxu0 %v3588
        %3605 = vmatpush.xpose.msra.mxu0 %v3586
        %3606 = vmatmul.f32.gmra.mxu0 %v3582
        %v3607 = vpop.f32.mrf.mxu0
        %v3608 = vadd.f32 0.0, %v3607
        %3609 = vmatmul.f32.gmra.mxu0 %v3584
        %v3610 = vpop.f32.mrf.mxu0
        %v3611 = vadd.f32 0.0, %v3610
        %3612 = vdwg.mxu0
        %v3613 = vmul.f32 %v3608, 0.17677669
        %v3614 = vmul.f32 %v3611, 0.17677669
        %v3615 = vsel %vm858, %v3613, -inf
        %3616 = vmax.xlane.f32.xlu0 %v3615
        %v3617 = vpop.xlane.xlu0 %3616
        %v3618 = vsel %vm862, %v3614, -inf
        %3619 = vmax.xlane.f32.xlu0 %v3618
        %v3620 = vpop.xlane.xlu0 %3619
        %v3621 = vsub.f32 %v3613, %v3617
        %v3622 = vsub.f32 %v3614, %v3620
        %v3623 = vmul.f32 %v3621, 1.442695
        %v3624 = vpow.pop %v3623
        %v3625 = vmul.f32 %v3622, 1.442695
        %v3626 = vpow.pop %v3625
        %v3627 = vsel %vm858, %v3624, 0.0
        %3628 = vadd.xlane.f32.xlu0 %v3627
        %v3629 = vpop.xlane.xlu0 %3628
        %v3630 = vsel %vm862, %v3626, 0.0
        %3631 = vadd.xlane.f32.xlu0 %v3630
        %v3632 = vpop.xlane.xlu0 %3631
        %v3633 = vrcp.pop %v3629
        %v3634 = vrcp.pop %v3632
        %v3635 = vmul.f32 %v3624, %v3633
        %v3636 = vmul.f32 %v3626, %v3634
        %3637 = vrot.lane.b32.xlu0 %v3467, 56
        %v3638 = vpop.permute.xlu0 %3637
        %3639 = vrot.lane.b32.xlu0 %v3470, 56
        %v3640 = vpop.permute.xlu0 %3639
        %v3643 = vsel %vm858, %v3635, 0
        %v3646 = vsel %vm858, %v3636, 0
        %v3648 = vsel %vm893, %v3640, 0
        %3650 = vmatpush.msra.mxu0 0.0
        %3651 = vmatpush.msra.mxu0 0.0
        %3652 = vmatpush.msra.mxu0 0.0
        %3653 = vmatpush.msra.mxu0 0.0
        %3654 = vmatpush.msra.mxu0 0.0
        %3655 = vmatpush.msra.mxu0 0.0
        %3656 = vmatpush.msra.mxu0 0.0
        %3657 = vmatpush.msra.mxu0 0.0
        %3658 = vmatpush.msra.mxu0 0.0
        %3659 = vmatpush.msra.mxu0 0.0
        %3660 = vmatpush.msra.mxu0 0.0
        %3661 = vmatpush.msra.mxu0 0.0
        %3662 = vmatpush.msra.mxu0 0.0
        %3663 = vmatpush.msra.mxu0 0.0
        %3664 = vmatpush.msra.mxu0 %v3648
        %3665 = vmatpush.msra.mxu0 %v3638
        %3666 = vmatmul.f32.gmra.mxu0 %v3643
        %v3667 = vpop.f32.mrf.mxu0
        %v3668 = vadd.f32 0.0, %v3667
        %3669 = vmatmul.f32.gmra.mxu0 %v3646
        %v3670 = vpop.f32.mrf.mxu0
        %v3671 = vadd.f32 0.0, %v3670
        %3672 = vdwg.mxu0
        %3675 = vrot.lane.b32.xlu0 %v3668, 8
        %v3676 = vpop.permute.xlu0 %3675
        %3677 = vrot.lane.b32.xlu0 %v3671, 8
        %v3678 = vpop.permute.xlu0 %3677
        %3681 = vst.msk [vmem:[#allocation3] sm:$0xff] %vm1029, %v3676
        %3682 = vst.msk [vmem:[#allocation3 + $0x8] sm:$0x1] %vm1031, %v3678
        %3683 = vrot.lane.b32.xlu0 %v3467, 112
        %v3684 = vpop.permute.xlu0 %3683
        %3685 = vrot.lane.b32.xlu0 %v3470, 112
        %v3686 = vpop.permute.xlu0 %3685
        %3687 = vrot.lane.b32.xlu0 %v3467, 80
        %v3688 = vpop.permute.xlu0 %3687
        %3689 = vrot.lane.b32.xlu0 %v3470, 80
        %v3690 = vpop.permute.xlu0 %3689
        %v3691 = vsel %vm824, %v3684, 0
        %v3693 = vsel %vm824, %v3686, 0
        %v3695 = vsel %vm824, %v3688, 0
        %v3697 = vsel %vm824, %v3690, 0
        %3699 = vmatpush.xpose.msra.mxu0 0.0
        %3700 = vmatpush.xpose.msra.mxu0 0.0
        %3701 = vmatpush.xpose.msra.mxu0 0.0
        %3702 = vmatpush.xpose.msra.mxu0 0.0
        %3703 = vmatpush.xpose.msra.mxu0 0.0
        %3704 = vmatpush.xpose.msra.mxu0 0.0
        %3705 = vmatpush.xpose.msra.mxu0 0.0
        %3706 = vmatpush.xpose.msra.mxu0 0.0
        %3707 = vmatpush.xpose.msra.mxu0 0.0
        %3708 = vmatpush.xpose.msra.mxu0 0.0
        %3709 = vmatpush.xpose.msra.mxu0 0.0
        %3710 = vmatpush.xpose.msra.mxu0 0.0
        %3711 = vmatpush.xpose.msra.mxu0 0.0
        %3712 = vmatpush.xpose.msra.mxu0 0.0
        %3713 = vmatpush.xpose.msra.mxu0 %v3697
        %3714 = vmatpush.xpose.msra.mxu0 %v3695
        %3715 = vmatmul.f32.gmra.mxu0 %v3691
        %v3716 = vpop.f32.mrf.mxu0
        %v3717 = vadd.f32 0.0, %v3716
        %3718 = vmatmul.f32.gmra.mxu0 %v3693
        %v3719 = vpop.f32.mrf.mxu0
        %v3720 = vadd.f32 0.0, %v3719
        %3721 = vdwg.mxu0
        %v3722 = vmul.f32 %v3717, 0.17677669
        %v3723 = vmul.f32 %v3720, 0.17677669
        %v3724 = vsel %vm858, %v3722, -inf
        %3725 = vmax.xlane.f32.xlu0 %v3724
        %v3726 = vpop.xlane.xlu0 %3725
        %v3727 = vsel %vm862, %v3723, -inf
        %3728 = vmax.xlane.f32.xlu0 %v3727
        %v3729 = vpop.xlane.xlu0 %3728
        %v3730 = vsub.f32 %v3722, %v3726
        %v3731 = vsub.f32 %v3723, %v3729
        %v3732 = vmul.f32 %v3730, 1.442695
        %v3733 = vpow.pop %v3732
        %v3734 = vmul.f32 %v3731, 1.442695
        %v3735 = vpow.pop %v3734
        %v3736 = vsel %vm858, %v3733, 0.0
        %3737 = vadd.xlane.f32.xlu0 %v3736
        %v3738 = vpop.xlane.xlu0 %3737
        %v3739 = vsel %vm862, %v3735, 0.0
        %3740 = vadd.xlane.f32.xlu0 %v3739
        %v3741 = vpop.xlane.xlu0 %3740
        %v3742 = vrcp.pop %v3738
        %v3743 = vrcp.pop %v3741
        %v3744 = vmul.f32 %v3733, %v3742
        %v3745 = vmul.f32 %v3735, %v3743
        %3746 = vrot.lane.b32.xlu0 %v3467, 48
        %v3747 = vpop.permute.xlu0 %3746
        %3748 = vrot.lane.b32.xlu0 %v3470, 48
        %v3749 = vpop.permute.xlu0 %3748
        %v3752 = vsel %vm858, %v3744, 0
        %v3755 = vsel %vm858, %v3745, 0
        %v3757 = vsel %vm893, %v3749, 0
        %3759 = vmatpush.msra.mxu0 0.0
        %3760 = vmatpush.msra.mxu0 0.0
        %3761 = vmatpush.msra.mxu0 0.0
        %3762 = vmatpush.msra.mxu0 0.0
        %3763 = vmatpush.msra.mxu0 0.0
        %3764 = vmatpush.msra.mxu0 0.0
        %3765 = vmatpush.msra.mxu0 0.0
        %3766 = vmatpush.msra.mxu0 0.0
        %3767 = vmatpush.msra.mxu0 0.0
        %3768 = vmatpush.msra.mxu0 0.0
        %3769 = vmatpush.msra.mxu0 0.0
        %3770 = vmatpush.msra.mxu0 0.0
        %3771 = vmatpush.msra.mxu0 0.0
        %3772 = vmatpush.msra.mxu0 0.0
        %3773 = vmatpush.msra.mxu0 %v3757
        %3774 = vmatpush.msra.mxu0 %v3747
        %3775 = vmatmul.f32.gmra.mxu0 %v3752
        %v3776 = vpop.f32.mrf.mxu0
        %v3777 = vadd.f32 0.0, %v3776
        %3778 = vmatmul.f32.gmra.mxu0 %v3755
        %v3779 = vpop.f32.mrf.mxu0
        %v3780 = vadd.f32 0.0, %v3779
        %3781 = vdwg.mxu0
        %3784 = vrot.lane.b32.xlu0 %v3777, 16
        %v3785 = vpop.permute.xlu0 %3784
        %3786 = vrot.lane.b32.xlu0 %v3780, 16
        %v3787 = vpop.permute.xlu0 %3786
        %3790 = vst.msk [vmem:[#allocation3] sm:$0xff] %vm1140, %v3785
        %3791 = vst.msk [vmem:[#allocation3 + $0x8] sm:$0x1] %vm1142, %v3787
        %3792 = vrot.lane.b32.xlu0 %v3467, 104
        %v3793 = vpop.permute.xlu0 %3792
        %3794 = vrot.lane.b32.xlu0 %v3470, 104
        %v3795 = vpop.permute.xlu0 %3794
        %3796 = vrot.lane.b32.xlu0 %v3467, 72
        %v3797 = vpop.permute.xlu0 %3796
        %3798 = vrot.lane.b32.xlu0 %v3470, 72
        %v3799 = vpop.permute.xlu0 %3798
        %v3800 = vsel %vm824, %v3793, 0
        %v3802 = vsel %vm824, %v3795, 0
        %v3804 = vsel %vm824, %v3797, 0
        %v3806 = vsel %vm824, %v3799, 0
        %3808 = vmatpush.xpose.msra.mxu0 0.0
        %3809 = vmatpush.xpose.msra.mxu0 0.0
        %3810 = vmatpush.xpose.msra.mxu0 0.0
        %3811 = vmatpush.xpose.msra.mxu0 0.0
        %3812 = vmatpush.xpose.msra.mxu0 0.0
        %3813 = vmatpush.xpose.msra.mxu0 0.0
        %3814 = vmatpush.xpose.msra.mxu0 0.0
        %3815 = vmatpush.xpose.msra.mxu0 0.0
        %3816 = vmatpush.xpose.msra.mxu0 0.0
        %3817 = vmatpush.xpose.msra.mxu0 0.0
        %3818 = vmatpush.xpose.msra.mxu0 0.0
        %3819 = vmatpush.xpose.msra.mxu0 0.0
        %3820 = vmatpush.xpose.msra.mxu0 0.0
        %3821 = vmatpush.xpose.msra.mxu0 0.0
        %3822 = vmatpush.xpose.msra.mxu0 %v3806
        %3823 = vmatpush.xpose.msra.mxu0 %v3804
        %3824 = vmatmul.f32.gmra.mxu0 %v3800
        %v3825 = vpop.f32.mrf.mxu0
        %v3826 = vadd.f32 0.0, %v3825
        %3827 = vmatmul.f32.gmra.mxu0 %v3802
        %v3828 = vpop.f32.mrf.mxu0
        %v3829 = vadd.f32 0.0, %v3828
        %3830 = vdwg.mxu0
        %v3831 = vmul.f32 %v3826, 0.17677669
        %v3832 = vmul.f32 %v3829, 0.17677669
        %v3833 = vsel %vm858, %v3831, -inf
        %3834 = vmax.xlane.f32.xlu0 %v3833
        %v3835 = vpop.xlane.xlu0 %3834
        %v3836 = vsel %vm862, %v3832, -inf
        %3837 = vmax.xlane.f32.xlu0 %v3836
        %v3838 = vpop.xlane.xlu0 %3837
        %v3839 = vsub.f32 %v3831, %v3835
        %v3840 = vsub.f32 %v3832, %v3838
        %v3841 = vmul.f32 %v3839, 1.442695
        %v3842 = vpow.pop %v3841
        %v3843 = vmul.f32 %v3840, 1.442695
        %v3844 = vpow.pop %v3843
        %v3845 = vsel %vm858, %v3842, 0.0
        %3846 = vadd.xlane.f32.xlu0 %v3845
        %v3847 = vpop.xlane.xlu0 %3846
        %v3848 = vsel %vm862, %v3844, 0.0
        %3849 = vadd.xlane.f32.xlu0 %v3848
        %v3850 = vpop.xlane.xlu0 %3849
        %v3851 = vrcp.pop %v3847
        %v3852 = vrcp.pop %v3850
        %v3853 = vmul.f32 %v3842, %v3851
        %v3854 = vmul.f32 %v3844, %v3852
        %3855 = vrot.lane.b32.xlu0 %v3467, 40
        %v3856 = vpop.permute.xlu0 %3855
        %3857 = vrot.lane.b32.xlu0 %v3470, 40
        %v3858 = vpop.permute.xlu0 %3857
        %v3861 = vsel %vm858, %v3853, 0
        %v3864 = vsel %vm858, %v3854, 0
        %v3866 = vsel %vm893, %v3858, 0
        %3868 = vmatpush.msra.mxu0 0.0
        %3869 = vmatpush.msra.mxu0 0.0
        %3870 = vmatpush.msra.mxu0 0.0
        %3871 = vmatpush.msra.mxu0 0.0
        %3872 = vmatpush.msra.mxu0 0.0
        %3873 = vmatpush.msra.mxu0 0.0
        %3874 = vmatpush.msra.mxu0 0.0
        %3875 = vmatpush.msra.mxu0 0.0
        %3876 = vmatpush.msra.mxu0 0.0
        %3877 = vmatpush.msra.mxu0 0.0
        %3878 = vmatpush.msra.mxu0 0.0
        %3879 = vmatpush.msra.mxu0 0.0
        %3880 = vmatpush.msra.mxu0 0.0
        %3881 = vmatpush.msra.mxu0 0.0
        %3882 = vmatpush.msra.mxu0 %v3866
        %3883 = vmatpush.msra.mxu0 %v3856
        %3884 = vmatmul.f32.gmra.mxu0 %v3861
        %v3885 = vpop.f32.mrf.mxu0
        %v3886 = vadd.f32 0.0, %v3885
        %3887 = vmatmul.f32.gmra.mxu0 %v3864
        %v3888 = vpop.f32.mrf.mxu0
        %v3889 = vadd.f32 0.0, %v3888
        %3890 = vdwg.mxu0
        %3893 = vrot.lane.b32.xlu0 %v3886, 24
        %v3894 = vpop.permute.xlu0 %3893
        %3895 = vrot.lane.b32.xlu0 %v3889, 24
        %v3896 = vpop.permute.xlu0 %3895
        %3899 = vst.msk [vmem:[#allocation3] sm:$0xff] %vm1251, %v3894
        %3900 = vst.msk [vmem:[#allocation3 + $0x8] sm:$0x1] %vm1253, %v3896
        %v3902 = vrot.slane %v3470, 1
        %v3903 = vrot.slane %v3473, 1
        %v3904 = vsel %vm1256, %v3902, %v3903
        %3905 = vrot.lane.b32.xlu0 %v3904, 96
        %v3906 = vpop.permute.xlu0 %3905
        %3907 = vrot.lane.b32.xlu0 %v3903, 96
        %v3908 = vpop.permute.xlu0 %3907
        %v3909 = vsel %vm824, %v3904, 0
        %v3911 = vsel %vm824, %v3903, 0
        %v3913 = vsel %vm824, %v3906, 0
        %v3915 = vsel %vm824, %v3908, 0
        %3917 = vmatpush.xpose.msra.mxu0 0.0
        %3918 = vmatpush.xpose.msra.mxu0 0.0
        %3919 = vmatpush.xpose.msra.mxu0 0.0
        %3920 = vmatpush.xpose.msra.mxu0 0.0
        %3921 = vmatpush.xpose.msra.mxu0 0.0
        %3922 = vmatpush.xpose.msra.mxu0 0.0
        %3923 = vmatpush.xpose.msra.mxu0 0.0
        %3924 = vmatpush.xpose.msra.mxu0 0.0
        %3925 = vmatpush.xpose.msra.mxu0 0.0
        %3926 = vmatpush.xpose.msra.mxu0 0.0
        %3927 = vmatpush.xpose.msra.mxu0 0.0
        %3928 = vmatpush.xpose.msra.mxu0 0.0
        %3929 = vmatpush.xpose.msra.mxu0 0.0
        %3930 = vmatpush.xpose.msra.mxu0 0.0
        %3931 = vmatpush.xpose.msra.mxu0 %v3915
        %3932 = vmatpush.xpose.msra.mxu0 %v3913
        %3933 = vmatmul.f32.gmra.mxu0 %v3909
        %v3934 = vpop.f32.mrf.mxu0
        %v3935 = vadd.f32 0.0, %v3934
        %3936 = vmatmul.f32.gmra.mxu0 %v3911
        %v3937 = vpop.f32.mrf.mxu0
        %v3938 = vadd.f32 0.0, %v3937
        %3939 = vdwg.mxu0
        %v3940 = vmul.f32 %v3935, 0.17677669
        %v3941 = vmul.f32 %v3938, 0.17677669
        %v3942 = vsel %vm858, %v3940, -inf
        %3943 = vmax.xlane.f32.xlu0 %v3942
        %v3944 = vpop.xlane.xlu0 %3943
        %v3945 = vsel %vm862, %v3941, -inf
        %3946 = vmax.xlane.f32.xlu0 %v3945
        %v3947 = vpop.xlane.xlu0 %3946
        %v3948 = vsub.f32 %v3940, %v3944
        %v3949 = vsub.f32 %v3941, %v3947
        %v3950 = vmul.f32 %v3948, 1.442695
        %v3951 = vpow.pop %v3950
        %v3952 = vmul.f32 %v3949, 1.442695
        %v3953 = vpow.pop %v3952
        %v3954 = vsel %vm858, %v3951, 0.0
        %3955 = vadd.xlane.f32.xlu0 %v3954
        %v3956 = vpop.xlane.xlu0 %3955
        %v3957 = vsel %vm862, %v3953, 0.0
        %3958 = vadd.xlane.f32.xlu0 %v3957
        %v3959 = vpop.xlane.xlu0 %3958
        %v3960 = vrcp.pop %v3956
        %v3961 = vrcp.pop %v3959
        %v3962 = vmul.f32 %v3951, %v3960
        %v3963 = vmul.f32 %v3953, %v3961
        %3964 = vrot.lane.b32.xlu0 %v3904, 64
        %v3965 = vpop.permute.xlu0 %3964
        %3966 = vrot.lane.b32.xlu0 %v3903, 64
        %v3967 = vpop.permute.xlu0 %3966
        %v3970 = vsel %vm858, %v3962, 0
        %v3973 = vsel %vm858, %v3963, 0
        %v3975 = vsel %vm893, %v3967, 0
        %3977 = vmatpush.msra.mxu0 0.0
        %3978 = vmatpush.msra.mxu0 0.0
        %3979 = vmatpush.msra.mxu0 0.0
        %3980 = vmatpush.msra.mxu0 0.0
        %3981 = vmatpush.msra.mxu0 0.0
        %3982 = vmatpush.msra.mxu0 0.0
        %3983 = vmatpush.msra.mxu0 0.0
        %3984 = vmatpush.msra.mxu0 0.0
        %3985 = vmatpush.msra.mxu0 0.0
        %3986 = vmatpush.msra.mxu0 0.0
        %3987 = vmatpush.msra.mxu0 0.0
        %3988 = vmatpush.msra.mxu0 0.0
        %3989 = vmatpush.msra.mxu0 0.0
        %3990 = vmatpush.msra.mxu0 0.0
        %3991 = vmatpush.msra.mxu0 %v3975
        %3992 = vmatpush.msra.mxu0 %v3965
        %3993 = vmatmul.f32.gmra.mxu0 %v3970
        %v3994 = vpop.f32.mrf.mxu0
        %v3995 = vadd.f32 0.0, %v3994
        %3996 = vmatmul.f32.gmra.mxu0 %v3973
        %v3997 = vpop.f32.mrf.mxu0
        %v3998 = vadd.f32 0.0, %v3997
        %3999 = vdwg.mxu0
        %4000 = vst.msk [vmem:[#allocation3 + $0x9] sm:$0xff] %vm824, %v3995
        %4001 = vst.msk [vmem:[#allocation3 + $0x11] sm:$0x1] %vm920, %v3998
        %4002 = vrot.lane.b32.xlu0 %v3904, 120
        %v4003 = vpop.permute.xlu0 %4002
        %4004 = vrot.lane.b32.xlu0 %v3903, 120
        %v4005 = vpop.permute.xlu0 %4004
        %4006 = vrot.lane.b32.xlu0 %v3904, 88
        %v4007 = vpop.permute.xlu0 %4006
        %4008 = vrot.lane.b32.xlu0 %v3903, 88
        %v4009 = vpop.permute.xlu0 %4008
        %v4010 = vsel %vm824, %v4003, 0
        %v4012 = vsel %vm824, %v4005, 0
        %v4014 = vsel %vm824, %v4007, 0
        %v4016 = vsel %vm824, %v4009, 0
        %4018 = vmatpush.xpose.msra.mxu0 0.0
        %4019 = vmatpush.xpose.msra.mxu0 0.0
        %4020 = vmatpush.xpose.msra.mxu0 0.0
        %4021 = vmatpush.xpose.msra.mxu0 0.0
        %4022 = vmatpush.xpose.msra.mxu0 0.0
        %4023 = vmatpush.xpose.msra.mxu0 0.0
        %4024 = vmatpush.xpose.msra.mxu0 0.0
        %4025 = vmatpush.xpose.msra.mxu0 0.0
        %4026 = vmatpush.xpose.msra.mxu0 0.0
        %4027 = vmatpush.xpose.msra.mxu0 0.0
        %4028 = vmatpush.xpose.msra.mxu0 0.0
        %4029 = vmatpush.xpose.msra.mxu0 0.0
        %4030 = vmatpush.xpose.msra.mxu0 0.0
        %4031 = vmatpush.xpose.msra.mxu0 0.0
        %4032 = vmatpush.xpose.msra.mxu0 %v4016
        %4033 = vmatpush.xpose.msra.mxu0 %v4014
        %4034 = vmatmul.f32.gmra.mxu0 %v4010
        %v4035 = vpop.f32.mrf.mxu0
        %v4036 = vadd.f32 0.0, %v4035
        %4037 = vmatmul.f32.gmra.mxu0 %v4012
        %v4038 = vpop.f32.mrf.mxu0
        %v4039 = vadd.f32 0.0, %v4038
        %4040 = vdwg.mxu0
        %v4041 = vmul.f32 %v4036, 0.17677669
        %v4042 = vmul.f32 %v4039, 0.17677669
        %v4043 = vsel %vm858, %v4041, -inf
        %4044 = vmax.xlane.f32.xlu0 %v4043
        %v4045 = vpop.xlane.xlu0 %4044
        %v4046 = vsel %vm862, %v4042, -inf
        %4047 = vmax.xlane.f32.xlu0 %v4046
        %v4048 = vpop.xlane.xlu0 %4047
        %v4049 = vsub.f32 %v4041, %v4045
        %v4050 = vsub.f32 %v4042, %v4048
        %v4051 = vmul.f32 %v4049, 1.442695
        %v4052 = vpow.pop %v4051
        %v4053 = vmul.f32 %v4050, 1.442695
        %v4054 = vpow.pop %v4053
        %v4055 = vsel %vm858, %v4052, 0.0
        %4056 = vadd.xlane.f32.xlu0 %v4055
        %v4057 = vpop.xlane.xlu0 %4056
        %v4058 = vsel %vm862, %v4054, 0.0
        %4059 = vadd.xlane.f32.xlu0 %v4058
        %v4060 = vpop.xlane.xlu0 %4059
        %v4061 = vrcp.pop %v4057
        %v4062 = vrcp.pop %v4060
        %v4063 = vmul.f32 %v4052, %v4061
        %v4064 = vmul.f32 %v4054, %v4062
        %4065 = vrot.lane.b32.xlu0 %v3904, 56
        %v4066 = vpop.permute.xlu0 %4065
        %4067 = vrot.lane.b32.xlu0 %v3903, 56
        %v4068 = vpop.permute.xlu0 %4067
        %v4071 = vsel %vm858, %v4063, 0
        %v4074 = vsel %vm858, %v4064, 0
        %v4076 = vsel %vm893, %v4068, 0
        %4078 = vmatpush.msra.mxu0 0.0
        %4079 = vmatpush.msra.mxu0 0.0
        %4080 = vmatpush.msra.mxu0 0.0
        %4081 = vmatpush.msra.mxu0 0.0
        %4082 = vmatpush.msra.mxu0 0.0
        %4083 = vmatpush.msra.mxu0 0.0
        %4084 = vmatpush.msra.mxu0 0.0
        %4085 = vmatpush.msra.mxu0 0.0
        %4086 = vmatpush.msra.mxu0 0.0
        %4087 = vmatpush.msra.mxu0 0.0
        %4088 = vmatpush.msra.mxu0 0.0
        %4089 = vmatpush.msra.mxu0 0.0
        %4090 = vmatpush.msra.mxu0 0.0
        %4091 = vmatpush.msra.mxu0 0.0
        %4092 = vmatpush.msra.mxu0 %v4076
        %4093 = vmatpush.msra.mxu0 %v4066
        %4094 = vmatmul.f32.gmra.mxu0 %v4071
        %v4095 = vpop.f32.mrf.mxu0
        %v4096 = vadd.f32 0.0, %v4095
        %4097 = vmatmul.f32.gmra.mxu0 %v4074
        %v4098 = vpop.f32.mrf.mxu0
        %v4099 = vadd.f32 0.0, %v4098
        %4100 = vdwg.mxu0
        %4103 = vrot.lane.b32.xlu0 %v4096, 8
        %v4104 = vpop.permute.xlu0 %4103
        %4105 = vrot.lane.b32.xlu0 %v4099, 8
        %v4106 = vpop.permute.xlu0 %4105
        %4109 = vst.msk [vmem:[#allocation3 + $0x9] sm:$0xff] %vm1029, %v4104
        %4110 = vst.msk [vmem:[#allocation3 + $0x11] sm:$0x1] %vm1031, %v4106
        %4111 = vrot.lane.b32.xlu0 %v3904, 112
        %v4112 = vpop.permute.xlu0 %4111
        %4113 = vrot.lane.b32.xlu0 %v3903, 112
        %v4114 = vpop.permute.xlu0 %4113
        %4115 = vrot.lane.b32.xlu0 %v3904, 80
        %v4116 = vpop.permute.xlu0 %4115
        %4117 = vrot.lane.b32.xlu0 %v3903, 80
        %v4118 = vpop.permute.xlu0 %4117
        %v4119 = vsel %vm824, %v4112, 0
        %v4121 = vsel %vm824, %v4114, 0
        %v4123 = vsel %vm824, %v4116, 0
        %v4125 = vsel %vm824, %v4118, 0
        %4127 = vmatpush.xpose.msra.mxu0 0.0
        %4128 = vmatpush.xpose.msra.mxu0 0.0
        %4129 = vmatpush.xpose.msra.mxu0 0.0
        %4130 = vmatpush.xpose.msra.mxu0 0.0
        %4131 = vmatpush.xpose.msra.mxu0 0.0
        %4132 = vmatpush.xpose.msra.mxu0 0.0
        %4133 = vmatpush.xpose.msra.mxu0 0.0
        %4134 = vmatpush.xpose.msra.mxu0 0.0
        %4135 = vmatpush.xpose.msra.mxu0 0.0
        %4136 = vmatpush.xpose.msra.mxu0 0.0
        %4137 = vmatpush.xpose.msra.mxu0 0.0
        %4138 = vmatpush.xpose.msra.mxu0 0.0
        %4139 = vmatpush.xpose.msra.mxu0 0.0
        %4140 = vmatpush.xpose.msra.mxu0 0.0
        %4141 = vmatpush.xpose.msra.mxu0 %v4125
        %4142 = vmatpush.xpose.msra.mxu0 %v4123
        %4143 = vmatmul.f32.gmra.mxu0 %v4119
        %v4144 = vpop.f32.mrf.mxu0
        %v4145 = vadd.f32 0.0, %v4144
        %4146 = vmatmul.f32.gmra.mxu0 %v4121
        %v4147 = vpop.f32.mrf.mxu0
        %v4148 = vadd.f32 0.0, %v4147
        %4149 = vdwg.mxu0
        %v4150 = vmul.f32 %v4145, 0.17677669
        %v4151 = vmul.f32 %v4148, 0.17677669
        %v4152 = vsel %vm858, %v4150, -inf
        %4153 = vmax.xlane.f32.xlu0 %v4152
        %v4154 = vpop.xlane.xlu0 %4153
        %v4155 = vsel %vm862, %v4151, -inf
        %4156 = vmax.xlane.f32.xlu0 %v4155
        %v4157 = vpop.xlane.xlu0 %4156
        %v4158 = vsub.f32 %v4150, %v4154
        %v4159 = vsub.f32 %v4151, %v4157
        %v4160 = vmul.f32 %v4158, 1.442695
        %v4161 = vpow.pop %v4160
        %v4162 = vmul.f32 %v4159, 1.442695
        %v4163 = vpow.pop %v4162
        %v4164 = vsel %vm858, %v4161, 0.0
        %4165 = vadd.xlane.f32.xlu0 %v4164
        %v4166 = vpop.xlane.xlu0 %4165
        %v4167 = vsel %vm862, %v4163, 0.0
        %4168 = vadd.xlane.f32.xlu0 %v4167
        %v4169 = vpop.xlane.xlu0 %4168
        %v4170 = vrcp.pop %v4166
        %v4171 = vrcp.pop %v4169
        %v4172 = vmul.f32 %v4161, %v4170
        %v4173 = vmul.f32 %v4163, %v4171
        %4174 = vrot.lane.b32.xlu0 %v3904, 48
        %v4175 = vpop.permute.xlu0 %4174
        %4176 = vrot.lane.b32.xlu0 %v3903, 48
        %v4177 = vpop.permute.xlu0 %4176
        %v4180 = vsel %vm858, %v4172, 0
        %v4183 = vsel %vm858, %v4173, 0
        %v4185 = vsel %vm893, %v4177, 0
        %4187 = vmatpush.msra.mxu0 0.0
        %4188 = vmatpush.msra.mxu0 0.0
        %4189 = vmatpush.msra.mxu0 0.0
        %4190 = vmatpush.msra.mxu0 0.0
        %4191 = vmatpush.msra.mxu0 0.0
        %4192 = vmatpush.msra.mxu0 0.0
        %4193 = vmatpush.msra.mxu0 0.0
        %4194 = vmatpush.msra.mxu0 0.0
        %4195 = vmatpush.msra.mxu0 0.0
        %4196 = vmatpush.msra.mxu0 0.0
        %4197 = vmatpush.msra.mxu0 0.0
        %4198 = vmatpush.msra.mxu0 0.0
        %4199 = vmatpush.msra.mxu0 0.0
        %4200 = vmatpush.msra.mxu0 0.0
        %4201 = vmatpush.msra.mxu0 %v4185
        %4202 = vmatpush.msra.mxu0 %v4175
        %4203 = vmatmul.f32.gmra.mxu0 %v4180
        %v4204 = vpop.f32.mrf.mxu0
        %v4205 = vadd.f32 0.0, %v4204
        %4206 = vmatmul.f32.gmra.mxu0 %v4183
        %v4207 = vpop.f32.mrf.mxu0
        %v4208 = vadd.f32 0.0, %v4207
        %4209 = vdwg.mxu0
        %4212 = vrot.lane.b32.xlu0 %v4205, 16
        %v4213 = vpop.permute.xlu0 %4212
        %4214 = vrot.lane.b32.xlu0 %v4208, 16
        %v4215 = vpop.permute.xlu0 %4214
        %4218 = vst.msk [vmem:[#allocation3 + $0x9] sm:$0xff] %vm1140, %v4213
        %4219 = vst.msk [vmem:[#allocation3 + $0x11] sm:$0x1] %vm1142, %v4215
        %4220 = vrot.lane.b32.xlu0 %v3904, 104
        %v4221 = vpop.permute.xlu0 %4220
        %4222 = vrot.lane.b32.xlu0 %v3903, 104
        %v4223 = vpop.permute.xlu0 %4222
        %4224 = vrot.lane.b32.xlu0 %v3904, 72
        %v4225 = vpop.permute.xlu0 %4224
        %4226 = vrot.lane.b32.xlu0 %v3903, 72
        %v4227 = vpop.permute.xlu0 %4226
        %v4228 = vsel %vm824, %v4221, 0
        %v4230 = vsel %vm824, %v4223, 0
        %v4232 = vsel %vm824, %v4225, 0
        %v4234 = vsel %vm824, %v4227, 0
        %4236 = vmatpush.xpose.msra.mxu0 0.0
        %4237 = vmatpush.xpose.msra.mxu0 0.0
        %4238 = vmatpush.xpose.msra.mxu0 0.0
        %4239 = vmatpush.xpose.msra.mxu0 0.0
        %4240 = vmatpush.xpose.msra.mxu0 0.0
        %4241 = vmatpush.xpose.msra.mxu0 0.0
        %4242 = vmatpush.xpose.msra.mxu0 0.0
        %4243 = vmatpush.xpose.msra.mxu0 0.0
        %4244 = vmatpush.xpose.msra.mxu0 0.0
        %4245 = vmatpush.xpose.msra.mxu0 0.0
        %4246 = vmatpush.xpose.msra.mxu0 0.0
        %4247 = vmatpush.xpose.msra.mxu0 0.0
        %4248 = vmatpush.xpose.msra.mxu0 0.0
        %4249 = vmatpush.xpose.msra.mxu0 0.0
        %4250 = vmatpush.xpose.msra.mxu0 %v4234
        %4251 = vmatpush.xpose.msra.mxu0 %v4232
        %4252 = vmatmul.f32.gmra.mxu0 %v4228
        %v4253 = vpop.f32.mrf.mxu0
        %v4254 = vadd.f32 0.0, %v4253
        %4255 = vmatmul.f32.gmra.mxu0 %v4230
        %v4256 = vpop.f32.mrf.mxu0
        %v4257 = vadd.f32 0.0, %v4256
        %4258 = vdwg.mxu0
        %v4259 = vmul.f32 %v4254, 0.17677669
        %v4260 = vmul.f32 %v4257, 0.17677669
        %v4261 = vsel %vm858, %v4259, -inf
        %4262 = vmax.xlane.f32.xlu0 %v4261
        %v4263 = vpop.xlane.xlu0 %4262
        %v4264 = vsel %vm862, %v4260, -inf
        %4265 = vmax.xlane.f32.xlu0 %v4264
        %v4266 = vpop.xlane.xlu0 %4265
        %v4267 = vsub.f32 %v4259, %v4263
        %v4268 = vsub.f32 %v4260, %v4266
        %v4269 = vmul.f32 %v4267, 1.442695
        %v4270 = vpow.pop %v4269
        %v4271 = vmul.f32 %v4268, 1.442695
        %v4272 = vpow.pop %v4271
        %v4273 = vsel %vm858, %v4270, 0.0
        %4274 = vadd.xlane.f32.xlu0 %v4273
        %v4275 = vpop.xlane.xlu0 %4274
        %v4276 = vsel %vm862, %v4272, 0.0
        %4277 = vadd.xlane.f32.xlu0 %v4276
        %v4278 = vpop.xlane.xlu0 %4277
        %v4279 = vrcp.pop %v4275
        %v4280 = vrcp.pop %v4278
        %v4281 = vmul.f32 %v4270, %v4279
        %v4282 = vmul.f32 %v4272, %v4280
        %4283 = vrot.lane.b32.xlu0 %v3904, 40
        %v4284 = vpop.permute.xlu0 %4283
        %4285 = vrot.lane.b32.xlu0 %v3903, 40
        %v4286 = vpop.permute.xlu0 %4285
        %v4289 = vsel %vm858, %v4281, 0
        %v4292 = vsel %vm858, %v4282, 0
        %v4294 = vsel %vm893, %v4286, 0
        %4296 = vmatpush.msra.mxu0 0.0
        %4297 = vmatpush.msra.mxu0 0.0
        %4298 = vmatpush.msra.mxu0 0.0
        %4299 = vmatpush.msra.mxu0 0.0
        %4300 = vmatpush.msra.mxu0 0.0
        %4301 = vmatpush.msra.mxu0 0.0
        %4302 = vmatpush.msra.mxu0 0.0
        %4303 = vmatpush.msra.mxu0 0.0
        %4304 = vmatpush.msra.mxu0 0.0
        %4305 = vmatpush.msra.mxu0 0.0
        %4306 = vmatpush.msra.mxu0 0.0
        %4307 = vmatpush.msra.mxu0 0.0
        %4308 = vmatpush.msra.mxu0 0.0
        %4309 = vmatpush.msra.mxu0 0.0
        %4310 = vmatpush.msra.mxu0 %v4294
        %4311 = vmatpush.msra.mxu0 %v4284
        %4312 = vmatmul.f32.gmra.mxu0 %v4289
        %v4313 = vpop.f32.mrf.mxu0
        %v4314 = vadd.f32 0.0, %v4313
        %4315 = vmatmul.f32.gmra.mxu0 %v4292
        %v4316 = vpop.f32.mrf.mxu0
        %v4317 = vadd.f32 0.0, %v4316
        %4318 = vdwg.mxu0
        %4321 = vrot.lane.b32.xlu0 %v4314, 24
        %v4322 = vpop.permute.xlu0 %4321
        %4323 = vrot.lane.b32.xlu0 %v4317, 24
        %v4324 = vpop.permute.xlu0 %4323
        %4327 = vst.msk [vmem:[#allocation3 + $0x9] sm:$0xff] %vm1251, %v4322
        %4328 = vst.msk [vmem:[#allocation3 + $0x11] sm:$0x1] %vm1253, %v4324
        %v4329 = vld [vmem:[#allocation3] sm:$0xff]
        %v4330 = vld [vmem:[#allocation3 + $0x8] sm:$0xff]
        %v4331 = vld [vmem:[#allocation3 + $0x10] sm:$0x3]
        %s4332 = scalar_lea.vmem %s7, 64
        %v4333 = vld [vmem:[%s4332] sm:$0xff]
        %v4334 = vld [vmem:[%s4332 + $0x8] sm:$0xff]
        %v4335 = vld [vmem:[%s4332 + $0x10] sm:$0xff]
        %v4336 = vld [vmem:[%s4332 + $0x18] sm:$0xff]
        %s4337 = scalar_lea.vmem [#allocation13], 2
        %v4338 = vld [vmem:[%s4337] sm:$0x1]
        %v4340 = vperm.slane %v4338, 0
        %v4343 = vsel %vm684, %v4329, 0
        %v4346 = vsel %vm684, %v4330, 0
        %v4349 = vsel %vm684, %v4331, 0
        %4351 = vmatpush.msra.mxu0 0.0
        %4352 = vmatpush.msra.mxu0 0.0
        %4353 = vmatpush.msra.mxu0 0.0
        %4354 = vmatpush.msra.mxu0 0.0
        %4355 = vmatpush.msra.mxu0 0.0
        %4356 = vmatpush.msra.mxu0 0.0
        %4357 = vmatpush.msra.mxu0 0.0
        %4358 = vmatpush.msra.mxu0 0.0
        %4359 = vmatpush.msra.mxu0 0.0
        %4360 = vmatpush.msra.mxu0 0.0
        %4361 = vmatpush.msra.mxu0 0.0
        %4362 = vmatpush.msra.mxu0 0.0
        %4363 = vmatpush.msra.mxu0 %v4336
        %4364 = vmatpush.msra.mxu0 %v4335
        %4365 = vmatpush.msra.mxu0 %v4334
        %4366 = vmatpush.msra.mxu0 %v4333
        %4367 = vmatmul.f32.gmra.mxu0 %v4343
        %v4368 = vpop.f32.mrf.mxu0
        %v4369 = vadd.f32 %v4340, %v4368
        %4370 = vmatmul.f32.gmra.mxu0 %v4346
        %v4371 = vpop.f32.mrf.mxu0
        %v4372 = vadd.f32 %v4340, %v4371
        %4373 = vmatmul.f32.gmra.mxu0 %v4349
        %v4374 = vpop.f32.mrf.mxu0
        %v4375 = vadd.f32 %v4340, %v4374
        %4376 = vdwg.mxu0
        %v4377 = vadd.f32 %v3350, %v4369
        %v4378 = vadd.f32 %v3351, %v4372
        %v4379 = vadd.f32 %v3352, %v4375
        %s4380 = scalar_lea.vmem [#allocation15], 2
        %v4381 = vld [vmem:[%s4380] sm:$0x1]
        %s4382 = scalar_lea.vmem %s10, 2
        %v4383 = vld [vmem:[%s4382] sm:$0x1]
        %v4384 = vsel %vm684, %v4377, 0.0
        %4385 = vadd.xlane.f32.xlu0 %v4384
        %v4386 = vpop.xlane.xlu0 %4385
        %v4387 = vsel %vm684, %v4378, 0.0
        %4388 = vadd.xlane.f32.xlu0 %v4387
        %v4389 = vpop.xlane.xlu0 %4388
        %v4390 = vsel %vm699, %v4379, 0.0
        %4391 = vadd.xlane.f32.xlu0 %v4390
        %v4392 = vpop.xlane.xlu0 %4391
        %v4393 = vmul.f32 %v4386, %v709
        %v4394 = vmul.f32 %v4389, %v709
        %v4395 = vmul.f32 %v4392, %v709
        %v4396 = vsub.f32 %v4377, %v4393
        %v4397 = vsub.f32 %v4378, %v4394
        %v4398 = vsub.f32 %v4379, %v4395
        %v4399 = vmul.f32 %v4396, %v4396
        %v4400 = vmul.f32 %v4397, %v4397
        %v4401 = vmul.f32 %v4398, %v4398
        %v4402 = vsel %vm684, %v4399, 0.0
        %4403 = vadd.xlane.f32.xlu0 %v4402
        %v4404 = vpop.xlane.xlu0 %4403
        %v4405 = vsel %vm684, %v4400, 0.0
        %4406 = vadd.xlane.f32.xlu0 %v4405
        %v4407 = vpop.xlane.xlu0 %4406
        %v4408 = vsel %vm699, %v4401, 0.0
        %4409 = vadd.xlane.f32.xlu0 %v4408
        %v4410 = vpop.xlane.xlu0 %4409
        %v4411 = vmul.f32 %v4404, %v709
        %v4412 = vmul.f32 %v4407, %v709
        %v4413 = vmul.f32 %v4410, %v709
        %v4414 = vadd.f32 %v4411, 1e-05
        %v4415 = vadd.f32 %v4412, 1e-05
        %v4416 = vadd.f32 %v4413, 1e-05
        %v4417 = vrsqrt.pop %v4414
        %v4418 = vmul.f32 %v4417, %v4414
        %v4419 = vmul.f32 %v4418, %v4417
        %v4420 = vmul.f32 0.5, %v4419
        %v4421 = vsub.f32 1.5, %v4420
        %v4422 = vmul.f32 %v4417, %v4421
        %vm4423 = vweird.f32 %v4414
        %vm4424 = vweird.f32 %v4417
        %vm4425 = vmor %vm4423, %vm4424
        %v4426 = vsel %vm4425, %v4417, %v4422
        %v4427 = vrsqrt.pop %v4415
        %v4428 = vmul.f32 %v4427, %v4415
        %v4429 = vmul.f32 %v4428, %v4427
        %v4430 = vmul.f32 0.5, %v4429
        %v4431 = vsub.f32 1.5, %v4430
        %v4432 = vmul.f32 %v4427, %v4431
        %vm4433 = vweird.f32 %v4415
        %vm4434 = vweird.f32 %v4427
        %vm4435 = vmor %vm4433, %vm4434
        %v4436 = vsel %vm4435, %v4427, %v4432
        %v4437 = vrsqrt.pop %v4416
        %v4438 = vmul.f32 %v4437, %v4416
        %v4439 = vmul.f32 %v4438, %v4437
        %v4440 = vmul.f32 0.5, %v4439
        %v4441 = vsub.f32 1.5, %v4440
        %v4442 = vmul.f32 %v4437, %v4441
        %vm4443 = vweird.f32 %v4416
        %vm4444 = vweird.f32 %v4437
        %vm4445 = vmor %vm4443, %vm4444
        %v4446 = vsel %vm4445, %v4437, %v4442
        %v4447 = vmul.f32 %v4396, %v4426
        %v4448 = vmul.f32 %v4397, %v4436
        %v4449 = vmul.f32 %v4398, %v4446
        %v4451 = vperm.slane %v4381, 0
        %v4453 = vmul.f32 %v4447, %v4451
        %v4454 = vmul.f32 %v4448, %v4451
        %v4455 = vmul.f32 %v4449, %v4451
        %v4457 = vperm.slane %v4383, 0
        %v4459 = vadd.f32 %v4453, %v4457
        %v4460 = vadd.f32 %v4454, %v4457
        %v4461 = vadd.f32 %v4455, %v4457
        %s4462 = scalar_lea.vmem %s11, 64
        %v4463 = vld [vmem:[%s4462] sm:$0xff]
        %v4464 = vld [vmem:[%s4462 + $0x8] sm:$0xff]
        %v4465 = vld [vmem:[%s4462 + $0x10] sm:$0xff]
        %v4466 = vld [vmem:[%s4462 + $0x18] sm:$0xff]
        %s4467 = scalar_lea.vmem [#allocation16], 2
        %v4468 = vld [vmem:[%s4467] sm:$0x1]
        %v4470 = vperm.slane %v4468, 0
        %v4473 = vsel %vm684, %v4459, 0
        %v4476 = vsel %vm684, %v4460, 0
        %v4479 = vsel %vm684, %v4461, 0
        %4481 = vmatpush.msra.mxu0 0.0
        %4482 = vmatpush.msra.mxu0 0.0
        %4483 = vmatpush.msra.mxu0 0.0
        %4484 = vmatpush.msra.mxu0 0.0
        %4485 = vmatpush.msra.mxu0 0.0
        %4486 = vmatpush.msra.mxu0 0.0
        %4487 = vmatpush.msra.mxu0 0.0
        %4488 = vmatpush.msra.mxu0 0.0
        %4489 = vmatpush.msra.mxu0 0.0
        %4490 = vmatpush.msra.mxu0 0.0
        %4491 = vmatpush.msra.mxu0 0.0
        %4492 = vmatpush.msra.mxu0 0.0
        %4493 = vmatpush.msra.mxu0 %v4466
        %4494 = vmatpush.msra.mxu0 %v4465
        %4495 = vmatpush.msra.mxu0 %v4464
        %4496 = vmatpush.msra.mxu0 %v4463
        %4497 = vmatmul.f32.gmra.mxu0 %v4473
        %v4498 = vpop.f32.mrf.mxu0
        %v4499 = vadd.f32 %v4470, %v4498
        %4500 = vmatmul.f32.gmra.mxu0 %v4476
        %v4501 = vpop.f32.mrf.mxu0
        %v4502 = vadd.f32 %v4470, %v4501
        %4503 = vmatmul.f32.gmra.mxu0 %v4479
        %v4504 = vpop.f32.mrf.mxu0
        %v4505 = vadd.f32 %v4470, %v4504
        %4506 = vdwg.mxu0
        %v4507 = vmul.f32 %v4499, 0.70710677
        %v4508 = vmul.f32 %v4502, 0.70710677
        %v4509 = vmul.f32 %v4505, 0.70710677
        %v4510 = vand.u32 2147483647, %v4507
        %v4511 = vand.u32 2147483647, %v4508
        %v4512 = vand.u32 2147483647, %v4509
        %v4513 = vmul.f32 %v4510, 0.3275911
        %v4514 = vmul.f32 %v4511, 0.3275911
        %v4515 = vmul.f32 %v4512, 0.3275911
        %v4516 = vadd.f32 %v4513, 1.0
        %v4517 = vadd.f32 %v4514, 1.0
        %v4518 = vadd.f32 %v4515, 1.0
        %v4519 = vrcp.pop %v4516
        %v4520 = vmul.f32 %v4516, %v4519
        %v4521 = vsub.f32 1.0, %v4520
        %v4522 = vmul.f32 %v4519, %v4521
        %v4523 = vadd.f32 %v4519, %v4522
        %vm4524 = vweird.f32 %v4516
        %vm4525 = vweird.f32 %v4519
        %vm4526 = vmor %vm4524, %vm4525
        %v4527 = vsel %vm4526, %v4519, %v4523
        %v4528 = vand.u32 2147483647, %v4516
        %vm4529 = vcmp.eq.f32.partialorder %v4528, 8.507059e+37
        %v4530 = vand.u32 %v4516, 2147483648
        %v4531 = vor.u32 1.1754944e-38, %v4530
        %v4532 = vsel %vm4529, %v4531, %v4527
        %v4533 = vmul.f32 1.0, %v4532
        %v4534 = vrcp.pop %v4517
        %v4535 = vmul.f32 %v4517, %v4534
        %v4536 = vsub.f32 1.0, %v4535
        %v4537 = vmul.f32 %v4534, %v4536
        %v4538 = vadd.f32 %v4534, %v4537
        %vm4539 = vweird.f32 %v4517
        %vm4540 = vweird.f32 %v4534
        %vm4541 = vmor %vm4539, %vm4540
        %v4542 = vsel %vm4541, %v4534, %v4538
        %v4543 = vand.u32 2147483647, %v4517
        %vm4544 = vcmp.eq.f32.partialorder %v4543, 8.507059e+37
        %v4545 = vand.u32 %v4517, 2147483648
        %v4546 = vor.u32 1.1754944e-38, %v4545
        %v4547 = vsel %vm4544, %v4546, %v4542
        %v4548 = vmul.f32 1.0, %v4547
        %v4549 = vrcp.pop %v4518
        %v4550 = vmul.f32 %v4518, %v4549
        %v4551 = vsub.f32 1.0, %v4550
        %v4552 = vmul.f32 %v4549, %v4551
        %v4553 = vadd.f32 %v4549, %v4552
        %vm4554 = vweird.f32 %v4518
        %vm4555 = vweird.f32 %v4549
        %vm4556 = vmor %vm4554, %vm4555
        %v4557 = vsel %vm4556, %v4549, %v4553
        %v4558 = vand.u32 2147483647, %v4518
        %vm4559 = vcmp.eq.f32.partialorder %v4558, 8.507059e+37
        %v4560 = vand.u32 %v4518, 2147483648
        %v4561 = vor.u32 1.1754944e-38, %v4560
        %v4562 = vsel %vm4559, %v4561, %v4557
        %v4563 = vmul.f32 1.0, %v4562
        %v4564 = vmul.f32 %v4533, 1.0614054
        %v4565 = vmul.f32 %v4548, 1.0614054
        %v4566 = vmul.f32 %v4563, 1.0614054
        %v4567 = vsub.f32 %v4564, 1.4531521
        %v4568 = vsub.f32 %v4565, 1.4531521
        %v4569 = vsub.f32 %v4566, 1.4531521
        %v4570 = vmul.f32 %v4567, %v4533
        %v4571 = vmul.f32 %v4568, %v4548
        %v4572 = vmul.f32 %v4569, %v4563
        %v4573 = vadd.f32 %v4570, 1.4214138
        %v4574 = vadd.f32 %v4571, 1.4214138
        %v4575 = vadd.f32 %v4572, 1.4214138
        %v4576 = vmul.f32 %v4573, %v4533
        %v4577 = vmul.f32 %v4574, %v4548
        %v4578 = vmul.f32 %v4575, %v4563
        %v4579 = vsub.f32 %v4576, 0.28449672
        %v4580 = vsub.f32 %v4577, 0.28449672
        %v4581 = vsub.f32 %v4578, 0.28449672
        %v4582 = vmul.f32 %v4579, %v4533
        %v4583 = vmul.f32 %v4580, %v4548
        %v4584 = vmul.f32 %v4581, %v4563
        %v4585 = vadd.f32 %v4582, 0.2548296
        %v4586 = vadd.f32 %v4583, 0.2548296
        %v4587 = vadd.f32 %v4584, 0.2548296
        %v4588 = vmul.f32 %v4585, %v4533
        %v4589 = vmul.f32 %v4586, %v4548
        %v4590 = vmul.f32 %v4587, %v4563
        %v4591 = vsub.f32 0.0, %v4510
        %v4592 = vsub.f32 0.0, %v4511
        %v4593 = vsub.f32 0.0, %v4512
        %v4594 = vmul.f32 %v4591, %v4510
        %v4595 = vmul.f32 %v4592, %v4511
        %v4596 = vmul.f32 %v4593, %v4512
        %v4597 = vmul.f32 %v4594, 1.442695
        %v4598 = vpow.pop %v4597
        %v4599 = vmul.f32 %v4595, 1.442695
        %v4600 = vpow.pop %v4599
        %v4601 = vmul.f32 %v4596, 1.442695
        %v4602 = vpow.pop %v4601
        %v4603 = vmul.f32 %v4588, %v4598
        %v4604 = vmul.f32 %v4589, %v4600
        %v4605 = vmul.f32 %v4590, %v4602
        %v4606 = vsub.f32 1.0, %v4603
        %v4607 = vsub.f32 1.0, %v4604
        %v4608 = vsub.f32 1.0, %v4605
        %vm4609 = vcmp.lt.f32.partialorder %v4507, 0.0
        %vm4610 = vcmp.lt.f32.partialorder %v4508, 0.0
        %vm4611 = vcmp.lt.f32.partialorder %v4509, 0.0
        %v4612 = vsub.f32 0.0, %v4606
        %v4613 = vsub.f32 0.0, %v4607
        %v4614 = vsub.f32 0.0, %v4608
        %v4615 = vsel %vm4609, %v4612, %v4606
        %v4616 = vsel %vm4610, %v4613, %v4607
        %v4617 = vsel %vm4611, %v4614, %v4608
        %v4618 = vmul.f32 %v4499, 0.5
        %v4619 = vmul.f32 %v4502, 0.5
        %v4620 = vmul.f32 %v4505, 0.5
        %v4621 = vadd.f32 %v4615, 1.0
        %v4622 = vadd.f32 %v4616, 1.0
        %v4623 = vadd.f32 %v4617, 1.0
        %v4624 = vmul.f32 %v4618, %v4621
        %v4625 = vmul.f32 %v4619, %v4622
        %v4626 = vmul.f32 %v4620, %v4623
        %s4627 = scalar_lea.vmem %s13, 128
        %v4628 = vld [vmem:[%s4627] sm:$0xff]
        %v4629 = vld [vmem:[%s4627 + $0x8] sm:$0xff]
        %v4630 = vld [vmem:[%s4627 + $0x10] sm:$0xff]
        %v4631 = vld [vmem:[%s4627 + $0x18] sm:$0xff]
        %v4632 = vld [vmem:[%s4627 + $0x20] sm:$0xff]
        %v4633 = vld [vmem:[%s4627 + $0x28] sm:$0xff]
        %v4634 = vld [vmem:[%s4627 + $0x30] sm:$0xff]
        %v4635 = vld [vmem:[%s4627 + $0x38] sm:$0xff]
        %s4636 = scalar_lea.vmem [#allocation18], 2
        %v4637 = vld [vmem:[%s4636] sm:$0x1]
        %v4639 = vperm.slane %v4637, 0
        %v4642 = vsel %vm1988, %v4624, 0
        %v4645 = vsel %vm1988, %v4625, 0
        %v4648 = vsel %vm1988, %v4626, 0
        %4650 = vmatpush.msra.mxu0 0.0
        %4651 = vmatpush.msra.mxu0 0.0
        %4652 = vmatpush.msra.mxu0 0.0
        %4653 = vmatpush.msra.mxu0 0.0
        %4654 = vmatpush.msra.mxu0 0.0
        %4655 = vmatpush.msra.mxu0 0.0
        %4656 = vmatpush.msra.mxu0 0.0
        %4657 = vmatpush.msra.mxu0 0.0
        %4658 = vmatpush.msra.mxu0 %v4635
        %4659 = vmatpush.msra.mxu0 %v4634
        %4660 = vmatpush.msra.mxu0 %v4633
        %4661 = vmatpush.msra.mxu0 %v4632
        %4662 = vmatpush.msra.mxu0 %v4631
        %4663 = vmatpush.msra.mxu0 %v4630
        %4664 = vmatpush.msra.mxu0 %v4629
        %4665 = vmatpush.msra.mxu0 %v4628
        %4666 = vmatmul.f32.gmra.mxu0 %v4642
        %v4667 = vpop.f32.mrf.mxu0
        %v4668 = vadd.f32 %v4639, %v4667
        %4669 = vmatmul.f32.gmra.mxu0 %v4645
        %v4670 = vpop.f32.mrf.mxu0
        %v4671 = vadd.f32 %v4639, %v4670
        %4672 = vmatmul.f32.gmra.mxu0 %v4648
        %v4673 = vpop.f32.mrf.mxu0
        %v4674 = vadd.f32 %v4639, %v4673
        %4675 = vdwg.mxu0
        %v4676 = vadd.f32 %v4377, %v4668
        %v4677 = vadd.f32 %v4378, %v4671
        %v4678 = vadd.f32 %v4379, %v4674
        %s4679 = scalar_lea.vmem [#allocation12], 3
        %v4680 = vld [vmem:[%s4679] sm:$0x1]
        %s4681 = scalar_lea.vmem %s5, 3
        %v4682 = vld [vmem:[%s4681] sm:$0x1]
        %v4683 = vsel %vm684, %v4676, 0.0
        %4684 = vadd.xlane.f32.xlu0 %v4683
        %v4685 = vpop.xlane.xlu0 %4684
        %v4686 = vsel %vm684, %v4677, 0.0
        %4687 = vadd.xlane.f32.xlu0 %v4686
        %v4688 = vpop.xlane.xlu0 %4687
        %v4689 = vsel %vm699, %v4678, 0.0
        %4690 = vadd.xlane.f32.xlu0 %v4689
        %v4691 = vpop.xlane.xlu0 %4690
        %v4692 = vmul.f32 %v4685, %v709
        %v4693 = vmul.f32 %v4688, %v709
        %v4694 = vmul.f32 %v4691, %v709
        %v4695 = vsub.f32 %v4676, %v4692
        %v4696 = vsub.f32 %v4677, %v4693
        %v4697 = vsub.f32 %v4678, %v4694
        %v4698 = vmul.f32 %v4695, %v4695
        %v4699 = vmul.f32 %v4696, %v4696
        %v4700 = vmul.f32 %v4697, %v4697
        %v4701 = vsel %vm684, %v4698, 0.0
        %4702 = vadd.xlane.f32.xlu0 %v4701
        %v4703 = vpop.xlane.xlu0 %4702
        %v4704 = vsel %vm684, %v4699, 0.0
        %4705 = vadd.xlane.f32.xlu0 %v4704
        %v4706 = vpop.xlane.xlu0 %4705
        %v4707 = vsel %vm699, %v4700, 0.0
        %4708 = vadd.xlane.f32.xlu0 %v4707
        %v4709 = vpop.xlane.xlu0 %4708
        %v4710 = vmul.f32 %v4703, %v709
        %v4711 = vmul.f32 %v4706, %v709
        %v4712 = vmul.f32 %v4709, %v709
        %v4713 = vadd.f32 %v4710, 1e-05
        %v4714 = vadd.f32 %v4711, 1e-05
        %v4715 = vadd.f32 %v4712, 1e-05
        %v4716 = vrsqrt.pop %v4713
        %v4717 = vmul.f32 %v4716, %v4713
        %v4718 = vmul.f32 %v4717, %v4716
        %v4719 = vmul.f32 0.5, %v4718
        %v4720 = vsub.f32 1.5, %v4719
        %v4721 = vmul.f32 %v4716, %v4720
        %vm4722 = vweird.f32 %v4713
        %vm4723 = vweird.f32 %v4716
        %vm4724 = vmor %vm4722, %vm4723
        %v4725 = vsel %vm4724, %v4716, %v4721
        %v4726 = vrsqrt.pop %v4714
        %v4727 = vmul.f32 %v4726, %v4714
        %v4728 = vmul.f32 %v4727, %v4726
        %v4729 = vmul.f32 0.5, %v4728
        %v4730 = vsub.f32 1.5, %v4729
        %v4731 = vmul.f32 %v4726, %v4730
        %vm4732 = vweird.f32 %v4714
        %vm4733 = vweird.f32 %v4726
        %vm4734 = vmor %vm4732, %vm4733
        %v4735 = vsel %vm4734, %v4726, %v4731
        %v4736 = vrsqrt.pop %v4715
        %v4737 = vmul.f32 %v4736, %v4715
        %v4738 = vmul.f32 %v4737, %v4736
        %v4739 = vmul.f32 0.5, %v4738
        %v4740 = vsub.f32 1.5, %v4739
        %v4741 = vmul.f32 %v4736, %v4740
        %vm4742 = vweird.f32 %v4715
        %vm4743 = vweird.f32 %v4736
        %vm4744 = vmor %vm4742, %vm4743
        %v4745 = vsel %vm4744, %v4736, %v4741
        %v4746 = vmul.f32 %v4695, %v4725
        %v4747 = vmul.f32 %v4696, %v4735
        %v4748 = vmul.f32 %v4697, %v4745
        %v4750 = vperm.slane %v4680, 0
        %v4752 = vmul.f32 %v4746, %v4750
        %v4753 = vmul.f32 %v4747, %v4750
        %v4754 = vmul.f32 %v4748, %v4750
        %v4756 = vperm.slane %v4682, 0
        %v4758 = vadd.f32 %v4752, %v4756
        %v4759 = vadd.f32 %v4753, %v4756
        %v4760 = vadd.f32 %v4754, %v4756
        %s4761 = scalar_lea.vmem %s6, 96
        %v4762 = vld [vmem:[%s4761] sm:$0xff]
        %v4763 = vld [vmem:[%s4761 + $0x8] sm:$0xff]
        %v4764 = vld [vmem:[%s4761 + $0x10] sm:$0xff]
        %v4765 = vld [vmem:[%s4761 + $0x18] sm:$0xff]
        %v4767 = vsel %vm684, %v4758, 0
        %v4770 = vsel %vm684, %v4759, 0
        %v4773 = vsel %vm684, %v4760, 0
        %4775 = vmatpush.msra.mxu0 0.0
        %4776 = vmatpush.msra.mxu0 0.0
        %4777 = vmatpush.msra.mxu0 0.0
        %4778 = vmatpush.msra.mxu0 0.0
        %4779 = vmatpush.msra.mxu0 0.0
        %4780 = vmatpush.msra.mxu0 0.0
        %4781 = vmatpush.msra.mxu0 0.0
        %4782 = vmatpush.msra.mxu0 0.0
        %4783 = vmatpush.msra.mxu0 0.0
        %4784 = vmatpush.msra.mxu0 0.0
        %4785 = vmatpush.msra.mxu0 0.0
        %4786 = vmatpush.msra.mxu0 0.0
        %4787 = vmatpush.msra.mxu0 %v4765
        %4788 = vmatpush.msra.mxu0 %v4764
        %4789 = vmatpush.msra.mxu0 %v4763
        %4790 = vmatpush.msra.mxu0 %v4762
        %4791 = vmatmul.f32.gmra.mxu0 %v4767
        %v4792 = vpop.f32.mrf.mxu0
        %v4793 = vadd.f32 0.0, %v4792
        %4794 = vmatmul.f32.gmra.mxu0 %v4770
        %v4795 = vpop.f32.mrf.mxu0
        %v4796 = vadd.f32 0.0, %v4795
        %4797 = vmatmul.f32.gmra.mxu0 %v4773
        %v4798 = vpop.f32.mrf.mxu0
        %v4799 = vadd.f32 0.0, %v4798
        %4800 = vdwg.mxu0
        %4803 = vrot.lane.b32.xlu0 %v4793, 96
        %v4804 = vpop.permute.xlu0 %4803
        %4805 = vrot.lane.b32.xlu0 %v4796, 96
        %v4806 = vpop.permute.xlu0 %4805
        %v4807 = vsel %vm824, %v4793, 0
        %v4809 = vsel %vm824, %v4796, 0
        %v4811 = vsel %vm824, %v4804, 0
        %v4813 = vsel %vm824, %v4806, 0
        %4815 = vmatpush.xpose.msra.mxu0 0.0
        %4816 = vmatpush.xpose.msra.mxu0 0.0
        %4817 = vmatpush.xpose.msra.mxu0 0.0
        %4818 = vmatpush.xpose.msra.mxu0 0.0
        %4819 = vmatpush.xpose.msra.mxu0 0.0
        %4820 = vmatpush.xpose.msra.mxu0 0.0
        %4821 = vmatpush.xpose.msra.mxu0 0.0
        %4822 = vmatpush.xpose.msra.mxu0 0.0
        %4823 = vmatpush.xpose.msra.mxu0 0.0
        %4824 = vmatpush.xpose.msra.mxu0 0.0
        %4825 = vmatpush.xpose.msra.mxu0 0.0
        %4826 = vmatpush.xpose.msra.mxu0 0.0
        %4827 = vmatpush.xpose.msra.mxu0 0.0
        %4828 = vmatpush.xpose.msra.mxu0 0.0
        %4829 = vmatpush.xpose.msra.mxu0 %v4813
        %4830 = vmatpush.xpose.msra.mxu0 %v4811
        %4831 = vmatmul.f32.gmra.mxu0 %v4807
        %v4832 = vpop.f32.mrf.mxu0
        %v4833 = vadd.f32 0.0, %v4832
        %4834 = vmatmul.f32.gmra.mxu0 %v4809
        %v4835 = vpop.f32.mrf.mxu0
        %v4836 = vadd.f32 0.0, %v4835
        %4837 = vdwg.mxu0
        %v4838 = vmul.f32 %v4833, 0.17677669
        %v4839 = vmul.f32 %v4836, 0.17677669
        %v4840 = vsel %vm858, %v4838, -inf
        %4841 = vmax.xlane.f32.xlu0 %v4840
        %v4842 = vpop.xlane.xlu0 %4841
        %v4843 = vsel %vm862, %v4839, -inf
        %4844 = vmax.xlane.f32.xlu0 %v4843
        %v4845 = vpop.xlane.xlu0 %4844
        %v4846 = vsub.f32 %v4838, %v4842
        %v4847 = vsub.f32 %v4839, %v4845
        %v4848 = vmul.f32 %v4846, 1.442695
        %v4849 = vpow.pop %v4848
        %v4850 = vmul.f32 %v4847, 1.442695
        %v4851 = vpow.pop %v4850
        %v4852 = vsel %vm858, %v4849, 0.0
        %4853 = vadd.xlane.f32.xlu0 %v4852
        %v4854 = vpop.xlane.xlu0 %4853
        %v4855 = vsel %vm862, %v4851, 0.0
        %4856 = vadd.xlane.f32.xlu0 %v4855
        %v4857 = vpop.xlane.xlu0 %4856
        %v4858 = vrcp.pop %v4854
        %v4859 = vrcp.pop %v4857
        %v4860 = vmul.f32 %v4849, %v4858
        %v4861 = vmul.f32 %v4851, %v4859
        %4862 = vrot.lane.b32.xlu0 %v4793, 64
        %v4863 = vpop.permute.xlu0 %4862
        %4864 = vrot.lane.b32.xlu0 %v4796, 64
        %v4865 = vpop.permute.xlu0 %4864
        %v4868 = vsel %vm858, %v4860, 0
        %v4871 = vsel %vm858, %v4861, 0
        %v4873 = vsel %vm893, %v4865, 0
        %4875 = vmatpush.msra.mxu0 0.0
        %4876 = vmatpush.msra.mxu0 0.0
        %4877 = vmatpush.msra.mxu0 0.0
        %4878 = vmatpush.msra.mxu0 0.0
        %4879 = vmatpush.msra.mxu0 0.0
        %4880 = vmatpush.msra.mxu0 0.0
        %4881 = vmatpush.msra.mxu0 0.0
        %4882 = vmatpush.msra.mxu0 0.0
        %4883 = vmatpush.msra.mxu0 0.0
        %4884 = vmatpush.msra.mxu0 0.0
        %4885 = vmatpush.msra.mxu0 0.0
        %4886 = vmatpush.msra.mxu0 0.0
        %4887 = vmatpush.msra.mxu0 0.0
        %4888 = vmatpush.msra.mxu0 0.0
        %4889 = vmatpush.msra.mxu0 %v4873
        %4890 = vmatpush.msra.mxu0 %v4863
        %4891 = vmatmul.f32.gmra.mxu0 %v4868
        %v4892 = vpop.f32.mrf.mxu0
        %v4893 = vadd.f32 0.0, %v4892
        %4894 = vmatmul.f32.gmra.mxu0 %v4871
        %v4895 = vpop.f32.mrf.mxu0
        %v4896 = vadd.f32 0.0, %v4895
        %4897 = vdwg.mxu0
        %4898 = vst.msk [vmem:[#allocation3] sm:$0xff] %vm824, %v4893
        %4899 = vst.msk [vmem:[#allocation3 + $0x8] sm:$0x1] %vm920, %v4896
        %4900 = vrot.lane.b32.xlu0 %v4793, 120
        %v4901 = vpop.permute.xlu0 %4900
        %4902 = vrot.lane.b32.xlu0 %v4796, 120
        %v4903 = vpop.permute.xlu0 %4902
        %4904 = vrot.lane.b32.xlu0 %v4793, 88
        %v4905 = vpop.permute.xlu0 %4904
        %4906 = vrot.lane.b32.xlu0 %v4796, 88
        %v4907 = vpop.permute.xlu0 %4906
        %v4908 = vsel %vm824, %v4901, 0
        %v4910 = vsel %vm824, %v4903, 0
        %v4912 = vsel %vm824, %v4905, 0
        %v4914 = vsel %vm824, %v4907, 0
        %4916 = vmatpush.xpose.msra.mxu0 0.0
        %4917 = vmatpush.xpose.msra.mxu0 0.0
        %4918 = vmatpush.xpose.msra.mxu0 0.0
        %4919 = vmatpush.xpose.msra.mxu0 0.0
        %4920 = vmatpush.xpose.msra.mxu0 0.0
        %4921 = vmatpush.xpose.msra.mxu0 0.0
        %4922 = vmatpush.xpose.msra.mxu0 0.0
        %4923 = vmatpush.xpose.msra.mxu0 0.0
        %4924 = vmatpush.xpose.msra.mxu0 0.0
        %4925 = vmatpush.xpose.msra.mxu0 0.0
        %4926 = vmatpush.xpose.msra.mxu0 0.0
        %4927 = vmatpush.xpose.msra.mxu0 0.0
        %4928 = vmatpush.xpose.msra.mxu0 0.0
        %4929 = vmatpush.xpose.msra.mxu0 0.0
        %4930 = vmatpush.xpose.msra.mxu0 %v4914
        %4931 = vmatpush.xpose.msra.mxu0 %v4912
        %4932 = vmatmul.f32.gmra.mxu0 %v4908
        %v4933 = vpop.f32.mrf.mxu0
        %v4934 = vadd.f32 0.0, %v4933
        %4935 = vmatmul.f32.gmra.mxu0 %v4910
        %v4936 = vpop.f32.mrf.mxu0
        %v4937 = vadd.f32 0.0, %v4936
        %4938 = vdwg.mxu0
        %v4939 = vmul.f32 %v4934, 0.17677669
        %v4940 = vmul.f32 %v4937, 0.17677669
        %v4941 = vsel %vm858, %v4939, -inf
        %4942 = vmax.xlane.f32.xlu0 %v4941
        %v4943 = vpop.xlane.xlu0 %4942
        %v4944 = vsel %vm862, %v4940, -inf
        %4945 = vmax.xlane.f32.xlu0 %v4944
        %v4946 = vpop.xlane.xlu0 %4945
        %v4947 = vsub.f32 %v4939, %v4943
        %v4948 = vsub.f32 %v4940, %v4946
        %v4949 = vmul.f32 %v4947, 1.442695
        %v4950 = vpow.pop %v4949
        %v4951 = vmul.f32 %v4948, 1.442695
        %v4952 = vpow.pop %v4951
        %v4953 = vsel %vm858, %v4950, 0.0
        %4954 = vadd.xlane.f32.xlu0 %v4953
        %v4955 = vpop.xlane.xlu0 %4954
        %v4956 = vsel %vm862, %v4952, 0.0
        %4957 = vadd.xlane.f32.xlu0 %v4956
        %v4958 = vpop.xlane.xlu0 %4957
        %v4959 = vrcp.pop %v4955
        %v4960 = vrcp.pop %v4958
        %v4961 = vmul.f32 %v4950, %v4959
        %v4962 = vmul.f32 %v4952, %v4960
        %4963 = vrot.lane.b32.xlu0 %v4793, 56
        %v4964 = vpop.permute.xlu0 %4963
        %4965 = vrot.lane.b32.xlu0 %v4796, 56
        %v4966 = vpop.permute.xlu0 %4965
        %v4969 = vsel %vm858, %v4961, 0
        %v4972 = vsel %vm858, %v4962, 0
        %v4974 = vsel %vm893, %v4966, 0
        %4976 = vmatpush.msra.mxu0 0.0
        %4977 = vmatpush.msra.mxu0 0.0
        %4978 = vmatpush.msra.mxu0 0.0
        %4979 = vmatpush.msra.mxu0 0.0
        %4980 = vmatpush.msra.mxu0 0.0
        %4981 = vmatpush.msra.mxu0 0.0
        %4982 = vmatpush.msra.mxu0 0.0
        %4983 = vmatpush.msra.mxu0 0.0
        %4984 = vmatpush.msra.mxu0 0.0
        %4985 = vmatpush.msra.mxu0 0.0
        %4986 = vmatpush.msra.mxu0 0.0
        %4987 = vmatpush.msra.mxu0 0.0
        %4988 = vmatpush.msra.mxu0 0.0
        %4989 = vmatpush.msra.mxu0 0.0
        %4990 = vmatpush.msra.mxu0 %v4974
        %4991 = vmatpush.msra.mxu0 %v4964
        %4992 = vmatmul.f32.gmra.mxu0 %v4969
        %v4993 = vpop.f32.mrf.mxu0
        %v4994 = vadd.f32 0.0, %v4993
        %4995 = vmatmul.f32.gmra.mxu0 %v4972
        %v4996 = vpop.f32.mrf.mxu0
        %v4997 = vadd.f32 0.0, %v4996
        %4998 = vdwg.mxu0
        %5001 = vrot.lane.b32.xlu0 %v4994, 8
        %v5002 = vpop.permute.xlu0 %5001
        %5003 = vrot.lane.b32.xlu0 %v4997, 8
        %v5004 = vpop.permute.xlu0 %5003
        %5007 = vst.msk [vmem:[#allocation3] sm:$0xff] %vm1029, %v5002
        %5008 = vst.msk [vmem:[#allocation3 + $0x8] sm:$0x1] %vm1031, %v5004
        %5009 = vrot.lane.b32.xlu0 %v4793, 112
        %v5010 = vpop.permute.xlu0 %5009
        %5011 = vrot.lane.b32.xlu0 %v4796, 112
        %v5012 = vpop.permute.xlu0 %5011
        %5013 = vrot.lane.b32.xlu0 %v4793, 80
        %v5014 = vpop.permute.xlu0 %5013
        %5015 = vrot.lane.b32.xlu0 %v4796, 80
        %v5016 = vpop.permute.xlu0 %5015
        %v5017 = vsel %vm824, %v5010, 0
        %v5019 = vsel %vm824, %v5012, 0
        %v5021 = vsel %vm824, %v5014, 0
        %v5023 = vsel %vm824, %v5016, 0
        %5025 = vmatpush.xpose.msra.mxu0 0.0
        %5026 = vmatpush.xpose.msra.mxu0 0.0
        %5027 = vmatpush.xpose.msra.mxu0 0.0
        %5028 = vmatpush.xpose.msra.mxu0 0.0
        %5029 = vmatpush.xpose.msra.mxu0 0.0
        %5030 = vmatpush.xpose.msra.mxu0 0.0
        %5031 = vmatpush.xpose.msra.mxu0 0.0
        %5032 = vmatpush.xpose.msra.mxu0 0.0
        %5033 = vmatpush.xpose.msra.mxu0 0.0
        %5034 = vmatpush.xpose.msra.mxu0 0.0
        %5035 = vmatpush.xpose.msra.mxu0 0.0
        %5036 = vmatpush.xpose.msra.mxu0 0.0
        %5037 = vmatpush.xpose.msra.mxu0 0.0
        %5038 = vmatpush.xpose.msra.mxu0 0.0
        %5039 = vmatpush.xpose.msra.mxu0 %v5023
        %5040 = vmatpush.xpose.msra.mxu0 %v5021
        %5041 = vmatmul.f32.gmra.mxu0 %v5017
        %v5042 = vpop.f32.mrf.mxu0
        %v5043 = vadd.f32 0.0, %v5042
        %5044 = vmatmul.f32.gmra.mxu0 %v5019
        %v5045 = vpop.f32.mrf.mxu0
        %v5046 = vadd.f32 0.0, %v5045
        %5047 = vdwg.mxu0
        %v5048 = vmul.f32 %v5043, 0.17677669
        %v5049 = vmul.f32 %v5046, 0.17677669
        %v5050 = vsel %vm858, %v5048, -inf
        %5051 = vmax.xlane.f32.xlu0 %v5050
        %v5052 = vpop.xlane.xlu0 %5051
        %v5053 = vsel %vm862, %v5049, -inf
        %5054 = vmax.xlane.f32.xlu0 %v5053
        %v5055 = vpop.xlane.xlu0 %5054
        %v5056 = vsub.f32 %v5048, %v5052
        %v5057 = vsub.f32 %v5049, %v5055
        %v5058 = vmul.f32 %v5056, 1.442695
        %v5059 = vpow.pop %v5058
        %v5060 = vmul.f32 %v5057, 1.442695
        %v5061 = vpow.pop %v5060
        %v5062 = vsel %vm858, %v5059, 0.0
        %5063 = vadd.xlane.f32.xlu0 %v5062
        %v5064 = vpop.xlane.xlu0 %5063
        %v5065 = vsel %vm862, %v5061, 0.0
        %5066 = vadd.xlane.f32.xlu0 %v5065
        %v5067 = vpop.xlane.xlu0 %5066
        %v5068 = vrcp.pop %v5064
        %v5069 = vrcp.pop %v5067
        %v5070 = vmul.f32 %v5059, %v5068
        %v5071 = vmul.f32 %v5061, %v5069
        %5072 = vrot.lane.b32.xlu0 %v4793, 48
        %v5073 = vpop.permute.xlu0 %5072
        %5074 = vrot.lane.b32.xlu0 %v4796, 48
        %v5075 = vpop.permute.xlu0 %5074
        %v5078 = vsel %vm858, %v5070, 0
        %v5081 = vsel %vm858, %v5071, 0
        %v5083 = vsel %vm893, %v5075, 0
        %5085 = vmatpush.msra.mxu0 0.0
        %5086 = vmatpush.msra.mxu0 0.0
        %5087 = vmatpush.msra.mxu0 0.0
        %5088 = vmatpush.msra.mxu0 0.0
        %5089 = vmatpush.msra.mxu0 0.0
        %5090 = vmatpush.msra.mxu0 0.0
        %5091 = vmatpush.msra.mxu0 0.0
        %5092 = vmatpush.msra.mxu0 0.0
        %5093 = vmatpush.msra.mxu0 0.0
        %5094 = vmatpush.msra.mxu0 0.0
        %5095 = vmatpush.msra.mxu0 0.0
        %5096 = vmatpush.msra.mxu0 0.0
        %5097 = vmatpush.msra.mxu0 0.0
        %5098 = vmatpush.msra.mxu0 0.0
        %5099 = vmatpush.msra.mxu0 %v5083
        %5100 = vmatpush.msra.mxu0 %v5073
        %5101 = vmatmul.f32.gmra.mxu0 %v5078
        %v5102 = vpop.f32.mrf.mxu0
        %v5103 = vadd.f32 0.0, %v5102
        %5104 = vmatmul.f32.gmra.mxu0 %v5081
        %v5105 = vpop.f32.mrf.mxu0
        %v5106 = vadd.f32 0.0, %v5105
        %5107 = vdwg.mxu0
        %5110 = vrot.lane.b32.xlu0 %v5103, 16
        %v5111 = vpop.permute.xlu0 %5110
        %5112 = vrot.lane.b32.xlu0 %v5106, 16
        %v5113 = vpop.permute.xlu0 %5112
        %5116 = vst.msk [vmem:[#allocation3] sm:$0xff] %vm1140, %v5111
        %5117 = vst.msk [vmem:[#allocation3 + $0x8] sm:$0x1] %vm1142, %v5113
        %5118 = vrot.lane.b32.xlu0 %v4793, 104
        %v5119 = vpop.permute.xlu0 %5118
        %5120 = vrot.lane.b32.xlu0 %v4796, 104
        %v5121 = vpop.permute.xlu0 %5120
        %5122 = vrot.lane.b32.xlu0 %v4793, 72
        %v5123 = vpop.permute.xlu0 %5122
        %5124 = vrot.lane.b32.xlu0 %v4796, 72
        %v5125 = vpop.permute.xlu0 %5124
        %v5126 = vsel %vm824, %v5119, 0
        %v5128 = vsel %vm824, %v5121, 0
        %v5130 = vsel %vm824, %v5123, 0
        %v5132 = vsel %vm824, %v5125, 0
        %5134 = vmatpush.xpose.msra.mxu0 0.0
        %5135 = vmatpush.xpose.msra.mxu0 0.0
        %5136 = vmatpush.xpose.msra.mxu0 0.0
        %5137 = vmatpush.xpose.msra.mxu0 0.0
        %5138 = vmatpush.xpose.msra.mxu0 0.0
        %5139 = vmatpush.xpose.msra.mxu0 0.0
        %5140 = vmatpush.xpose.msra.mxu0 0.0
        %5141 = vmatpush.xpose.msra.mxu0 0.0
        %5142 = vmatpush.xpose.msra.mxu0 0.0
        %5143 = vmatpush.xpose.msra.mxu0 0.0
        %5144 = vmatpush.xpose.msra.mxu0 0.0
        %5145 = vmatpush.xpose.msra.mxu0 0.0
        %5146 = vmatpush.xpose.msra.mxu0 0.0
        %5147 = vmatpush.xpose.msra.mxu0 0.0
        %5148 = vmatpush.xpose.msra.mxu0 %v5132
        %5149 = vmatpush.xpose.msra.mxu0 %v5130
        %5150 = vmatmul.f32.gmra.mxu0 %v5126
        %v5151 = vpop.f32.mrf.mxu0
        %v5152 = vadd.f32 0.0, %v5151
        %5153 = vmatmul.f32.gmra.mxu0 %v5128
        %v5154 = vpop.f32.mrf.mxu0
        %v5155 = vadd.f32 0.0, %v5154
        %5156 = vdwg.mxu0
        %v5157 = vmul.f32 %v5152, 0.17677669
        %v5158 = vmul.f32 %v5155, 0.17677669
        %v5159 = vsel %vm858, %v5157, -inf
        %5160 = vmax.xlane.f32.xlu0 %v5159
        %v5161 = vpop.xlane.xlu0 %5160
        %v5162 = vsel %vm862, %v5158, -inf
        %5163 = vmax.xlane.f32.xlu0 %v5162
        %v5164 = vpop.xlane.xlu0 %5163
        %v5165 = vsub.f32 %v5157, %v5161
        %v5166 = vsub.f32 %v5158, %v5164
        %v5167 = vmul.f32 %v5165, 1.442695
        %v5168 = vpow.pop %v5167
        %v5169 = vmul.f32 %v5166, 1.442695
        %v5170 = vpow.pop %v5169
        %v5171 = vsel %vm858, %v5168, 0.0
        %5172 = vadd.xlane.f32.xlu0 %v5171
        %v5173 = vpop.xlane.xlu0 %5172
        %v5174 = vsel %vm862, %v5170, 0.0
        %5175 = vadd.xlane.f32.xlu0 %v5174
        %v5176 = vpop.xlane.xlu0 %5175
        %v5177 = vrcp.pop %v5173
        %v5178 = vrcp.pop %v5176
        %v5179 = vmul.f32 %v5168, %v5177
        %v5180 = vmul.f32 %v5170, %v5178
        %5181 = vrot.lane.b32.xlu0 %v4793, 40
        %v5182 = vpop.permute.xlu0 %5181
        %5183 = vrot.lane.b32.xlu0 %v4796, 40
        %v5184 = vpop.permute.xlu0 %5183
        %v5187 = vsel %vm858, %v5179, 0
        %v5190 = vsel %vm858, %v5180, 0
        %v5192 = vsel %vm893, %v5184, 0
        %5194 = vmatpush.msra.mxu0 0.0
        %5195 = vmatpush.msra.mxu0 0.0
        %5196 = vmatpush.msra.mxu0 0.0
        %5197 = vmatpush.msra.mxu0 0.0
        %5198 = vmatpush.msra.mxu0 0.0
        %5199 = vmatpush.msra.mxu0 0.0
        %5200 = vmatpush.msra.mxu0 0.0
        %5201 = vmatpush.msra.mxu0 0.0
        %5202 = vmatpush.msra.mxu0 0.0
        %5203 = vmatpush.msra.mxu0 0.0
        %5204 = vmatpush.msra.mxu0 0.0
        %5205 = vmatpush.msra.mxu0 0.0
        %5206 = vmatpush.msra.mxu0 0.0
        %5207 = vmatpush.msra.mxu0 0.0
        %5208 = vmatpush.msra.mxu0 %v5192
        %5209 = vmatpush.msra.mxu0 %v5182
        %5210 = vmatmul.f32.gmra.mxu0 %v5187
        %v5211 = vpop.f32.mrf.mxu0
        %v5212 = vadd.f32 0.0, %v5211
        %5213 = vmatmul.f32.gmra.mxu0 %v5190
        %v5214 = vpop.f32.mrf.mxu0
        %v5215 = vadd.f32 0.0, %v5214
        %5216 = vdwg.mxu0
        %5219 = vrot.lane.b32.xlu0 %v5212, 24
        %v5220 = vpop.permute.xlu0 %5219
        %5221 = vrot.lane.b32.xlu0 %v5215, 24
        %v5222 = vpop.permute.xlu0 %5221
        %5225 = vst.msk [vmem:[#allocation3] sm:$0xff] %vm1251, %v5220
        %5226 = vst.msk [vmem:[#allocation3 + $0x8] sm:$0x1] %vm1253, %v5222
        %v5228 = vrot.slane %v4796, 1
        %v5229 = vrot.slane %v4799, 1
        %v5230 = vsel %vm1256, %v5228, %v5229
        %5231 = vrot.lane.b32.xlu0 %v5230, 96
        %v5232 = vpop.permute.xlu0 %5231
        %5233 = vrot.lane.b32.xlu0 %v5229, 96
        %v5234 = vpop.permute.xlu0 %5233
        %v5235 = vsel %vm824, %v5230, 0
        %v5237 = vsel %vm824, %v5229, 0
        %v5239 = vsel %vm824, %v5232, 0
        %v5241 = vsel %vm824, %v5234, 0
        %5243 = vmatpush.xpose.msra.mxu0 0.0
        %5244 = vmatpush.xpose.msra.mxu0 0.0
        %5245 = vmatpush.xpose.msra.mxu0 0.0
        %5246 = vmatpush.xpose.msra.mxu0 0.0
        %5247 = vmatpush.xpose.msra.mxu0 0.0
        %5248 = vmatpush.xpose.msra.mxu0 0.0
        %5249 = vmatpush.xpose.msra.mxu0 0.0
        %5250 = vmatpush.xpose.msra.mxu0 0.0
        %5251 = vmatpush.xpose.msra.mxu0 0.0
        %5252 = vmatpush.xpose.msra.mxu0 0.0
        %5253 = vmatpush.xpose.msra.mxu0 0.0
        %5254 = vmatpush.xpose.msra.mxu0 0.0
        %5255 = vmatpush.xpose.msra.mxu0 0.0
        %5256 = vmatpush.xpose.msra.mxu0 0.0
        %5257 = vmatpush.xpose.msra.mxu0 %v5241
        %5258 = vmatpush.xpose.msra.mxu0 %v5239
        %5259 = vmatmul.f32.gmra.mxu0 %v5235
        %v5260 = vpop.f32.mrf.mxu0
        %v5261 = vadd.f32 0.0, %v5260
        %5262 = vmatmul.f32.gmra.mxu0 %v5237
        %v5263 = vpop.f32.mrf.mxu0
        %v5264 = vadd.f32 0.0, %v5263
        %5265 = vdwg.mxu0
        %v5266 = vmul.f32 %v5261, 0.17677669
        %v5267 = vmul.f32 %v5264, 0.17677669
        %v5268 = vsel %vm858, %v5266, -inf
        %5269 = vmax.xlane.f32.xlu0 %v5268
        %v5270 = vpop.xlane.xlu0 %5269
        %v5271 = vsel %vm862, %v5267, -inf
        %5272 = vmax.xlane.f32.xlu0 %v5271
        %v5273 = vpop.xlane.xlu0 %5272
        %v5274 = vsub.f32 %v5266, %v5270
        %v5275 = vsub.f32 %v5267, %v5273
        %v5276 = vmul.f32 %v5274, 1.442695
        %v5277 = vpow.pop %v5276
        %v5278 = vmul.f32 %v5275, 1.442695
        %v5279 = vpow.pop %v5278
        %v5280 = vsel %vm858, %v5277, 0.0
        %5281 = vadd.xlane.f32.xlu0 %v5280
        %v5282 = vpop.xlane.xlu0 %5281
        %v5283 = vsel %vm862, %v5279, 0.0
        %5284 = vadd.xlane.f32.xlu0 %v5283
        %v5285 = vpop.xlane.xlu0 %5284
        %v5286 = vrcp.pop %v5282
        %v5287 = vrcp.pop %v5285
        %v5288 = vmul.f32 %v5277, %v5286
        %v5289 = vmul.f32 %v5279, %v5287
        %5290 = vrot.lane.b32.xlu0 %v5230, 64
        %v5291 = vpop.permute.xlu0 %5290
        %5292 = vrot.lane.b32.xlu0 %v5229, 64
        %v5293 = vpop.permute.xlu0 %5292
        %v5296 = vsel %vm858, %v5288, 0
        %v5299 = vsel %vm858, %v5289, 0
        %v5301 = vsel %vm893, %v5293, 0
        %5303 = vmatpush.msra.mxu0 0.0
        %5304 = vmatpush.msra.mxu0 0.0
        %5305 = vmatpush.msra.mxu0 0.0
        %5306 = vmatpush.msra.mxu0 0.0
        %5307 = vmatpush.msra.mxu0 0.0
        %5308 = vmatpush.msra.mxu0 0.0
        %5309 = vmatpush.msra.mxu0 0.0
        %5310 = vmatpush.msra.mxu0 0.0
        %5311 = vmatpush.msra.mxu0 0.0
        %5312 = vmatpush.msra.mxu0 0.0
        %5313 = vmatpush.msra.mxu0 0.0
        %5314 = vmatpush.msra.mxu0 0.0
        %5315 = vmatpush.msra.mxu0 0.0
        %5316 = vmatpush.msra.mxu0 0.0
        %5317 = vmatpush.msra.mxu0 %v5301
        %5318 = vmatpush.msra.mxu0 %v5291
        %5319 = vmatmul.f32.gmra.mxu0 %v5296
        %v5320 = vpop.f32.mrf.mxu0
        %v5321 = vadd.f32 0.0, %v5320
        %5322 = vmatmul.f32.gmra.mxu0 %v5299
        %v5323 = vpop.f32.mrf.mxu0
        %v5324 = vadd.f32 0.0, %v5323
        %5325 = vdwg.mxu0
        %5326 = vst.msk [vmem:[#allocation3 + $0x9] sm:$0xff] %vm824, %v5321
        %5327 = vst.msk [vmem:[#allocation3 + $0x11] sm:$0x1] %vm920, %v5324
        %5328 = vrot.lane.b32.xlu0 %v5230, 120
        %v5329 = vpop.permute.xlu0 %5328
        %5330 = vrot.lane.b32.xlu0 %v5229, 120
        %v5331 = vpop.permute.xlu0 %5330
        %5332 = vrot.lane.b32.xlu0 %v5230, 88
        %v5333 = vpop.permute.xlu0 %5332
        %5334 = vrot.lane.b32.xlu0 %v5229, 88
        %v5335 = vpop.permute.xlu0 %5334
        %v5336 = vsel %vm824, %v5329, 0
        %v5338 = vsel %vm824, %v5331, 0
        %v5340 = vsel %vm824, %v5333, 0
        %v5342 = vsel %vm824, %v5335, 0
        %5344 = vmatpush.xpose.msra.mxu0 0.0
        %5345 = vmatpush.xpose.msra.mxu0 0.0
        %5346 = vmatpush.xpose.msra.mxu0 0.0
        %5347 = vmatpush.xpose.msra.mxu0 0.0
        %5348 = vmatpush.xpose.msra.mxu0 0.0
        %5349 = vmatpush.xpose.msra.mxu0 0.0
        %5350 = vmatpush.xpose.msra.mxu0 0.0
        %5351 = vmatpush.xpose.msra.mxu0 0.0
        %5352 = vmatpush.xpose.msra.mxu0 0.0
        %5353 = vmatpush.xpose.msra.mxu0 0.0
        %5354 = vmatpush.xpose.msra.mxu0 0.0
        %5355 = vmatpush.xpose.msra.mxu0 0.0
        %5356 = vmatpush.xpose.msra.mxu0 0.0
        %5357 = vmatpush.xpose.msra.mxu0 0.0
        %5358 = vmatpush.xpose.msra.mxu0 %v5342
        %5359 = vmatpush.xpose.msra.mxu0 %v5340
        %5360 = vmatmul.f32.gmra.mxu0 %v5336
        %v5361 = vpop.f32.mrf.mxu0
        %v5362 = vadd.f32 0.0, %v5361
        %5363 = vmatmul.f32.gmra.mxu0 %v5338
        %v5364 = vpop.f32.mrf.mxu0
        %v5365 = vadd.f32 0.0, %v5364
        %5366 = vdwg.mxu0
        %v5367 = vmul.f32 %v5362, 0.17677669
        %v5368 = vmul.f32 %v5365, 0.17677669
        %v5369 = vsel %vm858, %v5367, -inf
        %5370 = vmax.xlane.f32.xlu0 %v5369
        %v5371 = vpop.xlane.xlu0 %5370
        %v5372 = vsel %vm862, %v5368, -inf
        %5373 = vmax.xlane.f32.xlu0 %v5372
        %v5374 = vpop.xlane.xlu0 %5373
        %v5375 = vsub.f32 %v5367, %v5371
        %v5376 = vsub.f32 %v5368, %v5374
        %v5377 = vmul.f32 %v5375, 1.442695
        %v5378 = vpow.pop %v5377
        %v5379 = vmul.f32 %v5376, 1.442695
        %v5380 = vpow.pop %v5379
        %v5381 = vsel %vm858, %v5378, 0.0
        %5382 = vadd.xlane.f32.xlu0 %v5381
        %v5383 = vpop.xlane.xlu0 %5382
        %v5384 = vsel %vm862, %v5380, 0.0
        %5385 = vadd.xlane.f32.xlu0 %v5384
        %v5386 = vpop.xlane.xlu0 %5385
        %v5387 = vrcp.pop %v5383
        %v5388 = vrcp.pop %v5386
        %v5389 = vmul.f32 %v5378, %v5387
        %v5390 = vmul.f32 %v5380, %v5388
        %5391 = vrot.lane.b32.xlu0 %v5230, 56
        %v5392 = vpop.permute.xlu0 %5391
        %5393 = vrot.lane.b32.xlu0 %v5229, 56
        %v5394 = vpop.permute.xlu0 %5393
        %v5397 = vsel %vm858, %v5389, 0
        %v5400 = vsel %vm858, %v5390, 0
        %v5402 = vsel %vm893, %v5394, 0
        %5404 = vmatpush.msra.mxu0 0.0
        %5405 = vmatpush.msra.mxu0 0.0
        %5406 = vmatpush.msra.mxu0 0.0
        %5407 = vmatpush.msra.mxu0 0.0
        %5408 = vmatpush.msra.mxu0 0.0
        %5409 = vmatpush.msra.mxu0 0.0
        %5410 = vmatpush.msra.mxu0 0.0
        %5411 = vmatpush.msra.mxu0 0.0
        %5412 = vmatpush.msra.mxu0 0.0
        %5413 = vmatpush.msra.mxu0 0.0
        %5414 = vmatpush.msra.mxu0 0.0
        %5415 = vmatpush.msra.mxu0 0.0
        %5416 = vmatpush.msra.mxu0 0.0
        %5417 = vmatpush.msra.mxu0 0.0
        %5418 = vmatpush.msra.mxu0 %v5402
        %5419 = vmatpush.msra.mxu0 %v5392
        %5420 = vmatmul.f32.gmra.mxu0 %v5397
        %v5421 = vpop.f32.mrf.mxu0
        %v5422 = vadd.f32 0.0, %v5421
        %5423 = vmatmul.f32.gmra.mxu0 %v5400
        %v5424 = vpop.f32.mrf.mxu0
        %v5425 = vadd.f32 0.0, %v5424
        %5426 = vdwg.mxu0
        %5429 = vrot.lane.b32.xlu0 %v5422, 8
        %v5430 = vpop.permute.xlu0 %5429
        %5431 = vrot.lane.b32.xlu0 %v5425, 8
        %v5432 = vpop.permute.xlu0 %5431
        %5435 = vst.msk [vmem:[#allocation3 + $0x9] sm:$0xff] %vm1029, %v5430
        %5436 = vst.msk [vmem:[#allocation3 + $0x11] sm:$0x1] %vm1031, %v5432
        %5437 = vrot.lane.b32.xlu0 %v5230, 112
        %v5438 = vpop.permute.xlu0 %5437
        %5439 = vrot.lane.b32.xlu0 %v5229, 112
        %v5440 = vpop.permute.xlu0 %5439
        %5441 = vrot.lane.b32.xlu0 %v5230, 80
        %v5442 = vpop.permute.xlu0 %5441
        %5443 = vrot.lane.b32.xlu0 %v5229, 80
        %v5444 = vpop.permute.xlu0 %5443
        %v5445 = vsel %vm824, %v5438, 0
        %v5447 = vsel %vm824, %v5440, 0
        %v5449 = vsel %vm824, %v5442, 0
        %v5451 = vsel %vm824, %v5444, 0
        %5453 = vmatpush.xpose.msra.mxu0 0.0
        %5454 = vmatpush.xpose.msra.mxu0 0.0
        %5455 = vmatpush.xpose.msra.mxu0 0.0
        %5456 = vmatpush.xpose.msra.mxu0 0.0
        %5457 = vmatpush.xpose.msra.mxu0 0.0
        %5458 = vmatpush.xpose.msra.mxu0 0.0
        %5459 = vmatpush.xpose.msra.mxu0 0.0
        %5460 = vmatpush.xpose.msra.mxu0 0.0
        %5461 = vmatpush.xpose.msra.mxu0 0.0
        %5462 = vmatpush.xpose.msra.mxu0 0.0
        %5463 = vmatpush.xpose.msra.mxu0 0.0
        %5464 = vmatpush.xpose.msra.mxu0 0.0
        %5465 = vmatpush.xpose.msra.mxu0 0.0
        %5466 = vmatpush.xpose.msra.mxu0 0.0
        %5467 = vmatpush.xpose.msra.mxu0 %v5451
        %5468 = vmatpush.xpose.msra.mxu0 %v5449
        %5469 = vmatmul.f32.gmra.mxu0 %v5445
        %v5470 = vpop.f32.mrf.mxu0
        %v5471 = vadd.f32 0.0, %v5470
        %5472 = vmatmul.f32.gmra.mxu0 %v5447
        %v5473 = vpop.f32.mrf.mxu0
        %v5474 = vadd.f32 0.0, %v5473
        %5475 = vdwg.mxu0
        %v5476 = vmul.f32 %v5471, 0.17677669
        %v5477 = vmul.f32 %v5474, 0.17677669
        %v5478 = vsel %vm858, %v5476, -inf
        %5479 = vmax.xlane.f32.xlu0 %v5478
        %v5480 = vpop.xlane.xlu0 %5479
        %v5481 = vsel %vm862, %v5477, -inf
        %5482 = vmax.xlane.f32.xlu0 %v5481
        %v5483 = vpop.xlane.xlu0 %5482
        %v5484 = vsub.f32 %v5476, %v5480
        %v5485 = vsub.f32 %v5477, %v5483
        %v5486 = vmul.f32 %v5484, 1.442695
        %v5487 = vpow.pop %v5486
        %v5488 = vmul.f32 %v5485, 1.442695
        %v5489 = vpow.pop %v5488
        %v5490 = vsel %vm858, %v5487, 0.0
        %5491 = vadd.xlane.f32.xlu0 %v5490
        %v5492 = vpop.xlane.xlu0 %5491
        %v5493 = vsel %vm862, %v5489, 0.0
        %5494 = vadd.xlane.f32.xlu0 %v5493
        %v5495 = vpop.xlane.xlu0 %5494
        %v5496 = vrcp.pop %v5492
        %v5497 = vrcp.pop %v5495
        %v5498 = vmul.f32 %v5487, %v5496
        %v5499 = vmul.f32 %v5489, %v5497
        %5500 = vrot.lane.b32.xlu0 %v5230, 48
        %v5501 = vpop.permute.xlu0 %5500
        %5502 = vrot.lane.b32.xlu0 %v5229, 48
        %v5503 = vpop.permute.xlu0 %5502
        %v5506 = vsel %vm858, %v5498, 0
        %v5509 = vsel %vm858, %v5499, 0
        %v5511 = vsel %vm893, %v5503, 0
        %5513 = vmatpush.msra.mxu0 0.0
        %5514 = vmatpush.msra.mxu0 0.0
        %5515 = vmatpush.msra.mxu0 0.0
        %5516 = vmatpush.msra.mxu0 0.0
        %5517 = vmatpush.msra.mxu0 0.0
        %5518 = vmatpush.msra.mxu0 0.0
        %5519 = vmatpush.msra.mxu0 0.0
        %5520 = vmatpush.msra.mxu0 0.0
        %5521 = vmatpush.msra.mxu0 0.0
        %5522 = vmatpush.msra.mxu0 0.0
        %5523 = vmatpush.msra.mxu0 0.0
        %5524 = vmatpush.msra.mxu0 0.0
        %5525 = vmatpush.msra.mxu0 0.0
        %5526 = vmatpush.msra.mxu0 0.0
        %5527 = vmatpush.msra.mxu0 %v5511
        %5528 = vmatpush.msra.mxu0 %v5501
        %5529 = vmatmul.f32.gmra.mxu0 %v5506
        %v5530 = vpop.f32.mrf.mxu0
        %v5531 = vadd.f32 0.0, %v5530
        %5532 = vmatmul.f32.gmra.mxu0 %v5509
        %v5533 = vpop.f32.mrf.mxu0
        %v5534 = vadd.f32 0.0, %v5533
        %5535 = vdwg.mxu0
        %5538 = vrot.lane.b32.xlu0 %v5531, 16
        %v5539 = vpop.permute.xlu0 %5538
        %5540 = vrot.lane.b32.xlu0 %v5534, 16
        %v5541 = vpop.permute.xlu0 %5540
        %5544 = vst.msk [vmem:[#allocation3 + $0x9] sm:$0xff] %vm1140, %v5539
        %5545 = vst.msk [vmem:[#allocation3 + $0x11] sm:$0x1] %vm1142, %v5541
        %5546 = vrot.lane.b32.xlu0 %v5230, 104
        %v5547 = vpop.permute.xlu0 %5546
        %5548 = vrot.lane.b32.xlu0 %v5229, 104
        %v5549 = vpop.permute.xlu0 %5548
        %5550 = vrot.lane.b32.xlu0 %v5230, 72
        %v5551 = vpop.permute.xlu0 %5550
        %5552 = vrot.lane.b32.xlu0 %v5229, 72
        %v5553 = vpop.permute.xlu0 %5552
        %v5554 = vsel %vm824, %v5547, 0
        %v5556 = vsel %vm824, %v5549, 0
        %v5558 = vsel %vm824, %v5551, 0
        %v5560 = vsel %vm824, %v5553, 0
        %5562 = vmatpush.xpose.msra.mxu0 0.0
        %5563 = vmatpush.xpose.msra.mxu0 0.0
        %5564 = vmatpush.xpose.msra.mxu0 0.0
        %5565 = vmatpush.xpose.msra.mxu0 0.0
        %5566 = vmatpush.xpose.msra.mxu0 0.0
        %5567 = vmatpush.xpose.msra.mxu0 0.0
        %5568 = vmatpush.xpose.msra.mxu0 0.0
        %5569 = vmatpush.xpose.msra.mxu0 0.0
        %5570 = vmatpush.xpose.msra.mxu0 0.0
        %5571 = vmatpush.xpose.msra.mxu0 0.0
        %5572 = vmatpush.xpose.msra.mxu0 0.0
        %5573 = vmatpush.xpose.msra.mxu0 0.0
        %5574 = vmatpush.xpose.msra.mxu0 0.0
        %5575 = vmatpush.xpose.msra.mxu0 0.0
        %5576 = vmatpush.xpose.msra.mxu0 %v5560
        %5577 = vmatpush.xpose.msra.mxu0 %v5558
        %5578 = vmatmul.f32.gmra.mxu0 %v5554
        %v5579 = vpop.f32.mrf.mxu0
        %v5580 = vadd.f32 0.0, %v5579
        %5581 = vmatmul.f32.gmra.mxu0 %v5556
        %v5582 = vpop.f32.mrf.mxu0
        %v5583 = vadd.f32 0.0, %v5582
        %5584 = vdwg.mxu0
        %v5585 = vmul.f32 %v5580, 0.17677669
        %v5586 = vmul.f32 %v5583, 0.17677669
        %v5587 = vsel %vm858, %v5585, -inf
        %5588 = vmax.xlane.f32.xlu0 %v5587
        %v5589 = vpop.xlane.xlu0 %5588
        %v5590 = vsel %vm862, %v5586, -inf
        %5591 = vmax.xlane.f32.xlu0 %v5590
        %v5592 = vpop.xlane.xlu0 %5591
        %v5593 = vsub.f32 %v5585, %v5589
        %v5594 = vsub.f32 %v5586, %v5592
        %v5595 = vmul.f32 %v5593, 1.442695
        %v5596 = vpow.pop %v5595
        %v5597 = vmul.f32 %v5594, 1.442695
        %v5598 = vpow.pop %v5597
        %v5599 = vsel %vm858, %v5596, 0.0
        %5600 = vadd.xlane.f32.xlu0 %v5599
        %v5601 = vpop.xlane.xlu0 %5600
        %v5602 = vsel %vm862, %v5598, 0.0
        %5603 = vadd.xlane.f32.xlu0 %v5602
        %v5604 = vpop.xlane.xlu0 %5603
        %v5605 = vrcp.pop %v5601
        %v5606 = vrcp.pop %v5604
        %v5607 = vmul.f32 %v5596, %v5605
        %v5608 = vmul.f32 %v5598, %v5606
        %5609 = vrot.lane.b32.xlu0 %v5230, 40
        %v5610 = vpop.permute.xlu0 %5609
        %5611 = vrot.lane.b32.xlu0 %v5229, 40
        %v5612 = vpop.permute.xlu0 %5611
        %v5615 = vsel %vm858, %v5607, 0
        %v5618 = vsel %vm858, %v5608, 0
        %v5620 = vsel %vm893, %v5612, 0
        %5622 = vmatpush.msra.mxu0 0.0
        %5623 = vmatpush.msra.mxu0 0.0
        %5624 = vmatpush.msra.mxu0 0.0
        %5625 = vmatpush.msra.mxu0 0.0
        %5626 = vmatpush.msra.mxu0 0.0
        %5627 = vmatpush.msra.mxu0 0.0
        %5628 = vmatpush.msra.mxu0 0.0
        %5629 = vmatpush.msra.mxu0 0.0
        %5630 = vmatpush.msra.mxu0 0.0
        %5631 = vmatpush.msra.mxu0 0.0
        %5632 = vmatpush.msra.mxu0 0.0
        %5633 = vmatpush.msra.mxu0 0.0
        %5634 = vmatpush.msra.mxu0 0.0
        %5635 = vmatpush.msra.mxu0 0.0
        %5636 = vmatpush.msra.mxu0 %v5620
        %5637 = vmatpush.msra.mxu0 %v5610
        %5638 = vmatmul.f32.gmra.mxu0 %v5615
        %v5639 = vpop.f32.mrf.mxu0
        %v5640 = vadd.f32 0.0, %v5639
        %5641 = vmatmul.f32.gmra.mxu0 %v5618
        %v5642 = vpop.f32.mrf.mxu0
        %v5643 = vadd.f32 0.0, %v5642
        %5644 = vdwg.mxu0
        %5647 = vrot.lane.b32.xlu0 %v5640, 24
        %v5648 = vpop.permute.xlu0 %5647
        %5649 = vrot.lane.b32.xlu0 %v5643, 24
        %v5650 = vpop.permute.xlu0 %5649
        %5653 = vst.msk [vmem:[#allocation3 + $0x9] sm:$0xff] %vm1251, %v5648
        %5654 = vst.msk [vmem:[#allocation3 + $0x11] sm:$0x1] %vm1253, %v5650
        %v5655 = vld [vmem:[#allocation3] sm:$0xff]
        %v5656 = vld [vmem:[#allocation3 + $0x8] sm:$0xff]
        %v5657 = vld [vmem:[#allocation3 + $0x10] sm:$0x3]
        %s5658 = scalar_lea.vmem %s7, 96
        %v5659 = vld [vmem:[%s5658] sm:$0xff]
        %v5660 = vld [vmem:[%s5658 + $0x8] sm:$0xff]
        %v5661 = vld [vmem:[%s5658 + $0x10] sm:$0xff]
        %v5662 = vld [vmem:[%s5658 + $0x18] sm:$0xff]
        %s5663 = scalar_lea.vmem [#allocation13], 3
        %v5664 = vld [vmem:[%s5663] sm:$0x1]
        %v5666 = vperm.slane %v5664, 0
        %v5669 = vsel %vm684, %v5655, 0
        %v5672 = vsel %vm684, %v5656, 0
        %v5675 = vsel %vm684, %v5657, 0
        %5677 = vmatpush.msra.mxu0 0.0
        %5678 = vmatpush.msra.mxu0 0.0
        %5679 = vmatpush.msra.mxu0 0.0
        %5680 = vmatpush.msra.mxu0 0.0
        %5681 = vmatpush.msra.mxu0 0.0
        %5682 = vmatpush.msra.mxu0 0.0
        %5683 = vmatpush.msra.mxu0 0.0
        %5684 = vmatpush.msra.mxu0 0.0
        %5685 = vmatpush.msra.mxu0 0.0
        %5686 = vmatpush.msra.mxu0 0.0
        %5687 = vmatpush.msra.mxu0 0.0
        %5688 = vmatpush.msra.mxu0 0.0
        %5689 = vmatpush.msra.mxu0 %v5662
        %5690 = vmatpush.msra.mxu0 %v5661
        %5691 = vmatpush.msra.mxu0 %v5660
        %5692 = vmatpush.msra.mxu0 %v5659
        %5693 = vmatmul.f32.gmra.mxu0 %v5669
        %v5694 = vpop.f32.mrf.mxu0
        %v5695 = vadd.f32 %v5666, %v5694
        %5696 = vmatmul.f32.gmra.mxu0 %v5672
        %v5697 = vpop.f32.mrf.mxu0
        %v5698 = vadd.f32 %v5666, %v5697
        %5699 = vmatmul.f32.gmra.mxu0 %v5675
        %v5700 = vpop.f32.mrf.mxu0
        %v5701 = vadd.f32 %v5666, %v5700
        %5702 = vdwg.mxu0
        %v5703 = vadd.f32 %v4676, %v5695
        %v5704 = vadd.f32 %v4677, %v5698
        %v5705 = vadd.f32 %v4678, %v5701
        %s5706 = scalar_lea.vmem [#allocation15], 3
        %v5707 = vld [vmem:[%s5706] sm:$0x1]
        %s5708 = scalar_lea.vmem %s10, 3
        %v5709 = vld [vmem:[%s5708] sm:$0x1]
        %v5710 = vsel %vm684, %v5703, 0.0
        %5711 = vadd.xlane.f32.xlu0 %v5710
        %v5712 = vpop.xlane.xlu0 %5711
        %v5713 = vsel %vm684, %v5704, 0.0
        %5714 = vadd.xlane.f32.xlu0 %v5713
        %v5715 = vpop.xlane.xlu0 %5714
        %v5716 = vsel %vm699, %v5705, 0.0
        %5717 = vadd.xlane.f32.xlu0 %v5716
        %v5718 = vpop.xlane.xlu0 %5717
        %v5719 = vmul.f32 %v5712, %v709
        %v5720 = vmul.f32 %v5715, %v709
        %v5721 = vmul.f32 %v5718, %v709
        %v5722 = vsub.f32 %v5703, %v5719
        %v5723 = vsub.f32 %v5704, %v5720
        %v5724 = vsub.f32 %v5705, %v5721
        %v5725 = vmul.f32 %v5722, %v5722
        %v5726 = vmul.f32 %v5723, %v5723
        %v5727 = vmul.f32 %v5724, %v5724
        %v5728 = vsel %vm684, %v5725, 0.0
        %5729 = vadd.xlane.f32.xlu0 %v5728
        %v5730 = vpop.xlane.xlu0 %5729
        %v5731 = vsel %vm684, %v5726, 0.0
        %5732 = vadd.xlane.f32.xlu0 %v5731
        %v5733 = vpop.xlane.xlu0 %5732
        %v5734 = vsel %vm699, %v5727, 0.0
        %5735 = vadd.xlane.f32.xlu0 %v5734
        %v5736 = vpop.xlane.xlu0 %5735
        %v5737 = vmul.f32 %v5730, %v709
        %v5738 = vmul.f32 %v5733, %v709
        %v5739 = vmul.f32 %v5736, %v709
        %v5740 = vadd.f32 %v5737, 1e-05
        %v5741 = vadd.f32 %v5738, 1e-05
        %v5742 = vadd.f32 %v5739, 1e-05
        %v5743 = vrsqrt.pop %v5740
        %v5744 = vmul.f32 %v5743, %v5740
        %v5745 = vmul.f32 %v5744, %v5743
        %v5746 = vmul.f32 0.5, %v5745
        %v5747 = vsub.f32 1.5, %v5746
        %v5748 = vmul.f32 %v5743, %v5747
        %vm5749 = vweird.f32 %v5740
        %vm5750 = vweird.f32 %v5743
        %vm5751 = vmor %vm5749, %vm5750
        %v5752 = vsel %vm5751, %v5743, %v5748
        %v5753 = vrsqrt.pop %v5741
        %v5754 = vmul.f32 %v5753, %v5741
        %v5755 = vmul.f32 %v5754, %v5753
        %v5756 = vmul.f32 0.5, %v5755
        %v5757 = vsub.f32 1.5, %v5756
        %v5758 = vmul.f32 %v5753, %v5757
        %vm5759 = vweird.f32 %v5741
        %vm5760 = vweird.f32 %v5753
        %vm5761 = vmor %vm5759, %vm5760
        %v5762 = vsel %vm5761, %v5753, %v5758
        %v5763 = vrsqrt.pop %v5742
        %v5764 = vmul.f32 %v5763, %v5742
        %v5765 = vmul.f32 %v5764, %v5763
        %v5766 = vmul.f32 0.5, %v5765
        %v5767 = vsub.f32 1.5, %v5766
        %v5768 = vmul.f32 %v5763, %v5767
        %vm5769 = vweird.f32 %v5742
        %vm5770 = vweird.f32 %v5763
        %vm5771 = vmor %vm5769, %vm5770
        %v5772 = vsel %vm5771, %v5763, %v5768
        %v5773 = vmul.f32 %v5722, %v5752
        %v5774 = vmul.f32 %v5723, %v5762
        %v5775 = vmul.f32 %v5724, %v5772
        %v5777 = vperm.slane %v5707, 0
        %v5779 = vmul.f32 %v5773, %v5777
        %v5780 = vmul.f32 %v5774, %v5777
        %v5781 = vmul.f32 %v5775, %v5777
        %v5783 = vperm.slane %v5709, 0
        %v5785 = vadd.f32 %v5779, %v5783
        %v5786 = vadd.f32 %v5780, %v5783
        %v5787 = vadd.f32 %v5781, %v5783
        %s5788 = scalar_lea.vmem %s11, 96
        %v5789 = vld [vmem:[%s5788] sm:$0xff]
        %v5790 = vld [vmem:[%s5788 + $0x8] sm:$0xff]
        %v5791 = vld [vmem:[%s5788 + $0x10] sm:$0xff]
        %v5792 = vld [vmem:[%s5788 + $0x18] sm:$0xff]
        %s5793 = scalar_lea.vmem [#allocation16], 3
        %v5794 = vld [vmem:[%s5793] sm:$0x1]
        %v5796 = vperm.slane %v5794, 0
        %v5799 = vsel %vm684, %v5785, 0
        %v5802 = vsel %vm684, %v5786, 0
        %v5805 = vsel %vm684, %v5787, 0
        %5807 = vmatpush.msra.mxu0 0.0
        %5808 = vmatpush.msra.mxu0 0.0
        %5809 = vmatpush.msra.mxu0 0.0
        %5810 = vmatpush.msra.mxu0 0.0
        %5811 = vmatpush.msra.mxu0 0.0
        %5812 = vmatpush.msra.mxu0 0.0
        %5813 = vmatpush.msra.mxu0 0.0
        %5814 = vmatpush.msra.mxu0 0.0
        %5815 = vmatpush.msra.mxu0 0.0
        %5816 = vmatpush.msra.mxu0 0.0
        %5817 = vmatpush.msra.mxu0 0.0
        %5818 = vmatpush.msra.mxu0 0.0
        %5819 = vmatpush.msra.mxu0 %v5792
        %5820 = vmatpush.msra.mxu0 %v5791
        %5821 = vmatpush.msra.mxu0 %v5790
        %5822 = vmatpush.msra.mxu0 %v5789
        %5823 = vmatmul.f32.gmra.mxu0 %v5799
        %v5824 = vpop.f32.mrf.mxu0
        %v5825 = vadd.f32 %v5796, %v5824
        %5826 = vmatmul.f32.gmra.mxu0 %v5802
        %v5827 = vpop.f32.mrf.mxu0
        %v5828 = vadd.f32 %v5796, %v5827
        %5829 = vmatmul.f32.gmra.mxu0 %v5805
        %v5830 = vpop.f32.mrf.mxu0
        %v5831 = vadd.f32 %v5796, %v5830
        %5832 = vdwg.mxu0
        %v5833 = vmul.f32 %v5825, 0.70710677
        %v5834 = vmul.f32 %v5828, 0.70710677
        %v5835 = vmul.f32 %v5831, 0.70710677
        %v5836 = vand.u32 2147483647, %v5833
        %v5837 = vand.u32 2147483647, %v5834
        %v5838 = vand.u32 2147483647, %v5835
        %v5839 = vmul.f32 %v5836, 0.3275911
        %v5840 = vmul.f32 %v5837, 0.3275911
        %v5841 = vmul.f32 %v5838, 0.3275911
        %v5842 = vadd.f32 %v5839, 1.0
        %v5843 = vadd.f32 %v5840, 1.0
        %v5844 = vadd.f32 %v5841, 1.0
        %v5845 = vrcp.pop %v5842
        %v5846 = vmul.f32 %v5842, %v5845
        %v5847 = vsub.f32 1.0, %v5846
        %v5848 = vmul.f32 %v5845, %v5847
        %v5849 = vadd.f32 %v5845, %v5848
        %vm5850 = vweird.f32 %v5842
        %vm5851 = vweird.f32 %v5845
        %vm5852 = vmor %vm5850, %vm5851
        %v5853 = vsel %vm5852, %v5845, %v5849
        %v5854 = vand.u32 2147483647, %v5842
        %vm5855 = vcmp.eq.f32.partialorder %v5854, 8.507059e+37
        %v5856 = vand.u32 %v5842, 2147483648
        %v5857 = vor.u32 1.1754944e-38, %v5856
        %v5858 = vsel %vm5855, %v5857, %v5853
        %v5859 = vmul.f32 1.0, %v5858
        %v5860 = vrcp.pop %v5843
        %v5861 = vmul.f32 %v5843, %v5860
        %v5862 = vsub.f32 1.0, %v5861
        %v5863 = vmul.f32 %v5860, %v5862
        %v5864 = vadd.f32 %v5860, %v5863
        %vm5865 = vweird.f32 %v5843
        %vm5866 = vweird.f32 %v5860
        %vm5867 = vmor %vm5865, %vm5866
        %v5868 = vsel %vm5867, %v5860, %v5864
        %v5869 = vand.u32 2147483647, %v5843
        %vm5870 = vcmp.eq.f32.partialorder %v5869, 8.507059e+37
        %v5871 = vand.u32 %v5843, 2147483648
        %v5872 = vor.u32 1.1754944e-38, %v5871
        %v5873 = vsel %vm5870, %v5872, %v5868
        %v5874 = vmul.f32 1.0, %v5873
        %v5875 = vrcp.pop %v5844
        %v5876 = vmul.f32 %v5844, %v5875
        %v5877 = vsub.f32 1.0, %v5876
        %v5878 = vmul.f32 %v5875, %v5877
        %v5879 = vadd.f32 %v5875, %v5878
        %vm5880 = vweird.f32 %v5844
        %vm5881 = vweird.f32 %v5875
        %vm5882 = vmor %vm5880, %vm5881
        %v5883 = vsel %vm5882, %v5875, %v5879
        %v5884 = vand.u32 2147483647, %v5844
        %vm5885 = vcmp.eq.f32.partialorder %v5884, 8.507059e+37
        %v5886 = vand.u32 %v5844, 2147483648
        %v5887 = vor.u32 1.1754944e-38, %v5886
        %v5888 = vsel %vm5885, %v5887, %v5883
        %v5889 = vmul.f32 1.0, %v5888
        %v5890 = vmul.f32 %v5859, 1.0614054
        %v5891 = vmul.f32 %v5874, 1.0614054
        %v5892 = vmul.f32 %v5889, 1.0614054
        %v5893 = vsub.f32 %v5890, 1.4531521
        %v5894 = vsub.f32 %v5891, 1.4531521
        %v5895 = vsub.f32 %v5892, 1.4531521
        %v5896 = vmul.f32 %v5893, %v5859
        %v5897 = vmul.f32 %v5894, %v5874
        %v5898 = vmul.f32 %v5895, %v5889
        %v5899 = vadd.f32 %v5896, 1.4214138
        %v5900 = vadd.f32 %v5897, 1.4214138
        %v5901 = vadd.f32 %v5898, 1.4214138
        %v5902 = vmul.f32 %v5899, %v5859
        %v5903 = vmul.f32 %v5900, %v5874
        %v5904 = vmul.f32 %v5901, %v5889
        %v5905 = vsub.f32 %v5902, 0.28449672
        %v5906 = vsub.f32 %v5903, 0.28449672
        %v5907 = vsub.f32 %v5904, 0.28449672
        %v5908 = vmul.f32 %v5905, %v5859
        %v5909 = vmul.f32 %v5906, %v5874
        %v5910 = vmul.f32 %v5907, %v5889
        %v5911 = vadd.f32 %v5908, 0.2548296
        %v5912 = vadd.f32 %v5909, 0.2548296
        %v5913 = vadd.f32 %v5910, 0.2548296
        %v5914 = vmul.f32 %v5911, %v5859
        %v5915 = vmul.f32 %v5912, %v5874
        %v5916 = vmul.f32 %v5913, %v5889
        %v5917 = vsub.f32 0.0, %v5836
        %v5918 = vsub.f32 0.0, %v5837
        %v5919 = vsub.f32 0.0, %v5838
        %v5920 = vmul.f32 %v5917, %v5836
        %v5921 = vmul.f32 %v5918, %v5837
        %v5922 = vmul.f32 %v5919, %v5838
        %v5923 = vmul.f32 %v5920, 1.442695
        %v5924 = vpow.pop %v5923
        %v5925 = vmul.f32 %v5921, 1.442695
        %v5926 = vpow.pop %v5925
        %v5927 = vmul.f32 %v5922, 1.442695
        %v5928 = vpow.pop %v5927
        %v5929 = vmul.f32 %v5914, %v5924
        %v5930 = vmul.f32 %v5915, %v5926
        %v5931 = vmul.f32 %v5916, %v5928
        %v5932 = vsub.f32 1.0, %v5929
        %v5933 = vsub.f32 1.0, %v5930
        %v5934 = vsub.f32 1.0, %v5931
        %vm5935 = vcmp.lt.f32.partialorder %v5833, 0.0
        %vm5936 = vcmp.lt.f32.partialorder %v5834, 0.0
        %vm5937 = vcmp.lt.f32.partialorder %v5835, 0.0
        %v5938 = vsub.f32 0.0, %v5932
        %v5939 = vsub.f32 0.0, %v5933
        %v5940 = vsub.f32 0.0, %v5934
        %v5941 = vsel %vm5935, %v5938, %v5932
        %v5942 = vsel %vm5936, %v5939, %v5933
        %v5943 = vsel %vm5937, %v5940, %v5934
        %v5944 = vmul.f32 %v5825, 0.5
        %v5945 = vmul.f32 %v5828, 0.5
        %v5946 = vmul.f32 %v5831, 0.5
        %v5947 = vadd.f32 %v5941, 1.0
        %v5948 = vadd.f32 %v5942, 1.0
        %v5949 = vadd.f32 %v5943, 1.0
        %v5950 = vmul.f32 %v5944, %v5947
        %v5951 = vmul.f32 %v5945, %v5948
        %v5952 = vmul.f32 %v5946, %v5949
        %s5953 = scalar_lea.vmem %s13, 192
        %v5954 = vld [vmem:[%s5953] sm:$0xff]
        %v5955 = vld [vmem:[%s5953 + $0x8] sm:$0xff]
        %v5956 = vld [vmem:[%s5953 + $0x10] sm:$0xff]
        %v5957 = vld [vmem:[%s5953 + $0x18] sm:$0xff]
        %v5958 = vld [vmem:[%s5953 + $0x20] sm:$0xff]
        %v5959 = vld [vmem:[%s5953 + $0x28] sm:$0xff]
        %v5960 = vld [vmem:[%s5953 + $0x30] sm:$0xff]
        %v5961 = vld [vmem:[%s5953 + $0x38] sm:$0xff]
        %s5962 = scalar_lea.vmem [#allocation18], 3
        %v5963 = vld [vmem:[%s5962] sm:$0x1]
        %v5965 = vperm.slane %v5963, 0
        %v5968 = vsel %vm1988, %v5950, 0
        %v5971 = vsel %vm1988, %v5951, 0
        %v5974 = vsel %vm1988, %v5952, 0
        %5976 = vmatpush.msra.mxu0 0.0
        %5977 = vmatpush.msra.mxu0 0.0
        %5978 = vmatpush.msra.mxu0 0.0
        %5979 = vmatpush.msra.mxu0 0.0
        %5980 = vmatpush.msra.mxu0 0.0
        %5981 = vmatpush.msra.mxu0 0.0
        %5982 = vmatpush.msra.mxu0 0.0
        %5983 = vmatpush.msra.mxu0 0.0
        %5984 = vmatpush.msra.mxu0 %v5961
        %5985 = vmatpush.msra.mxu0 %v5960
        %5986 = vmatpush.msra.mxu0 %v5959
        %5987 = vmatpush.msra.mxu0 %v5958
        %5988 = vmatpush.msra.mxu0 %v5957
        %5989 = vmatpush.msra.mxu0 %v5956
        %5990 = vmatpush.msra.mxu0 %v5955
        %5991 = vmatpush.msra.mxu0 %v5954
        %5992 = vmatmul.f32.gmra.mxu0 %v5968
        %v5993 = vpop.f32.mrf.mxu0
        %v5994 = vadd.f32 %v5965, %v5993
        %5995 = vmatmul.f32.gmra.mxu0 %v5971
        %v5996 = vpop.f32.mrf.mxu0
        %v5997 = vadd.f32 %v5965, %v5996
        %5998 = vmatmul.f32.gmra.mxu0 %v5974
        %v5999 = vpop.f32.mrf.mxu0
        %6000 = vdwg.mxu0
        %v6001 = vadd.f32 %v5703, %v5994
        %v6002 = vadd.f32 %v5704, %v5997
        %6003 = vst.msk [vmem:[%s642] sm:$0x1] %vm682, %v6001
        %vm6004 = vcmask 254977
        %6005 = vst.msk [vmem:[%s642] sm:$0x2] %vm6004, %v6002
        %s6006 = sand.u32 %s364, 1
        %s6007 = scalar_lea.sflag [#allocation6], %s6006
        %s6008 = sand.u32 %s364, 1
        %s6009 = smul.addr %s6008, 2
        %s6010 = scalar_lea.vmem [#allocation19], %s6009
        // Predicated region
        $region117: #{tpu_custom_call.1} parent=79 // pred_check
          %p6011 = pneg %p374
        $region118: #{tpu_custom_call.1} parent=79 // pred_check_branch
          %6013 = sbr.rel (%p6011) target = $region120
        $region119: #{tpu_custom_call.1} parent=79 // pred_region
          %6015 = vsyncadd %s6007, 0
          %s6016 = smul.addr %s36, 2
          %s6017 = scalar_lea.hbm %s15, %s6016
          %s6019 = sshll.u32 %s6010, 4
          %s6020 = int_to_ptr.vmem [resolvable:$true] %s6019
          %s6021 = sshll.u32 %s6017, 4
          %s6022 = int_to_ptr.hbm [resolvable:$true] %s6021
          %6024 = dma.vmem_to_hbm [thread:$0]  %s6020, 32, %s6022, %s6007
        $region120: #{tpu_custom_call.1} parent=79 // pred_fallthru
          _
      $region80: #{tpu_custom_call.1} parent=5 // pred_fallthru
        _
      %p6025 = scmp.le.s32.totalorder 2, %s31
      // Predicated region
      $region121: #{tpu_custom_call.1} parent=5 // pred_check
        %p6026 = pneg %p6025
      $region122: #{tpu_custom_call.1} parent=5 // pred_check_branch
        %6028 = sbr.rel (%p6026) target = $region124
      $region123: #{tpu_custom_call.1} parent=5 // pred_region
        %s6029 = ssub.s32 %s31, 2
        // Predicated region
        $region125: #{tpu_custom_call.1} parent=123 // pred_check
          %p6030 = pneg %p380
        $region126: #{tpu_custom_call.1} parent=123 // pred_check_branch
          %6032 = sbr.rel (%p6030) target = $region128
        $region127: #{tpu_custom_call.1} parent=123 // pred_region
          %s6033 = sand.u32 %s365, 1
          %s6034 = scalar_lea.sflag [#allocation6], %s6033
          %s6035 = sand.u32 %s365, 1
          %s6036 = smul.addr %s6035, 2
          %s6037 = scalar_lea.vmem [#allocation19], %s6036
          %6039 = dma.done %s6034, 32
        $region128: #{tpu_custom_call.1} parent=123 // pred_fallthru
          _
      $region124: #{tpu_custom_call.1} parent=5 // pred_fallthru
        _
    $region6: #{tpu_custom_call.1} parent=1 // loop_footer
      %s35 = sadd.s32 1, %s31
    $region7: #{tpu_custom_call.1} parent=1 // loop_footer_branch
      %30 = sbr.rel target = $region3
    $region8: #{tpu_custom_call.1} parent=1 // loop_exit
      _
    %6040 = vsyncpa [#allocation5], 1
    %s6041 = scalar_lea.sflag [#allocation5], 1
    %6042 = vsyncpa %s6041, 1
    %6043 = vsyncpa [#allocation8], 1
    %6044 = vsyncpa [#allocation11], 1
    %6045 = vsyncpa [#allocation14], 1
    %6046 = vsyncpa [#allocation17], 1
    %6047 = vsyncpa [#allocation6], 1
    %s6048 = scalar_lea.sflag [#allocation6], 1
    %6049 = vsyncpa %s6048, 1

</llo_original>
